<compile_context>
chip_gen: v7x
topology: tpu7x:2x2x1
jax: 0.10.0
libtpu: 0.0.40
codegen_flags: <defaults>
</compile_context>

<pallas_src>
import jax
import jax.numpy as jnp
from jax.experimental import pallas as pl
from jax.experimental.pallas import tpu as pltpu

_VMEM_LIMIT = 32 * 1024 * 1024


# -------------- fused conv (matmul) + bias + ReLU + 2x2 max-pool ----------- #

def _conv_relu_pool_kernel(p_ref, w_ref, b_ref, o_ref):
    """p_ref: (KKC, 4*tq) bf16 patch columns (4 pool quadrants of the same tq
    pooled-output pixels); w_ref: (Cout, KKC) bf16; b_ref: (Cout, 1) f32;
    o_ref: (Cout, tq) f32 pooled activations."""
    tq = o_ref.shape[1]
    z = jnp.dot(w_ref[...], p_ref[...],
                preferred_element_type=jnp.float32)          # (Cout, 4*tq)
    m = jnp.maximum(jnp.maximum(z[:, 0 * tq:1 * tq], z[:, 1 * tq:2 * tq]),
                    jnp.maximum(z[:, 2 * tq:3 * tq], z[:, 3 * tq:4 * tq]))
    # relu(max_q(z) + b) == max_q(relu(z + b)) since +b / relu are monotone.
    o_ref[...] = jnp.maximum(m + b_ref[...], 0.0)


def _pool_quadrant_patches_t(x, kh, kw, dtype=jnp.bfloat16):
    """x: (N, H, W, C) NHWC -> (4, KH*KW*C, Q), Q = N*(Ho//2)*(Wo//2).

    Quadrant (dy, dx), column (n, y', x') holds the im2col patch of conv
    output pixel (2*y'+dy, 2*x'+dx); K (row) ordering is (i, j, c), matching
    the (Cout, KH*KW*C) weight matrix.  Pure XLA-side data movement in bf16.
    """
    n, h, w, c = x.shape
    ho, wo = h - kh + 1, w - kw + 1
    hp, wp = ho // 2, wo // 2
    x = x.astype(dtype)
    quads = []
    for dy in range(2):
        for dx in range(2):
            taps = []
            for i in range(kh):
                for j in range(kw):
                    taps.append(
                        x[:, dy + i:dy + i + 2 * hp:2,
                          dx + j:dx + j + 2 * wp:2, :])
            p = jnp.stack(taps, axis=0)            # (KH*KW, N, Hp, Wp, C)
            p = p.transpose(0, 4, 1, 2, 3)         # (KH*KW, C, N, Hp, Wp)
            quads.append(p.reshape(kh * kw * c, n * hp * wp))
    return jnp.stack(quads, axis=0), (n, hp, wp)   # (4, KKC, Q)


def _pick_tile(q, kkc, max_block_bytes=4 * 1024 * 1024, itemsize=2):
    """Lane tile (multiple of 128) of pooled-output pixels per grid step.

    Sized from a byte budget so the (KKC, 4*tq) bf16 block, double-buffered,
    stays far below even v7x's 64 MiB VMEM at any batch size, and capped at
    ceil(Q/2) so there are >= 2 'parallel' grid steps (both v7x TensorCores
    get work).  Q is padded up to a multiple of tq by the caller, so any tq
    returned here is legal.
    """
    if q <= 128:
        return 128
    cap = max(128, (max_block_bytes // (4 * kkc * itemsize)) // 128 * 128)
    half = max(128, (((q + 1) // 2) + 127) // 128 * 128)
    cap = min(cap, half)
    if q % 128 == 0:                       # prefer a tile that divides Q
        for tq in range(cap, 127, -128):
            if q % tq == 0:
                return tq
    return cap                             # caller pads Q up to ntiles * tq


def _rearrange_quadrant_cols(quads, q, tq):
    """(4, KKC, Q) -> (KKC, ntiles*4*tq): columns ordered (tile, quadrant, m)
    so one lane block holds all 4 quadrants of the same tq output pixels."""
    kkc = quads.shape[1]
    ntiles = pl.cdiv(q, tq)
    q_pad = ntiles * tq
    if q_pad != q:
        quads = jnp.pad(quads, ((0, 0), (0, 0), (0, q_pad - q)))
    p = quads.reshape(4, kkc, ntiles, tq).transpose(1, 2, 0, 3)
    return p.reshape(kkc, ntiles * 4 * tq), ntiles, q_pad


def conv_relu_pool(x_nhwc, w_mat, bias_col, kh, kw, cout):
    """'valid' conv (stride 1) + bias + ReLU + 2x2/2 max-pool in one call.

    x_nhwc: (N, H, W, Cin); w_mat: (Cout, KH*KW*Cin) bf16; bias_col: (Cout, 1).
    Returns (Cout, N, Ho//2, Wo//2) float32.
    """
    quads, (n, hp, wp) = _pool_quadrant_patches_t(x_nhwc, kh, kw)
    _, kkc, q = quads.shape
    tq = _pick_tile(q, kkc)
    patches, ntiles, q_pad = _rearrange_quadrant_cols(quads, q, tq)
    out = pl.pallas_call(
        _conv_relu_pool_kernel,
        out_shape=jax.ShapeDtypeStruct((cout, q_pad), jnp.float32),
        grid_spec=pltpu.PrefetchScalarGridSpec(
            num_scalar_prefetch=0,
            grid=(ntiles,),
            in_specs=[
                pl.BlockSpec((kkc, 4 * tq), lambda i: (0, i)),
                pl.BlockSpec((cout, kkc), lambda i: (0, 0)),
                pl.BlockSpec((cout, 1), lambda i: (0, 0)),
            ],
            out_specs=pl.BlockSpec((cout, tq), lambda i: (0, i)),
        ),
        compiler_params=pltpu.CompilerParams(
            dimension_semantics=("parallel",),
            vmem_limit_bytes=_VMEM_LIMIT),
    )(patches, w_mat, bias_col)
    return out[:, :q].reshape(cout, n, hp, wp)


# ---------------------- fused fc1 + fc2 + fc3 head ------------------------- #

def _mlp_kernel(x_ref, w1_ref, b1_ref, w2_ref, b2_ref, w3_ref, b3_ref, o_ref):
    h = jnp.dot(x_ref[...], w1_ref[...], preferred_element_type=jnp.float32)
    h = jnp.maximum(h + b1_ref[...], 0.0).astype(jnp.bfloat16)
    h = jnp.dot(h, w2_ref[...], preferred_element_type=jnp.float32)
    h = jnp.maximum(h + b2_ref[...], 0.0).astype(jnp.bfloat16)
    o_ref[...] = (jnp.dot(h, w3_ref[...], preferred_element_type=jnp.float32)
                  + b3_ref[...])


def mlp_head(x, w1, b1, w2, b2, w3, b3):
    m, n_out = x.shape[0], w3.shape[1]
    args = (x, w1, b1, w2, b2, w3, b3)

    def full(a):
        return pl.BlockSpec(a.shape, lambda i: (0,) * a.ndim)

    return pl.pallas_call(
        _mlp_kernel,
        out_shape=jax.ShapeDtypeStruct((m, n_out), jnp.float32),
        grid_spec=pltpu.PrefetchScalarGridSpec(
            num_scalar_prefetch=0,
            grid=(1,),
            in_specs=[full(a) for a in args],
            out_specs=pl.BlockSpec((m, n_out), lambda i: (0, 0)),
        ),
        compiler_params=pltpu.CompilerParams(
            dimension_semantics=("arbitrary",),
            vmem_limit_bytes=_VMEM_LIMIT),
    )(*args)


# ------------------------------ parameters --------------------------------- #

def init_params(key):
    ks = jax.random.split(key, 10)

    def w(k, shape, fan_in):
        return jax.random.normal(k, shape, jnp.float32) / jnp.sqrt(fan_in)

    return {
        "conv1_w": w(ks[0], (6, 3, 5, 5), 3 * 25),
        "conv1_b": w(ks[1], (6,), 3 * 25),
        "conv2_w": w(ks[2], (16, 6, 5, 5), 6 * 25),
        "conv2_b": w(ks[3], (16,), 6 * 25),
        "fc1_w": w(ks[4], (120, 7744), 7744),
        "fc1_b": w(ks[5], (120,), 7744),
        "fc2_w": w(ks[6], (84, 120), 120),
        "fc2_b": w(ks[7], (84,), 120),
        "fc3_w": w(ks[8], (10, 84), 84),
        "fc3_b": w(ks[9], (10,), 84),
    }


def prepare_params(params):
    """One-time weight re-layout (outside the jit hot path):
      * conv weights (Cout, Cin, KH, KW) -> (Cout, KH*KW*Cin) bf16 matrices
        with K ordered (i, j, c) to match the patch rows;
      * fc weights pre-transposed to (in, out) bf16 -- no .T per forward;
        conv output is (Cout, N, Hp, Wp) so the flatten order already matches
        PyTorch's (C, H, W) and fc1 needs no row permutation;
      * biases kept f32 (epilogues stay f32), conv biases as (Cout, 1) columns.
    """
    def conv_mat(w_oihw):
        cout, cin, kh, kw = w_oihw.shape
        return (jnp.transpose(w_oihw, (0, 2, 3, 1))
                .reshape(cout, kh * kw * cin).astype(jnp.bfloat16))

    return {
        "conv1_w": conv_mat(params["conv1_w"]),
        "conv1_b": params["conv1_b"].reshape(-1, 1).astype(jnp.float32),
        "conv2_w": conv_mat(params["conv2_w"]),
        "conv2_b": params["conv2_b"].reshape(-1, 1).astype(jnp.float32),
        "fc1_w": params["fc1_w"].T.astype(jnp.bfloat16),
        "fc1_b": params["fc1_b"].reshape(1, -1).astype(jnp.float32),
        "fc2_w": params["fc2_w"].T.astype(jnp.bfloat16),
        "fc2_b": params["fc2_b"].reshape(1, -1).astype(jnp.float32),
        "fc3_w": params["fc3_w"].T.astype(jnp.bfloat16),
        "fc3_b": params["fc3_b"].reshape(1, -1).astype(jnp.float32),
    }


# ------------------------------ Net forward -------------------------------- #

def net_forward(p, x_nchw):
    x = jnp.transpose(x_nchw, (0, 2, 3, 1))                        # NCHW -> NHWC (tiny)
    y1 = conv_relu_pool(x, p["conv1_w"], p["conv1_b"], 5, 5, 6)    # (6, N, 48, 48)
    x2 = jnp.transpose(y1, (1, 2, 3, 0))                           # NHWC for next patches
    y2 = conv_relu_pool(x2, p["conv2_w"], p["conv2_b"], 5, 5, 16)  # (16, N, 22, 22)
    flat = jnp.transpose(y2, (1, 0, 2, 3)).reshape(y2.shape[1], -1)  # (N, 7744), (C,H,W) order
    flat = flat.astype(jnp.bfloat16)
    return mlp_head(flat, p["fc1_w"], p["fc1_b"], p["fc2_w"], p["fc2_b"],
                    p["fc3_w"], p["fc3_b"])                        # (N, 10)


if __name__ == "__main__":
    key = jax.random.PRNGKey(0)
    pkey, xkey = jax.random.split(key)
    params = prepare_params(init_params(pkey))
    # 100x100 spatial input is implied by fc1.in_features = 7744 = 16*22*22.
    x = jax.random.normal(xkey, (2, 3, 100, 100), jnp.float32)
    out = jax.block_until_ready(jax.jit(net_forward)(params, x))
    assert out.shape == (2, 10)
    print("KERNEL_OK")
</pallas_src>

<mosaic_0001>
module attributes {stable_mosaic.version = 11 : i64} {
  func.func @_conv_relu_pool_kernel(%arg0: i32, %arg1: memref<75x9216xbf16, #tpu.memory_space<vmem>>, %arg2: memref<6x75xbf16, #tpu.memory_space<vmem>>, %arg3: memref<6x1xf32, #tpu.memory_space<vmem>>, %arg4: memref<6x2304xf32, #tpu.memory_space<vmem>>) attributes {dimension_semantics = [#tpu.dimension_semantics<parallel>], iteration_bounds = array<i64: 2>, scalar_prefetch = 0 : i64, scratch_operands = 0 : i64, tpu.core_type = #tpu.core_type<tc>, window_params = [{transform_indices = @transform_0, window_bounds = array<i64: 75, 9216>}, {pipeline_mode = #tpu.pipeline_mode<synchronous>, transform_indices = @transform_1, window_bounds = array<i64: 6, 75>}, {pipeline_mode = #tpu.pipeline_mode<synchronous>, transform_indices = @transform_2, window_bounds = array<i64: 6, 1>}, {transform_indices = @transform_3, window_bounds = array<i64: 6, 2304>}]} {
    %c0 = arith.constant 0 : index
    %c0_0 = arith.constant 0 : index
    %0 = vector.load %arg2[%c0, %c0_0] : memref<6x75xbf16, #tpu.memory_space<vmem>>, vector<6x75xbf16>
    %c0_1 = arith.constant 0 : index
    %c0_2 = arith.constant 0 : index
    %1 = vector.load %arg1[%c0_1, %c0_2] : memref<75x9216xbf16, #tpu.memory_space<vmem>>, vector<75x9216xbf16>
    %cst = arith.constant dense<0.000000e+00> : vector<6x9216xf32>
    %2 = tpu.matmul %0, %1, %cst {dimension_numbers = #tpu.dot_dimension_numbers<[1], [0], [0], [1], [0, 0, 1, 1], [], []>} : vector<6x75xbf16>, vector<75x9216xbf16>, vector<6x9216xf32> -> vector<6x9216xf32>
    %3 = vector.extract_strided_slice %2 {offsets = [0, 0], sizes = [6, 2304], strides = [1, 1]} : vector<6x9216xf32> to vector<6x2304xf32>
    %4 = vector.extract_strided_slice %2 {offsets = [0, 2304], sizes = [6, 2304], strides = [1, 1]} : vector<6x9216xf32> to vector<6x2304xf32>
    %5 = arith.maximumf %3, %4 : vector<6x2304xf32>
    %6 = vector.extract_strided_slice %2 {offsets = [0, 4608], sizes = [6, 2304], strides = [1, 1]} : vector<6x9216xf32> to vector<6x2304xf32>
    %7 = vector.extract_strided_slice %2 {offsets = [0, 6912], sizes = [6, 2304], strides = [1, 1]} : vector<6x9216xf32> to vector<6x2304xf32>
    %8 = arith.maximumf %6, %7 : vector<6x2304xf32>
    %9 = arith.maximumf %5, %8 : vector<6x2304xf32>
    %c0_3 = arith.constant 0 : index
    %c0_4 = arith.constant 0 : index
    %10 = vector.load %arg3[%c0_3, %c0_4] : memref<6x1xf32, #tpu.memory_space<vmem>>, vector<6x1xf32>
    %11 = vector.broadcast %10 : vector<6x1xf32> to vector<6x2304xf32>
    %12 = arith.addf %9, %11 : vector<6x2304xf32>
    %cst_5 = arith.constant 0.000000e+00 : f32
    %13 = vector.broadcast %cst_5 : f32 to vector<6x2304xf32>
    %14 = arith.maximumf %12, %13 : vector<6x2304xf32>
    %c0_6 = arith.constant 0 : index
    %c0_7 = arith.constant 0 : index
    %15 = vector.load %arg4[%c0_6, %c0_7] : memref<6x2304xf32, #tpu.memory_space<vmem>>, vector<6x2304xf32>
    tpu.vector_store %arg4[%c0_6, %c0_7], %14 {strides = array<i32>} : memref<6x2304xf32, #tpu.memory_space<vmem>>, vector<6x2304xf32>,
    return
  }
  func.func @transform_0(%arg0: i32) -> (i32, i32) {
    %c0_i32 = arith.constant 0 : i32
    %c0_i32_0 = arith.constant 0 : i32
    return %c0_i32, %arg0 : i32, i32
  }
  func.func @transform_1(%arg0: i32) -> (i32, i32) {
    %c0_i32 = arith.constant 0 : i32
    %c0_i32_0 = arith.constant 0 : i32
    %c0_i32_1 = arith.constant 0 : i32
    return %c0_i32, %c0_i32_0 : i32, i32
  }
  func.func @transform_2(%arg0: i32) -> (i32, i32) {
    %c0_i32 = arith.constant 0 : i32
    %c0_i32_0 = arith.constant 0 : i32
    %c0_i32_1 = arith.constant 0 : i32
    return %c0_i32, %c0_i32_0 : i32, i32
  }
  func.func @transform_3(%arg0: i32) -> (i32, i32) {
    %c0_i32 = arith.constant 0 : i32
    %c0_i32_0 = arith.constant 0 : i32
    return %c0_i32, %arg0 : i32, i32
  }
}

module attributes {stable_mosaic.version = 11 : i64} {
  func.func @_conv_relu_pool_kernel(%arg0: i32, %arg1: memref<150x2048xbf16, #tpu.memory_space<vmem>>, %arg2: memref<16x150xbf16, #tpu.memory_space<vmem>>, %arg3: memref<16x1xf32, #tpu.memory_space<vmem>>, %arg4: memref<16x512xf32, #tpu.memory_space<vmem>>) attributes {dimension_semantics = [#tpu.dimension_semantics<parallel>], iteration_bounds = array<i64: 2>, scalar_prefetch = 0 : i64, scratch_operands = 0 : i64, tpu.core_type = #tpu.core_type<tc>, window_params = [{transform_indices = @transform_0, window_bounds = array<i64: 150, 2048>}, {pipeline_mode = #tpu.pipeline_mode<synchronous>, transform_indices = @transform_1, window_bounds = array<i64: 16, 150>}, {pipeline_mode = #tpu.pipeline_mode<synchronous>, transform_indices = @transform_2, window_bounds = array<i64: 16, 1>}, {transform_indices = @transform_3, window_bounds = array<i64: 16, 512>}]} {
    %c0 = arith.constant 0 : index
    %c0_0 = arith.constant 0 : index
    %0 = vector.load %arg2[%c0, %c0_0] : memref<16x150xbf16, #tpu.memory_space<vmem>>, vector<16x150xbf16>
    %c0_1 = arith.constant 0 : index
    %c0_2 = arith.constant 0 : index
    %1 = vector.load %arg1[%c0_1, %c0_2] : memref<150x2048xbf16, #tpu.memory_space<vmem>>, vector<150x2048xbf16>
    %cst = arith.constant dense<0.000000e+00> : vector<16x2048xf32>
    %2 = tpu.matmul %0, %1, %cst {dimension_numbers = #tpu.dot_dimension_numbers<[1], [0], [0], [1], [0, 0, 1, 1], [], []>} : vector<16x150xbf16>, vector<150x2048xbf16>, vector<16x2048xf32> -> vector<16x2048xf32>
    %3 = vector.extract_strided_slice %2 {offsets = [0, 0], sizes = [16, 512], strides = [1, 1]} : vector<16x2048xf32> to vector<16x512xf32>
    %4 = vector.extract_strided_slice %2 {offsets = [0, 512], sizes = [16, 512], strides = [1, 1]} : vector<16x2048xf32> to vector<16x512xf32>
    %5 = arith.maximumf %3, %4 : vector<16x512xf32>
    %6 = vector.extract_strided_slice %2 {offsets = [0, 1024], sizes = [16, 512], strides = [1, 1]} : vector<16x2048xf32> to vector<16x512xf32>
    %7 = vector.extract_strided_slice %2 {offsets = [0, 1536], sizes = [16, 512], strides = [1, 1]} : vector<16x2048xf32> to vector<16x512xf32>
    %8 = arith.maximumf %6, %7 : vector<16x512xf32>
    %9 = arith.maximumf %5, %8 : vector<16x512xf32>
    %c0_3 = arith.constant 0 : index
    %c0_4 = arith.constant 0 : index
    %10 = vector.load %arg3[%c0_3, %c0_4] : memref<16x1xf32, #tpu.memory_space<vmem>>, vector<16x1xf32>
    %11 = vector.broadcast %10 : vector<16x1xf32> to vector<16x512xf32>
    %12 = arith.addf %9, %11 : vector<16x512xf32>
    %cst_5 = arith.constant 0.000000e+00 : f32
    %13 = vector.broadcast %cst_5 : f32 to vector<16x512xf32>
    %14 = arith.maximumf %12, %13 : vector<16x512xf32>
    %c0_6 = arith.constant 0 : index
    %c0_7 = arith.constant 0 : index
    %15 = vector.load %arg4[%c0_6, %c0_7] : memref<16x512xf32, #tpu.memory_space<vmem>>, vector<16x512xf32>
    tpu.vector_store %arg4[%c0_6, %c0_7], %14 {strides = array<i32>} : memref<16x512xf32, #tpu.memory_space<vmem>>, vector<16x512xf32>,
    return
  }
  func.func @transform_0(%arg0: i32) -> (i32, i32) {
    %c0_i32 = arith.constant 0 : i32
    %c0_i32_0 = arith.constant 0 : i32
    return %c0_i32, %arg0 : i32, i32
  }
  func.func @transform_1(%arg0: i32) -> (i32, i32) {
    %c0_i32 = arith.constant 0 : i32
    %c0_i32_0 = arith.constant 0 : i32
    %c0_i32_1 = arith.constant 0 : i32
    return %c0_i32, %c0_i32_0 : i32, i32
  }
  func.func @transform_2(%arg0: i32) -> (i32, i32) {
    %c0_i32 = arith.constant 0 : i32
    %c0_i32_0 = arith.constant 0 : i32
    %c0_i32_1 = arith.constant 0 : i32
    return %c0_i32, %c0_i32_0 : i32, i32
  }
  func.func @transform_3(%arg0: i32) -> (i32, i32) {
    %c0_i32 = arith.constant 0 : i32
    %c0_i32_0 = arith.constant 0 : i32
    return %c0_i32, %arg0 : i32, i32
  }
}

module attributes {stable_mosaic.version = 11 : i64} {
  func.func @_mlp_kernel(%arg0: i32, %arg1: memref<2x7744xbf16, #tpu.memory_space<vmem>>, %arg2: memref<7744x120xbf16, #tpu.memory_space<vmem>>, %arg3: memref<1x120xf32, #tpu.memory_space<vmem>>, %arg4: memref<120x84xbf16, #tpu.memory_space<vmem>>, %arg5: memref<1x84xf32, #tpu.memory_space<vmem>>, %arg6: memref<84x10xbf16, #tpu.memory_space<vmem>>, %arg7: memref<1x10xf32, #tpu.memory_space<vmem>>, %arg8: memref<2x10xf32, #tpu.memory_space<vmem>>) attributes {dimension_semantics = [#tpu.dimension_semantics<arbitrary>], iteration_bounds = array<i64: 1>, scalar_prefetch = 0 : i64, scratch_operands = 0 : i64, tpu.core_type = #tpu.core_type<tc>, window_params = [{pipeline_mode = #tpu.pipeline_mode<synchronous>, transform_indices = @transform_0, window_bounds = array<i64: 2, 7744>}, {pipeline_mode = #tpu.pipeline_mode<synchronous>, transform_indices = @transform_1, window_bounds = array<i64: 7744, 120>}, {pipeline_mode = #tpu.pipeline_mode<synchronous>, transform_indices = @transform_2, window_bounds = array<i64: 1, 120>}, {pipeline_mode = #tpu.pipeline_mode<synchronous>, transform_indices = @transform_3, window_bounds = array<i64: 120, 84>}, {pipeline_mode = #tpu.pipeline_mode<synchronous>, transform_indices = @transform_4, window_bounds = array<i64: 1, 84>}, {pipeline_mode = #tpu.pipeline_mode<synchronous>, transform_indices = @transform_5, window_bounds = array<i64: 84, 10>}, {pipeline_mode = #tpu.pipeline_mode<synchronous>, transform_indices = @transform_6, window_bounds = array<i64: 1, 10>}, {pipeline_mode = #tpu.pipeline_mode<synchronous>, transform_indices = @transform_7, window_bounds = array<i64: 2, 10>}]} {
    %c0 = arith.constant 0 : index
    %c0_0 = arith.constant 0 : index
    %0 = vector.load %arg1[%c0, %c0_0] : memref<2x7744xbf16, #tpu.memory_space<vmem>>, vector<2x7744xbf16>
    %c0_1 = arith.constant 0 : index
    %c0_2 = arith.constant 0 : index
    %1 = vector.load %arg2[%c0_1, %c0_2] : memref<7744x120xbf16, #tpu.memory_space<vmem>>, vector<7744x120xbf16>
    %cst = arith.constant dense<0.000000e+00> : vector<2x120xf32>
    %2 = tpu.matmul %0, %1, %cst {dimension_numbers = #tpu.dot_dimension_numbers<[1], [0], [0], [1], [0, 0, 1, 1], [], []>} : vector<2x7744xbf16>, vector<7744x120xbf16>, vector<2x120xf32> -> vector<2x120xf32>
    %c0_3 = arith.constant 0 : index
    %c0_4 = arith.constant 0 : index
    %3 = vector.load %arg3[%c0_3, %c0_4] : memref<1x120xf32, #tpu.memory_space<vmem>>, vector<1x120xf32>
    %4 = vector.broadcast %3 : vector<1x120xf32> to vector<2x120xf32>
    %5 = arith.addf %2, %4 : vector<2x120xf32>
    %cst_5 = arith.constant 0.000000e+00 : f32
    %6 = vector.broadcast %cst_5 : f32 to vector<2x120xf32>
    %7 = arith.maximumf %5, %6 : vector<2x120xf32>
    %8 = arith.truncf %7 : vector<2x120xf32> to vector<2x120xbf16>
    %c0_6 = arith.constant 0 : index
    %c0_7 = arith.constant 0 : index
    %9 = vector.load %arg4[%c0_6, %c0_7] : memref<120x84xbf16, #tpu.memory_space<vmem>>, vector<120x84xbf16>
    %cst_8 = arith.constant dense<0.000000e+00> : vector<2x84xf32>
    %10 = tpu.matmul %8, %9, %cst_8 {dimension_numbers = #tpu.dot_dimension_numbers<[1], [0], [0], [1], [0, 0, 1, 1], [], []>} : vector<2x120xbf16>, vector<120x84xbf16>, vector<2x84xf32> -> vector<2x84xf32>
    %c0_9 = arith.constant 0 : index
    %c0_10 = arith.constant 0 : index
    %11 = vector.load %arg5[%c0_9, %c0_10] : memref<1x84xf32, #tpu.memory_space<vmem>>, vector<1x84xf32>
    %12 = vector.broadcast %11 : vector<1x84xf32> to vector<2x84xf32>
    %13 = arith.addf %10, %12 : vector<2x84xf32>
    %cst_11 = arith.constant 0.000000e+00 : f32
    %14 = vector.broadcast %cst_11 : f32 to vector<2x84xf32>
    %15 = arith.maximumf %13, %14 : vector<2x84xf32>
    %16 = arith.truncf %15 : vector<2x84xf32> to vector<2x84xbf16>
    %c0_12 = arith.constant 0 : index
    %c0_13 = arith.constant 0 : index
    %17 = vector.load %arg6[%c0_12, %c0_13] : memref<84x10xbf16, #tpu.memory_space<vmem>>, vector<84x10xbf16>
    %cst_14 = arith.constant dense<0.000000e+00> : vector<2x10xf32>
    %18 = tpu.matmul %16, %17, %cst_14 {dimension_numbers = #tpu.dot_dimension_numbers<[1], [0], [0], [1], [0, 0, 1, 1], [], []>} : vector<2x84xbf16>, vector<84x10xbf16>, vector<2x10xf32> -> vector<2x10xf32>
    %c0_15 = arith.constant 0 : index
    %c0_16 = arith.constant 0 : index
    %19 = vector.load %arg7[%c0_15, %c0_16] : memref<1x10xf32, #tpu.memory_space<vmem>>, vector<1x10xf32>
    %20 = vector.broadcast %19 : vector<1x10xf32> to vector<2x10xf32>
    %21 = arith.addf %18, %20 : vector<2x10xf32>
    %c0_17 = arith.constant 0 : index
    %c0_18 = arith.constant 0 : index
    %22 = vector.load %arg8[%c0_17, %c0_18] : memref<2x10xf32, #tpu.memory_space<vmem>>, vector<2x10xf32>
    tpu.vector_store %arg8[%c0_17, %c0_18], %21 {strides = array<i32>} : memref<2x10xf32, #tpu.memory_space<vmem>>, vector<2x10xf32>,
    return
  }
  func.func @transform_0(%arg0: i32) -> (i32, i32) {
    %c0_i32 = arith.constant 0 : i32
    %c0_i32_0 = arith.constant 0 : i32
    %c0_i32_1 = arith.constant 0 : i32
    return %c0_i32, %c0_i32_0 : i32, i32
  }
  func.func @transform_1(%arg0: i32) -> (i32, i32) {
    %c0_i32 = arith.constant 0 : i32
    %c0_i32_0 = arith.constant 0 : i32
    %c0_i32_1 = arith.constant 0 : i32
    return %c0_i32, %c0_i32_0 : i32, i32
  }
  func.func @transform_2(%arg0: i32) -> (i32, i32) {
    %c0_i32 = arith.constant 0 : i32
    %c0_i32_0 = arith.constant 0 : i32
    %c0_i32_1 = arith.constant 0 : i32
    return %c0_i32, %c0_i32_0 : i32, i32
  }
  func.func @transform_3(%arg0: i32) -> (i32, i32) {
    %c0_i32 = arith.constant 0 : i32
    %c0_i32_0 = arith.constant 0 : i32
    %c0_i32_1 = arith.constant 0 : i32
    return %c0_i32, %c0_i32_0 : i32, i32
  }
  func.func @transform_4(%arg0: i32) -> (i32, i32) {
    %c0_i32 = arith.constant 0 : i32
    %c0_i32_0 = arith.constant 0 : i32
    %c0_i32_1 = arith.constant 0 : i32
    return %c0_i32, %c0_i32_0 : i32, i32
  }
  func.func @transform_5(%arg0: i32) -> (i32, i32) {
    %c0_i32 = arith.constant 0 : i32
    %c0_i32_0 = arith.constant 0 : i32
    %c0_i32_1 = arith.constant 0 : i32
    return %c0_i32, %c0_i32_0 : i32, i32
  }
  func.func @transform_6(%arg0: i32) -> (i32, i32) {
    %c0_i32 = arith.constant 0 : i32
    %c0_i32_0 = arith.constant 0 : i32
    %c0_i32_1 = arith.constant 0 : i32
    return %c0_i32, %c0_i32_0 : i32, i32
  }
  func.func @transform_7(%arg0: i32) -> (i32, i32) {
    %c0_i32 = arith.constant 0 : i32
    %c0_i32_0 = arith.constant 0 : i32
    %c0_i32_1 = arith.constant 0 : i32
    return %c0_i32, %c0_i32_0 : i32, i32
  }
}

</mosaic_0001>

<llo_original>
// kernel: net_forward.3
$region0: #{net_forward.3}
  #allocation0 [shape = 'u32[]', space=smem, size = 0x4, offset = 0x4, fixed_abs, tag = 'smem constant byte address 0x4 - core index']
  #allocation1 [shape = 'u32[144,128]{1,0:T(1,128)}', space=vmem, size = 0x12000, scoped, tag = 'internal scratch']
  %s0 = inlined_call_operand.vmem [shape: bf16[75,18432], index: 0, kind: input, shape index: {}]
  %s1 = inlined_call_operand.vmem [shape: bf16[6,75], index: 1, kind: input, shape index: {}]
  %s2 = inlined_call_operand.vmem [shape: f32[6,1], index: 2, kind: input, shape index: {}]
  %s3 = inlined_call_operand.vmem [shape: f32[6,4608], index: 3, kind: output, shape index: {}]
  %s4 = sld [smem:[#allocation0]]
  $region68: #{net_forward.3} parent=0
    _
  %s6 = ssub.s32 1, %s4
  %s7 = scalar_select 0, %s6, %s4
  $region1: #{net_forward.3} parent=0
    #allocation2 [shape = 'u8[2949120]{0}', space=vmem, size = 0x2d0000, scoped, tag = 'input window, operand 0']
    loop: start=0, step=1, limit=4
    $region2: #{net_forward.3} parent=1 // loop_pre_header
      _
    $region3: #{net_forward.3} parent=1 // loop_header
      %s9 = sphi 0, %s13
      %p10 = scmp.ge.s32.totalorder %s9, 4
      %s19 = sphi 0, %s21
      %s22 = sphi 0, %s19
      %s23 = sphi 0, %s22
      %s39 = sphi 0, %s23
      %s43 = sphi 0, %s43
      %s45 = sphi 0, %s43
      %s46 = sphi 0, %s45
      %s60 = sphi 0, %s46
      %s64 = sphi 0, %s64
      %s66 = sphi 0, %s64
      %s67 = sphi 0, %s66
      %s81 = sphi 0, %s67
      %s87 = sphi 0, %s89
      %s90 = sphi 0, %s87
      %s91 = sphi 0, %s90
      %s107 = sphi 0, %s91
    $region4: #{net_forward.3} parent=1 // loop_header_branch
      %12 = sbr.rel (%p10) target = $region8
    $region5: #{net_forward.3} parent=1 // loop_body
      %s14 = ssub.s32 %s9, 1
      %s15 = ssub.s32 %s9, 2
      %s16 = sadd.s32 %s9, 1
      %s17 = ssub.s32 %s9, %s16
      %p18 = scmp.eq.s32.totalorder %s17, 0
      %s20 = sadd.s32 %s19, 1
      %s21 = scalar_select %p18, %s19, %s20
      %p24 = pneg %p18
      %p25 = scmp.eq.s32.totalorder %s9, 1
      %p26 = por %p24, %p25
      %p27 = scmp.ne.s32.totalorder %s19, %s22
      %p28 = scmp.eq.s32.totalorder %s9, 0
      %p29 = por %p27, %p28
      %p30 = scmp.ne.s32.totalorder %s19, %s22
      %p31 = scmp.eq.s32.totalorder %s14, 1
      %p32 = por %p30, %p31
      %p33 = scmp.ne.s32.totalorder %s22, %s23
      %p34 = scmp.eq.s32.totalorder %s14, 0
      %p35 = por %p33, %p34
      %p36 = scmp.ne.s32.totalorder %s22, %s23
      %p37 = scmp.eq.s32.totalorder %s15, 1
      %p38 = por %p36, %p37
      %p40 = scmp.ne.s32.totalorder %s23, %s39
      %p41 = scmp.eq.s32.totalorder %s15, 0
      %p42 = por %p40, %p41
      %s44 = sadd.s32 %s43, 1
      %p47 = scmp.eq.s32.totalorder %s9, 1
      %p48 = scmp.ne.s32.totalorder %s43, %s45
      %p49 = scmp.eq.s32.totalorder %s9, 0
      %p50 = por %p48, %p49
      %p51 = scmp.ne.s32.totalorder %s43, %s45
      %p52 = scmp.eq.s32.totalorder %s14, 1
      %p53 = por %p51, %p52
      %p54 = scmp.ne.s32.totalorder %s45, %s46
      %p55 = scmp.eq.s32.totalorder %s14, 0
      %p56 = por %p54, %p55
      %p57 = scmp.ne.s32.totalorder %s45, %s46
      %p58 = scmp.eq.s32.totalorder %s15, 1
      %p59 = por %p57, %p58
      %p61 = scmp.ne.s32.totalorder %s46, %s60
      %p62 = scmp.eq.s32.totalorder %s15, 0
      %p63 = por %p61, %p62
      %s65 = sadd.s32 %s64, 1
      %p68 = scmp.eq.s32.totalorder %s9, 1
      %p69 = scmp.ne.s32.totalorder %s64, %s66
      %p70 = scmp.eq.s32.totalorder %s9, 0
      %p71 = por %p69, %p70
      %p72 = scmp.ne.s32.totalorder %s64, %s66
      %p73 = scmp.eq.s32.totalorder %s14, 1
      %p74 = por %p72, %p73
      %p75 = scmp.ne.s32.totalorder %s66, %s67
      %p76 = scmp.eq.s32.totalorder %s14, 0
      %p77 = por %p75, %p76
      %p78 = scmp.ne.s32.totalorder %s66, %s67
      %p79 = scmp.eq.s32.totalorder %s15, 1
      %p80 = por %p78, %p79
      %p82 = scmp.ne.s32.totalorder %s67, %s81
      %p83 = scmp.eq.s32.totalorder %s15, 0
      %p84 = por %p82, %p83
      %s85 = ssub.s32 %s9, %s16
      %p86 = scmp.eq.s32.totalorder %s85, 0
      %s88 = sadd.s32 %s87, 1
      %s89 = scalar_select %p86, %s87, %s88
      %p92 = pneg %p86
      %p93 = scmp.eq.s32.totalorder %s9, 1
      %p94 = por %p92, %p93
      %p95 = scmp.ne.s32.totalorder %s87, %s90
      %p96 = scmp.eq.s32.totalorder %s9, 0
      %p97 = por %p95, %p96
      %p98 = scmp.ne.s32.totalorder %s87, %s90
      %p99 = scmp.eq.s32.totalorder %s14, 1
      %p100 = por %p98, %p99
      %p101 = scmp.ne.s32.totalorder %s90, %s91
      %p102 = scmp.eq.s32.totalorder %s14, 0
      %p103 = por %p101, %p102
      %p104 = scmp.ne.s32.totalorder %s90, %s91
      %p105 = scmp.eq.s32.totalorder %s15, 1
      %p106 = por %p104, %p105
      %p108 = scmp.ne.s32.totalorder %s91, %s107
      %p109 = scmp.eq.s32.totalorder %s15, 0
      %p110 = por %p108, %p109
      %p111 = scmp.le.s32.totalorder 1, %s9
      %p112 = scmp.lt.s32.totalorder %s9, 3
      %p113 = pnand %p111, %p112
      %p114 = pneg %p113
      // Predicated region
      $region9: #{net_forward.3} parent=5 // pred_check
        _
      $region10: #{net_forward.3} parent=5 // pred_check_branch
        %116 = sbr.rel (%p113) target = $region12
      $region11: #{net_forward.3} parent=5 // pred_region
        %s117 = ssub.s32 %s9, 1
        // Predicated region
        $region13: #{net_forward.3} parent=11 // pred_check
          %p118 = pneg %p56
        $region14: #{net_forward.3} parent=11 // pred_check_branch
          %120 = sbr.rel (%p118) target = $region16
        $region15: #{net_forward.3} parent=11 // pred_region
          _
        $region16: #{net_forward.3} parent=11 // pred_fallthru
          _
        // Predicated region
        $region17: #{net_forward.3} parent=11 // pred_check
          %p121 = pneg %p77
        $region18: #{net_forward.3} parent=11 // pred_check_branch
          %123 = sbr.rel (%p121) target = $region20
        $region19: #{net_forward.3} parent=11 // pred_region
          _
        $region20: #{net_forward.3} parent=11 // pred_fallthru
          _
      $region12: #{net_forward.3} parent=5 // pred_fallthru
        _
      %p124 = scmp.lt.s32.totalorder %s9, 2
      // Predicated region
      $region21: #{net_forward.3} parent=5 // pred_check
        %p125 = pneg %p124
      $region22: #{net_forward.3} parent=5 // pred_check_branch
        %127 = sbr.rel (%p125) target = $region24
      $region23: #{net_forward.3} parent=5 // pred_region
        // Predicated region
        $region25: #{net_forward.3} parent=23 // pred_check
          %p128 = pneg %p29
        $region26: #{net_forward.3} parent=23 // pred_check_branch
          %130 = sbr.rel (%p128) target = $region28
        $region27: #{net_forward.3} parent=23 // pred_region
          %s131 = sand.u32 %s19, 1
          %s132 = sand.u32 %s19, 1
          %s133 = smul.addr %s132, 2880
          %s134 = scalar_lea.vmem [#allocation2], %s133
          %s135 = smul.u32 72, %s9
          %s136 = smul.addr %s135, 4
          %s137 = scalar_lea.vmem %s0, %s136
          // Predicated region
          $region29: #{net_forward.3} parent=27 // pred_check
            _
          $region30: #{net_forward.3} parent=27 // pred_check_branch
            %139 = sbr.rel (0) target = $region32
          $region31: #{net_forward.3} parent=27 // pred_region
            // Predicated region
            $region33: #{net_forward.3} parent=31 // pred_check
              _
            $region34: #{net_forward.3} parent=31 // pred_check_branch
              %141 = sbr.rel (0) target = $region36
            $region35: #{net_forward.3} parent=31 // pred_region
              loop: start=0, step=1, limit=1
              $region37: #{net_forward.3} parent=35 // loop_pre_header
                _
              $region38: #{net_forward.3} parent=35 // loop_header
                %s143 = sphi 0, %s147
                %p144 = scmp.ge.s32.totalorder %s143, 1
                %s148 = sphi %s137, %s137
                %s149 = sphi %s134, %s134
              $region39: #{net_forward.3} parent=35 // loop_header_branch
                %146 = sbr.rel (%p144) target = $region43
              $region40: #{net_forward.3} parent=35 // loop_body
                %v150 = vld [vmem:[%s148] sm:$0xff]
                %151 = vst [vmem:[%s149] sm:$0xff] %v150
                %v152 = vld [vmem:[%s148 + $0x8] sm:$0xff]
                %153 = vst [vmem:[%s149 + $0x8] sm:$0xff] %v152
                %v154 = vld [vmem:[%s148 + $0x10] sm:$0xff]
                %155 = vst [vmem:[%s149 + $0x10] sm:$0xff] %v154
                %v156 = vld [vmem:[%s148 + $0x18] sm:$0xff]
                %157 = vst [vmem:[%s149 + $0x18] sm:$0xff] %v156
                %v158 = vld [vmem:[%s148 + $0x20] sm:$0xff]
                %159 = vst [vmem:[%s149 + $0x20] sm:$0xff] %v158
                %v160 = vld [vmem:[%s148 + $0x28] sm:$0xff]
                %161 = vst [vmem:[%s149 + $0x28] sm:$0xff] %v160
                %v162 = vld [vmem:[%s148 + $0x30] sm:$0xff]
                %163 = vst [vmem:[%s149 + $0x30] sm:$0xff] %v162
                %v164 = vld [vmem:[%s148 + $0x38] sm:$0xff]
                %165 = vst [vmem:[%s149 + $0x38] sm:$0xff] %v164
                %v166 = vld [vmem:[%s148 + $0x40] sm:$0xff]
                %167 = vst [vmem:[%s149 + $0x40] sm:$0xff] %v166
                %v168 = vld [vmem:[%s148 + $0x48] sm:$0xff]
                %169 = vst [vmem:[%s149 + $0x48] sm:$0xff] %v168
                %v170 = vld [vmem:[%s148 + $0x50] sm:$0xff]
                %171 = vst [vmem:[%s149 + $0x50] sm:$0xff] %v170
                %v172 = vld [vmem:[%s148 + $0x58] sm:$0xff]
                %173 = vst [vmem:[%s149 + $0x58] sm:$0xff] %v172
                %v174 = vld [vmem:[%s148 + $0x60] sm:$0xff]
                %175 = vst [vmem:[%s149 + $0x60] sm:$0xff] %v174
                %v176 = vld [vmem:[%s148 + $0x68] sm:$0xff]
                %177 = vst [vmem:[%s149 + $0x68] sm:$0xff] %v176
                %v178 = vld [vmem:[%s148 + $0x70] sm:$0xff]
                %179 = vst [vmem:[%s149 + $0x70] sm:$0xff] %v178
                %v180 = vld [vmem:[%s148 + $0x78] sm:$0xff]
                %181 = vst [vmem:[%s149 + $0x78] sm:$0xff] %v180
                %v182 = vld [vmem:[%s148 + $0x80] sm:$0xff]
                %183 = vst [vmem:[%s149 + $0x80] sm:$0xff] %v182
                %v184 = vld [vmem:[%s148 + $0x88] sm:$0xff]
                %185 = vst [vmem:[%s149 + $0x88] sm:$0xff] %v184
                %v186 = vld [vmem:[%s148 + $0x90] sm:$0xff]
                %187 = vst [vmem:[%s149 + $0x90] sm:$0xff] %v186
                %v188 = vld [vmem:[%s148 + $0x98] sm:$0xff]
                %189 = vst [vmem:[%s149 + $0x98] sm:$0xff] %v188
                %v190 = vld [vmem:[%s148 + $0xa0] sm:$0xff]
                %191 = vst [vmem:[%s149 + $0xa0] sm:$0xff] %v190
                %v192 = vld [vmem:[%s148 + $0xa8] sm:$0xff]
                %193 = vst [vmem:[%s149 + $0xa8] sm:$0xff] %v192
                %v194 = vld [vmem:[%s148 + $0xb0] sm:$0xff]
                %195 = vst [vmem:[%s149 + $0xb0] sm:$0xff] %v194
                %v196 = vld [vmem:[%s148 + $0xb8] sm:$0xff]
                %197 = vst [vmem:[%s149 + $0xb8] sm:$0xff] %v196
                %v198 = vld [vmem:[%s148 + $0xc0] sm:$0xff]
                %199 = vst [vmem:[%s149 + $0xc0] sm:$0xff] %v198
                %v200 = vld [vmem:[%s148 + $0xc8] sm:$0xff]
                %201 = vst [vmem:[%s149 + $0xc8] sm:$0xff] %v200
                %v202 = vld [vmem:[%s148 + $0xd0] sm:$0xff]
                %203 = vst [vmem:[%s149 + $0xd0] sm:$0xff] %v202
                %v204 = vld [vmem:[%s148 + $0xd8] sm:$0xff]
                %205 = vst [vmem:[%s149 + $0xd8] sm:$0xff] %v204
                %v206 = vld [vmem:[%s148 + $0xe0] sm:$0xff]
                %207 = vst [vmem:[%s149 + $0xe0] sm:$0xff] %v206
                %v208 = vld [vmem:[%s148 + $0xe8] sm:$0xff]
                %209 = vst [vmem:[%s149 + $0xe8] sm:$0xff] %v208
                %v210 = vld [vmem:[%s148 + $0xf0] sm:$0xff]
                %211 = vst [vmem:[%s149 + $0xf0] sm:$0xff] %v210
                %v212 = vld [vmem:[%s148 + $0xf8] sm:$0xff]
                %213 = vst [vmem:[%s149 + $0xf8] sm:$0xff] %v212
                %v214 = vld [vmem:[%s148 + $0x100] sm:$0xff]
                %215 = vst [vmem:[%s149 + $0x100] sm:$0xff] %v214
                %v216 = vld [vmem:[%s148 + $0x108] sm:$0xff]
                %217 = vst [vmem:[%s149 + $0x108] sm:$0xff] %v216
                %v218 = vld [vmem:[%s148 + $0x110] sm:$0xff]
                %219 = vst [vmem:[%s149 + $0x110] sm:$0xff] %v218
                %v220 = vld [vmem:[%s148 + $0x118] sm:$0xff]
                %221 = vst [vmem:[%s149 + $0x118] sm:$0xff] %v220
                %v222 = vld [vmem:[%s148 + $0x240] sm:$0xff]
                %223 = vst [vmem:[%s149 + $0x120] sm:$0xff] %v222
                %v224 = vld [vmem:[%s148 + $0x248] sm:$0xff]
                %225 = vst [vmem:[%s149 + $0x128] sm:$0xff] %v224
                %v226 = vld [vmem:[%s148 + $0x250] sm:$0xff]
                %227 = vst [vmem:[%s149 + $0x130] sm:$0xff] %v226
                %v228 = vld [vmem:[%s148 + $0x258] sm:$0xff]
                %229 = vst [vmem:[%s149 + $0x138] sm:$0xff] %v228
                %v230 = vld [vmem:[%s148 + $0x260] sm:$0xff]
                %231 = vst [vmem:[%s149 + $0x140] sm:$0xff] %v230
                %v232 = vld [vmem:[%s148 + $0x268] sm:$0xff]
                %233 = vst [vmem:[%s149 + $0x148] sm:$0xff] %v232
                %v234 = vld [vmem:[%s148 + $0x270] sm:$0xff]
                %235 = vst [vmem:[%s149 + $0x150] sm:$0xff] %v234
                %v236 = vld [vmem:[%s148 + $0x278] sm:$0xff]
                %237 = vst [vmem:[%s149 + $0x158] sm:$0xff] %v236
                %v238 = vld [vmem:[%s148 + $0x280] sm:$0xff]
                %239 = vst [vmem:[%s149 + $0x160] sm:$0xff] %v238
                %v240 = vld [vmem:[%s148 + $0x288] sm:$0xff]
                %241 = vst [vmem:[%s149 + $0x168] sm:$0xff] %v240
                %v242 = vld [vmem:[%s148 + $0x290] sm:$0xff]
                %243 = vst [vmem:[%s149 + $0x170] sm:$0xff] %v242
                %v244 = vld [vmem:[%s148 + $0x298] sm:$0xff]
                %245 = vst [vmem:[%s149 + $0x178] sm:$0xff] %v244
                %v246 = vld [vmem:[%s148 + $0x2a0] sm:$0xff]
                %247 = vst [vmem:[%s149 + $0x180] sm:$0xff] %v246
                %v248 = vld [vmem:[%s148 + $0x2a8] sm:$0xff]
                %249 = vst [vmem:[%s149 + $0x188] sm:$0xff] %v248
                %v250 = vld [vmem:[%s148 + $0x2b0] sm:$0xff]
                %251 = vst [vmem:[%s149 + $0x190] sm:$0xff] %v250
                %v252 = vld [vmem:[%s148 + $0x2b8] sm:$0xff]
                %253 = vst [vmem:[%s149 + $0x198] sm:$0xff] %v252
                %v254 = vld [vmem:[%s148 + $0x2c0] sm:$0xff]
                %255 = vst [vmem:[%s149 + $0x1a0] sm:$0xff] %v254
                %v256 = vld [vmem:[%s148 + $0x2c8] sm:$0xff]
                %257 = vst [vmem:[%s149 + $0x1a8] sm:$0xff] %v256
                %v258 = vld [vmem:[%s148 + $0x2d0] sm:$0xff]
                %259 = vst [vmem:[%s149 + $0x1b0] sm:$0xff] %v258
                %v260 = vld [vmem:[%s148 + $0x2d8] sm:$0xff]
                %261 = vst [vmem:[%s149 + $0x1b8] sm:$0xff] %v260
                %v262 = vld [vmem:[%s148 + $0x2e0] sm:$0xff]
                %263 = vst [vmem:[%s149 + $0x1c0] sm:$0xff] %v262
                %v264 = vld [vmem:[%s148 + $0x2e8] sm:$0xff]
                %265 = vst [vmem:[%s149 + $0x1c8] sm:$0xff] %v264
                %v266 = vld [vmem:[%s148 + $0x2f0] sm:$0xff]
                %267 = vst [vmem:[%s149 + $0x1d0] sm:$0xff] %v266
                %v268 = vld [vmem:[%s148 + $0x2f8] sm:$0xff]
                %269 = vst [vmem:[%s149 + $0x1d8] sm:$0xff] %v268
                %v270 = vld [vmem:[%s148 + $0x300] sm:$0xff]
                %271 = vst [vmem:[%s149 + $0x1e0] sm:$0xff] %v270
                %v272 = vld [vmem:[%s148 + $0x308] sm:$0xff]
                %273 = vst [vmem:[%s149 + $0x1e8] sm:$0xff] %v272
                %v274 = vld [vmem:[%s148 + $0x310] sm:$0xff]
                %275 = vst [vmem:[%s149 + $0x1f0] sm:$0xff] %v274
                %v276 = vld [vmem:[%s148 + $0x318] sm:$0xff]
                %277 = vst [vmem:[%s149 + $0x1f8] sm:$0xff] %v276
                %v278 = vld [vmem:[%s148 + $0x320] sm:$0xff]
                %279 = vst [vmem:[%s149 + $0x200] sm:$0xff] %v278
                %v280 = vld [vmem:[%s148 + $0x328] sm:$0xff]
                %281 = vst [vmem:[%s149 + $0x208] sm:$0xff] %v280
                %v282 = vld [vmem:[%s148 + $0x330] sm:$0xff]
                %283 = vst [vmem:[%s149 + $0x210] sm:$0xff] %v282
                %v284 = vld [vmem:[%s148 + $0x338] sm:$0xff]
                %285 = vst [vmem:[%s149 + $0x218] sm:$0xff] %v284
                %v286 = vld [vmem:[%s148 + $0x340] sm:$0xff]
                %287 = vst [vmem:[%s149 + $0x220] sm:$0xff] %v286
                %v288 = vld [vmem:[%s148 + $0x348] sm:$0xff]
                %289 = vst [vmem:[%s149 + $0x228] sm:$0xff] %v288
                %v290 = vld [vmem:[%s148 + $0x350] sm:$0xff]
                %291 = vst [vmem:[%s149 + $0x230] sm:$0xff] %v290
                %v292 = vld [vmem:[%s148 + $0x358] sm:$0xff]
                %293 = vst [vmem:[%s149 + $0x238] sm:$0xff] %v292
                %v294 = vld [vmem:[%s148 + $0x480] sm:$0xff]
                %295 = vst [vmem:[%s149 + $0x240] sm:$0xff] %v294
                %v296 = vld [vmem:[%s148 + $0x488] sm:$0xff]
                %297 = vst [vmem:[%s149 + $0x248] sm:$0xff] %v296
                %v298 = vld [vmem:[%s148 + $0x490] sm:$0xff]
                %299 = vst [vmem:[%s149 + $0x250] sm:$0xff] %v298
                %v300 = vld [vmem:[%s148 + $0x498] sm:$0xff]
                %301 = vst [vmem:[%s149 + $0x258] sm:$0xff] %v300
                %v302 = vld [vmem:[%s148 + $0x4a0] sm:$0xff]
                %303 = vst [vmem:[%s149 + $0x260] sm:$0xff] %v302
                %v304 = vld [vmem:[%s148 + $0x4a8] sm:$0xff]
                %305 = vst [vmem:[%s149 + $0x268] sm:$0xff] %v304
                %v306 = vld [vmem:[%s148 + $0x4b0] sm:$0xff]
                %307 = vst [vmem:[%s149 + $0x270] sm:$0xff] %v306
                %v308 = vld [vmem:[%s148 + $0x4b8] sm:$0xff]
                %309 = vst [vmem:[%s149 + $0x278] sm:$0xff] %v308
                %v310 = vld [vmem:[%s148 + $0x4c0] sm:$0xff]
                %311 = vst [vmem:[%s149 + $0x280] sm:$0xff] %v310
                %v312 = vld [vmem:[%s148 + $0x4c8] sm:$0xff]
                %313 = vst [vmem:[%s149 + $0x288] sm:$0xff] %v312
                %v314 = vld [vmem:[%s148 + $0x4d0] sm:$0xff]
                %315 = vst [vmem:[%s149 + $0x290] sm:$0xff] %v314
                %v316 = vld [vmem:[%s148 + $0x4d8] sm:$0xff]
                %317 = vst [vmem:[%s149 + $0x298] sm:$0xff] %v316
                %v318 = vld [vmem:[%s148 + $0x4e0] sm:$0xff]
                %319 = vst [vmem:[%s149 + $0x2a0] sm:$0xff] %v318
                %v320 = vld [vmem:[%s148 + $0x4e8] sm:$0xff]
                %321 = vst [vmem:[%s149 + $0x2a8] sm:$0xff] %v320
                %v322 = vld [vmem:[%s148 + $0x4f0] sm:$0xff]
                %323 = vst [vmem:[%s149 + $0x2b0] sm:$0xff] %v322
                %v324 = vld [vmem:[%s148 + $0x4f8] sm:$0xff]
                %325 = vst [vmem:[%s149 + $0x2b8] sm:$0xff] %v324
                %v326 = vld [vmem:[%s148 + $0x500] sm:$0xff]
                %327 = vst [vmem:[%s149 + $0x2c0] sm:$0xff] %v326
                %v328 = vld [vmem:[%s148 + $0x508] sm:$0xff]
                %329 = vst [vmem:[%s149 + $0x2c8] sm:$0xff] %v328
                %v330 = vld [vmem:[%s148 + $0x510] sm:$0xff]
                %331 = vst [vmem:[%s149 + $0x2d0] sm:$0xff] %v330
                %v332 = vld [vmem:[%s148 + $0x518] sm:$0xff]
                %333 = vst [vmem:[%s149 + $0x2d8] sm:$0xff] %v332
                %v334 = vld [vmem:[%s148 + $0x520] sm:$0xff]
                %335 = vst [vmem:[%s149 + $0x2e0] sm:$0xff] %v334
                %v336 = vld [vmem:[%s148 + $0x528] sm:$0xff]
                %337 = vst [vmem:[%s149 + $0x2e8] sm:$0xff] %v336
                %v338 = vld [vmem:[%s148 + $0x530] sm:$0xff]
                %339 = vst [vmem:[%s149 + $0x2f0] sm:$0xff] %v338
                %v340 = vld [vmem:[%s148 + $0x538] sm:$0xff]
                %341 = vst [vmem:[%s149 + $0x2f8] sm:$0xff] %v340
                %v342 = vld [vmem:[%s148 + $0x540] sm:$0xff]
                %343 = vst [vmem:[%s149 + $0x300] sm:$0xff] %v342
                %v344 = vld [vmem:[%s148 + $0x548] sm:$0xff]
                %345 = vst [vmem:[%s149 + $0x308] sm:$0xff] %v344
                %v346 = vld [vmem:[%s148 + $0x550] sm:$0xff]
                %347 = vst [vmem:[%s149 + $0x310] sm:$0xff] %v346
                %v348 = vld [vmem:[%s148 + $0x558] sm:$0xff]
                %349 = vst [vmem:[%s149 + $0x318] sm:$0xff] %v348
                %v350 = vld [vmem:[%s148 + $0x560] sm:$0xff]
                %351 = vst [vmem:[%s149 + $0x320] sm:$0xff] %v350
                %v352 = vld [vmem:[%s148 + $0x568] sm:$0xff]
                %353 = vst [vmem:[%s149 + $0x328] sm:$0xff] %v352
                %v354 = vld [vmem:[%s148 + $0x570] sm:$0xff]
                %355 = vst [vmem:[%s149 + $0x330] sm:$0xff] %v354
                %v356 = vld [vmem:[%s148 + $0x578] sm:$0xff]
                %357 = vst [vmem:[%s149 + $0x338] sm:$0xff] %v356
                %v358 = vld [vmem:[%s148 + $0x580] sm:$0xff]
                %359 = vst [vmem:[%s149 + $0x340] sm:$0xff] %v358
                %v360 = vld [vmem:[%s148 + $0x588] sm:$0xff]
                %361 = vst [vmem:[%s149 + $0x348] sm:$0xff] %v360
                %v362 = vld [vmem:[%s148 + $0x590] sm:$0xff]
                %363 = vst [vmem:[%s149 + $0x350] sm:$0xff] %v362
                %v364 = vld [vmem:[%s148 + $0x598] sm:$0xff]
                %365 = vst [vmem:[%s149 + $0x358] sm:$0xff] %v364
                %v366 = vld [vmem:[%s148 + $0x6c0] sm:$0xff]
                %367 = vst [vmem:[%s149 + $0x360] sm:$0xff] %v366
                %v368 = vld [vmem:[%s148 + $0x6c8] sm:$0xff]
                %369 = vst [vmem:[%s149 + $0x368] sm:$0xff] %v368
                %v370 = vld [vmem:[%s148 + $0x6d0] sm:$0xff]
                %371 = vst [vmem:[%s149 + $0x370] sm:$0xff] %v370
                %v372 = vld [vmem:[%s148 + $0x6d8] sm:$0xff]
                %373 = vst [vmem:[%s149 + $0x378] sm:$0xff] %v372
                %v374 = vld [vmem:[%s148 + $0x6e0] sm:$0xff]
                %375 = vst [vmem:[%s149 + $0x380] sm:$0xff] %v374
                %v376 = vld [vmem:[%s148 + $0x6e8] sm:$0xff]
                %377 = vst [vmem:[%s149 + $0x388] sm:$0xff] %v376
                %v378 = vld [vmem:[%s148 + $0x6f0] sm:$0xff]
                %379 = vst [vmem:[%s149 + $0x390] sm:$0xff] %v378
                %v380 = vld [vmem:[%s148 + $0x6f8] sm:$0xff]
                %381 = vst [vmem:[%s149 + $0x398] sm:$0xff] %v380
                %v382 = vld [vmem:[%s148 + $0x700] sm:$0xff]
                %383 = vst [vmem:[%s149 + $0x3a0] sm:$0xff] %v382
                %v384 = vld [vmem:[%s148 + $0x708] sm:$0xff]
                %385 = vst [vmem:[%s149 + $0x3a8] sm:$0xff] %v384
                %v386 = vld [vmem:[%s148 + $0x710] sm:$0xff]
                %387 = vst [vmem:[%s149 + $0x3b0] sm:$0xff] %v386
                %v388 = vld [vmem:[%s148 + $0x718] sm:$0xff]
                %389 = vst [vmem:[%s149 + $0x3b8] sm:$0xff] %v388
                %v390 = vld [vmem:[%s148 + $0x720] sm:$0xff]
                %391 = vst [vmem:[%s149 + $0x3c0] sm:$0xff] %v390
                %v392 = vld [vmem:[%s148 + $0x728] sm:$0xff]
                %393 = vst [vmem:[%s149 + $0x3c8] sm:$0xff] %v392
                %v394 = vld [vmem:[%s148 + $0x730] sm:$0xff]
                %395 = vst [vmem:[%s149 + $0x3d0] sm:$0xff] %v394
                %v396 = vld [vmem:[%s148 + $0x738] sm:$0xff]
                %397 = vst [vmem:[%s149 + $0x3d8] sm:$0xff] %v396
                %v398 = vld [vmem:[%s148 + $0x740] sm:$0xff]
                %399 = vst [vmem:[%s149 + $0x3e0] sm:$0xff] %v398
                %v400 = vld [vmem:[%s148 + $0x748] sm:$0xff]
                %401 = vst [vmem:[%s149 + $0x3e8] sm:$0xff] %v400
                %v402 = vld [vmem:[%s148 + $0x750] sm:$0xff]
                %403 = vst [vmem:[%s149 + $0x3f0] sm:$0xff] %v402
                %v404 = vld [vmem:[%s148 + $0x758] sm:$0xff]
                %405 = vst [vmem:[%s149 + $0x3f8] sm:$0xff] %v404
                %v406 = vld [vmem:[%s148 + $0x760] sm:$0xff]
                %407 = vst [vmem:[%s149 + $0x400] sm:$0xff] %v406
                %v408 = vld [vmem:[%s148 + $0x768] sm:$0xff]
                %409 = vst [vmem:[%s149 + $0x408] sm:$0xff] %v408
                %v410 = vld [vmem:[%s148 + $0x770] sm:$0xff]
                %411 = vst [vmem:[%s149 + $0x410] sm:$0xff] %v410
                %v412 = vld [vmem:[%s148 + $0x778] sm:$0xff]
                %413 = vst [vmem:[%s149 + $0x418] sm:$0xff] %v412
                %v414 = vld [vmem:[%s148 + $0x780] sm:$0xff]
                %415 = vst [vmem:[%s149 + $0x420] sm:$0xff] %v414
                %v416 = vld [vmem:[%s148 + $0x788] sm:$0xff]
                %417 = vst [vmem:[%s149 + $0x428] sm:$0xff] %v416
                %v418 = vld [vmem:[%s148 + $0x790] sm:$0xff]
                %419 = vst [vmem:[%s149 + $0x430] sm:$0xff] %v418
                %v420 = vld [vmem:[%s148 + $0x798] sm:$0xff]
                %421 = vst [vmem:[%s149 + $0x438] sm:$0xff] %v420
                %v422 = vld [vmem:[%s148 + $0x7a0] sm:$0xff]
                %423 = vst [vmem:[%s149 + $0x440] sm:$0xff] %v422
                %v424 = vld [vmem:[%s148 + $0x7a8] sm:$0xff]
                %425 = vst [vmem:[%s149 + $0x448] sm:$0xff] %v424
                %v426 = vld [vmem:[%s148 + $0x7b0] sm:$0xff]
                %427 = vst [vmem:[%s149 + $0x450] sm:$0xff] %v426
                %v428 = vld [vmem:[%s148 + $0x7b8] sm:$0xff]
                %429 = vst [vmem:[%s149 + $0x458] sm:$0xff] %v428
                %v430 = vld [vmem:[%s148 + $0x7c0] sm:$0xff]
                %431 = vst [vmem:[%s149 + $0x460] sm:$0xff] %v430
                %v432 = vld [vmem:[%s148 + $0x7c8] sm:$0xff]
                %433 = vst [vmem:[%s149 + $0x468] sm:$0xff] %v432
                %v434 = vld [vmem:[%s148 + $0x7d0] sm:$0xff]
                %435 = vst [vmem:[%s149 + $0x470] sm:$0xff] %v434
                %v436 = vld [vmem:[%s148 + $0x7d8] sm:$0xff]
                %437 = vst [vmem:[%s149 + $0x478] sm:$0xff] %v436
                %v438 = vld [vmem:[%s148 + $0x900] sm:$0xff]
                %439 = vst [vmem:[%s149 + $0x480] sm:$0xff] %v438
                %v440 = vld [vmem:[%s148 + $0x908] sm:$0xff]
                %441 = vst [vmem:[%s149 + $0x488] sm:$0xff] %v440
                %v442 = vld [vmem:[%s148 + $0x910] sm:$0xff]
                %443 = vst [vmem:[%s149 + $0x490] sm:$0xff] %v442
                %v444 = vld [vmem:[%s148 + $0x918] sm:$0xff]
                %445 = vst [vmem:[%s149 + $0x498] sm:$0xff] %v444
                %v446 = vld [vmem:[%s148 + $0x920] sm:$0xff]
                %447 = vst [vmem:[%s149 + $0x4a0] sm:$0xff] %v446
                %v448 = vld [vmem:[%s148 + $0x928] sm:$0xff]
                %449 = vst [vmem:[%s149 + $0x4a8] sm:$0xff] %v448
                %v450 = vld [vmem:[%s148 + $0x930] sm:$0xff]
                %451 = vst [vmem:[%s149 + $0x4b0] sm:$0xff] %v450
                %v452 = vld [vmem:[%s148 + $0x938] sm:$0xff]
                %453 = vst [vmem:[%s149 + $0x4b8] sm:$0xff] %v452
                %v454 = vld [vmem:[%s148 + $0x940] sm:$0xff]
                %455 = vst [vmem:[%s149 + $0x4c0] sm:$0xff] %v454
                %v456 = vld [vmem:[%s148 + $0x948] sm:$0xff]
                %457 = vst [vmem:[%s149 + $0x4c8] sm:$0xff] %v456
                %v458 = vld [vmem:[%s148 + $0x950] sm:$0xff]
                %459 = vst [vmem:[%s149 + $0x4d0] sm:$0xff] %v458
                %v460 = vld [vmem:[%s148 + $0x958] sm:$0xff]
                %461 = vst [vmem:[%s149 + $0x4d8] sm:$0xff] %v460
                %v462 = vld [vmem:[%s148 + $0x960] sm:$0xff]
                %463 = vst [vmem:[%s149 + $0x4e0] sm:$0xff] %v462
                %v464 = vld [vmem:[%s148 + $0x968] sm:$0xff]
                %465 = vst [vmem:[%s149 + $0x4e8] sm:$0xff] %v464
                %v466 = vld [vmem:[%s148 + $0x970] sm:$0xff]
                %467 = vst [vmem:[%s149 + $0x4f0] sm:$0xff] %v466
                %v468 = vld [vmem:[%s148 + $0x978] sm:$0xff]
                %469 = vst [vmem:[%s149 + $0x4f8] sm:$0xff] %v468
                %v470 = vld [vmem:[%s148 + $0x980] sm:$0xff]
                %471 = vst [vmem:[%s149 + $0x500] sm:$0xff] %v470
                %v472 = vld [vmem:[%s148 + $0x988] sm:$0xff]
                %473 = vst [vmem:[%s149 + $0x508] sm:$0xff] %v472
                %v474 = vld [vmem:[%s148 + $0x990] sm:$0xff]
                %475 = vst [vmem:[%s149 + $0x510] sm:$0xff] %v474
                %v476 = vld [vmem:[%s148 + $0x998] sm:$0xff]
                %477 = vst [vmem:[%s149 + $0x518] sm:$0xff] %v476
                %v478 = vld [vmem:[%s148 + $0x9a0] sm:$0xff]
                %479 = vst [vmem:[%s149 + $0x520] sm:$0xff] %v478
                %v480 = vld [vmem:[%s148 + $0x9a8] sm:$0xff]
                %481 = vst [vmem:[%s149 + $0x528] sm:$0xff] %v480
                %v482 = vld [vmem:[%s148 + $0x9b0] sm:$0xff]
                %483 = vst [vmem:[%s149 + $0x530] sm:$0xff] %v482
                %v484 = vld [vmem:[%s148 + $0x9b8] sm:$0xff]
                %485 = vst [vmem:[%s149 + $0x538] sm:$0xff] %v484
                %v486 = vld [vmem:[%s148 + $0x9c0] sm:$0xff]
                %487 = vst [vmem:[%s149 + $0x540] sm:$0xff] %v486
                %v488 = vld [vmem:[%s148 + $0x9c8] sm:$0xff]
                %489 = vst [vmem:[%s149 + $0x548] sm:$0xff] %v488
                %v490 = vld [vmem:[%s148 + $0x9d0] sm:$0xff]
                %491 = vst [vmem:[%s149 + $0x550] sm:$0xff] %v490
                %v492 = vld [vmem:[%s148 + $0x9d8] sm:$0xff]
                %493 = vst [vmem:[%s149 + $0x558] sm:$0xff] %v492
                %v494 = vld [vmem:[%s148 + $0x9e0] sm:$0xff]
                %495 = vst [vmem:[%s149 + $0x560] sm:$0xff] %v494
                %v496 = vld [vmem:[%s148 + $0x9e8] sm:$0xff]
                %497 = vst [vmem:[%s149 + $0x568] sm:$0xff] %v496
                %v498 = vld [vmem:[%s148 + $0x9f0] sm:$0xff]
                %499 = vst [vmem:[%s149 + $0x570] sm:$0xff] %v498
                %v500 = vld [vmem:[%s148 + $0x9f8] sm:$0xff]
                %501 = vst [vmem:[%s149 + $0x578] sm:$0xff] %v500
                %v502 = vld [vmem:[%s148 + $0xa00] sm:$0xff]
                %503 = vst [vmem:[%s149 + $0x580] sm:$0xff] %v502
                %v504 = vld [vmem:[%s148 + $0xa08] sm:$0xff]
                %505 = vst [vmem:[%s149 + $0x588] sm:$0xff] %v504
                %v506 = vld [vmem:[%s148 + $0xa10] sm:$0xff]
                %507 = vst [vmem:[%s149 + $0x590] sm:$0xff] %v506
                %v508 = vld [vmem:[%s148 + $0xa18] sm:$0xff]
                %509 = vst [vmem:[%s149 + $0x598] sm:$0xff] %v508
                %v510 = vld [vmem:[%s148 + $0xb40] sm:$0xff]
                %511 = vst [vmem:[%s149 + $0x5a0] sm:$0xff] %v510
                %v512 = vld [vmem:[%s148 + $0xb48] sm:$0xff]
                %513 = vst [vmem:[%s149 + $0x5a8] sm:$0xff] %v512
                %v514 = vld [vmem:[%s148 + $0xb50] sm:$0xff]
                %515 = vst [vmem:[%s149 + $0x5b0] sm:$0xff] %v514
                %v516 = vld [vmem:[%s148 + $0xb58] sm:$0xff]
                %517 = vst [vmem:[%s149 + $0x5b8] sm:$0xff] %v516
                %v518 = vld [vmem:[%s148 + $0xb60] sm:$0xff]
                %519 = vst [vmem:[%s149 + $0x5c0] sm:$0xff] %v518
                %v520 = vld [vmem:[%s148 + $0xb68] sm:$0xff]
                %521 = vst [vmem:[%s149 + $0x5c8] sm:$0xff] %v520
                %v522 = vld [vmem:[%s148 + $0xb70] sm:$0xff]
                %523 = vst [vmem:[%s149 + $0x5d0] sm:$0xff] %v522
                %v524 = vld [vmem:[%s148 + $0xb78] sm:$0xff]
                %525 = vst [vmem:[%s149 + $0x5d8] sm:$0xff] %v524
                %v526 = vld [vmem:[%s148 + $0xb80] sm:$0xff]
                %527 = vst [vmem:[%s149 + $0x5e0] sm:$0xff] %v526
                %v528 = vld [vmem:[%s148 + $0xb88] sm:$0xff]
                %529 = vst [vmem:[%s149 + $0x5e8] sm:$0xff] %v528
                %v530 = vld [vmem:[%s148 + $0xb90] sm:$0xff]
                %531 = vst [vmem:[%s149 + $0x5f0] sm:$0xff] %v530
                %v532 = vld [vmem:[%s148 + $0xb98] sm:$0xff]
                %533 = vst [vmem:[%s149 + $0x5f8] sm:$0xff] %v532
                %v534 = vld [vmem:[%s148 + $0xba0] sm:$0xff]
                %535 = vst [vmem:[%s149 + $0x600] sm:$0xff] %v534
                %v536 = vld [vmem:[%s148 + $0xba8] sm:$0xff]
                %537 = vst [vmem:[%s149 + $0x608] sm:$0xff] %v536
                %v538 = vld [vmem:[%s148 + $0xbb0] sm:$0xff]
                %539 = vst [vmem:[%s149 + $0x610] sm:$0xff] %v538
                %v540 = vld [vmem:[%s148 + $0xbb8] sm:$0xff]
                %541 = vst [vmem:[%s149 + $0x618] sm:$0xff] %v540
                %v542 = vld [vmem:[%s148 + $0xbc0] sm:$0xff]
                %543 = vst [vmem:[%s149 + $0x620] sm:$0xff] %v542
                %v544 = vld [vmem:[%s148 + $0xbc8] sm:$0xff]
                %545 = vst [vmem:[%s149 + $0x628] sm:$0xff] %v544
                %v546 = vld [vmem:[%s148 + $0xbd0] sm:$0xff]
                %547 = vst [vmem:[%s149 + $0x630] sm:$0xff] %v546
                %v548 = vld [vmem:[%s148 + $0xbd8] sm:$0xff]
                %549 = vst [vmem:[%s149 + $0x638] sm:$0xff] %v548
                %v550 = vld [vmem:[%s148 + $0xbe0] sm:$0xff]
                %551 = vst [vmem:[%s149 + $0x640] sm:$0xff] %v550
                %v552 = vld [vmem:[%s148 + $0xbe8] sm:$0xff]
                %553 = vst [vmem:[%s149 + $0x648] sm:$0xff] %v552
                %v554 = vld [vmem:[%s148 + $0xbf0] sm:$0xff]
                %555 = vst [vmem:[%s149 + $0x650] sm:$0xff] %v554
                %v556 = vld [vmem:[%s148 + $0xbf8] sm:$0xff]
                %557 = vst [vmem:[%s149 + $0x658] sm:$0xff] %v556
                %v558 = vld [vmem:[%s148 + $0xc00] sm:$0xff]
                %559 = vst [vmem:[%s149 + $0x660] sm:$0xff] %v558
                %v560 = vld [vmem:[%s148 + $0xc08] sm:$0xff]
                %561 = vst [vmem:[%s149 + $0x668] sm:$0xff] %v560
                %v562 = vld [vmem:[%s148 + $0xc10] sm:$0xff]
                %563 = vst [vmem:[%s149 + $0x670] sm:$0xff] %v562
                %v564 = vld [vmem:[%s148 + $0xc18] sm:$0xff]
                %565 = vst [vmem:[%s149 + $0x678] sm:$0xff] %v564
                %v566 = vld [vmem:[%s148 + $0xc20] sm:$0xff]
                %567 = vst [vmem:[%s149 + $0x680] sm:$0xff] %v566
                %v568 = vld [vmem:[%s148 + $0xc28] sm:$0xff]
                %569 = vst [vmem:[%s149 + $0x688] sm:$0xff] %v568
                %v570 = vld [vmem:[%s148 + $0xc30] sm:$0xff]
                %571 = vst [vmem:[%s149 + $0x690] sm:$0xff] %v570
                %v572 = vld [vmem:[%s148 + $0xc38] sm:$0xff]
                %573 = vst [vmem:[%s149 + $0x698] sm:$0xff] %v572
                %v574 = vld [vmem:[%s148 + $0xc40] sm:$0xff]
                %575 = vst [vmem:[%s149 + $0x6a0] sm:$0xff] %v574
                %v576 = vld [vmem:[%s148 + $0xc48] sm:$0xff]
                %577 = vst [vmem:[%s149 + $0x6a8] sm:$0xff] %v576
                %v578 = vld [vmem:[%s148 + $0xc50] sm:$0xff]
                %579 = vst [vmem:[%s149 + $0x6b0] sm:$0xff] %v578
                %v580 = vld [vmem:[%s148 + $0xc58] sm:$0xff]
                %581 = vst [vmem:[%s149 + $0x6b8] sm:$0xff] %v580
                %v582 = vld [vmem:[%s148 + $0xd80] sm:$0xff]
                %583 = vst [vmem:[%s149 + $0x6c0] sm:$0xff] %v582
                %v584 = vld [vmem:[%s148 + $0xd88] sm:$0xff]
                %585 = vst [vmem:[%s149 + $0x6c8] sm:$0xff] %v584
                %v586 = vld [vmem:[%s148 + $0xd90] sm:$0xff]
                %587 = vst [vmem:[%s149 + $0x6d0] sm:$0xff] %v586
                %v588 = vld [vmem:[%s148 + $0xd98] sm:$0xff]
                %589 = vst [vmem:[%s149 + $0x6d8] sm:$0xff] %v588
                %v590 = vld [vmem:[%s148 + $0xda0] sm:$0xff]
                %591 = vst [vmem:[%s149 + $0x6e0] sm:$0xff] %v590
                %v592 = vld [vmem:[%s148 + $0xda8] sm:$0xff]
                %593 = vst [vmem:[%s149 + $0x6e8] sm:$0xff] %v592
                %v594 = vld [vmem:[%s148 + $0xdb0] sm:$0xff]
                %595 = vst [vmem:[%s149 + $0x6f0] sm:$0xff] %v594
                %v596 = vld [vmem:[%s148 + $0xdb8] sm:$0xff]
                %597 = vst [vmem:[%s149 + $0x6f8] sm:$0xff] %v596
                %v598 = vld [vmem:[%s148 + $0xdc0] sm:$0xff]
                %599 = vst [vmem:[%s149 + $0x700] sm:$0xff] %v598
                %v600 = vld [vmem:[%s148 + $0xdc8] sm:$0xff]
                %601 = vst [vmem:[%s149 + $0x708] sm:$0xff] %v600
                %v602 = vld [vmem:[%s148 + $0xdd0] sm:$0xff]
                %603 = vst [vmem:[%s149 + $0x710] sm:$0xff] %v602
                %v604 = vld [vmem:[%s148 + $0xdd8] sm:$0xff]
                %605 = vst [vmem:[%s149 + $0x718] sm:$0xff] %v604
                %v606 = vld [vmem:[%s148 + $0xde0] sm:$0xff]
                %607 = vst [vmem:[%s149 + $0x720] sm:$0xff] %v606
                %v608 = vld [vmem:[%s148 + $0xde8] sm:$0xff]
                %609 = vst [vmem:[%s149 + $0x728] sm:$0xff] %v608
                %v610 = vld [vmem:[%s148 + $0xdf0] sm:$0xff]
                %611 = vst [vmem:[%s149 + $0x730] sm:$0xff] %v610
                %v612 = vld [vmem:[%s148 + $0xdf8] sm:$0xff]
                %613 = vst [vmem:[%s149 + $0x738] sm:$0xff] %v612
                %v614 = vld [vmem:[%s148 + $0xe00] sm:$0xff]
                %615 = vst [vmem:[%s149 + $0x740] sm:$0xff] %v614
                %v616 = vld [vmem:[%s148 + $0xe08] sm:$0xff]
                %617 = vst [vmem:[%s149 + $0x748] sm:$0xff] %v616
                %v618 = vld [vmem:[%s148 + $0xe10] sm:$0xff]
                %619 = vst [vmem:[%s149 + $0x750] sm:$0xff] %v618
                %v620 = vld [vmem:[%s148 + $0xe18] sm:$0xff]
                %621 = vst [vmem:[%s149 + $0x758] sm:$0xff] %v620
                %v622 = vld [vmem:[%s148 + $0xe20] sm:$0xff]
                %623 = vst [vmem:[%s149 + $0x760] sm:$0xff] %v622
                %v624 = vld [vmem:[%s148 + $0xe28] sm:$0xff]
                %625 = vst [vmem:[%s149 + $0x768] sm:$0xff] %v624
                %v626 = vld [vmem:[%s148 + $0xe30] sm:$0xff]
                %627 = vst [vmem:[%s149 + $0x770] sm:$0xff] %v626
                %v628 = vld [vmem:[%s148 + $0xe38] sm:$0xff]
                %629 = vst [vmem:[%s149 + $0x778] sm:$0xff] %v628
                %v630 = vld [vmem:[%s148 + $0xe40] sm:$0xff]
                %631 = vst [vmem:[%s149 + $0x780] sm:$0xff] %v630
                %v632 = vld [vmem:[%s148 + $0xe48] sm:$0xff]
                %633 = vst [vmem:[%s149 + $0x788] sm:$0xff] %v632
                %v634 = vld [vmem:[%s148 + $0xe50] sm:$0xff]
                %635 = vst [vmem:[%s149 + $0x790] sm:$0xff] %v634
                %v636 = vld [vmem:[%s148 + $0xe58] sm:$0xff]
                %637 = vst [vmem:[%s149 + $0x798] sm:$0xff] %v636
                %v638 = vld [vmem:[%s148 + $0xe60] sm:$0xff]
                %639 = vst [vmem:[%s149 + $0x7a0] sm:$0xff] %v638
                %v640 = vld [vmem:[%s148 + $0xe68] sm:$0xff]
                %641 = vst [vmem:[%s149 + $0x7a8] sm:$0xff] %v640
                %v642 = vld [vmem:[%s148 + $0xe70] sm:$0xff]
                %643 = vst [vmem:[%s149 + $0x7b0] sm:$0xff] %v642
                %v644 = vld [vmem:[%s148 + $0xe78] sm:$0xff]
                %645 = vst [vmem:[%s149 + $0x7b8] sm:$0xff] %v644
                %v646 = vld [vmem:[%s148 + $0xe80] sm:$0xff]
                %647 = vst [vmem:[%s149 + $0x7c0] sm:$0xff] %v646
                %v648 = vld [vmem:[%s148 + $0xe88] sm:$0xff]
                %649 = vst [vmem:[%s149 + $0x7c8] sm:$0xff] %v648
                %v650 = vld [vmem:[%s148 + $0xe90] sm:$0xff]
                %651 = vst [vmem:[%s149 + $0x7d0] sm:$0xff] %v650
                %v652 = vld [vmem:[%s148 + $0xe98] sm:$0xff]
                %653 = vst [vmem:[%s149 + $0x7d8] sm:$0xff] %v652
                %v654 = vld [vmem:[%s148 + $0xfc0] sm:$0xff]
                %655 = vst [vmem:[%s149 + $0x7e0] sm:$0xff] %v654
                %v656 = vld [vmem:[%s148 + $0xfc8] sm:$0xff]
                %657 = vst [vmem:[%s149 + $0x7e8] sm:$0xff] %v656
                %v658 = vld [vmem:[%s148 + $0xfd0] sm:$0xff]
                %659 = vst [vmem:[%s149 + $0x7f0] sm:$0xff] %v658
                %v660 = vld [vmem:[%s148 + $0xfd8] sm:$0xff]
                %661 = vst [vmem:[%s149 + $0x7f8] sm:$0xff] %v660
                %v662 = vld [vmem:[%s148 + $0xfe0] sm:$0xff]
                %663 = vst [vmem:[%s149 + $0x800] sm:$0xff] %v662
                %v664 = vld [vmem:[%s148 + $0xfe8] sm:$0xff]
                %665 = vst [vmem:[%s149 + $0x808] sm:$0xff] %v664
                %v666 = vld [vmem:[%s148 + $0xff0] sm:$0xff]
                %667 = vst [vmem:[%s149 + $0x810] sm:$0xff] %v666
                %v668 = vld [vmem:[%s148 + $0xff8] sm:$0xff]
                %669 = vst [vmem:[%s149 + $0x818] sm:$0xff] %v668
                %v670 = vld [vmem:[%s148 + $0x1000] sm:$0xff]
                %671 = vst [vmem:[%s149 + $0x820] sm:$0xff] %v670
                %v672 = vld [vmem:[%s148 + $0x1008] sm:$0xff]
                %673 = vst [vmem:[%s149 + $0x828] sm:$0xff] %v672
                %v674 = vld [vmem:[%s148 + $0x1010] sm:$0xff]
                %675 = vst [vmem:[%s149 + $0x830] sm:$0xff] %v674
                %v676 = vld [vmem:[%s148 + $0x1018] sm:$0xff]
                %677 = vst [vmem:[%s149 + $0x838] sm:$0xff] %v676
                %v678 = vld [vmem:[%s148 + $0x1020] sm:$0xff]
                %679 = vst [vmem:[%s149 + $0x840] sm:$0xff] %v678
                %v680 = vld [vmem:[%s148 + $0x1028] sm:$0xff]
                %681 = vst [vmem:[%s149 + $0x848] sm:$0xff] %v680
                %v682 = vld [vmem:[%s148 + $0x1030] sm:$0xff]
                %683 = vst [vmem:[%s149 + $0x850] sm:$0xff] %v682
                %v684 = vld [vmem:[%s148 + $0x1038] sm:$0xff]
                %685 = vst [vmem:[%s149 + $0x858] sm:$0xff] %v684
                %v686 = vld [vmem:[%s148 + $0x1040] sm:$0xff]
                %687 = vst [vmem:[%s149 + $0x860] sm:$0xff] %v686
                %v688 = vld [vmem:[%s148 + $0x1048] sm:$0xff]
                %689 = vst [vmem:[%s149 + $0x868] sm:$0xff] %v688
                %v690 = vld [vmem:[%s148 + $0x1050] sm:$0xff]
                %691 = vst [vmem:[%s149 + $0x870] sm:$0xff] %v690
                %v692 = vld [vmem:[%s148 + $0x1058] sm:$0xff]
                %693 = vst [vmem:[%s149 + $0x878] sm:$0xff] %v692
                %v694 = vld [vmem:[%s148 + $0x1060] sm:$0xff]
                %695 = vst [vmem:[%s149 + $0x880] sm:$0xff] %v694
                %v696 = vld [vmem:[%s148 + $0x1068] sm:$0xff]
                %697 = vst [vmem:[%s149 + $0x888] sm:$0xff] %v696
                %v698 = vld [vmem:[%s148 + $0x1070] sm:$0xff]
                %699 = vst [vmem:[%s149 + $0x890] sm:$0xff] %v698
                %v700 = vld [vmem:[%s148 + $0x1078] sm:$0xff]
                %701 = vst [vmem:[%s149 + $0x898] sm:$0xff] %v700
                %v702 = vld [vmem:[%s148 + $0x1080] sm:$0xff]
                %703 = vst [vmem:[%s149 + $0x8a0] sm:$0xff] %v702
                %v704 = vld [vmem:[%s148 + $0x1088] sm:$0xff]
                %705 = vst [vmem:[%s149 + $0x8a8] sm:$0xff] %v704
                %v706 = vld [vmem:[%s148 + $0x1090] sm:$0xff]
                %707 = vst [vmem:[%s149 + $0x8b0] sm:$0xff] %v706
                %v708 = vld [vmem:[%s148 + $0x1098] sm:$0xff]
                %709 = vst [vmem:[%s149 + $0x8b8] sm:$0xff] %v708
                %v710 = vld [vmem:[%s148 + $0x10a0] sm:$0xff]
                %711 = vst [vmem:[%s149 + $0x8c0] sm:$0xff] %v710
                %v712 = vld [vmem:[%s148 + $0x10a8] sm:$0xff]
                %713 = vst [vmem:[%s149 + $0x8c8] sm:$0xff] %v712
                %v714 = vld [vmem:[%s148 + $0x10b0] sm:$0xff]
                %715 = vst [vmem:[%s149 + $0x8d0] sm:$0xff] %v714
                %v716 = vld [vmem:[%s148 + $0x10b8] sm:$0xff]
                %717 = vst [vmem:[%s149 + $0x8d8] sm:$0xff] %v716
                %v718 = vld [vmem:[%s148 + $0x10c0] sm:$0xff]
                %719 = vst [vmem:[%s149 + $0x8e0] sm:$0xff] %v718
                %v720 = vld [vmem:[%s148 + $0x10c8] sm:$0xff]
                %721 = vst [vmem:[%s149 + $0x8e8] sm:$0xff] %v720
                %v722 = vld [vmem:[%s148 + $0x10d0] sm:$0xff]
                %723 = vst [vmem:[%s149 + $0x8f0] sm:$0xff] %v722
                %v724 = vld [vmem:[%s148 + $0x10d8] sm:$0xff]
                %725 = vst [vmem:[%s149 + $0x8f8] sm:$0xff] %v724
                %v726 = vld [vmem:[%s148 + $0x1200] sm:$0xff]
                %727 = vst [vmem:[%s149 + $0x900] sm:$0xff] %v726
                %v728 = vld [vmem:[%s148 + $0x1208] sm:$0xff]
                %729 = vst [vmem:[%s149 + $0x908] sm:$0xff] %v728
                %v730 = vld [vmem:[%s148 + $0x1210] sm:$0xff]
                %731 = vst [vmem:[%s149 + $0x910] sm:$0xff] %v730
                %v732 = vld [vmem:[%s148 + $0x1218] sm:$0xff]
                %733 = vst [vmem:[%s149 + $0x918] sm:$0xff] %v732
                %v734 = vld [vmem:[%s148 + $0x1220] sm:$0xff]
                %735 = vst [vmem:[%s149 + $0x920] sm:$0xff] %v734
                %v736 = vld [vmem:[%s148 + $0x1228] sm:$0xff]
                %737 = vst [vmem:[%s149 + $0x928] sm:$0xff] %v736
                %v738 = vld [vmem:[%s148 + $0x1230] sm:$0xff]
                %739 = vst [vmem:[%s149 + $0x930] sm:$0xff] %v738
                %v740 = vld [vmem:[%s148 + $0x1238] sm:$0xff]
                %741 = vst [vmem:[%s149 + $0x938] sm:$0xff] %v740
                %v742 = vld [vmem:[%s148 + $0x1240] sm:$0xff]
                %743 = vst [vmem:[%s149 + $0x940] sm:$0xff] %v742
                %v744 = vld [vmem:[%s148 + $0x1248] sm:$0xff]
                %745 = vst [vmem:[%s149 + $0x948] sm:$0xff] %v744
                %v746 = vld [vmem:[%s148 + $0x1250] sm:$0xff]
                %747 = vst [vmem:[%s149 + $0x950] sm:$0xff] %v746
                %v748 = vld [vmem:[%s148 + $0x1258] sm:$0xff]
                %749 = vst [vmem:[%s149 + $0x958] sm:$0xff] %v748
                %v750 = vld [vmem:[%s148 + $0x1260] sm:$0xff]
                %751 = vst [vmem:[%s149 + $0x960] sm:$0xff] %v750
                %v752 = vld [vmem:[%s148 + $0x1268] sm:$0xff]
                %753 = vst [vmem:[%s149 + $0x968] sm:$0xff] %v752
                %v754 = vld [vmem:[%s148 + $0x1270] sm:$0xff]
                %755 = vst [vmem:[%s149 + $0x970] sm:$0xff] %v754
                %v756 = vld [vmem:[%s148 + $0x1278] sm:$0xff]
                %757 = vst [vmem:[%s149 + $0x978] sm:$0xff] %v756
                %v758 = vld [vmem:[%s148 + $0x1280] sm:$0xff]
                %759 = vst [vmem:[%s149 + $0x980] sm:$0xff] %v758
                %v760 = vld [vmem:[%s148 + $0x1288] sm:$0xff]
                %761 = vst [vmem:[%s149 + $0x988] sm:$0xff] %v760
                %v762 = vld [vmem:[%s148 + $0x1290] sm:$0xff]
                %763 = vst [vmem:[%s149 + $0x990] sm:$0xff] %v762
                %v764 = vld [vmem:[%s148 + $0x1298] sm:$0xff]
                %765 = vst [vmem:[%s149 + $0x998] sm:$0xff] %v764
                %v766 = vld [vmem:[%s148 + $0x12a0] sm:$0xff]
                %767 = vst [vmem:[%s149 + $0x9a0] sm:$0xff] %v766
                %v768 = vld [vmem:[%s148 + $0x12a8] sm:$0xff]
                %769 = vst [vmem:[%s149 + $0x9a8] sm:$0xff] %v768
                %v770 = vld [vmem:[%s148 + $0x12b0] sm:$0xff]
                %771 = vst [vmem:[%s149 + $0x9b0] sm:$0xff] %v770
                %v772 = vld [vmem:[%s148 + $0x12b8] sm:$0xff]
                %773 = vst [vmem:[%s149 + $0x9b8] sm:$0xff] %v772
                %v774 = vld [vmem:[%s148 + $0x12c0] sm:$0xff]
                %775 = vst [vmem:[%s149 + $0x9c0] sm:$0xff] %v774
                %v776 = vld [vmem:[%s148 + $0x12c8] sm:$0xff]
                %777 = vst [vmem:[%s149 + $0x9c8] sm:$0xff] %v776
                %v778 = vld [vmem:[%s148 + $0x12d0] sm:$0xff]
                %779 = vst [vmem:[%s149 + $0x9d0] sm:$0xff] %v778
                %v780 = vld [vmem:[%s148 + $0x12d8] sm:$0xff]
                %781 = vst [vmem:[%s149 + $0x9d8] sm:$0xff] %v780
                %v782 = vld [vmem:[%s148 + $0x12e0] sm:$0xff]
                %783 = vst [vmem:[%s149 + $0x9e0] sm:$0xff] %v782
                %v784 = vld [vmem:[%s148 + $0x12e8] sm:$0xff]
                %785 = vst [vmem:[%s149 + $0x9e8] sm:$0xff] %v784
                %v786 = vld [vmem:[%s148 + $0x12f0] sm:$0xff]
                %787 = vst [vmem:[%s149 + $0x9f0] sm:$0xff] %v786
                %v788 = vld [vmem:[%s148 + $0x12f8] sm:$0xff]
                %789 = vst [vmem:[%s149 + $0x9f8] sm:$0xff] %v788
                %v790 = vld [vmem:[%s148 + $0x1300] sm:$0xff]
                %791 = vst [vmem:[%s149 + $0xa00] sm:$0xff] %v790
                %v792 = vld [vmem:[%s148 + $0x1308] sm:$0xff]
                %793 = vst [vmem:[%s149 + $0xa08] sm:$0xff] %v792
                %v794 = vld [vmem:[%s148 + $0x1310] sm:$0xff]
                %795 = vst [vmem:[%s149 + $0xa10] sm:$0xff] %v794
                %v796 = vld [vmem:[%s148 + $0x1318] sm:$0xff]
                %797 = vst [vmem:[%s149 + $0xa18] sm:$0xff] %v796
                %v798 = vld [vmem:[%s148 + $0x1440] sm:$0xff]
                %799 = vst [vmem:[%s149 + $0xa20] sm:$0xff] %v798
                %v800 = vld [vmem:[%s148 + $0x1448] sm:$0xff]
                %801 = vst [vmem:[%s149 + $0xa28] sm:$0xff] %v800
                %v802 = vld [vmem:[%s148 + $0x1450] sm:$0xff]
                %803 = vst [vmem:[%s149 + $0xa30] sm:$0xff] %v802
                %v804 = vld [vmem:[%s148 + $0x1458] sm:$0xff]
                %805 = vst [vmem:[%s149 + $0xa38] sm:$0xff] %v804
                %v806 = vld [vmem:[%s148 + $0x1460] sm:$0xff]
                %807 = vst [vmem:[%s149 + $0xa40] sm:$0xff] %v806
                %v808 = vld [vmem:[%s148 + $0x1468] sm:$0xff]
                %809 = vst [vmem:[%s149 + $0xa48] sm:$0xff] %v808
                %v810 = vld [vmem:[%s148 + $0x1470] sm:$0xff]
                %811 = vst [vmem:[%s149 + $0xa50] sm:$0xff] %v810
                %v812 = vld [vmem:[%s148 + $0x1478] sm:$0xff]
                %813 = vst [vmem:[%s149 + $0xa58] sm:$0xff] %v812
                %v814 = vld [vmem:[%s148 + $0x1480] sm:$0xff]
                %815 = vst [vmem:[%s149 + $0xa60] sm:$0xff] %v814
                %v816 = vld [vmem:[%s148 + $0x1488] sm:$0xff]
                %817 = vst [vmem:[%s149 + $0xa68] sm:$0xff] %v816
                %v818 = vld [vmem:[%s148 + $0x1490] sm:$0xff]
                %819 = vst [vmem:[%s149 + $0xa70] sm:$0xff] %v818
                %v820 = vld [vmem:[%s148 + $0x1498] sm:$0xff]
                %821 = vst [vmem:[%s149 + $0xa78] sm:$0xff] %v820
                %v822 = vld [vmem:[%s148 + $0x14a0] sm:$0xff]
                %823 = vst [vmem:[%s149 + $0xa80] sm:$0xff] %v822
                %v824 = vld [vmem:[%s148 + $0x14a8] sm:$0xff]
                %825 = vst [vmem:[%s149 + $0xa88] sm:$0xff] %v824
                %v826 = vld [vmem:[%s148 + $0x14b0] sm:$0xff]
                %827 = vst [vmem:[%s149 + $0xa90] sm:$0xff] %v826
                %v828 = vld [vmem:[%s148 + $0x14b8] sm:$0xff]
                %829 = vst [vmem:[%s149 + $0xa98] sm:$0xff] %v828
                %v830 = vld [vmem:[%s148 + $0x14c0] sm:$0xff]
                %831 = vst [vmem:[%s149 + $0xaa0] sm:$0xff] %v830
                %v832 = vld [vmem:[%s148 + $0x14c8] sm:$0xff]
                %833 = vst [vmem:[%s149 + $0xaa8] sm:$0xff] %v832
                %v834 = vld [vmem:[%s148 + $0x14d0] sm:$0xff]
                %835 = vst [vmem:[%s149 + $0xab0] sm:$0xff] %v834
                %v836 = vld [vmem:[%s148 + $0x14d8] sm:$0xff]
                %837 = vst [vmem:[%s149 + $0xab8] sm:$0xff] %v836
                %v838 = vld [vmem:[%s148 + $0x14e0] sm:$0xff]
                %839 = vst [vmem:[%s149 + $0xac0] sm:$0xff] %v838
                %v840 = vld [vmem:[%s148 + $0x14e8] sm:$0xff]
                %841 = vst [vmem:[%s149 + $0xac8] sm:$0xff] %v840
                %v842 = vld [vmem:[%s148 + $0x14f0] sm:$0xff]
                %843 = vst [vmem:[%s149 + $0xad0] sm:$0xff] %v842
                %v844 = vld [vmem:[%s148 + $0x14f8] sm:$0xff]
                %845 = vst [vmem:[%s149 + $0xad8] sm:$0xff] %v844
                %v846 = vld [vmem:[%s148 + $0x1500] sm:$0xff]
                %847 = vst [vmem:[%s149 + $0xae0] sm:$0xff] %v846
                %v848 = vld [vmem:[%s148 + $0x1508] sm:$0xff]
                %849 = vst [vmem:[%s149 + $0xae8] sm:$0xff] %v848
                %v850 = vld [vmem:[%s148 + $0x1510] sm:$0xff]
                %851 = vst [vmem:[%s149 + $0xaf0] sm:$0xff] %v850
                %v852 = vld [vmem:[%s148 + $0x1518] sm:$0xff]
                %853 = vst [vmem:[%s149 + $0xaf8] sm:$0xff] %v852
                %v854 = vld [vmem:[%s148 + $0x1520] sm:$0xff]
                %855 = vst [vmem:[%s149 + $0xb00] sm:$0xff] %v854
                %v856 = vld [vmem:[%s148 + $0x1528] sm:$0xff]
                %857 = vst [vmem:[%s149 + $0xb08] sm:$0xff] %v856
                %v858 = vld [vmem:[%s148 + $0x1530] sm:$0xff]
                %859 = vst [vmem:[%s149 + $0xb10] sm:$0xff] %v858
                %v860 = vld [vmem:[%s148 + $0x1538] sm:$0xff]
                %861 = vst [vmem:[%s149 + $0xb18] sm:$0xff] %v860
                %v862 = vld [vmem:[%s148 + $0x1540] sm:$0xff]
                %863 = vst [vmem:[%s149 + $0xb20] sm:$0xff] %v862
                %v864 = vld [vmem:[%s148 + $0x1548] sm:$0xff]
                %865 = vst [vmem:[%s149 + $0xb28] sm:$0xff] %v864
                %v866 = vld [vmem:[%s148 + $0x1550] sm:$0xff]
                %867 = vst [vmem:[%s149 + $0xb30] sm:$0xff] %v866
                %v868 = vld [vmem:[%s148 + $0x1558] sm:$0xff]
                %869 = vst [vmem:[%s149 + $0xb38] sm:$0xff] %v868
              $region41: #{net_forward.3} parent=35 // loop_footer
                %s147 = sadd.s32 1, %s143
              $region42: #{net_forward.3} parent=35 // loop_footer_branch
                %142 = sbr.rel target = $region38
              $region43: #{net_forward.3} parent=35 // loop_exit
                _
            $region36: #{net_forward.3} parent=31 // pred_fallthru
              _
            // Predicated region
            $region44: #{net_forward.3} parent=31 // pred_check
              _
            $region45: #{net_forward.3} parent=31 // pred_check_branch
              %871 = sbr.rel target = $region47
            $region46: #{net_forward.3} parent=31 // pred_region
              _
            $region47: #{net_forward.3} parent=31 // pred_fallthru
              _
          $region32: #{net_forward.3} parent=27 // pred_fallthru
            _
          %872 = vnop
        $region28: #{net_forward.3} parent=23 // pred_fallthru
          _
      $region24: #{net_forward.3} parent=5 // pred_fallthru
        _
      %p873 = scmp.le.s32.totalorder 1, %s9
      %p874 = scmp.lt.s32.totalorder %s9, 3
      %p875 = pnand %p873, %p874
      %p876 = pneg %p875
      // Predicated region
      $region48: #{net_forward.3} parent=5 // pred_check
        _
      $region49: #{net_forward.3} parent=5 // pred_check_branch
        %878 = sbr.rel (%p875) target = $region51
      $region50: #{net_forward.3} parent=5 // pred_region
        %s879 = ssub.s32 %s9, 1
        %s880 = sand.u32 %s22, 1
        %s881 = sand.u32 %s22, 1
        %s882 = smul.addr %s881, 2880
        %s883 = scalar_lea.vmem [#allocation2], %s882
        // Predicated region
        $region52: #{net_forward.3} parent=50 // pred_check
          %p884 = pneg %p35
        $region53: #{net_forward.3} parent=50 // pred_check_branch
          %886 = sbr.rel (%p884) target = $region55
        $region54: #{net_forward.3} parent=50 // pred_region
          _
        $region55: #{net_forward.3} parent=50 // pred_fallthru
          _
        %s887 = sand.u32 %s22, 1
        %s888 = sand.u32 %s22, 1
        %s889 = smul.addr %s888, 2880
        %s890 = scalar_lea.vmem [#allocation2], %s889
        %p891 = pneg %p35
        %p892 = pneg %p32
        %p893 = pneg %p56
        %p894 = pneg %p53
        %p895 = pneg %p77
        %p896 = pneg %p74
        %p897 = pneg %p103
        %p898 = pneg %p100
        %s899 = smul.u32 18, %s14
        %p900 = scmp.lt.s32.totalorder %s899, 35
        %s901 = scalar_select %p900, %s899, 35
        %s902 = smul.addr %s901, 8
        %s903 = scalar_lea.vmem %s3, %s902
        %s904 = smul.u32 72, %s14
        %s905 = smul.u32 18, %s14
        %p906 = scmp.lt.s32.totalorder %s905, 35
        %s907 = scalar_select %p906, %s905, 35
        %s908 = smul.addr %s907, 8
        %s909 = scalar_lea.vmem %s3, %s908
        %s910 = smul.u32 18, %s14
        %v912 = vld [vmem:[%s1] sm:$0x7]
        %v913 = vld [vmem:[%s883] sm:$0xff]
        %v914 = vld [vmem:[%s883 + $0x8] sm:$0xff]
        %v915 = vld [vmem:[%s883 + $0x10] sm:$0xff]
        %v916 = vld [vmem:[%s883 + $0x18] sm:$0xff]
        %v917 = vld [vmem:[%s883 + $0x20] sm:$0xff]
        %v918 = vld [vmem:[%s883 + $0x28] sm:$0xff]
        %v919 = vld [vmem:[%s883 + $0x30] sm:$0xff]
        %v920 = vld [vmem:[%s883 + $0x38] sm:$0xff]
        %v921 = vld [vmem:[%s883 + $0x40] sm:$0xff]
        %v922 = vld [vmem:[%s883 + $0x48] sm:$0xff]
        %v923 = vld [vmem:[%s883 + $0x50] sm:$0xff]
        %v924 = vld [vmem:[%s883 + $0x58] sm:$0xff]
        %v925 = vld [vmem:[%s883 + $0x60] sm:$0xff]
        %v926 = vld [vmem:[%s883 + $0x68] sm:$0xff]
        %v927 = vld [vmem:[%s883 + $0x70] sm:$0xff]
        %v928 = vld [vmem:[%s883 + $0x78] sm:$0xff]
        %v929 = vld [vmem:[%s883 + $0x80] sm:$0xff]
        %v930 = vld [vmem:[%s883 + $0x88] sm:$0xff]
        %v931 = vld [vmem:[%s883 + $0x90] sm:$0xff]
        %v932 = vld [vmem:[%s883 + $0x98] sm:$0xff]
        %v933 = vld [vmem:[%s883 + $0xa0] sm:$0xff]
        %v934 = vld [vmem:[%s883 + $0xa8] sm:$0xff]
        %v935 = vld [vmem:[%s883 + $0xb0] sm:$0xff]
        %v936 = vld [vmem:[%s883 + $0xb8] sm:$0xff]
        %v937 = vld [vmem:[%s883 + $0xc0] sm:$0xff]
        %v938 = vld [vmem:[%s883 + $0xc8] sm:$0xff]
        %v939 = vld [vmem:[%s883 + $0xd0] sm:$0xff]
        %v940 = vld [vmem:[%s883 + $0xd8] sm:$0xff]
        %v941 = vld [vmem:[%s883 + $0xe0] sm:$0xff]
        %v942 = vld [vmem:[%s883 + $0xe8] sm:$0xff]
        %v943 = vld [vmem:[%s883 + $0xf0] sm:$0xff]
        %v944 = vld [vmem:[%s883 + $0xf8] sm:$0xff]
        %v945 = vld [vmem:[%s883 + $0x100] sm:$0xff]
        %v946 = vld [vmem:[%s883 + $0x108] sm:$0xff]
        %v947 = vld [vmem:[%s883 + $0x110] sm:$0xff]
        %v948 = vld [vmem:[%s883 + $0x118] sm:$0xff]
        %v949 = vld [vmem:[%s883 + $0x120] sm:$0xff]
        %v950 = vld [vmem:[%s883 + $0x128] sm:$0xff]
        %v951 = vld [vmem:[%s883 + $0x130] sm:$0xff]
        %v952 = vld [vmem:[%s883 + $0x138] sm:$0xff]
        %v953 = vld [vmem:[%s883 + $0x140] sm:$0xff]
        %v954 = vld [vmem:[%s883 + $0x148] sm:$0xff]
        %v955 = vld [vmem:[%s883 + $0x150] sm:$0xff]
        %v956 = vld [vmem:[%s883 + $0x158] sm:$0xff]
        %v957 = vld [vmem:[%s883 + $0x160] sm:$0xff]
        %v958 = vld [vmem:[%s883 + $0x168] sm:$0xff]
        %v959 = vld [vmem:[%s883 + $0x170] sm:$0xff]
        %v960 = vld [vmem:[%s883 + $0x178] sm:$0xff]
        %v961 = vld [vmem:[%s883 + $0x180] sm:$0xff]
        %v962 = vld [vmem:[%s883 + $0x188] sm:$0xff]
        %v963 = vld [vmem:[%s883 + $0x190] sm:$0xff]
        %v964 = vld [vmem:[%s883 + $0x198] sm:$0xff]
        %v965 = vld [vmem:[%s883 + $0x1a0] sm:$0xff]
        %v966 = vld [vmem:[%s883 + $0x1a8] sm:$0xff]
        %v967 = vld [vmem:[%s883 + $0x1b0] sm:$0xff]
        %v968 = vld [vmem:[%s883 + $0x1b8] sm:$0xff]
        %v969 = vld [vmem:[%s883 + $0x1c0] sm:$0xff]
        %v970 = vld [vmem:[%s883 + $0x1c8] sm:$0xff]
        %v971 = vld [vmem:[%s883 + $0x1d0] sm:$0xff]
        %v972 = vld [vmem:[%s883 + $0x1d8] sm:$0xff]
        %v973 = vld [vmem:[%s883 + $0x1e0] sm:$0xff]
        %v974 = vld [vmem:[%s883 + $0x1e8] sm:$0xff]
        %v975 = vld [vmem:[%s883 + $0x1f0] sm:$0xff]
        %v976 = vld [vmem:[%s883 + $0x1f8] sm:$0xff]
        %v977 = vld [vmem:[%s883 + $0x200] sm:$0xff]
        %v978 = vld [vmem:[%s883 + $0x208] sm:$0xff]
        %v979 = vld [vmem:[%s883 + $0x210] sm:$0xff]
        %v980 = vld [vmem:[%s883 + $0x218] sm:$0xff]
        %v981 = vld [vmem:[%s883 + $0x220] sm:$0xff]
        %v982 = vld [vmem:[%s883 + $0x228] sm:$0xff]
        %v983 = vld [vmem:[%s883 + $0x230] sm:$0xff]
        %v984 = vld [vmem:[%s883 + $0x238] sm:$0xff]
        %v985 = vld [vmem:[%s883 + $0x240] sm:$0xff]
        %v986 = vld [vmem:[%s883 + $0x248] sm:$0xff]
        %v987 = vld [vmem:[%s883 + $0x250] sm:$0xff]
        %v988 = vld [vmem:[%s883 + $0x258] sm:$0xff]
        %v989 = vld [vmem:[%s883 + $0x260] sm:$0xff]
        %v990 = vld [vmem:[%s883 + $0x268] sm:$0xff]
        %v991 = vld [vmem:[%s883 + $0x270] sm:$0xff]
        %v992 = vld [vmem:[%s883 + $0x278] sm:$0xff]
        %v993 = vld [vmem:[%s883 + $0x280] sm:$0xff]
        %v994 = vld [vmem:[%s883 + $0x288] sm:$0xff]
        %v995 = vld [vmem:[%s883 + $0x290] sm:$0xff]
        %v996 = vld [vmem:[%s883 + $0x298] sm:$0xff]
        %v997 = vld [vmem:[%s883 + $0x2a0] sm:$0xff]
        %v998 = vld [vmem:[%s883 + $0x2a8] sm:$0xff]
        %v999 = vld [vmem:[%s883 + $0x2b0] sm:$0xff]
        %v1000 = vld [vmem:[%s883 + $0x2b8] sm:$0xff]
        %v1001 = vld [vmem:[%s883 + $0x2c0] sm:$0xff]
        %v1002 = vld [vmem:[%s883 + $0x2c8] sm:$0xff]
        %v1003 = vld [vmem:[%s883 + $0x2d0] sm:$0xff]
        %v1004 = vld [vmem:[%s883 + $0x2d8] sm:$0xff]
        %v1005 = vld [vmem:[%s883 + $0x2e0] sm:$0xff]
        %v1006 = vld [vmem:[%s883 + $0x2e8] sm:$0xff]
        %v1007 = vld [vmem:[%s883 + $0x2f0] sm:$0xff]
        %v1008 = vld [vmem:[%s883 + $0x2f8] sm:$0xff]
        %v1009 = vld [vmem:[%s883 + $0x300] sm:$0xff]
        %v1010 = vld [vmem:[%s883 + $0x308] sm:$0xff]
        %v1011 = vld [vmem:[%s883 + $0x310] sm:$0xff]
        %v1012 = vld [vmem:[%s883 + $0x318] sm:$0xff]
        %v1013 = vld [vmem:[%s883 + $0x320] sm:$0xff]
        %v1014 = vld [vmem:[%s883 + $0x328] sm:$0xff]
        %v1015 = vld [vmem:[%s883 + $0x330] sm:$0xff]
        %v1016 = vld [vmem:[%s883 + $0x338] sm:$0xff]
        %v1017 = vld [vmem:[%s883 + $0x340] sm:$0xff]
        %v1018 = vld [vmem:[%s883 + $0x348] sm:$0xff]
        %v1019 = vld [vmem:[%s883 + $0x350] sm:$0xff]
        %v1020 = vld [vmem:[%s883 + $0x358] sm:$0xff]
        %v1021 = vld [vmem:[%s883 + $0x360] sm:$0xff]
        %v1022 = vld [vmem:[%s883 + $0x368] sm:$0xff]
        %v1023 = vld [vmem:[%s883 + $0x370] sm:$0xff]
        %v1024 = vld [vmem:[%s883 + $0x378] sm:$0xff]
        %v1025 = vld [vmem:[%s883 + $0x380] sm:$0xff]
        %v1026 = vld [vmem:[%s883 + $0x388] sm:$0xff]
        %v1027 = vld [vmem:[%s883 + $0x390] sm:$0xff]
        %v1028 = vld [vmem:[%s883 + $0x398] sm:$0xff]
        %v1029 = vld [vmem:[%s883 + $0x3a0] sm:$0xff]
        %v1030 = vld [vmem:[%s883 + $0x3a8] sm:$0xff]
        %v1031 = vld [vmem:[%s883 + $0x3b0] sm:$0xff]
        %v1032 = vld [vmem:[%s883 + $0x3b8] sm:$0xff]
        %v1033 = vld [vmem:[%s883 + $0x3c0] sm:$0xff]
        %v1034 = vld [vmem:[%s883 + $0x3c8] sm:$0xff]
        %v1035 = vld [vmem:[%s883 + $0x3d0] sm:$0xff]
        %v1036 = vld [vmem:[%s883 + $0x3d8] sm:$0xff]
        %v1037 = vld [vmem:[%s883 + $0x3e0] sm:$0xff]
        %v1038 = vld [vmem:[%s883 + $0x3e8] sm:$0xff]
        %v1039 = vld [vmem:[%s883 + $0x3f0] sm:$0xff]
        %v1040 = vld [vmem:[%s883 + $0x3f8] sm:$0xff]
        %v1041 = vld [vmem:[%s883 + $0x400] sm:$0xff]
        %v1042 = vld [vmem:[%s883 + $0x408] sm:$0xff]
        %v1043 = vld [vmem:[%s883 + $0x410] sm:$0xff]
        %v1044 = vld [vmem:[%s883 + $0x418] sm:$0xff]
        %v1045 = vld [vmem:[%s883 + $0x420] sm:$0xff]
        %v1046 = vld [vmem:[%s883 + $0x428] sm:$0xff]
        %v1047 = vld [vmem:[%s883 + $0x430] sm:$0xff]
        %v1048 = vld [vmem:[%s883 + $0x438] sm:$0xff]
        %v1049 = vld [vmem:[%s883 + $0x440] sm:$0xff]
        %v1050 = vld [vmem:[%s883 + $0x448] sm:$0xff]
        %v1051 = vld [vmem:[%s883 + $0x450] sm:$0xff]
        %v1052 = vld [vmem:[%s883 + $0x458] sm:$0xff]
        %v1053 = vld [vmem:[%s883 + $0x460] sm:$0xff]
        %v1054 = vld [vmem:[%s883 + $0x468] sm:$0xff]
        %v1055 = vld [vmem:[%s883 + $0x470] sm:$0xff]
        %v1056 = vld [vmem:[%s883 + $0x478] sm:$0xff]
        %v1057 = vld [vmem:[%s883 + $0x480] sm:$0xff]
        %v1058 = vld [vmem:[%s883 + $0x488] sm:$0xff]
        %v1059 = vld [vmem:[%s883 + $0x490] sm:$0xff]
        %v1060 = vld [vmem:[%s883 + $0x498] sm:$0xff]
        %v1061 = vld [vmem:[%s883 + $0x4a0] sm:$0xff]
        %v1062 = vld [vmem:[%s883 + $0x4a8] sm:$0xff]
        %v1063 = vld [vmem:[%s883 + $0x4b0] sm:$0xff]
        %v1064 = vld [vmem:[%s883 + $0x4b8] sm:$0xff]
        %v1065 = vld [vmem:[%s883 + $0x4c0] sm:$0xff]
        %v1066 = vld [vmem:[%s883 + $0x4c8] sm:$0xff]
        %v1067 = vld [vmem:[%s883 + $0x4d0] sm:$0xff]
        %v1068 = vld [vmem:[%s883 + $0x4d8] sm:$0xff]
        %v1069 = vld [vmem:[%s883 + $0x4e0] sm:$0xff]
        %v1070 = vld [vmem:[%s883 + $0x4e8] sm:$0xff]
        %v1071 = vld [vmem:[%s883 + $0x4f0] sm:$0xff]
        %v1072 = vld [vmem:[%s883 + $0x4f8] sm:$0xff]
        %v1073 = vld [vmem:[%s883 + $0x500] sm:$0xff]
        %v1074 = vld [vmem:[%s883 + $0x508] sm:$0xff]
        %v1075 = vld [vmem:[%s883 + $0x510] sm:$0xff]
        %v1076 = vld [vmem:[%s883 + $0x518] sm:$0xff]
        %v1077 = vld [vmem:[%s883 + $0x520] sm:$0xff]
        %v1078 = vld [vmem:[%s883 + $0x528] sm:$0xff]
        %v1079 = vld [vmem:[%s883 + $0x530] sm:$0xff]
        %v1080 = vld [vmem:[%s883 + $0x538] sm:$0xff]
        %v1081 = vld [vmem:[%s883 + $0x540] sm:$0xff]
        %v1082 = vld [vmem:[%s883 + $0x548] sm:$0xff]
        %v1083 = vld [vmem:[%s883 + $0x550] sm:$0xff]
        %v1084 = vld [vmem:[%s883 + $0x558] sm:$0xff]
        %v1085 = vld [vmem:[%s883 + $0x560] sm:$0xff]
        %v1086 = vld [vmem:[%s883 + $0x568] sm:$0xff]
        %v1087 = vld [vmem:[%s883 + $0x570] sm:$0xff]
        %v1088 = vld [vmem:[%s883 + $0x578] sm:$0xff]
        %v1089 = vld [vmem:[%s883 + $0x580] sm:$0xff]
        %v1090 = vld [vmem:[%s883 + $0x588] sm:$0xff]
        %v1091 = vld [vmem:[%s883 + $0x590] sm:$0xff]
        %v1092 = vld [vmem:[%s883 + $0x598] sm:$0xff]
        %v1093 = vld [vmem:[%s883 + $0x5a0] sm:$0xff]
        %v1094 = vld [vmem:[%s883 + $0x5a8] sm:$0xff]
        %v1095 = vld [vmem:[%s883 + $0x5b0] sm:$0xff]
        %v1096 = vld [vmem:[%s883 + $0x5b8] sm:$0xff]
        %v1097 = vld [vmem:[%s883 + $0x5c0] sm:$0xff]
        %v1098 = vld [vmem:[%s883 + $0x5c8] sm:$0xff]
        %v1099 = vld [vmem:[%s883 + $0x5d0] sm:$0xff]
        %v1100 = vld [vmem:[%s883 + $0x5d8] sm:$0xff]
        %v1101 = vld [vmem:[%s883 + $0x5e0] sm:$0xff]
        %v1102 = vld [vmem:[%s883 + $0x5e8] sm:$0xff]
        %v1103 = vld [vmem:[%s883 + $0x5f0] sm:$0xff]
        %v1104 = vld [vmem:[%s883 + $0x5f8] sm:$0xff]
        %v1105 = vld [vmem:[%s883 + $0x600] sm:$0xff]
        %v1106 = vld [vmem:[%s883 + $0x608] sm:$0xff]
        %v1107 = vld [vmem:[%s883 + $0x610] sm:$0xff]
        %v1108 = vld [vmem:[%s883 + $0x618] sm:$0xff]
        %v1109 = vld [vmem:[%s883 + $0x620] sm:$0xff]
        %v1110 = vld [vmem:[%s883 + $0x628] sm:$0xff]
        %v1111 = vld [vmem:[%s883 + $0x630] sm:$0xff]
        %v1112 = vld [vmem:[%s883 + $0x638] sm:$0xff]
        %v1113 = vld [vmem:[%s883 + $0x640] sm:$0xff]
        %v1114 = vld [vmem:[%s883 + $0x648] sm:$0xff]
        %v1115 = vld [vmem:[%s883 + $0x650] sm:$0xff]
        %v1116 = vld [vmem:[%s883 + $0x658] sm:$0xff]
        %v1117 = vld [vmem:[%s883 + $0x660] sm:$0xff]
        %v1118 = vld [vmem:[%s883 + $0x668] sm:$0xff]
        %v1119 = vld [vmem:[%s883 + $0x670] sm:$0xff]
        %v1120 = vld [vmem:[%s883 + $0x678] sm:$0xff]
        %v1121 = vld [vmem:[%s883 + $0x680] sm:$0xff]
        %v1122 = vld [vmem:[%s883 + $0x688] sm:$0xff]
        %v1123 = vld [vmem:[%s883 + $0x690] sm:$0xff]
        %v1124 = vld [vmem:[%s883 + $0x698] sm:$0xff]
        %v1125 = vld [vmem:[%s883 + $0x6a0] sm:$0xff]
        %v1126 = vld [vmem:[%s883 + $0x6a8] sm:$0xff]
        %v1127 = vld [vmem:[%s883 + $0x6b0] sm:$0xff]
        %v1128 = vld [vmem:[%s883 + $0x6b8] sm:$0xff]
        %v1129 = vld [vmem:[%s883 + $0x6c0] sm:$0xff]
        %v1130 = vld [vmem:[%s883 + $0x6c8] sm:$0xff]
        %v1131 = vld [vmem:[%s883 + $0x6d0] sm:$0xff]
        %v1132 = vld [vmem:[%s883 + $0x6d8] sm:$0xff]
        %v1133 = vld [vmem:[%s883 + $0x6e0] sm:$0xff]
        %v1134 = vld [vmem:[%s883 + $0x6e8] sm:$0xff]
        %v1135 = vld [vmem:[%s883 + $0x6f0] sm:$0xff]
        %v1136 = vld [vmem:[%s883 + $0x6f8] sm:$0xff]
        %v1137 = vld [vmem:[%s883 + $0x700] sm:$0xff]
        %v1138 = vld [vmem:[%s883 + $0x708] sm:$0xff]
        %v1139 = vld [vmem:[%s883 + $0x710] sm:$0xff]
        %v1140 = vld [vmem:[%s883 + $0x718] sm:$0xff]
        %v1141 = vld [vmem:[%s883 + $0x720] sm:$0xff]
        %v1142 = vld [vmem:[%s883 + $0x728] sm:$0xff]
        %v1143 = vld [vmem:[%s883 + $0x730] sm:$0xff]
        %v1144 = vld [vmem:[%s883 + $0x738] sm:$0xff]
        %v1145 = vld [vmem:[%s883 + $0x740] sm:$0xff]
        %v1146 = vld [vmem:[%s883 + $0x748] sm:$0xff]
        %v1147 = vld [vmem:[%s883 + $0x750] sm:$0xff]
        %v1148 = vld [vmem:[%s883 + $0x758] sm:$0xff]
        %v1149 = vld [vmem:[%s883 + $0x760] sm:$0xff]
        %v1150 = vld [vmem:[%s883 + $0x768] sm:$0xff]
        %v1151 = vld [vmem:[%s883 + $0x770] sm:$0xff]
        %v1152 = vld [vmem:[%s883 + $0x778] sm:$0xff]
        %v1153 = vld [vmem:[%s883 + $0x780] sm:$0xff]
        %v1154 = vld [vmem:[%s883 + $0x788] sm:$0xff]
        %v1155 = vld [vmem:[%s883 + $0x790] sm:$0xff]
        %v1156 = vld [vmem:[%s883 + $0x798] sm:$0xff]
        %v1157 = vld [vmem:[%s883 + $0x7a0] sm:$0xff]
        %v1158 = vld [vmem:[%s883 + $0x7a8] sm:$0xff]
        %v1159 = vld [vmem:[%s883 + $0x7b0] sm:$0xff]
        %v1160 = vld [vmem:[%s883 + $0x7b8] sm:$0xff]
        %v1161 = vld [vmem:[%s883 + $0x7c0] sm:$0xff]
        %v1162 = vld [vmem:[%s883 + $0x7c8] sm:$0xff]
        %v1163 = vld [vmem:[%s883 + $0x7d0] sm:$0xff]
        %v1164 = vld [vmem:[%s883 + $0x7d8] sm:$0xff]
        %v1165 = vld [vmem:[%s883 + $0x7e0] sm:$0xff]
        %v1166 = vld [vmem:[%s883 + $0x7e8] sm:$0xff]
        %v1167 = vld [vmem:[%s883 + $0x7f0] sm:$0xff]
        %v1168 = vld [vmem:[%s883 + $0x7f8] sm:$0xff]
        %v1169 = vld [vmem:[%s883 + $0x800] sm:$0xff]
        %v1170 = vld [vmem:[%s883 + $0x808] sm:$0xff]
        %v1171 = vld [vmem:[%s883 + $0x810] sm:$0xff]
        %v1172 = vld [vmem:[%s883 + $0x818] sm:$0xff]
        %v1173 = vld [vmem:[%s883 + $0x820] sm:$0xff]
        %v1174 = vld [vmem:[%s883 + $0x828] sm:$0xff]
        %v1175 = vld [vmem:[%s883 + $0x830] sm:$0xff]
        %v1176 = vld [vmem:[%s883 + $0x838] sm:$0xff]
        %v1177 = vld [vmem:[%s883 + $0x840] sm:$0xff]
        %v1178 = vld [vmem:[%s883 + $0x848] sm:$0xff]
        %v1179 = vld [vmem:[%s883 + $0x850] sm:$0xff]
        %v1180 = vld [vmem:[%s883 + $0x858] sm:$0xff]
        %v1181 = vld [vmem:[%s883 + $0x860] sm:$0xff]
        %v1182 = vld [vmem:[%s883 + $0x868] sm:$0xff]
        %v1183 = vld [vmem:[%s883 + $0x870] sm:$0xff]
        %v1184 = vld [vmem:[%s883 + $0x878] sm:$0xff]
        %v1185 = vld [vmem:[%s883 + $0x880] sm:$0xff]
        %v1186 = vld [vmem:[%s883 + $0x888] sm:$0xff]
        %v1187 = vld [vmem:[%s883 + $0x890] sm:$0xff]
        %v1188 = vld [vmem:[%s883 + $0x898] sm:$0xff]
        %v1189 = vld [vmem:[%s883 + $0x8a0] sm:$0xff]
        %v1190 = vld [vmem:[%s883 + $0x8a8] sm:$0xff]
        %v1191 = vld [vmem:[%s883 + $0x8b0] sm:$0xff]
        %v1192 = vld [vmem:[%s883 + $0x8b8] sm:$0xff]
        %v1193 = vld [vmem:[%s883 + $0x8c0] sm:$0xff]
        %v1194 = vld [vmem:[%s883 + $0x8c8] sm:$0xff]
        %v1195 = vld [vmem:[%s883 + $0x8d0] sm:$0xff]
        %v1196 = vld [vmem:[%s883 + $0x8d8] sm:$0xff]
        %v1197 = vld [vmem:[%s883 + $0x8e0] sm:$0xff]
        %v1198 = vld [vmem:[%s883 + $0x8e8] sm:$0xff]
        %v1199 = vld [vmem:[%s883 + $0x8f0] sm:$0xff]
        %v1200 = vld [vmem:[%s883 + $0x8f8] sm:$0xff]
        %v1201 = vld [vmem:[%s883 + $0x900] sm:$0xff]
        %v1202 = vld [vmem:[%s883 + $0x908] sm:$0xff]
        %v1203 = vld [vmem:[%s883 + $0x910] sm:$0xff]
        %v1204 = vld [vmem:[%s883 + $0x918] sm:$0xff]
        %v1205 = vld [vmem:[%s883 + $0x920] sm:$0xff]
        %v1206 = vld [vmem:[%s883 + $0x928] sm:$0xff]
        %v1207 = vld [vmem:[%s883 + $0x930] sm:$0xff]
        %v1208 = vld [vmem:[%s883 + $0x938] sm:$0xff]
        %v1209 = vld [vmem:[%s883 + $0x940] sm:$0xff]
        %v1210 = vld [vmem:[%s883 + $0x948] sm:$0xff]
        %v1211 = vld [vmem:[%s883 + $0x950] sm:$0xff]
        %v1212 = vld [vmem:[%s883 + $0x958] sm:$0xff]
        %v1213 = vld [vmem:[%s883 + $0x960] sm:$0xff]
        %v1214 = vld [vmem:[%s883 + $0x968] sm:$0xff]
        %v1215 = vld [vmem:[%s883 + $0x970] sm:$0xff]
        %v1216 = vld [vmem:[%s883 + $0x978] sm:$0xff]
        %v1217 = vld [vmem:[%s883 + $0x980] sm:$0xff]
        %v1218 = vld [vmem:[%s883 + $0x988] sm:$0xff]
        %v1219 = vld [vmem:[%s883 + $0x990] sm:$0xff]
        %v1220 = vld [vmem:[%s883 + $0x998] sm:$0xff]
        %v1221 = vld [vmem:[%s883 + $0x9a0] sm:$0xff]
        %v1222 = vld [vmem:[%s883 + $0x9a8] sm:$0xff]
        %v1223 = vld [vmem:[%s883 + $0x9b0] sm:$0xff]
        %v1224 = vld [vmem:[%s883 + $0x9b8] sm:$0xff]
        %v1225 = vld [vmem:[%s883 + $0x9c0] sm:$0xff]
        %v1226 = vld [vmem:[%s883 + $0x9c8] sm:$0xff]
        %v1227 = vld [vmem:[%s883 + $0x9d0] sm:$0xff]
        %v1228 = vld [vmem:[%s883 + $0x9d8] sm:$0xff]
        %v1229 = vld [vmem:[%s883 + $0x9e0] sm:$0xff]
        %v1230 = vld [vmem:[%s883 + $0x9e8] sm:$0xff]
        %v1231 = vld [vmem:[%s883 + $0x9f0] sm:$0xff]
        %v1232 = vld [vmem:[%s883 + $0x9f8] sm:$0xff]
        %v1233 = vld [vmem:[%s883 + $0xa00] sm:$0xff]
        %v1234 = vld [vmem:[%s883 + $0xa08] sm:$0xff]
        %v1235 = vld [vmem:[%s883 + $0xa10] sm:$0xff]
        %v1236 = vld [vmem:[%s883 + $0xa18] sm:$0xff]
        %v1237 = vld [vmem:[%s883 + $0xa20] sm:$0x33]
        %v1238 = vld [vmem:[%s883 + $0xa28] sm:$0x33]
        %v1239 = vld [vmem:[%s883 + $0xa30] sm:$0x33]
        %v1240 = vld [vmem:[%s883 + $0xa38] sm:$0x33]
        %v1241 = vld [vmem:[%s883 + $0xa40] sm:$0x33]
        %v1242 = vld [vmem:[%s883 + $0xa48] sm:$0x33]
        %v1243 = vld [vmem:[%s883 + $0xa50] sm:$0x33]
        %v1244 = vld [vmem:[%s883 + $0xa58] sm:$0x33]
        %v1245 = vld [vmem:[%s883 + $0xa60] sm:$0x33]
        %v1246 = vld [vmem:[%s883 + $0xa68] sm:$0x33]
        %v1247 = vld [vmem:[%s883 + $0xa70] sm:$0x33]
        %v1248 = vld [vmem:[%s883 + $0xa78] sm:$0x33]
        %v1249 = vld [vmem:[%s883 + $0xa80] sm:$0x33]
        %v1250 = vld [vmem:[%s883 + $0xa88] sm:$0x33]
        %v1251 = vld [vmem:[%s883 + $0xa90] sm:$0x33]
        %v1252 = vld [vmem:[%s883 + $0xa98] sm:$0x33]
        %v1253 = vld [vmem:[%s883 + $0xaa0] sm:$0x33]
        %v1254 = vld [vmem:[%s883 + $0xaa8] sm:$0x33]
        %v1255 = vld [vmem:[%s883 + $0xab0] sm:$0x33]
        %v1256 = vld [vmem:[%s883 + $0xab8] sm:$0x33]
        %v1257 = vld [vmem:[%s883 + $0xac0] sm:$0x33]
        %v1258 = vld [vmem:[%s883 + $0xac8] sm:$0x33]
        %v1259 = vld [vmem:[%s883 + $0xad0] sm:$0x33]
        %v1260 = vld [vmem:[%s883 + $0xad8] sm:$0x33]
        %v1261 = vld [vmem:[%s883 + $0xae0] sm:$0x33]
        %v1262 = vld [vmem:[%s883 + $0xae8] sm:$0x33]
        %v1263 = vld [vmem:[%s883 + $0xaf0] sm:$0x33]
        %v1264 = vld [vmem:[%s883 + $0xaf8] sm:$0x33]
        %v1265 = vld [vmem:[%s883 + $0xb00] sm:$0x33]
        %v1266 = vld [vmem:[%s883 + $0xb08] sm:$0x33]
        %v1267 = vld [vmem:[%s883 + $0xb10] sm:$0x33]
        %v1268 = vld [vmem:[%s883 + $0xb18] sm:$0x33]
        %v1269 = vld [vmem:[%s883 + $0xb20] sm:$0x33]
        %v1270 = vld [vmem:[%s883 + $0xb28] sm:$0x33]
        %v1271 = vld [vmem:[%s883 + $0xb30] sm:$0x33]
        %v1272 = vld [vmem:[%s883 + $0xb38] sm:$0x33]
        %v1633 = vunpack.c.l.b16 %v913
        %v1634 = vunpack.c.h.b16 %v913
        %v1635 = vunpack.c.l.b16 %v914
        %v1636 = vunpack.c.h.b16 %v914
        %v1637 = vunpack.c.l.b16 %v915
        %v1638 = vunpack.c.h.b16 %v915
        %v1639 = vunpack.c.l.b16 %v916
        %v1640 = vunpack.c.h.b16 %v916
        %v1641 = vunpack.c.l.b16 %v917
        %v1642 = vunpack.c.h.b16 %v917
        %v1643 = vunpack.c.l.b16 %v918
        %v1644 = vunpack.c.h.b16 %v918
        %v1645 = vunpack.c.l.b16 %v919
        %v1646 = vunpack.c.h.b16 %v919
        %v1647 = vunpack.c.l.b16 %v920
        %v1648 = vunpack.c.h.b16 %v920
        %v1649 = vunpack.c.l.b16 %v921
        %v1650 = vunpack.c.h.b16 %v921
        %v1651 = vunpack.c.l.b16 %v922
        %v1652 = vunpack.c.h.b16 %v922
        %v1653 = vunpack.c.l.b16 %v923
        %v1654 = vunpack.c.h.b16 %v923
        %v1655 = vunpack.c.l.b16 %v924
        %v1656 = vunpack.c.h.b16 %v924
        %v1657 = vunpack.c.l.b16 %v925
        %v1658 = vunpack.c.h.b16 %v925
        %v1659 = vunpack.c.l.b16 %v926
        %v1660 = vunpack.c.h.b16 %v926
        %v1661 = vunpack.c.l.b16 %v927
        %v1662 = vunpack.c.h.b16 %v927
        %v1663 = vunpack.c.l.b16 %v928
        %v1664 = vunpack.c.h.b16 %v928
        %v1665 = vunpack.c.l.b16 %v929
        %v1666 = vunpack.c.h.b16 %v929
        %v1667 = vunpack.c.l.b16 %v930
        %v1668 = vunpack.c.h.b16 %v930
        %v1669 = vunpack.c.l.b16 %v931
        %v1670 = vunpack.c.h.b16 %v931
        %v1671 = vunpack.c.l.b16 %v932
        %v1672 = vunpack.c.h.b16 %v932
        %v1673 = vunpack.c.l.b16 %v933
        %v1674 = vunpack.c.h.b16 %v933
        %v1675 = vunpack.c.l.b16 %v934
        %v1676 = vunpack.c.h.b16 %v934
        %v1677 = vunpack.c.l.b16 %v935
        %v1678 = vunpack.c.h.b16 %v935
        %v1679 = vunpack.c.l.b16 %v936
        %v1680 = vunpack.c.h.b16 %v936
        %v1681 = vunpack.c.l.b16 %v937
        %v1682 = vunpack.c.h.b16 %v937
        %v1683 = vunpack.c.l.b16 %v938
        %v1684 = vunpack.c.h.b16 %v938
        %v1685 = vunpack.c.l.b16 %v939
        %v1686 = vunpack.c.h.b16 %v939
        %v1687 = vunpack.c.l.b16 %v940
        %v1688 = vunpack.c.h.b16 %v940
        %v1689 = vunpack.c.l.b16 %v941
        %v1690 = vunpack.c.h.b16 %v941
        %v1691 = vunpack.c.l.b16 %v942
        %v1692 = vunpack.c.h.b16 %v942
        %v1693 = vunpack.c.l.b16 %v943
        %v1694 = vunpack.c.h.b16 %v943
        %v1695 = vunpack.c.l.b16 %v944
        %v1696 = vunpack.c.h.b16 %v944
        %v1697 = vunpack.c.l.b16 %v945
        %v1698 = vunpack.c.h.b16 %v945
        %v1699 = vunpack.c.l.b16 %v946
        %v1700 = vunpack.c.h.b16 %v946
        %v1701 = vunpack.c.l.b16 %v947
        %v1702 = vunpack.c.h.b16 %v947
        %v1703 = vunpack.c.l.b16 %v948
        %v1704 = vunpack.c.h.b16 %v948
        %v1705 = vunpack.c.l.b16 %v949
        %v1706 = vunpack.c.h.b16 %v949
        %v1707 = vunpack.c.l.b16 %v950
        %v1708 = vunpack.c.h.b16 %v950
        %v1709 = vunpack.c.l.b16 %v951
        %v1710 = vunpack.c.h.b16 %v951
        %v1711 = vunpack.c.l.b16 %v952
        %v1712 = vunpack.c.h.b16 %v952
        %v1713 = vunpack.c.l.b16 %v953
        %v1714 = vunpack.c.h.b16 %v953
        %v1715 = vunpack.c.l.b16 %v954
        %v1716 = vunpack.c.h.b16 %v954
        %v1717 = vunpack.c.l.b16 %v955
        %v1718 = vunpack.c.h.b16 %v955
        %v1719 = vunpack.c.l.b16 %v956
        %v1720 = vunpack.c.h.b16 %v956
        %v1721 = vunpack.c.l.b16 %v957
        %v1722 = vunpack.c.h.b16 %v957
        %v1723 = vunpack.c.l.b16 %v958
        %v1724 = vunpack.c.h.b16 %v958
        %v1725 = vunpack.c.l.b16 %v959
        %v1726 = vunpack.c.h.b16 %v959
        %v1727 = vunpack.c.l.b16 %v960
        %v1728 = vunpack.c.h.b16 %v960
        %v1729 = vunpack.c.l.b16 %v961
        %v1730 = vunpack.c.h.b16 %v961
        %v1731 = vunpack.c.l.b16 %v962
        %v1732 = vunpack.c.h.b16 %v962
        %v1733 = vunpack.c.l.b16 %v963
        %v1734 = vunpack.c.h.b16 %v963
        %v1735 = vunpack.c.l.b16 %v964
        %v1736 = vunpack.c.h.b16 %v964
        %v1737 = vunpack.c.l.b16 %v965
        %v1738 = vunpack.c.h.b16 %v965
        %v1739 = vunpack.c.l.b16 %v966
        %v1740 = vunpack.c.h.b16 %v966
        %v1741 = vunpack.c.l.b16 %v967
        %v1742 = vunpack.c.h.b16 %v967
        %v1743 = vunpack.c.l.b16 %v968
        %v1744 = vunpack.c.h.b16 %v968
        %v1745 = vunpack.c.l.b16 %v969
        %v1746 = vunpack.c.h.b16 %v969
        %v1747 = vunpack.c.l.b16 %v970
        %v1748 = vunpack.c.h.b16 %v970
        %v1749 = vunpack.c.l.b16 %v971
        %v1750 = vunpack.c.h.b16 %v971
        %v1751 = vunpack.c.l.b16 %v972
        %v1752 = vunpack.c.h.b16 %v972
        %v1753 = vunpack.c.l.b16 %v973
        %v1754 = vunpack.c.h.b16 %v973
        %v1755 = vunpack.c.l.b16 %v974
        %v1756 = vunpack.c.h.b16 %v974
        %v1757 = vunpack.c.l.b16 %v975
        %v1758 = vunpack.c.h.b16 %v975
        %v1759 = vunpack.c.l.b16 %v976
        %v1760 = vunpack.c.h.b16 %v976
        %v1761 = vunpack.c.l.b16 %v977
        %v1762 = vunpack.c.h.b16 %v977
        %v1763 = vunpack.c.l.b16 %v978
        %v1764 = vunpack.c.h.b16 %v978
        %v1765 = vunpack.c.l.b16 %v979
        %v1766 = vunpack.c.h.b16 %v979
        %v1767 = vunpack.c.l.b16 %v980
        %v1768 = vunpack.c.h.b16 %v980
        %v1769 = vunpack.c.l.b16 %v981
        %v1770 = vunpack.c.h.b16 %v981
        %v1771 = vunpack.c.l.b16 %v982
        %v1772 = vunpack.c.h.b16 %v982
        %v1773 = vunpack.c.l.b16 %v983
        %v1774 = vunpack.c.h.b16 %v983
        %v1775 = vunpack.c.l.b16 %v984
        %v1776 = vunpack.c.h.b16 %v984
        %v1777 = vunpack.c.l.b16 %v985
        %v1778 = vunpack.c.h.b16 %v985
        %v1779 = vunpack.c.l.b16 %v986
        %v1780 = vunpack.c.h.b16 %v986
        %v1781 = vunpack.c.l.b16 %v987
        %v1782 = vunpack.c.h.b16 %v987
        %v1783 = vunpack.c.l.b16 %v988
        %v1784 = vunpack.c.h.b16 %v988
        %v1785 = vunpack.c.l.b16 %v989
        %v1786 = vunpack.c.h.b16 %v989
        %v1787 = vunpack.c.l.b16 %v990
        %v1788 = vunpack.c.h.b16 %v990
        %v1789 = vunpack.c.l.b16 %v991
        %v1790 = vunpack.c.h.b16 %v991
        %v1791 = vunpack.c.l.b16 %v992
        %v1792 = vunpack.c.h.b16 %v992
        %v1793 = vunpack.c.l.b16 %v993
        %v1794 = vunpack.c.h.b16 %v993
        %v1795 = vunpack.c.l.b16 %v994
        %v1796 = vunpack.c.h.b16 %v994
        %v1797 = vunpack.c.l.b16 %v995
        %v1798 = vunpack.c.h.b16 %v995
        %v1799 = vunpack.c.l.b16 %v996
        %v1800 = vunpack.c.h.b16 %v996
        %v1801 = vunpack.c.l.b16 %v997
        %v1802 = vunpack.c.h.b16 %v997
        %v1803 = vunpack.c.l.b16 %v998
        %v1804 = vunpack.c.h.b16 %v998
        %v1805 = vunpack.c.l.b16 %v999
        %v1806 = vunpack.c.h.b16 %v999
        %v1807 = vunpack.c.l.b16 %v1000
        %v1808 = vunpack.c.h.b16 %v1000
        %v1809 = vunpack.c.l.b16 %v1001
        %v1810 = vunpack.c.h.b16 %v1001
        %v1811 = vunpack.c.l.b16 %v1002
        %v1812 = vunpack.c.h.b16 %v1002
        %v1813 = vunpack.c.l.b16 %v1003
        %v1814 = vunpack.c.h.b16 %v1003
        %v1815 = vunpack.c.l.b16 %v1004
        %v1816 = vunpack.c.h.b16 %v1004
        %v1817 = vunpack.c.l.b16 %v1005
        %v1818 = vunpack.c.h.b16 %v1005
        %v1819 = vunpack.c.l.b16 %v1006
        %v1820 = vunpack.c.h.b16 %v1006
        %v1821 = vunpack.c.l.b16 %v1007
        %v1822 = vunpack.c.h.b16 %v1007
        %v1823 = vunpack.c.l.b16 %v1008
        %v1824 = vunpack.c.h.b16 %v1008
        %v1825 = vunpack.c.l.b16 %v1009
        %v1826 = vunpack.c.h.b16 %v1009
        %v1827 = vunpack.c.l.b16 %v1010
        %v1828 = vunpack.c.h.b16 %v1010
        %v1829 = vunpack.c.l.b16 %v1011
        %v1830 = vunpack.c.h.b16 %v1011
        %v1831 = vunpack.c.l.b16 %v1012
        %v1832 = vunpack.c.h.b16 %v1012
        %v1833 = vunpack.c.l.b16 %v1013
        %v1834 = vunpack.c.h.b16 %v1013
        %v1835 = vunpack.c.l.b16 %v1014
        %v1836 = vunpack.c.h.b16 %v1014
        %v1837 = vunpack.c.l.b16 %v1015
        %v1838 = vunpack.c.h.b16 %v1015
        %v1839 = vunpack.c.l.b16 %v1016
        %v1840 = vunpack.c.h.b16 %v1016
        %v1841 = vunpack.c.l.b16 %v1017
        %v1842 = vunpack.c.h.b16 %v1017
        %v1843 = vunpack.c.l.b16 %v1018
        %v1844 = vunpack.c.h.b16 %v1018
        %v1845 = vunpack.c.l.b16 %v1019
        %v1846 = vunpack.c.h.b16 %v1019
        %v1847 = vunpack.c.l.b16 %v1020
        %v1848 = vunpack.c.h.b16 %v1020
        %v1849 = vunpack.c.l.b16 %v1021
        %v1850 = vunpack.c.h.b16 %v1021
        %v1851 = vunpack.c.l.b16 %v1022
        %v1852 = vunpack.c.h.b16 %v1022
        %v1853 = vunpack.c.l.b16 %v1023
        %v1854 = vunpack.c.h.b16 %v1023
        %v1855 = vunpack.c.l.b16 %v1024
        %v1856 = vunpack.c.h.b16 %v1024
        %v1857 = vunpack.c.l.b16 %v1025
        %v1858 = vunpack.c.h.b16 %v1025
        %v1859 = vunpack.c.l.b16 %v1026
        %v1860 = vunpack.c.h.b16 %v1026
        %v1861 = vunpack.c.l.b16 %v1027
        %v1862 = vunpack.c.h.b16 %v1027
        %v1863 = vunpack.c.l.b16 %v1028
        %v1864 = vunpack.c.h.b16 %v1028
        %v1865 = vunpack.c.l.b16 %v1029
        %v1866 = vunpack.c.h.b16 %v1029
        %v1867 = vunpack.c.l.b16 %v1030
        %v1868 = vunpack.c.h.b16 %v1030
        %v1869 = vunpack.c.l.b16 %v1031
        %v1870 = vunpack.c.h.b16 %v1031
        %v1871 = vunpack.c.l.b16 %v1032
        %v1872 = vunpack.c.h.b16 %v1032
        %v1873 = vunpack.c.l.b16 %v1033
        %v1874 = vunpack.c.h.b16 %v1033
        %v1875 = vunpack.c.l.b16 %v1034
        %v1876 = vunpack.c.h.b16 %v1034
        %v1877 = vunpack.c.l.b16 %v1035
        %v1878 = vunpack.c.h.b16 %v1035
        %v1879 = vunpack.c.l.b16 %v1036
        %v1880 = vunpack.c.h.b16 %v1036
        %v1881 = vunpack.c.l.b16 %v1037
        %v1882 = vunpack.c.h.b16 %v1037
        %v1883 = vunpack.c.l.b16 %v1038
        %v1884 = vunpack.c.h.b16 %v1038
        %v1885 = vunpack.c.l.b16 %v1039
        %v1886 = vunpack.c.h.b16 %v1039
        %v1887 = vunpack.c.l.b16 %v1040
        %v1888 = vunpack.c.h.b16 %v1040
        %v1889 = vunpack.c.l.b16 %v1041
        %v1890 = vunpack.c.h.b16 %v1041
        %v1891 = vunpack.c.l.b16 %v1042
        %v1892 = vunpack.c.h.b16 %v1042
        %v1893 = vunpack.c.l.b16 %v1043
        %v1894 = vunpack.c.h.b16 %v1043
        %v1895 = vunpack.c.l.b16 %v1044
        %v1896 = vunpack.c.h.b16 %v1044
        %v1897 = vunpack.c.l.b16 %v1045
        %v1898 = vunpack.c.h.b16 %v1045
        %v1899 = vunpack.c.l.b16 %v1046
        %v1900 = vunpack.c.h.b16 %v1046
        %v1901 = vunpack.c.l.b16 %v1047
        %v1902 = vunpack.c.h.b16 %v1047
        %v1903 = vunpack.c.l.b16 %v1048
        %v1904 = vunpack.c.h.b16 %v1048
        %v1905 = vunpack.c.l.b16 %v1049
        %v1906 = vunpack.c.h.b16 %v1049
        %v1907 = vunpack.c.l.b16 %v1050
        %v1908 = vunpack.c.h.b16 %v1050
        %v1909 = vunpack.c.l.b16 %v1051
        %v1910 = vunpack.c.h.b16 %v1051
        %v1911 = vunpack.c.l.b16 %v1052
        %v1912 = vunpack.c.h.b16 %v1052
        %v1913 = vunpack.c.l.b16 %v1053
        %v1914 = vunpack.c.h.b16 %v1053
        %v1915 = vunpack.c.l.b16 %v1054
        %v1916 = vunpack.c.h.b16 %v1054
        %v1917 = vunpack.c.l.b16 %v1055
        %v1918 = vunpack.c.h.b16 %v1055
        %v1919 = vunpack.c.l.b16 %v1056
        %v1920 = vunpack.c.h.b16 %v1056
        %v1921 = vunpack.c.l.b16 %v1057
        %v1922 = vunpack.c.h.b16 %v1057
        %v1923 = vunpack.c.l.b16 %v1058
        %v1924 = vunpack.c.h.b16 %v1058
        %v1925 = vunpack.c.l.b16 %v1059
        %v1926 = vunpack.c.h.b16 %v1059
        %v1927 = vunpack.c.l.b16 %v1060
        %v1928 = vunpack.c.h.b16 %v1060
        %v1929 = vunpack.c.l.b16 %v1061
        %v1930 = vunpack.c.h.b16 %v1061
        %v1931 = vunpack.c.l.b16 %v1062
        %v1932 = vunpack.c.h.b16 %v1062
        %v1933 = vunpack.c.l.b16 %v1063
        %v1934 = vunpack.c.h.b16 %v1063
        %v1935 = vunpack.c.l.b16 %v1064
        %v1936 = vunpack.c.h.b16 %v1064
        %v1937 = vunpack.c.l.b16 %v1065
        %v1938 = vunpack.c.h.b16 %v1065
        %v1939 = vunpack.c.l.b16 %v1066
        %v1940 = vunpack.c.h.b16 %v1066
        %v1941 = vunpack.c.l.b16 %v1067
        %v1942 = vunpack.c.h.b16 %v1067
        %v1943 = vunpack.c.l.b16 %v1068
        %v1944 = vunpack.c.h.b16 %v1068
        %v1945 = vunpack.c.l.b16 %v1069
        %v1946 = vunpack.c.h.b16 %v1069
        %v1947 = vunpack.c.l.b16 %v1070
        %v1948 = vunpack.c.h.b16 %v1070
        %v1949 = vunpack.c.l.b16 %v1071
        %v1950 = vunpack.c.h.b16 %v1071
        %v1951 = vunpack.c.l.b16 %v1072
        %v1952 = vunpack.c.h.b16 %v1072
        %v1953 = vunpack.c.l.b16 %v1073
        %v1954 = vunpack.c.h.b16 %v1073
        %v1955 = vunpack.c.l.b16 %v1074
        %v1956 = vunpack.c.h.b16 %v1074
        %v1957 = vunpack.c.l.b16 %v1075
        %v1958 = vunpack.c.h.b16 %v1075
        %v1959 = vunpack.c.l.b16 %v1076
        %v1960 = vunpack.c.h.b16 %v1076
        %v1961 = vunpack.c.l.b16 %v1077
        %v1962 = vunpack.c.h.b16 %v1077
        %v1963 = vunpack.c.l.b16 %v1078
        %v1964 = vunpack.c.h.b16 %v1078
        %v1965 = vunpack.c.l.b16 %v1079
        %v1966 = vunpack.c.h.b16 %v1079
        %v1967 = vunpack.c.l.b16 %v1080
        %v1968 = vunpack.c.h.b16 %v1080
        %v1969 = vunpack.c.l.b16 %v1081
        %v1970 = vunpack.c.h.b16 %v1081
        %v1971 = vunpack.c.l.b16 %v1082
        %v1972 = vunpack.c.h.b16 %v1082
        %v1973 = vunpack.c.l.b16 %v1083
        %v1974 = vunpack.c.h.b16 %v1083
        %v1975 = vunpack.c.l.b16 %v1084
        %v1976 = vunpack.c.h.b16 %v1084
        %v1977 = vunpack.c.l.b16 %v1085
        %v1978 = vunpack.c.h.b16 %v1085
        %v1979 = vunpack.c.l.b16 %v1086
        %v1980 = vunpack.c.h.b16 %v1086
        %v1981 = vunpack.c.l.b16 %v1087
        %v1982 = vunpack.c.h.b16 %v1087
        %v1983 = vunpack.c.l.b16 %v1088
        %v1984 = vunpack.c.h.b16 %v1088
        %v1985 = vunpack.c.l.b16 %v1089
        %v1986 = vunpack.c.h.b16 %v1089
        %v1987 = vunpack.c.l.b16 %v1090
        %v1988 = vunpack.c.h.b16 %v1090
        %v1989 = vunpack.c.l.b16 %v1091
        %v1990 = vunpack.c.h.b16 %v1091
        %v1991 = vunpack.c.l.b16 %v1092
        %v1992 = vunpack.c.h.b16 %v1092
        %v1993 = vunpack.c.l.b16 %v1093
        %v1994 = vunpack.c.h.b16 %v1093
        %v1995 = vunpack.c.l.b16 %v1094
        %v1996 = vunpack.c.h.b16 %v1094
        %v1997 = vunpack.c.l.b16 %v1095
        %v1998 = vunpack.c.h.b16 %v1095
        %v1999 = vunpack.c.l.b16 %v1096
        %v2000 = vunpack.c.h.b16 %v1096
        %v2001 = vunpack.c.l.b16 %v1097
        %v2002 = vunpack.c.h.b16 %v1097
        %v2003 = vunpack.c.l.b16 %v1098
        %v2004 = vunpack.c.h.b16 %v1098
        %v2005 = vunpack.c.l.b16 %v1099
        %v2006 = vunpack.c.h.b16 %v1099
        %v2007 = vunpack.c.l.b16 %v1100
        %v2008 = vunpack.c.h.b16 %v1100
        %v2009 = vunpack.c.l.b16 %v1101
        %v2010 = vunpack.c.h.b16 %v1101
        %v2011 = vunpack.c.l.b16 %v1102
        %v2012 = vunpack.c.h.b16 %v1102
        %v2013 = vunpack.c.l.b16 %v1103
        %v2014 = vunpack.c.h.b16 %v1103
        %v2015 = vunpack.c.l.b16 %v1104
        %v2016 = vunpack.c.h.b16 %v1104
        %v2017 = vunpack.c.l.b16 %v1105
        %v2018 = vunpack.c.h.b16 %v1105
        %v2019 = vunpack.c.l.b16 %v1106
        %v2020 = vunpack.c.h.b16 %v1106
        %v2021 = vunpack.c.l.b16 %v1107
        %v2022 = vunpack.c.h.b16 %v1107
        %v2023 = vunpack.c.l.b16 %v1108
        %v2024 = vunpack.c.h.b16 %v1108
        %v2025 = vunpack.c.l.b16 %v1109
        %v2026 = vunpack.c.h.b16 %v1109
        %v2027 = vunpack.c.l.b16 %v1110
        %v2028 = vunpack.c.h.b16 %v1110
        %v2029 = vunpack.c.l.b16 %v1111
        %v2030 = vunpack.c.h.b16 %v1111
        %v2031 = vunpack.c.l.b16 %v1112
        %v2032 = vunpack.c.h.b16 %v1112
        %v2033 = vunpack.c.l.b16 %v1113
        %v2034 = vunpack.c.h.b16 %v1113
        %v2035 = vunpack.c.l.b16 %v1114
        %v2036 = vunpack.c.h.b16 %v1114
        %v2037 = vunpack.c.l.b16 %v1115
        %v2038 = vunpack.c.h.b16 %v1115
        %v2039 = vunpack.c.l.b16 %v1116
        %v2040 = vunpack.c.h.b16 %v1116
        %v2041 = vunpack.c.l.b16 %v1117
        %v2042 = vunpack.c.h.b16 %v1117
        %v2043 = vunpack.c.l.b16 %v1118
        %v2044 = vunpack.c.h.b16 %v1118
        %v2045 = vunpack.c.l.b16 %v1119
        %v2046 = vunpack.c.h.b16 %v1119
        %v2047 = vunpack.c.l.b16 %v1120
        %v2048 = vunpack.c.h.b16 %v1120
        %v2049 = vunpack.c.l.b16 %v1121
        %v2050 = vunpack.c.h.b16 %v1121
        %v2051 = vunpack.c.l.b16 %v1122
        %v2052 = vunpack.c.h.b16 %v1122
        %v2053 = vunpack.c.l.b16 %v1123
        %v2054 = vunpack.c.h.b16 %v1123
        %v2055 = vunpack.c.l.b16 %v1124
        %v2056 = vunpack.c.h.b16 %v1124
        %v2057 = vunpack.c.l.b16 %v1125
        %v2058 = vunpack.c.h.b16 %v1125
        %v2059 = vunpack.c.l.b16 %v1126
        %v2060 = vunpack.c.h.b16 %v1126
        %v2061 = vunpack.c.l.b16 %v1127
        %v2062 = vunpack.c.h.b16 %v1127
        %v2063 = vunpack.c.l.b16 %v1128
        %v2064 = vunpack.c.h.b16 %v1128
        %v2065 = vunpack.c.l.b16 %v1129
        %v2066 = vunpack.c.h.b16 %v1129
        %v2067 = vunpack.c.l.b16 %v1130
        %v2068 = vunpack.c.h.b16 %v1130
        %v2069 = vunpack.c.l.b16 %v1131
        %v2070 = vunpack.c.h.b16 %v1131
        %v2071 = vunpack.c.l.b16 %v1132
        %v2072 = vunpack.c.h.b16 %v1132
        %v2073 = vunpack.c.l.b16 %v1133
        %v2074 = vunpack.c.h.b16 %v1133
        %v2075 = vunpack.c.l.b16 %v1134
        %v2076 = vunpack.c.h.b16 %v1134
        %v2077 = vunpack.c.l.b16 %v1135
        %v2078 = vunpack.c.h.b16 %v1135
        %v2079 = vunpack.c.l.b16 %v1136
        %v2080 = vunpack.c.h.b16 %v1136
        %v2081 = vunpack.c.l.b16 %v1137
        %v2082 = vunpack.c.h.b16 %v1137
        %v2083 = vunpack.c.l.b16 %v1138
        %v2084 = vunpack.c.h.b16 %v1138
        %v2085 = vunpack.c.l.b16 %v1139
        %v2086 = vunpack.c.h.b16 %v1139
        %v2087 = vunpack.c.l.b16 %v1140
        %v2088 = vunpack.c.h.b16 %v1140
        %v2089 = vunpack.c.l.b16 %v1141
        %v2090 = vunpack.c.h.b16 %v1141
        %v2091 = vunpack.c.l.b16 %v1142
        %v2092 = vunpack.c.h.b16 %v1142
        %v2093 = vunpack.c.l.b16 %v1143
        %v2094 = vunpack.c.h.b16 %v1143
        %v2095 = vunpack.c.l.b16 %v1144
        %v2096 = vunpack.c.h.b16 %v1144
        %v2097 = vunpack.c.l.b16 %v1145
        %v2098 = vunpack.c.h.b16 %v1145
        %v2099 = vunpack.c.l.b16 %v1146
        %v2100 = vunpack.c.h.b16 %v1146
        %v2101 = vunpack.c.l.b16 %v1147
        %v2102 = vunpack.c.h.b16 %v1147
        %v2103 = vunpack.c.l.b16 %v1148
        %v2104 = vunpack.c.h.b16 %v1148
        %v2105 = vunpack.c.l.b16 %v1149
        %v2106 = vunpack.c.h.b16 %v1149
        %v2107 = vunpack.c.l.b16 %v1150
        %v2108 = vunpack.c.h.b16 %v1150
        %v2109 = vunpack.c.l.b16 %v1151
        %v2110 = vunpack.c.h.b16 %v1151
        %v2111 = vunpack.c.l.b16 %v1152
        %v2112 = vunpack.c.h.b16 %v1152
        %v2113 = vunpack.c.l.b16 %v1153
        %v2114 = vunpack.c.h.b16 %v1153
        %v2115 = vunpack.c.l.b16 %v1154
        %v2116 = vunpack.c.h.b16 %v1154
        %v2117 = vunpack.c.l.b16 %v1155
        %v2118 = vunpack.c.h.b16 %v1155
        %v2119 = vunpack.c.l.b16 %v1156
        %v2120 = vunpack.c.h.b16 %v1156
        %v2121 = vunpack.c.l.b16 %v1157
        %v2122 = vunpack.c.h.b16 %v1157
        %v2123 = vunpack.c.l.b16 %v1158
        %v2124 = vunpack.c.h.b16 %v1158
        %v2125 = vunpack.c.l.b16 %v1159
        %v2126 = vunpack.c.h.b16 %v1159
        %v2127 = vunpack.c.l.b16 %v1160
        %v2128 = vunpack.c.h.b16 %v1160
        %v2129 = vunpack.c.l.b16 %v1161
        %v2130 = vunpack.c.h.b16 %v1161
        %v2131 = vunpack.c.l.b16 %v1162
        %v2132 = vunpack.c.h.b16 %v1162
        %v2133 = vunpack.c.l.b16 %v1163
        %v2134 = vunpack.c.h.b16 %v1163
        %v2135 = vunpack.c.l.b16 %v1164
        %v2136 = vunpack.c.h.b16 %v1164
        %v2137 = vunpack.c.l.b16 %v1165
        %v2138 = vunpack.c.h.b16 %v1165
        %v2139 = vunpack.c.l.b16 %v1166
        %v2140 = vunpack.c.h.b16 %v1166
        %v2141 = vunpack.c.l.b16 %v1167
        %v2142 = vunpack.c.h.b16 %v1167
        %v2143 = vunpack.c.l.b16 %v1168
        %v2144 = vunpack.c.h.b16 %v1168
        %v2145 = vunpack.c.l.b16 %v1169
        %v2146 = vunpack.c.h.b16 %v1169
        %v2147 = vunpack.c.l.b16 %v1170
        %v2148 = vunpack.c.h.b16 %v1170
        %v2149 = vunpack.c.l.b16 %v1171
        %v2150 = vunpack.c.h.b16 %v1171
        %v2151 = vunpack.c.l.b16 %v1172
        %v2152 = vunpack.c.h.b16 %v1172
        %v2153 = vunpack.c.l.b16 %v1173
        %v2154 = vunpack.c.h.b16 %v1173
        %v2155 = vunpack.c.l.b16 %v1174
        %v2156 = vunpack.c.h.b16 %v1174
        %v2157 = vunpack.c.l.b16 %v1175
        %v2158 = vunpack.c.h.b16 %v1175
        %v2159 = vunpack.c.l.b16 %v1176
        %v2160 = vunpack.c.h.b16 %v1176
        %v2161 = vunpack.c.l.b16 %v1177
        %v2162 = vunpack.c.h.b16 %v1177
        %v2163 = vunpack.c.l.b16 %v1178
        %v2164 = vunpack.c.h.b16 %v1178
        %v2165 = vunpack.c.l.b16 %v1179
        %v2166 = vunpack.c.h.b16 %v1179
        %v2167 = vunpack.c.l.b16 %v1180
        %v2168 = vunpack.c.h.b16 %v1180
        %v2169 = vunpack.c.l.b16 %v1181
        %v2170 = vunpack.c.h.b16 %v1181
        %v2171 = vunpack.c.l.b16 %v1182
        %v2172 = vunpack.c.h.b16 %v1182
        %v2173 = vunpack.c.l.b16 %v1183
        %v2174 = vunpack.c.h.b16 %v1183
        %v2175 = vunpack.c.l.b16 %v1184
        %v2176 = vunpack.c.h.b16 %v1184
        %v2177 = vunpack.c.l.b16 %v1185
        %v2178 = vunpack.c.h.b16 %v1185
        %v2179 = vunpack.c.l.b16 %v1186
        %v2180 = vunpack.c.h.b16 %v1186
        %v2181 = vunpack.c.l.b16 %v1187
        %v2182 = vunpack.c.h.b16 %v1187
        %v2183 = vunpack.c.l.b16 %v1188
        %v2184 = vunpack.c.h.b16 %v1188
        %v2185 = vunpack.c.l.b16 %v1189
        %v2186 = vunpack.c.h.b16 %v1189
        %v2187 = vunpack.c.l.b16 %v1190
        %v2188 = vunpack.c.h.b16 %v1190
        %v2189 = vunpack.c.l.b16 %v1191
        %v2190 = vunpack.c.h.b16 %v1191
        %v2191 = vunpack.c.l.b16 %v1192
        %v2192 = vunpack.c.h.b16 %v1192
        %v2193 = vunpack.c.l.b16 %v1193
        %v2194 = vunpack.c.h.b16 %v1193
        %v2195 = vunpack.c.l.b16 %v1194
        %v2196 = vunpack.c.h.b16 %v1194
        %v2197 = vunpack.c.l.b16 %v1195
        %v2198 = vunpack.c.h.b16 %v1195
        %v2199 = vunpack.c.l.b16 %v1196
        %v2200 = vunpack.c.h.b16 %v1196
        %v2201 = vunpack.c.l.b16 %v1197
        %v2202 = vunpack.c.h.b16 %v1197
        %v2203 = vunpack.c.l.b16 %v1198
        %v2204 = vunpack.c.h.b16 %v1198
        %v2205 = vunpack.c.l.b16 %v1199
        %v2206 = vunpack.c.h.b16 %v1199
        %v2207 = vunpack.c.l.b16 %v1200
        %v2208 = vunpack.c.h.b16 %v1200
        %v2209 = vunpack.c.l.b16 %v1201
        %v2210 = vunpack.c.h.b16 %v1201
        %v2211 = vunpack.c.l.b16 %v1202
        %v2212 = vunpack.c.h.b16 %v1202
        %v2213 = vunpack.c.l.b16 %v1203
        %v2214 = vunpack.c.h.b16 %v1203
        %v2215 = vunpack.c.l.b16 %v1204
        %v2216 = vunpack.c.h.b16 %v1204
        %v2217 = vunpack.c.l.b16 %v1205
        %v2218 = vunpack.c.h.b16 %v1205
        %v2219 = vunpack.c.l.b16 %v1206
        %v2220 = vunpack.c.h.b16 %v1206
        %v2221 = vunpack.c.l.b16 %v1207
        %v2222 = vunpack.c.h.b16 %v1207
        %v2223 = vunpack.c.l.b16 %v1208
        %v2224 = vunpack.c.h.b16 %v1208
        %v2225 = vunpack.c.l.b16 %v1209
        %v2226 = vunpack.c.h.b16 %v1209
        %v2227 = vunpack.c.l.b16 %v1210
        %v2228 = vunpack.c.h.b16 %v1210
        %v2229 = vunpack.c.l.b16 %v1211
        %v2230 = vunpack.c.h.b16 %v1211
        %v2231 = vunpack.c.l.b16 %v1212
        %v2232 = vunpack.c.h.b16 %v1212
        %v2233 = vunpack.c.l.b16 %v1213
        %v2234 = vunpack.c.h.b16 %v1213
        %v2235 = vunpack.c.l.b16 %v1214
        %v2236 = vunpack.c.h.b16 %v1214
        %v2237 = vunpack.c.l.b16 %v1215
        %v2238 = vunpack.c.h.b16 %v1215
        %v2239 = vunpack.c.l.b16 %v1216
        %v2240 = vunpack.c.h.b16 %v1216
        %v2241 = vunpack.c.l.b16 %v1217
        %v2242 = vunpack.c.h.b16 %v1217
        %v2243 = vunpack.c.l.b16 %v1218
        %v2244 = vunpack.c.h.b16 %v1218
        %v2245 = vunpack.c.l.b16 %v1219
        %v2246 = vunpack.c.h.b16 %v1219
        %v2247 = vunpack.c.l.b16 %v1220
        %v2248 = vunpack.c.h.b16 %v1220
        %v2249 = vunpack.c.l.b16 %v1221
        %v2250 = vunpack.c.h.b16 %v1221
        %v2251 = vunpack.c.l.b16 %v1222
        %v2252 = vunpack.c.h.b16 %v1222
        %v2253 = vunpack.c.l.b16 %v1223
        %v2254 = vunpack.c.h.b16 %v1223
        %v2255 = vunpack.c.l.b16 %v1224
        %v2256 = vunpack.c.h.b16 %v1224
        %v2257 = vunpack.c.l.b16 %v1225
        %v2258 = vunpack.c.h.b16 %v1225
        %v2259 = vunpack.c.l.b16 %v1226
        %v2260 = vunpack.c.h.b16 %v1226
        %v2261 = vunpack.c.l.b16 %v1227
        %v2262 = vunpack.c.h.b16 %v1227
        %v2263 = vunpack.c.l.b16 %v1228
        %v2264 = vunpack.c.h.b16 %v1228
        %v2265 = vunpack.c.l.b16 %v1229
        %v2266 = vunpack.c.h.b16 %v1229
        %v2267 = vunpack.c.l.b16 %v1230
        %v2268 = vunpack.c.h.b16 %v1230
        %v2269 = vunpack.c.l.b16 %v1231
        %v2270 = vunpack.c.h.b16 %v1231
        %v2271 = vunpack.c.l.b16 %v1232
        %v2272 = vunpack.c.h.b16 %v1232
        %v2273 = vunpack.c.l.b16 %v1233
        %v2274 = vunpack.c.h.b16 %v1233
        %v2275 = vunpack.c.l.b16 %v1234
        %v2276 = vunpack.c.h.b16 %v1234
        %v2277 = vunpack.c.l.b16 %v1235
        %v2278 = vunpack.c.h.b16 %v1235
        %v2279 = vunpack.c.l.b16 %v1236
        %v2280 = vunpack.c.h.b16 %v1236
        %v2281 = vunpack.c.l.b16 %v1237
        %v2282 = vunpack.c.h.b16 %v1237
        %v2283 = vunpack.c.l.b16 %v1238
        %v2284 = vunpack.c.h.b16 %v1238
        %v2285 = vunpack.c.l.b16 %v1239
        %v2286 = vunpack.c.h.b16 %v1239
        %v2287 = vunpack.c.l.b16 %v1240
        %v2288 = vunpack.c.h.b16 %v1240
        %v2289 = vunpack.c.l.b16 %v1241
        %v2290 = vunpack.c.h.b16 %v1241
        %v2291 = vunpack.c.l.b16 %v1242
        %v2292 = vunpack.c.h.b16 %v1242
        %v2293 = vunpack.c.l.b16 %v1243
        %v2294 = vunpack.c.h.b16 %v1243
        %v2295 = vunpack.c.l.b16 %v1244
        %v2296 = vunpack.c.h.b16 %v1244
        %v2297 = vunpack.c.l.b16 %v1245
        %v2298 = vunpack.c.h.b16 %v1245
        %v2299 = vunpack.c.l.b16 %v1246
        %v2300 = vunpack.c.h.b16 %v1246
        %v2301 = vunpack.c.l.b16 %v1247
        %v2302 = vunpack.c.h.b16 %v1247
        %v2303 = vunpack.c.l.b16 %v1248
        %v2304 = vunpack.c.h.b16 %v1248
        %v2305 = vunpack.c.l.b16 %v1249
        %v2306 = vunpack.c.h.b16 %v1249
        %v2307 = vunpack.c.l.b16 %v1250
        %v2308 = vunpack.c.h.b16 %v1250
        %v2309 = vunpack.c.l.b16 %v1251
        %v2310 = vunpack.c.h.b16 %v1251
        %v2311 = vunpack.c.l.b16 %v1252
        %v2312 = vunpack.c.h.b16 %v1252
        %v2313 = vunpack.c.l.b16 %v1253
        %v2314 = vunpack.c.h.b16 %v1253
        %v2315 = vunpack.c.l.b16 %v1254
        %v2316 = vunpack.c.h.b16 %v1254
        %v2317 = vunpack.c.l.b16 %v1255
        %v2318 = vunpack.c.h.b16 %v1255
        %v2319 = vunpack.c.l.b16 %v1256
        %v2320 = vunpack.c.h.b16 %v1256
        %v2321 = vunpack.c.l.b16 %v1257
        %v2322 = vunpack.c.h.b16 %v1257
        %v2323 = vunpack.c.l.b16 %v1258
        %v2324 = vunpack.c.h.b16 %v1258
        %v2325 = vunpack.c.l.b16 %v1259
        %v2326 = vunpack.c.h.b16 %v1259
        %v2327 = vunpack.c.l.b16 %v1260
        %v2328 = vunpack.c.h.b16 %v1260
        %v2329 = vunpack.c.l.b16 %v1261
        %v2330 = vunpack.c.h.b16 %v1261
        %v2331 = vunpack.c.l.b16 %v1262
        %v2332 = vunpack.c.h.b16 %v1262
        %v2333 = vunpack.c.l.b16 %v1263
        %v2334 = vunpack.c.h.b16 %v1263
        %v2335 = vunpack.c.l.b16 %v1264
        %v2336 = vunpack.c.h.b16 %v1264
        %v2337 = vunpack.c.l.b16 %v1265
        %v2338 = vunpack.c.h.b16 %v1265
        %v2339 = vunpack.c.l.b16 %v1266
        %v2340 = vunpack.c.h.b16 %v1266
        %v2341 = vunpack.c.l.b16 %v1267
        %v2342 = vunpack.c.h.b16 %v1267
        %v2343 = vunpack.c.l.b16 %v1268
        %v2344 = vunpack.c.h.b16 %v1268
        %v2345 = vunpack.c.l.b16 %v1269
        %v2346 = vunpack.c.h.b16 %v1269
        %v2347 = vunpack.c.l.b16 %v1270
        %v2348 = vunpack.c.h.b16 %v1270
        %v2349 = vunpack.c.l.b16 %v1271
        %v2350 = vunpack.c.h.b16 %v1271
        %v2351 = vunpack.c.l.b16 %v1272
        %v2352 = vunpack.c.h.b16 %v1272
        %v2353 = vpack.c.b16 %v1705, %v1633
        %v2354 = vpack.c.b16 %v1706, %v1634
        %v2355 = vpack.c.b16 %v1707, %v1635
        %v2356 = vpack.c.b16 %v1708, %v1636
        %v2357 = vpack.c.b16 %v1709, %v1637
        %v2358 = vpack.c.b16 %v1710, %v1638
        %v2359 = vpack.c.b16 %v1711, %v1639
        %v2360 = vpack.c.b16 %v1712, %v1640
        %v2361 = vpack.c.b16 %v1713, %v1641
        %v2362 = vpack.c.b16 %v1714, %v1642
        %v2363 = vpack.c.b16 %v1715, %v1643
        %v2364 = vpack.c.b16 %v1716, %v1644
        %v2365 = vpack.c.b16 %v1717, %v1645
        %v2366 = vpack.c.b16 %v1718, %v1646
        %v2367 = vpack.c.b16 %v1719, %v1647
        %v2368 = vpack.c.b16 %v1720, %v1648
        %v2369 = vpack.c.b16 %v1721, %v1649
        %v2370 = vpack.c.b16 %v1722, %v1650
        %v2371 = vpack.c.b16 %v1723, %v1651
        %v2372 = vpack.c.b16 %v1724, %v1652
        %v2373 = vpack.c.b16 %v1725, %v1653
        %v2374 = vpack.c.b16 %v1726, %v1654
        %v2375 = vpack.c.b16 %v1727, %v1655
        %v2376 = vpack.c.b16 %v1728, %v1656
        %v2377 = vpack.c.b16 %v1729, %v1657
        %v2378 = vpack.c.b16 %v1730, %v1658
        %v2379 = vpack.c.b16 %v1731, %v1659
        %v2380 = vpack.c.b16 %v1732, %v1660
        %v2381 = vpack.c.b16 %v1733, %v1661
        %v2382 = vpack.c.b16 %v1734, %v1662
        %v2383 = vpack.c.b16 %v1735, %v1663
        %v2384 = vpack.c.b16 %v1736, %v1664
        %v2385 = vpack.c.b16 %v1737, %v1665
        %v2386 = vpack.c.b16 %v1738, %v1666
        %v2387 = vpack.c.b16 %v1739, %v1667
        %v2388 = vpack.c.b16 %v1740, %v1668
        %v2389 = vpack.c.b16 %v1741, %v1669
        %v2390 = vpack.c.b16 %v1742, %v1670
        %v2391 = vpack.c.b16 %v1743, %v1671
        %v2392 = vpack.c.b16 %v1744, %v1672
        %v2393 = vpack.c.b16 %v1745, %v1673
        %v2394 = vpack.c.b16 %v1746, %v1674
        %v2395 = vpack.c.b16 %v1747, %v1675
        %v2396 = vpack.c.b16 %v1748, %v1676
        %v2397 = vpack.c.b16 %v1749, %v1677
        %v2398 = vpack.c.b16 %v1750, %v1678
        %v2399 = vpack.c.b16 %v1751, %v1679
        %v2400 = vpack.c.b16 %v1752, %v1680
        %v2401 = vpack.c.b16 %v1753, %v1681
        %v2402 = vpack.c.b16 %v1754, %v1682
        %v2403 = vpack.c.b16 %v1755, %v1683
        %v2404 = vpack.c.b16 %v1756, %v1684
        %v2405 = vpack.c.b16 %v1757, %v1685
        %v2406 = vpack.c.b16 %v1758, %v1686
        %v2407 = vpack.c.b16 %v1759, %v1687
        %v2408 = vpack.c.b16 %v1760, %v1688
        %v2409 = vpack.c.b16 %v1761, %v1689
        %v2410 = vpack.c.b16 %v1762, %v1690
        %v2411 = vpack.c.b16 %v1763, %v1691
        %v2412 = vpack.c.b16 %v1764, %v1692
        %v2413 = vpack.c.b16 %v1765, %v1693
        %v2414 = vpack.c.b16 %v1766, %v1694
        %v2415 = vpack.c.b16 %v1767, %v1695
        %v2416 = vpack.c.b16 %v1768, %v1696
        %v2417 = vpack.c.b16 %v1769, %v1697
        %v2418 = vpack.c.b16 %v1770, %v1698
        %v2419 = vpack.c.b16 %v1771, %v1699
        %v2420 = vpack.c.b16 %v1772, %v1700
        %v2421 = vpack.c.b16 %v1773, %v1701
        %v2422 = vpack.c.b16 %v1774, %v1702
        %v2423 = vpack.c.b16 %v1775, %v1703
        %v2424 = vpack.c.b16 %v1776, %v1704
        %v2425 = vpack.c.b16 %v1849, %v1777
        %v2426 = vpack.c.b16 %v1850, %v1778
        %v2427 = vpack.c.b16 %v1851, %v1779
        %v2428 = vpack.c.b16 %v1852, %v1780
        %v2429 = vpack.c.b16 %v1853, %v1781
        %v2430 = vpack.c.b16 %v1854, %v1782
        %v2431 = vpack.c.b16 %v1855, %v1783
        %v2432 = vpack.c.b16 %v1856, %v1784
        %v2433 = vpack.c.b16 %v1857, %v1785
        %v2434 = vpack.c.b16 %v1858, %v1786
        %v2435 = vpack.c.b16 %v1859, %v1787
        %v2436 = vpack.c.b16 %v1860, %v1788
        %v2437 = vpack.c.b16 %v1861, %v1789
        %v2438 = vpack.c.b16 %v1862, %v1790
        %v2439 = vpack.c.b16 %v1863, %v1791
        %v2440 = vpack.c.b16 %v1864, %v1792
        %v2441 = vpack.c.b16 %v1865, %v1793
        %v2442 = vpack.c.b16 %v1866, %v1794
        %v2443 = vpack.c.b16 %v1867, %v1795
        %v2444 = vpack.c.b16 %v1868, %v1796
        %v2445 = vpack.c.b16 %v1869, %v1797
        %v2446 = vpack.c.b16 %v1870, %v1798
        %v2447 = vpack.c.b16 %v1871, %v1799
        %v2448 = vpack.c.b16 %v1872, %v1800
        %v2449 = vpack.c.b16 %v1873, %v1801
        %v2450 = vpack.c.b16 %v1874, %v1802
        %v2451 = vpack.c.b16 %v1875, %v1803
        %v2452 = vpack.c.b16 %v1876, %v1804
        %v2453 = vpack.c.b16 %v1877, %v1805
        %v2454 = vpack.c.b16 %v1878, %v1806
        %v2455 = vpack.c.b16 %v1879, %v1807
        %v2456 = vpack.c.b16 %v1880, %v1808
        %v2457 = vpack.c.b16 %v1881, %v1809
        %v2458 = vpack.c.b16 %v1882, %v1810
        %v2459 = vpack.c.b16 %v1883, %v1811
        %v2460 = vpack.c.b16 %v1884, %v1812
        %v2461 = vpack.c.b16 %v1885, %v1813
        %v2462 = vpack.c.b16 %v1886, %v1814
        %v2463 = vpack.c.b16 %v1887, %v1815
        %v2464 = vpack.c.b16 %v1888, %v1816
        %v2465 = vpack.c.b16 %v1889, %v1817
        %v2466 = vpack.c.b16 %v1890, %v1818
        %v2467 = vpack.c.b16 %v1891, %v1819
        %v2468 = vpack.c.b16 %v1892, %v1820
        %v2469 = vpack.c.b16 %v1893, %v1821
        %v2470 = vpack.c.b16 %v1894, %v1822
        %v2471 = vpack.c.b16 %v1895, %v1823
        %v2472 = vpack.c.b16 %v1896, %v1824
        %v2473 = vpack.c.b16 %v1897, %v1825
        %v2474 = vpack.c.b16 %v1898, %v1826
        %v2475 = vpack.c.b16 %v1899, %v1827
        %v2476 = vpack.c.b16 %v1900, %v1828
        %v2477 = vpack.c.b16 %v1901, %v1829
        %v2478 = vpack.c.b16 %v1902, %v1830
        %v2479 = vpack.c.b16 %v1903, %v1831
        %v2480 = vpack.c.b16 %v1904, %v1832
        %v2481 = vpack.c.b16 %v1905, %v1833
        %v2482 = vpack.c.b16 %v1906, %v1834
        %v2483 = vpack.c.b16 %v1907, %v1835
        %v2484 = vpack.c.b16 %v1908, %v1836
        %v2485 = vpack.c.b16 %v1909, %v1837
        %v2486 = vpack.c.b16 %v1910, %v1838
        %v2487 = vpack.c.b16 %v1911, %v1839
        %v2488 = vpack.c.b16 %v1912, %v1840
        %v2489 = vpack.c.b16 %v1913, %v1841
        %v2490 = vpack.c.b16 %v1914, %v1842
        %v2491 = vpack.c.b16 %v1915, %v1843
        %v2492 = vpack.c.b16 %v1916, %v1844
        %v2493 = vpack.c.b16 %v1917, %v1845
        %v2494 = vpack.c.b16 %v1918, %v1846
        %v2495 = vpack.c.b16 %v1919, %v1847
        %v2496 = vpack.c.b16 %v1920, %v1848
        %v2497 = vpack.c.b16 %v1993, %v1921
        %v2498 = vpack.c.b16 %v1994, %v1922
        %v2499 = vpack.c.b16 %v1995, %v1923
        %v2500 = vpack.c.b16 %v1996, %v1924
        %v2501 = vpack.c.b16 %v1997, %v1925
        %v2502 = vpack.c.b16 %v1998, %v1926
        %v2503 = vpack.c.b16 %v1999, %v1927
        %v2504 = vpack.c.b16 %v2000, %v1928
        %v2505 = vpack.c.b16 %v2001, %v1929
        %v2506 = vpack.c.b16 %v2002, %v1930
        %v2507 = vpack.c.b16 %v2003, %v1931
        %v2508 = vpack.c.b16 %v2004, %v1932
        %v2509 = vpack.c.b16 %v2005, %v1933
        %v2510 = vpack.c.b16 %v2006, %v1934
        %v2511 = vpack.c.b16 %v2007, %v1935
        %v2512 = vpack.c.b16 %v2008, %v1936
        %v2513 = vpack.c.b16 %v2009, %v1937
        %v2514 = vpack.c.b16 %v2010, %v1938
        %v2515 = vpack.c.b16 %v2011, %v1939
        %v2516 = vpack.c.b16 %v2012, %v1940
        %v2517 = vpack.c.b16 %v2013, %v1941
        %v2518 = vpack.c.b16 %v2014, %v1942
        %v2519 = vpack.c.b16 %v2015, %v1943
        %v2520 = vpack.c.b16 %v2016, %v1944
        %v2521 = vpack.c.b16 %v2017, %v1945
        %v2522 = vpack.c.b16 %v2018, %v1946
        %v2523 = vpack.c.b16 %v2019, %v1947
        %v2524 = vpack.c.b16 %v2020, %v1948
        %v2525 = vpack.c.b16 %v2021, %v1949
        %v2526 = vpack.c.b16 %v2022, %v1950
        %v2527 = vpack.c.b16 %v2023, %v1951
        %v2528 = vpack.c.b16 %v2024, %v1952
        %v2529 = vpack.c.b16 %v2025, %v1953
        %v2530 = vpack.c.b16 %v2026, %v1954
        %v2531 = vpack.c.b16 %v2027, %v1955
        %v2532 = vpack.c.b16 %v2028, %v1956
        %v2533 = vpack.c.b16 %v2029, %v1957
        %v2534 = vpack.c.b16 %v2030, %v1958
        %v2535 = vpack.c.b16 %v2031, %v1959
        %v2536 = vpack.c.b16 %v2032, %v1960
        %v2537 = vpack.c.b16 %v2033, %v1961
        %v2538 = vpack.c.b16 %v2034, %v1962
        %v2539 = vpack.c.b16 %v2035, %v1963
        %v2540 = vpack.c.b16 %v2036, %v1964
        %v2541 = vpack.c.b16 %v2037, %v1965
        %v2542 = vpack.c.b16 %v2038, %v1966
        %v2543 = vpack.c.b16 %v2039, %v1967
        %v2544 = vpack.c.b16 %v2040, %v1968
        %v2545 = vpack.c.b16 %v2041, %v1969
        %v2546 = vpack.c.b16 %v2042, %v1970
        %v2547 = vpack.c.b16 %v2043, %v1971
        %v2548 = vpack.c.b16 %v2044, %v1972
        %v2549 = vpack.c.b16 %v2045, %v1973
        %v2550 = vpack.c.b16 %v2046, %v1974
        %v2551 = vpack.c.b16 %v2047, %v1975
        %v2552 = vpack.c.b16 %v2048, %v1976
        %v2553 = vpack.c.b16 %v2049, %v1977
        %v2554 = vpack.c.b16 %v2050, %v1978
        %v2555 = vpack.c.b16 %v2051, %v1979
        %v2556 = vpack.c.b16 %v2052, %v1980
        %v2557 = vpack.c.b16 %v2053, %v1981
        %v2558 = vpack.c.b16 %v2054, %v1982
        %v2559 = vpack.c.b16 %v2055, %v1983
        %v2560 = vpack.c.b16 %v2056, %v1984
        %v2561 = vpack.c.b16 %v2057, %v1985
        %v2562 = vpack.c.b16 %v2058, %v1986
        %v2563 = vpack.c.b16 %v2059, %v1987
        %v2564 = vpack.c.b16 %v2060, %v1988
        %v2565 = vpack.c.b16 %v2061, %v1989
        %v2566 = vpack.c.b16 %v2062, %v1990
        %v2567 = vpack.c.b16 %v2063, %v1991
        %v2568 = vpack.c.b16 %v2064, %v1992
        %v2569 = vpack.c.b16 %v2137, %v2065
        %v2570 = vpack.c.b16 %v2138, %v2066
        %v2571 = vpack.c.b16 %v2139, %v2067
        %v2572 = vpack.c.b16 %v2140, %v2068
        %v2573 = vpack.c.b16 %v2141, %v2069
        %v2574 = vpack.c.b16 %v2142, %v2070
        %v2575 = vpack.c.b16 %v2143, %v2071
        %v2576 = vpack.c.b16 %v2144, %v2072
        %v2577 = vpack.c.b16 %v2145, %v2073
        %v2578 = vpack.c.b16 %v2146, %v2074
        %v2579 = vpack.c.b16 %v2147, %v2075
        %v2580 = vpack.c.b16 %v2148, %v2076
        %v2581 = vpack.c.b16 %v2149, %v2077
        %v2582 = vpack.c.b16 %v2150, %v2078
        %v2583 = vpack.c.b16 %v2151, %v2079
        %v2584 = vpack.c.b16 %v2152, %v2080
        %v2585 = vpack.c.b16 %v2153, %v2081
        %v2586 = vpack.c.b16 %v2154, %v2082
        %v2587 = vpack.c.b16 %v2155, %v2083
        %v2588 = vpack.c.b16 %v2156, %v2084
        %v2589 = vpack.c.b16 %v2157, %v2085
        %v2590 = vpack.c.b16 %v2158, %v2086
        %v2591 = vpack.c.b16 %v2159, %v2087
        %v2592 = vpack.c.b16 %v2160, %v2088
        %v2593 = vpack.c.b16 %v2161, %v2089
        %v2594 = vpack.c.b16 %v2162, %v2090
        %v2595 = vpack.c.b16 %v2163, %v2091
        %v2596 = vpack.c.b16 %v2164, %v2092
        %v2597 = vpack.c.b16 %v2165, %v2093
        %v2598 = vpack.c.b16 %v2166, %v2094
        %v2599 = vpack.c.b16 %v2167, %v2095
        %v2600 = vpack.c.b16 %v2168, %v2096
        %v2601 = vpack.c.b16 %v2169, %v2097
        %v2602 = vpack.c.b16 %v2170, %v2098
        %v2603 = vpack.c.b16 %v2171, %v2099
        %v2604 = vpack.c.b16 %v2172, %v2100
        %v2605 = vpack.c.b16 %v2173, %v2101
        %v2606 = vpack.c.b16 %v2174, %v2102
        %v2607 = vpack.c.b16 %v2175, %v2103
        %v2608 = vpack.c.b16 %v2176, %v2104
        %v2609 = vpack.c.b16 %v2177, %v2105
        %v2610 = vpack.c.b16 %v2178, %v2106
        %v2611 = vpack.c.b16 %v2179, %v2107
        %v2612 = vpack.c.b16 %v2180, %v2108
        %v2613 = vpack.c.b16 %v2181, %v2109
        %v2614 = vpack.c.b16 %v2182, %v2110
        %v2615 = vpack.c.b16 %v2183, %v2111
        %v2616 = vpack.c.b16 %v2184, %v2112
        %v2617 = vpack.c.b16 %v2185, %v2113
        %v2618 = vpack.c.b16 %v2186, %v2114
        %v2619 = vpack.c.b16 %v2187, %v2115
        %v2620 = vpack.c.b16 %v2188, %v2116
        %v2621 = vpack.c.b16 %v2189, %v2117
        %v2622 = vpack.c.b16 %v2190, %v2118
        %v2623 = vpack.c.b16 %v2191, %v2119
        %v2624 = vpack.c.b16 %v2192, %v2120
        %v2625 = vpack.c.b16 %v2193, %v2121
        %v2626 = vpack.c.b16 %v2194, %v2122
        %v2627 = vpack.c.b16 %v2195, %v2123
        %v2628 = vpack.c.b16 %v2196, %v2124
        %v2629 = vpack.c.b16 %v2197, %v2125
        %v2630 = vpack.c.b16 %v2198, %v2126
        %v2631 = vpack.c.b16 %v2199, %v2127
        %v2632 = vpack.c.b16 %v2200, %v2128
        %v2633 = vpack.c.b16 %v2201, %v2129
        %v2634 = vpack.c.b16 %v2202, %v2130
        %v2635 = vpack.c.b16 %v2203, %v2131
        %v2636 = vpack.c.b16 %v2204, %v2132
        %v2637 = vpack.c.b16 %v2205, %v2133
        %v2638 = vpack.c.b16 %v2206, %v2134
        %v2639 = vpack.c.b16 %v2207, %v2135
        %v2640 = vpack.c.b16 %v2208, %v2136
        %v2641 = vpack.c.b16 %v2281, %v2209
        %v2642 = vpack.c.b16 %v2282, %v2210
        %v2643 = vpack.c.b16 %v2283, %v2211
        %v2644 = vpack.c.b16 %v2284, %v2212
        %v2645 = vpack.c.b16 %v2285, %v2213
        %v2646 = vpack.c.b16 %v2286, %v2214
        %v2647 = vpack.c.b16 %v2287, %v2215
        %v2648 = vpack.c.b16 %v2288, %v2216
        %v2649 = vpack.c.b16 %v2289, %v2217
        %v2650 = vpack.c.b16 %v2290, %v2218
        %v2651 = vpack.c.b16 %v2291, %v2219
        %v2652 = vpack.c.b16 %v2292, %v2220
        %v2653 = vpack.c.b16 %v2293, %v2221
        %v2654 = vpack.c.b16 %v2294, %v2222
        %v2655 = vpack.c.b16 %v2295, %v2223
        %v2656 = vpack.c.b16 %v2296, %v2224
        %v2657 = vpack.c.b16 %v2297, %v2225
        %v2658 = vpack.c.b16 %v2298, %v2226
        %v2659 = vpack.c.b16 %v2299, %v2227
        %v2660 = vpack.c.b16 %v2300, %v2228
        %v2661 = vpack.c.b16 %v2301, %v2229
        %v2662 = vpack.c.b16 %v2302, %v2230
        %v2663 = vpack.c.b16 %v2303, %v2231
        %v2664 = vpack.c.b16 %v2304, %v2232
        %v2665 = vpack.c.b16 %v2305, %v2233
        %v2666 = vpack.c.b16 %v2306, %v2234
        %v2667 = vpack.c.b16 %v2307, %v2235
        %v2668 = vpack.c.b16 %v2308, %v2236
        %v2669 = vpack.c.b16 %v2309, %v2237
        %v2670 = vpack.c.b16 %v2310, %v2238
        %v2671 = vpack.c.b16 %v2311, %v2239
        %v2672 = vpack.c.b16 %v2312, %v2240
        %v2673 = vpack.c.b16 %v2313, %v2241
        %v2674 = vpack.c.b16 %v2314, %v2242
        %v2675 = vpack.c.b16 %v2315, %v2243
        %v2676 = vpack.c.b16 %v2316, %v2244
        %v2677 = vpack.c.b16 %v2317, %v2245
        %v2678 = vpack.c.b16 %v2318, %v2246
        %v2679 = vpack.c.b16 %v2319, %v2247
        %v2680 = vpack.c.b16 %v2320, %v2248
        %v2681 = vpack.c.b16 %v2321, %v2249
        %v2682 = vpack.c.b16 %v2322, %v2250
        %v2683 = vpack.c.b16 %v2323, %v2251
        %v2684 = vpack.c.b16 %v2324, %v2252
        %v2685 = vpack.c.b16 %v2325, %v2253
        %v2686 = vpack.c.b16 %v2326, %v2254
        %v2687 = vpack.c.b16 %v2327, %v2255
        %v2688 = vpack.c.b16 %v2328, %v2256
        %v2689 = vpack.c.b16 %v2329, %v2257
        %v2690 = vpack.c.b16 %v2330, %v2258
        %v2691 = vpack.c.b16 %v2331, %v2259
        %v2692 = vpack.c.b16 %v2332, %v2260
        %v2693 = vpack.c.b16 %v2333, %v2261
        %v2694 = vpack.c.b16 %v2334, %v2262
        %v2695 = vpack.c.b16 %v2335, %v2263
        %v2696 = vpack.c.b16 %v2336, %v2264
        %v2697 = vpack.c.b16 %v2337, %v2265
        %v2698 = vpack.c.b16 %v2338, %v2266
        %v2699 = vpack.c.b16 %v2339, %v2267
        %v2700 = vpack.c.b16 %v2340, %v2268
        %v2701 = vpack.c.b16 %v2341, %v2269
        %v2702 = vpack.c.b16 %v2342, %v2270
        %v2703 = vpack.c.b16 %v2343, %v2271
        %v2704 = vpack.c.b16 %v2344, %v2272
        %v2705 = vpack.c.b16 %v2345, %v2273
        %v2706 = vpack.c.b16 %v2346, %v2274
        %v2707 = vpack.c.b16 %v2347, %v2275
        %v2708 = vpack.c.b16 %v2348, %v2276
        %v2709 = vpack.c.b16 %v2349, %v2277
        %v2710 = vpack.c.b16 %v2350, %v2278
        %v2711 = vpack.c.b16 %v2351, %v2279
        %v2712 = vpack.c.b16 %v2352, %v2280
        %vm3001 = vcmask 613376
        %v3003 = vsel %vm3001, %v912, 0
        %vm3005 = vcmask 1044480
        %vm3006 = vcmask 1045504
        %v3007 = vsel %vm3005, 4294967295, 65535
        %v3008 = vsel %vm3006, %v3007, 0
        %v3010 = vand.u32 %v2641, %v3008
        %v3013 = vand.u32 %v2642, %v3008
        %v3016 = vand.u32 %v2643, %v3008
        %v3019 = vand.u32 %v2644, %v3008
        %v3022 = vand.u32 %v2645, %v3008
        %v3025 = vand.u32 %v2646, %v3008
        %v3028 = vand.u32 %v2647, %v3008
        %v3031 = vand.u32 %v2648, %v3008
        %v3034 = vand.u32 %v2649, %v3008
        %v3037 = vand.u32 %v2650, %v3008
        %v3040 = vand.u32 %v2651, %v3008
        %v3043 = vand.u32 %v2652, %v3008
        %v3046 = vand.u32 %v2653, %v3008
        %v3049 = vand.u32 %v2654, %v3008
        %v3052 = vand.u32 %v2655, %v3008
        %v3055 = vand.u32 %v2656, %v3008
        %v3058 = vand.u32 %v2657, %v3008
        %v3061 = vand.u32 %v2658, %v3008
        %v3064 = vand.u32 %v2659, %v3008
        %v3067 = vand.u32 %v2660, %v3008
        %v3070 = vand.u32 %v2661, %v3008
        %v3073 = vand.u32 %v2662, %v3008
        %v3076 = vand.u32 %v2663, %v3008
        %v3079 = vand.u32 %v2664, %v3008
        %v3082 = vand.u32 %v2665, %v3008
        %v3085 = vand.u32 %v2666, %v3008
        %v3088 = vand.u32 %v2667, %v3008
        %v3091 = vand.u32 %v2668, %v3008
        %v3094 = vand.u32 %v2669, %v3008
        %v3097 = vand.u32 %v2670, %v3008
        %v3100 = vand.u32 %v2671, %v3008
        %v3103 = vand.u32 %v2672, %v3008
        %v3106 = vand.u32 %v2673, %v3008
        %v3109 = vand.u32 %v2674, %v3008
        %v3112 = vand.u32 %v2675, %v3008
        %v3115 = vand.u32 %v2676, %v3008
        %v3118 = vand.u32 %v2677, %v3008
        %v3121 = vand.u32 %v2678, %v3008
        %v3124 = vand.u32 %v2679, %v3008
        %v3127 = vand.u32 %v2680, %v3008
        %v3130 = vand.u32 %v2681, %v3008
        %v3133 = vand.u32 %v2682, %v3008
        %v3136 = vand.u32 %v2683, %v3008
        %v3139 = vand.u32 %v2684, %v3008
        %v3142 = vand.u32 %v2685, %v3008
        %v3145 = vand.u32 %v2686, %v3008
        %v3148 = vand.u32 %v2687, %v3008
        %v3151 = vand.u32 %v2688, %v3008
        %v3154 = vand.u32 %v2689, %v3008
        %v3157 = vand.u32 %v2690, %v3008
        %v3160 = vand.u32 %v2691, %v3008
        %v3163 = vand.u32 %v2692, %v3008
        %v3166 = vand.u32 %v2693, %v3008
        %v3169 = vand.u32 %v2694, %v3008
        %v3172 = vand.u32 %v2695, %v3008
        %v3175 = vand.u32 %v2696, %v3008
        %v3178 = vand.u32 %v2697, %v3008
        %v3181 = vand.u32 %v2698, %v3008
        %v3184 = vand.u32 %v2699, %v3008
        %v3187 = vand.u32 %v2700, %v3008
        %v3190 = vand.u32 %v2701, %v3008
        %v3193 = vand.u32 %v2702, %v3008
        %v3196 = vand.u32 %v2703, %v3008
        %v3199 = vand.u32 %v2704, %v3008
        %v3202 = vand.u32 %v2705, %v3008
        %v3205 = vand.u32 %v2706, %v3008
        %v3208 = vand.u32 %v2707, %v3008
        %v3211 = vand.u32 %v2708, %v3008
        %v3214 = vand.u32 %v2709, %v3008
        %v3217 = vand.u32 %v2710, %v3008
        %v3220 = vand.u32 %v2711, %v3008
        %v3223 = vand.u32 %v2712, %v3008
        %3225 = vmatprep.subr.bf16.mxu0 %v2354
        %3226 = vmatpush1.bf16.msra.mxu0 %v2353
        %3227 = vmatprep.subr.bf16.mxu0 %v2426
        %3228 = vmatpush1.bf16.msra.mxu0 %v2425
        %3229 = vmatprep.subr.bf16.mxu0 %v2498
        %3230 = vmatpush1.bf16.msra.mxu0 %v2497
        %3231 = vmatprep.subr.bf16.mxu0 %v2570
        %3232 = vmatpush1.bf16.msra.mxu0 %v2569
        %3233 = vmatprep.subr.bf16.mxu0 %v3013
        %3234 = vmatpush1.bf16.msra.mxu0 %v3010
        %3235 = vmatprep.subr.bf16.mxu0 0
        %3236 = vmatpush1.bf16.msra.mxu0 0
        %3237 = vmatprep.subr.bf16.mxu0 0
        %3238 = vmatpush1.bf16.msra.mxu0 0
        %3239 = vmatprep.subr.bf16.mxu0 0
        %3240 = vmatpush1.bf16.msra.mxu0 0
        %3241 = vmatprep.subr.bf16.mxu0 0
        %3242 = vmatpush1.bf16.msra.mxu0 0
        %3243 = vmatprep.subr.bf16.mxu0 0
        %3244 = vmatpush1.bf16.msra.mxu0 0
        %3245 = vmatprep.subr.bf16.mxu0 0
        %3246 = vmatpush1.bf16.msra.mxu0 0
        %3247 = vmatprep.subr.bf16.mxu0 0
        %3248 = vmatpush1.bf16.msra.mxu0 0
        %3249 = vmatprep.subr.bf16.mxu0 0
        %3250 = vmatpush1.bf16.msra.mxu0 0
        %3251 = vmatprep.subr.bf16.mxu0 0
        %3252 = vmatpush1.bf16.msra.mxu0 0
        %3253 = vmatprep.subr.bf16.mxu0 0
        %3254 = vmatpush1.bf16.msra.mxu0 0
        %3255 = vmatprep.subr.bf16.mxu0 0
        %3256 = vmatpush1.bf16.msra.mxu0 0
        %3257 = vmatprep.mubr.bf16.mxu0 0
        %3258 = vmatmul.mubr.bf16.gmra.mrb[0].mxu0 %v3003
        %v3259 = vpop.f32.mrb[0].mxu0
        %v3260 = vadd.f32 0.0, %v3259
        %v3261 = vpop.f32.mrb[0].mxu0
        %v3262 = vadd.f32 0.0, %v3261
        %v3263 = vpop.f32.mrb[0].mxu0
        %v3264 = vpop.f32.mrb[0].mxu0
        %3265 = vdwg.mxu0
        %3266 = vmatprep.subr.bf16.mxu0 %v2356
        %3267 = vmatpush1.bf16.msra.mxu0 %v2355
        %3268 = vmatprep.subr.bf16.mxu0 %v2428
        %3269 = vmatpush1.bf16.msra.mxu0 %v2427
        %3270 = vmatprep.subr.bf16.mxu0 %v2500
        %3271 = vmatpush1.bf16.msra.mxu0 %v2499
        %3272 = vmatprep.subr.bf16.mxu0 %v2572
        %3273 = vmatpush1.bf16.msra.mxu0 %v2571
        %3274 = vmatprep.subr.bf16.mxu0 %v3019
        %3275 = vmatpush1.bf16.msra.mxu0 %v3016
        %3276 = vmatprep.subr.bf16.mxu0 0
        %3277 = vmatpush1.bf16.msra.mxu0 0
        %3278 = vmatprep.subr.bf16.mxu0 0
        %3279 = vmatpush1.bf16.msra.mxu0 0
        %3280 = vmatprep.subr.bf16.mxu0 0
        %3281 = vmatpush1.bf16.msra.mxu0 0
        %3282 = vmatprep.subr.bf16.mxu0 0
        %3283 = vmatpush1.bf16.msra.mxu0 0
        %3284 = vmatprep.subr.bf16.mxu0 0
        %3285 = vmatpush1.bf16.msra.mxu0 0
        %3286 = vmatprep.subr.bf16.mxu0 0
        %3287 = vmatpush1.bf16.msra.mxu0 0
        %3288 = vmatprep.subr.bf16.mxu0 0
        %3289 = vmatpush1.bf16.msra.mxu0 0
        %3290 = vmatprep.subr.bf16.mxu0 0
        %3291 = vmatpush1.bf16.msra.mxu0 0
        %3292 = vmatprep.subr.bf16.mxu0 0
        %3293 = vmatpush1.bf16.msra.mxu0 0
        %3294 = vmatprep.subr.bf16.mxu0 0
        %3295 = vmatpush1.bf16.msra.mxu0 0
        %3296 = vmatprep.subr.bf16.mxu0 0
        %3297 = vmatpush1.bf16.msra.mxu0 0
        %3298 = vmatprep.mubr.bf16.mxu0 0
        %3299 = vmatmul.mubr.bf16.gmra.mrb[0].mxu0 %v3003
        %v3300 = vpop.f32.mrb[0].mxu0
        %v3301 = vadd.f32 0.0, %v3300
        %v3302 = vpop.f32.mrb[0].mxu0
        %v3303 = vadd.f32 0.0, %v3302
        %v3304 = vpop.f32.mrb[0].mxu0
        %v3305 = vpop.f32.mrb[0].mxu0
        %3306 = vdwg.mxu0
        %3307 = vmatprep.subr.bf16.mxu0 %v2358
        %3308 = vmatpush1.bf16.msra.mxu0 %v2357
        %3309 = vmatprep.subr.bf16.mxu0 %v2430
        %3310 = vmatpush1.bf16.msra.mxu0 %v2429
        %3311 = vmatprep.subr.bf16.mxu0 %v2502
        %3312 = vmatpush1.bf16.msra.mxu0 %v2501
        %3313 = vmatprep.subr.bf16.mxu0 %v2574
        %3314 = vmatpush1.bf16.msra.mxu0 %v2573
        %3315 = vmatprep.subr.bf16.mxu0 %v3025
        %3316 = vmatpush1.bf16.msra.mxu0 %v3022
        %3317 = vmatprep.subr.bf16.mxu0 0
        %3318 = vmatpush1.bf16.msra.mxu0 0
        %3319 = vmatprep.subr.bf16.mxu0 0
        %3320 = vmatpush1.bf16.msra.mxu0 0
        %3321 = vmatprep.subr.bf16.mxu0 0
        %3322 = vmatpush1.bf16.msra.mxu0 0
        %3323 = vmatprep.subr.bf16.mxu0 0
        %3324 = vmatpush1.bf16.msra.mxu0 0
        %3325 = vmatprep.subr.bf16.mxu0 0
        %3326 = vmatpush1.bf16.msra.mxu0 0
        %3327 = vmatprep.subr.bf16.mxu0 0
        %3328 = vmatpush1.bf16.msra.mxu0 0
        %3329 = vmatprep.subr.bf16.mxu0 0
        %3330 = vmatpush1.bf16.msra.mxu0 0
        %3331 = vmatprep.subr.bf16.mxu0 0
        %3332 = vmatpush1.bf16.msra.mxu0 0
        %3333 = vmatprep.subr.bf16.mxu0 0
        %3334 = vmatpush1.bf16.msra.mxu0 0
        %3335 = vmatprep.subr.bf16.mxu0 0
        %3336 = vmatpush1.bf16.msra.mxu0 0
        %3337 = vmatprep.subr.bf16.mxu0 0
        %3338 = vmatpush1.bf16.msra.mxu0 0
        %3339 = vmatprep.mubr.bf16.mxu0 0
        %3340 = vmatmul.mubr.bf16.gmra.mrb[0].mxu0 %v3003
        %v3341 = vpop.f32.mrb[0].mxu0
        %v3342 = vadd.f32 0.0, %v3341
        %v3343 = vpop.f32.mrb[0].mxu0
        %v3344 = vadd.f32 0.0, %v3343
        %v3345 = vpop.f32.mrb[0].mxu0
        %v3346 = vpop.f32.mrb[0].mxu0
        %3347 = vdwg.mxu0
        %3348 = vmatprep.subr.bf16.mxu0 %v2360
        %3349 = vmatpush1.bf16.msra.mxu0 %v2359
        %3350 = vmatprep.subr.bf16.mxu0 %v2432
        %3351 = vmatpush1.bf16.msra.mxu0 %v2431
        %3352 = vmatprep.subr.bf16.mxu0 %v2504
        %3353 = vmatpush1.bf16.msra.mxu0 %v2503
        %3354 = vmatprep.subr.bf16.mxu0 %v2576
        %3355 = vmatpush1.bf16.msra.mxu0 %v2575
        %3356 = vmatprep.subr.bf16.mxu0 %v3031
        %3357 = vmatpush1.bf16.msra.mxu0 %v3028
        %3358 = vmatprep.subr.bf16.mxu0 0
        %3359 = vmatpush1.bf16.msra.mxu0 0
        %3360 = vmatprep.subr.bf16.mxu0 0
        %3361 = vmatpush1.bf16.msra.mxu0 0
        %3362 = vmatprep.subr.bf16.mxu0 0
        %3363 = vmatpush1.bf16.msra.mxu0 0
        %3364 = vmatprep.subr.bf16.mxu0 0
        %3365 = vmatpush1.bf16.msra.mxu0 0
        %3366 = vmatprep.subr.bf16.mxu0 0
        %3367 = vmatpush1.bf16.msra.mxu0 0
        %3368 = vmatprep.subr.bf16.mxu0 0
        %3369 = vmatpush1.bf16.msra.mxu0 0
        %3370 = vmatprep.subr.bf16.mxu0 0
        %3371 = vmatpush1.bf16.msra.mxu0 0
        %3372 = vmatprep.subr.bf16.mxu0 0
        %3373 = vmatpush1.bf16.msra.mxu0 0
        %3374 = vmatprep.subr.bf16.mxu0 0
        %3375 = vmatpush1.bf16.msra.mxu0 0
        %3376 = vmatprep.subr.bf16.mxu0 0
        %3377 = vmatpush1.bf16.msra.mxu0 0
        %3378 = vmatprep.subr.bf16.mxu0 0
        %3379 = vmatpush1.bf16.msra.mxu0 0
        %3380 = vmatprep.mubr.bf16.mxu0 0
        %3381 = vmatmul.mubr.bf16.gmra.mrb[0].mxu0 %v3003
        %v3382 = vpop.f32.mrb[0].mxu0
        %v3383 = vadd.f32 0.0, %v3382
        %v3384 = vpop.f32.mrb[0].mxu0
        %v3385 = vadd.f32 0.0, %v3384
        %v3386 = vpop.f32.mrb[0].mxu0
        %v3387 = vpop.f32.mrb[0].mxu0
        %3388 = vdwg.mxu0
        %3389 = vmatprep.subr.bf16.mxu0 %v2362
        %3390 = vmatpush1.bf16.msra.mxu0 %v2361
        %3391 = vmatprep.subr.bf16.mxu0 %v2434
        %3392 = vmatpush1.bf16.msra.mxu0 %v2433
        %3393 = vmatprep.subr.bf16.mxu0 %v2506
        %3394 = vmatpush1.bf16.msra.mxu0 %v2505
        %3395 = vmatprep.subr.bf16.mxu0 %v2578
        %3396 = vmatpush1.bf16.msra.mxu0 %v2577
        %3397 = vmatprep.subr.bf16.mxu0 %v3037
        %3398 = vmatpush1.bf16.msra.mxu0 %v3034
        %3399 = vmatprep.subr.bf16.mxu0 0
        %3400 = vmatpush1.bf16.msra.mxu0 0
        %3401 = vmatprep.subr.bf16.mxu0 0
        %3402 = vmatpush1.bf16.msra.mxu0 0
        %3403 = vmatprep.subr.bf16.mxu0 0
        %3404 = vmatpush1.bf16.msra.mxu0 0
        %3405 = vmatprep.subr.bf16.mxu0 0
        %3406 = vmatpush1.bf16.msra.mxu0 0
        %3407 = vmatprep.subr.bf16.mxu0 0
        %3408 = vmatpush1.bf16.msra.mxu0 0
        %3409 = vmatprep.subr.bf16.mxu0 0
        %3410 = vmatpush1.bf16.msra.mxu0 0
        %3411 = vmatprep.subr.bf16.mxu0 0
        %3412 = vmatpush1.bf16.msra.mxu0 0
        %3413 = vmatprep.subr.bf16.mxu0 0
        %3414 = vmatpush1.bf16.msra.mxu0 0
        %3415 = vmatprep.subr.bf16.mxu0 0
        %3416 = vmatpush1.bf16.msra.mxu0 0
        %3417 = vmatprep.subr.bf16.mxu0 0
        %3418 = vmatpush1.bf16.msra.mxu0 0
        %3419 = vmatprep.subr.bf16.mxu0 0
        %3420 = vmatpush1.bf16.msra.mxu0 0
        %3421 = vmatprep.mubr.bf16.mxu0 0
        %3422 = vmatmul.mubr.bf16.gmra.mrb[0].mxu0 %v3003
        %v3423 = vpop.f32.mrb[0].mxu0
        %v3424 = vadd.f32 0.0, %v3423
        %v3425 = vpop.f32.mrb[0].mxu0
        %v3426 = vadd.f32 0.0, %v3425
        %v3427 = vpop.f32.mrb[0].mxu0
        %v3428 = vpop.f32.mrb[0].mxu0
        %3429 = vdwg.mxu0
        %3430 = vmatprep.subr.bf16.mxu0 %v2364
        %3431 = vmatpush1.bf16.msra.mxu0 %v2363
        %3432 = vmatprep.subr.bf16.mxu0 %v2436
        %3433 = vmatpush1.bf16.msra.mxu0 %v2435
        %3434 = vmatprep.subr.bf16.mxu0 %v2508
        %3435 = vmatpush1.bf16.msra.mxu0 %v2507
        %3436 = vmatprep.subr.bf16.mxu0 %v2580
        %3437 = vmatpush1.bf16.msra.mxu0 %v2579
        %3438 = vmatprep.subr.bf16.mxu0 %v3043
        %3439 = vmatpush1.bf16.msra.mxu0 %v3040
        %3440 = vmatprep.subr.bf16.mxu0 0
        %3441 = vmatpush1.bf16.msra.mxu0 0
        %3442 = vmatprep.subr.bf16.mxu0 0
        %3443 = vmatpush1.bf16.msra.mxu0 0
        %3444 = vmatprep.subr.bf16.mxu0 0
        %3445 = vmatpush1.bf16.msra.mxu0 0
        %3446 = vmatprep.subr.bf16.mxu0 0
        %3447 = vmatpush1.bf16.msra.mxu0 0
        %3448 = vmatprep.subr.bf16.mxu0 0
        %3449 = vmatpush1.bf16.msra.mxu0 0
        %3450 = vmatprep.subr.bf16.mxu0 0
        %3451 = vmatpush1.bf16.msra.mxu0 0
        %3452 = vmatprep.subr.bf16.mxu0 0
        %3453 = vmatpush1.bf16.msra.mxu0 0
        %3454 = vmatprep.subr.bf16.mxu0 0
        %3455 = vmatpush1.bf16.msra.mxu0 0
        %3456 = vmatprep.subr.bf16.mxu0 0
        %3457 = vmatpush1.bf16.msra.mxu0 0
        %3458 = vmatprep.subr.bf16.mxu0 0
        %3459 = vmatpush1.bf16.msra.mxu0 0
        %3460 = vmatprep.subr.bf16.mxu0 0
        %3461 = vmatpush1.bf16.msra.mxu0 0
        %3462 = vmatprep.mubr.bf16.mxu0 0
        %3463 = vmatmul.mubr.bf16.gmra.mrb[0].mxu0 %v3003
        %v3464 = vpop.f32.mrb[0].mxu0
        %v3465 = vadd.f32 0.0, %v3464
        %v3466 = vpop.f32.mrb[0].mxu0
        %v3467 = vadd.f32 0.0, %v3466
        %v3468 = vpop.f32.mrb[0].mxu0
        %v3469 = vpop.f32.mrb[0].mxu0
        %3470 = vdwg.mxu0
        %3471 = vmatprep.subr.bf16.mxu0 %v2366
        %3472 = vmatpush1.bf16.msra.mxu0 %v2365
        %3473 = vmatprep.subr.bf16.mxu0 %v2438
        %3474 = vmatpush1.bf16.msra.mxu0 %v2437
        %3475 = vmatprep.subr.bf16.mxu0 %v2510
        %3476 = vmatpush1.bf16.msra.mxu0 %v2509
        %3477 = vmatprep.subr.bf16.mxu0 %v2582
        %3478 = vmatpush1.bf16.msra.mxu0 %v2581
        %3479 = vmatprep.subr.bf16.mxu0 %v3049
        %3480 = vmatpush1.bf16.msra.mxu0 %v3046
        %3481 = vmatprep.subr.bf16.mxu0 0
        %3482 = vmatpush1.bf16.msra.mxu0 0
        %3483 = vmatprep.subr.bf16.mxu0 0
        %3484 = vmatpush1.bf16.msra.mxu0 0
        %3485 = vmatprep.subr.bf16.mxu0 0
        %3486 = vmatpush1.bf16.msra.mxu0 0
        %3487 = vmatprep.subr.bf16.mxu0 0
        %3488 = vmatpush1.bf16.msra.mxu0 0
        %3489 = vmatprep.subr.bf16.mxu0 0
        %3490 = vmatpush1.bf16.msra.mxu0 0
        %3491 = vmatprep.subr.bf16.mxu0 0
        %3492 = vmatpush1.bf16.msra.mxu0 0
        %3493 = vmatprep.subr.bf16.mxu0 0
        %3494 = vmatpush1.bf16.msra.mxu0 0
        %3495 = vmatprep.subr.bf16.mxu0 0
        %3496 = vmatpush1.bf16.msra.mxu0 0
        %3497 = vmatprep.subr.bf16.mxu0 0
        %3498 = vmatpush1.bf16.msra.mxu0 0
        %3499 = vmatprep.subr.bf16.mxu0 0
        %3500 = vmatpush1.bf16.msra.mxu0 0
        %3501 = vmatprep.subr.bf16.mxu0 0
        %3502 = vmatpush1.bf16.msra.mxu0 0
        %3503 = vmatprep.mubr.bf16.mxu0 0
        %3504 = vmatmul.mubr.bf16.gmra.mrb[0].mxu0 %v3003
        %v3505 = vpop.f32.mrb[0].mxu0
        %v3506 = vadd.f32 0.0, %v3505
        %v3507 = vpop.f32.mrb[0].mxu0
        %v3508 = vadd.f32 0.0, %v3507
        %v3509 = vpop.f32.mrb[0].mxu0
        %v3510 = vpop.f32.mrb[0].mxu0
        %3511 = vdwg.mxu0
        %3512 = vmatprep.subr.bf16.mxu0 %v2368
        %3513 = vmatpush1.bf16.msra.mxu0 %v2367
        %3514 = vmatprep.subr.bf16.mxu0 %v2440
        %3515 = vmatpush1.bf16.msra.mxu0 %v2439
        %3516 = vmatprep.subr.bf16.mxu0 %v2512
        %3517 = vmatpush1.bf16.msra.mxu0 %v2511
        %3518 = vmatprep.subr.bf16.mxu0 %v2584
        %3519 = vmatpush1.bf16.msra.mxu0 %v2583
        %3520 = vmatprep.subr.bf16.mxu0 %v3055
        %3521 = vmatpush1.bf16.msra.mxu0 %v3052
        %3522 = vmatprep.subr.bf16.mxu0 0
        %3523 = vmatpush1.bf16.msra.mxu0 0
        %3524 = vmatprep.subr.bf16.mxu0 0
        %3525 = vmatpush1.bf16.msra.mxu0 0
        %3526 = vmatprep.subr.bf16.mxu0 0
        %3527 = vmatpush1.bf16.msra.mxu0 0
        %3528 = vmatprep.subr.bf16.mxu0 0
        %3529 = vmatpush1.bf16.msra.mxu0 0
        %3530 = vmatprep.subr.bf16.mxu0 0
        %3531 = vmatpush1.bf16.msra.mxu0 0
        %3532 = vmatprep.subr.bf16.mxu0 0
        %3533 = vmatpush1.bf16.msra.mxu0 0
        %3534 = vmatprep.subr.bf16.mxu0 0
        %3535 = vmatpush1.bf16.msra.mxu0 0
        %3536 = vmatprep.subr.bf16.mxu0 0
        %3537 = vmatpush1.bf16.msra.mxu0 0
        %3538 = vmatprep.subr.bf16.mxu0 0
        %3539 = vmatpush1.bf16.msra.mxu0 0
        %3540 = vmatprep.subr.bf16.mxu0 0
        %3541 = vmatpush1.bf16.msra.mxu0 0
        %3542 = vmatprep.subr.bf16.mxu0 0
        %3543 = vmatpush1.bf16.msra.mxu0 0
        %3544 = vmatprep.mubr.bf16.mxu0 0
        %3545 = vmatmul.mubr.bf16.gmra.mrb[0].mxu0 %v3003
        %v3546 = vpop.f32.mrb[0].mxu0
        %v3547 = vadd.f32 0.0, %v3546
        %v3548 = vpop.f32.mrb[0].mxu0
        %v3549 = vadd.f32 0.0, %v3548
        %v3550 = vpop.f32.mrb[0].mxu0
        %v3551 = vpop.f32.mrb[0].mxu0
        %3552 = vdwg.mxu0
        %3553 = vmatprep.subr.bf16.mxu0 %v2370
        %3554 = vmatpush1.bf16.msra.mxu0 %v2369
        %3555 = vmatprep.subr.bf16.mxu0 %v2442
        %3556 = vmatpush1.bf16.msra.mxu0 %v2441
        %3557 = vmatprep.subr.bf16.mxu0 %v2514
        %3558 = vmatpush1.bf16.msra.mxu0 %v2513
        %3559 = vmatprep.subr.bf16.mxu0 %v2586
        %3560 = vmatpush1.bf16.msra.mxu0 %v2585
        %3561 = vmatprep.subr.bf16.mxu0 %v3061
        %3562 = vmatpush1.bf16.msra.mxu0 %v3058
        %3563 = vmatprep.subr.bf16.mxu0 0
        %3564 = vmatpush1.bf16.msra.mxu0 0
        %3565 = vmatprep.subr.bf16.mxu0 0
        %3566 = vmatpush1.bf16.msra.mxu0 0
        %3567 = vmatprep.subr.bf16.mxu0 0
        %3568 = vmatpush1.bf16.msra.mxu0 0
        %3569 = vmatprep.subr.bf16.mxu0 0
        %3570 = vmatpush1.bf16.msra.mxu0 0
        %3571 = vmatprep.subr.bf16.mxu0 0
        %3572 = vmatpush1.bf16.msra.mxu0 0
        %3573 = vmatprep.subr.bf16.mxu0 0
        %3574 = vmatpush1.bf16.msra.mxu0 0
        %3575 = vmatprep.subr.bf16.mxu0 0
        %3576 = vmatpush1.bf16.msra.mxu0 0
        %3577 = vmatprep.subr.bf16.mxu0 0
        %3578 = vmatpush1.bf16.msra.mxu0 0
        %3579 = vmatprep.subr.bf16.mxu0 0
        %3580 = vmatpush1.bf16.msra.mxu0 0
        %3581 = vmatprep.subr.bf16.mxu0 0
        %3582 = vmatpush1.bf16.msra.mxu0 0
        %3583 = vmatprep.subr.bf16.mxu0 0
        %3584 = vmatpush1.bf16.msra.mxu0 0
        %3585 = vmatprep.mubr.bf16.mxu0 0
        %3586 = vmatmul.mubr.bf16.gmra.mrb[0].mxu0 %v3003
        %v3587 = vpop.f32.mrb[0].mxu0
        %v3588 = vadd.f32 0.0, %v3587
        %v3589 = vpop.f32.mrb[0].mxu0
        %v3590 = vadd.f32 0.0, %v3589
        %v3591 = vpop.f32.mrb[0].mxu0
        %v3592 = vpop.f32.mrb[0].mxu0
        %3593 = vdwg.mxu0
        %3594 = vmatprep.subr.bf16.mxu0 %v2372
        %3595 = vmatpush1.bf16.msra.mxu0 %v2371
        %3596 = vmatprep.subr.bf16.mxu0 %v2444
        %3597 = vmatpush1.bf16.msra.mxu0 %v2443
        %3598 = vmatprep.subr.bf16.mxu0 %v2516
        %3599 = vmatpush1.bf16.msra.mxu0 %v2515
        %3600 = vmatprep.subr.bf16.mxu0 %v2588
        %3601 = vmatpush1.bf16.msra.mxu0 %v2587
        %3602 = vmatprep.subr.bf16.mxu0 %v3067
        %3603 = vmatpush1.bf16.msra.mxu0 %v3064
        %3604 = vmatprep.subr.bf16.mxu0 0
        %3605 = vmatpush1.bf16.msra.mxu0 0
        %3606 = vmatprep.subr.bf16.mxu0 0
        %3607 = vmatpush1.bf16.msra.mxu0 0
        %3608 = vmatprep.subr.bf16.mxu0 0
        %3609 = vmatpush1.bf16.msra.mxu0 0
        %3610 = vmatprep.subr.bf16.mxu0 0
        %3611 = vmatpush1.bf16.msra.mxu0 0
        %3612 = vmatprep.subr.bf16.mxu0 0
        %3613 = vmatpush1.bf16.msra.mxu0 0
        %3614 = vmatprep.subr.bf16.mxu0 0
        %3615 = vmatpush1.bf16.msra.mxu0 0
        %3616 = vmatprep.subr.bf16.mxu0 0
        %3617 = vmatpush1.bf16.msra.mxu0 0
        %3618 = vmatprep.subr.bf16.mxu0 0
        %3619 = vmatpush1.bf16.msra.mxu0 0
        %3620 = vmatprep.subr.bf16.mxu0 0
        %3621 = vmatpush1.bf16.msra.mxu0 0
        %3622 = vmatprep.subr.bf16.mxu0 0
        %3623 = vmatpush1.bf16.msra.mxu0 0
        %3624 = vmatprep.subr.bf16.mxu0 0
        %3625 = vmatpush1.bf16.msra.mxu0 0
        %3626 = vmatprep.mubr.bf16.mxu0 0
        %3627 = vmatmul.mubr.bf16.gmra.mrb[0].mxu0 %v3003
        %v3628 = vpop.f32.mrb[0].mxu0
        %v3629 = vadd.f32 0.0, %v3628
        %v3630 = vpop.f32.mrb[0].mxu0
        %v3631 = vadd.f32 0.0, %v3630
        %v3632 = vpop.f32.mrb[0].mxu0
        %v3633 = vpop.f32.mrb[0].mxu0
        %3634 = vdwg.mxu0
        %3635 = vmatprep.subr.bf16.mxu0 %v2374
        %3636 = vmatpush1.bf16.msra.mxu0 %v2373
        %3637 = vmatprep.subr.bf16.mxu0 %v2446
        %3638 = vmatpush1.bf16.msra.mxu0 %v2445
        %3639 = vmatprep.subr.bf16.mxu0 %v2518
        %3640 = vmatpush1.bf16.msra.mxu0 %v2517
        %3641 = vmatprep.subr.bf16.mxu0 %v2590
        %3642 = vmatpush1.bf16.msra.mxu0 %v2589
        %3643 = vmatprep.subr.bf16.mxu0 %v3073
        %3644 = vmatpush1.bf16.msra.mxu0 %v3070
        %3645 = vmatprep.subr.bf16.mxu0 0
        %3646 = vmatpush1.bf16.msra.mxu0 0
        %3647 = vmatprep.subr.bf16.mxu0 0
        %3648 = vmatpush1.bf16.msra.mxu0 0
        %3649 = vmatprep.subr.bf16.mxu0 0
        %3650 = vmatpush1.bf16.msra.mxu0 0
        %3651 = vmatprep.subr.bf16.mxu0 0
        %3652 = vmatpush1.bf16.msra.mxu0 0
        %3653 = vmatprep.subr.bf16.mxu0 0
        %3654 = vmatpush1.bf16.msra.mxu0 0
        %3655 = vmatprep.subr.bf16.mxu0 0
        %3656 = vmatpush1.bf16.msra.mxu0 0
        %3657 = vmatprep.subr.bf16.mxu0 0
        %3658 = vmatpush1.bf16.msra.mxu0 0
        %3659 = vmatprep.subr.bf16.mxu0 0
        %3660 = vmatpush1.bf16.msra.mxu0 0
        %3661 = vmatprep.subr.bf16.mxu0 0
        %3662 = vmatpush1.bf16.msra.mxu0 0
        %3663 = vmatprep.subr.bf16.mxu0 0
        %3664 = vmatpush1.bf16.msra.mxu0 0
        %3665 = vmatprep.subr.bf16.mxu0 0
        %3666 = vmatpush1.bf16.msra.mxu0 0
        %3667 = vmatprep.mubr.bf16.mxu0 0
        %3668 = vmatmul.mubr.bf16.gmra.mrb[0].mxu0 %v3003
        %v3669 = vpop.f32.mrb[0].mxu0
        %v3670 = vadd.f32 0.0, %v3669
        %v3671 = vpop.f32.mrb[0].mxu0
        %v3672 = vadd.f32 0.0, %v3671
        %v3673 = vpop.f32.mrb[0].mxu0
        %v3674 = vpop.f32.mrb[0].mxu0
        %3675 = vdwg.mxu0
        %3676 = vmatprep.subr.bf16.mxu0 %v2376
        %3677 = vmatpush1.bf16.msra.mxu0 %v2375
        %3678 = vmatprep.subr.bf16.mxu0 %v2448
        %3679 = vmatpush1.bf16.msra.mxu0 %v2447
        %3680 = vmatprep.subr.bf16.mxu0 %v2520
        %3681 = vmatpush1.bf16.msra.mxu0 %v2519
        %3682 = vmatprep.subr.bf16.mxu0 %v2592
        %3683 = vmatpush1.bf16.msra.mxu0 %v2591
        %3684 = vmatprep.subr.bf16.mxu0 %v3079
        %3685 = vmatpush1.bf16.msra.mxu0 %v3076
        %3686 = vmatprep.subr.bf16.mxu0 0
        %3687 = vmatpush1.bf16.msra.mxu0 0
        %3688 = vmatprep.subr.bf16.mxu0 0
        %3689 = vmatpush1.bf16.msra.mxu0 0
        %3690 = vmatprep.subr.bf16.mxu0 0
        %3691 = vmatpush1.bf16.msra.mxu0 0
        %3692 = vmatprep.subr.bf16.mxu0 0
        %3693 = vmatpush1.bf16.msra.mxu0 0
        %3694 = vmatprep.subr.bf16.mxu0 0
        %3695 = vmatpush1.bf16.msra.mxu0 0
        %3696 = vmatprep.subr.bf16.mxu0 0
        %3697 = vmatpush1.bf16.msra.mxu0 0
        %3698 = vmatprep.subr.bf16.mxu0 0
        %3699 = vmatpush1.bf16.msra.mxu0 0
        %3700 = vmatprep.subr.bf16.mxu0 0
        %3701 = vmatpush1.bf16.msra.mxu0 0
        %3702 = vmatprep.subr.bf16.mxu0 0
        %3703 = vmatpush1.bf16.msra.mxu0 0
        %3704 = vmatprep.subr.bf16.mxu0 0
        %3705 = vmatpush1.bf16.msra.mxu0 0
        %3706 = vmatprep.subr.bf16.mxu0 0
        %3707 = vmatpush1.bf16.msra.mxu0 0
        %3708 = vmatprep.mubr.bf16.mxu0 0
        %3709 = vmatmul.mubr.bf16.gmra.mrb[0].mxu0 %v3003
        %v3710 = vpop.f32.mrb[0].mxu0
        %v3711 = vadd.f32 0.0, %v3710
        %v3712 = vpop.f32.mrb[0].mxu0
        %v3713 = vadd.f32 0.0, %v3712
        %v3714 = vpop.f32.mrb[0].mxu0
        %v3715 = vpop.f32.mrb[0].mxu0
        %3716 = vdwg.mxu0
        %3717 = vmatprep.subr.bf16.mxu0 %v2378
        %3718 = vmatpush1.bf16.msra.mxu0 %v2377
        %3719 = vmatprep.subr.bf16.mxu0 %v2450
        %3720 = vmatpush1.bf16.msra.mxu0 %v2449
        %3721 = vmatprep.subr.bf16.mxu0 %v2522
        %3722 = vmatpush1.bf16.msra.mxu0 %v2521
        %3723 = vmatprep.subr.bf16.mxu0 %v2594
        %3724 = vmatpush1.bf16.msra.mxu0 %v2593
        %3725 = vmatprep.subr.bf16.mxu0 %v3085
        %3726 = vmatpush1.bf16.msra.mxu0 %v3082
        %3727 = vmatprep.subr.bf16.mxu0 0
        %3728 = vmatpush1.bf16.msra.mxu0 0
        %3729 = vmatprep.subr.bf16.mxu0 0
        %3730 = vmatpush1.bf16.msra.mxu0 0
        %3731 = vmatprep.subr.bf16.mxu0 0
        %3732 = vmatpush1.bf16.msra.mxu0 0
        %3733 = vmatprep.subr.bf16.mxu0 0
        %3734 = vmatpush1.bf16.msra.mxu0 0
        %3735 = vmatprep.subr.bf16.mxu0 0
        %3736 = vmatpush1.bf16.msra.mxu0 0
        %3737 = vmatprep.subr.bf16.mxu0 0
        %3738 = vmatpush1.bf16.msra.mxu0 0
        %3739 = vmatprep.subr.bf16.mxu0 0
        %3740 = vmatpush1.bf16.msra.mxu0 0
        %3741 = vmatprep.subr.bf16.mxu0 0
        %3742 = vmatpush1.bf16.msra.mxu0 0
        %3743 = vmatprep.subr.bf16.mxu0 0
        %3744 = vmatpush1.bf16.msra.mxu0 0
        %3745 = vmatprep.subr.bf16.mxu0 0
        %3746 = vmatpush1.bf16.msra.mxu0 0
        %3747 = vmatprep.subr.bf16.mxu0 0
        %3748 = vmatpush1.bf16.msra.mxu0 0
        %3749 = vmatprep.mubr.bf16.mxu0 0
        %3750 = vmatmul.mubr.bf16.gmra.mrb[0].mxu0 %v3003
        %v3751 = vpop.f32.mrb[0].mxu0
        %v3752 = vadd.f32 0.0, %v3751
        %v3753 = vpop.f32.mrb[0].mxu0
        %v3754 = vadd.f32 0.0, %v3753
        %v3755 = vpop.f32.mrb[0].mxu0
        %v3756 = vpop.f32.mrb[0].mxu0
        %3757 = vdwg.mxu0
        %3758 = vmatprep.subr.bf16.mxu0 %v2380
        %3759 = vmatpush1.bf16.msra.mxu0 %v2379
        %3760 = vmatprep.subr.bf16.mxu0 %v2452
        %3761 = vmatpush1.bf16.msra.mxu0 %v2451
        %3762 = vmatprep.subr.bf16.mxu0 %v2524
        %3763 = vmatpush1.bf16.msra.mxu0 %v2523
        %3764 = vmatprep.subr.bf16.mxu0 %v2596
        %3765 = vmatpush1.bf16.msra.mxu0 %v2595
        %3766 = vmatprep.subr.bf16.mxu0 %v3091
        %3767 = vmatpush1.bf16.msra.mxu0 %v3088
        %3768 = vmatprep.subr.bf16.mxu0 0
        %3769 = vmatpush1.bf16.msra.mxu0 0
        %3770 = vmatprep.subr.bf16.mxu0 0
        %3771 = vmatpush1.bf16.msra.mxu0 0
        %3772 = vmatprep.subr.bf16.mxu0 0
        %3773 = vmatpush1.bf16.msra.mxu0 0
        %3774 = vmatprep.subr.bf16.mxu0 0
        %3775 = vmatpush1.bf16.msra.mxu0 0
        %3776 = vmatprep.subr.bf16.mxu0 0
        %3777 = vmatpush1.bf16.msra.mxu0 0
        %3778 = vmatprep.subr.bf16.mxu0 0
        %3779 = vmatpush1.bf16.msra.mxu0 0
        %3780 = vmatprep.subr.bf16.mxu0 0
        %3781 = vmatpush1.bf16.msra.mxu0 0
        %3782 = vmatprep.subr.bf16.mxu0 0
        %3783 = vmatpush1.bf16.msra.mxu0 0
        %3784 = vmatprep.subr.bf16.mxu0 0
        %3785 = vmatpush1.bf16.msra.mxu0 0
        %3786 = vmatprep.subr.bf16.mxu0 0
        %3787 = vmatpush1.bf16.msra.mxu0 0
        %3788 = vmatprep.subr.bf16.mxu0 0
        %3789 = vmatpush1.bf16.msra.mxu0 0
        %3790 = vmatprep.mubr.bf16.mxu0 0
        %3791 = vmatmul.mubr.bf16.gmra.mrb[0].mxu0 %v3003
        %v3792 = vpop.f32.mrb[0].mxu0
        %v3793 = vadd.f32 0.0, %v3792
        %v3794 = vpop.f32.mrb[0].mxu0
        %v3795 = vadd.f32 0.0, %v3794
        %v3796 = vpop.f32.mrb[0].mxu0
        %v3797 = vpop.f32.mrb[0].mxu0
        %3798 = vdwg.mxu0
        %3799 = vmatprep.subr.bf16.mxu0 %v2382
        %3800 = vmatpush1.bf16.msra.mxu0 %v2381
        %3801 = vmatprep.subr.bf16.mxu0 %v2454
        %3802 = vmatpush1.bf16.msra.mxu0 %v2453
        %3803 = vmatprep.subr.bf16.mxu0 %v2526
        %3804 = vmatpush1.bf16.msra.mxu0 %v2525
        %3805 = vmatprep.subr.bf16.mxu0 %v2598
        %3806 = vmatpush1.bf16.msra.mxu0 %v2597
        %3807 = vmatprep.subr.bf16.mxu0 %v3097
        %3808 = vmatpush1.bf16.msra.mxu0 %v3094
        %3809 = vmatprep.subr.bf16.mxu0 0
        %3810 = vmatpush1.bf16.msra.mxu0 0
        %3811 = vmatprep.subr.bf16.mxu0 0
        %3812 = vmatpush1.bf16.msra.mxu0 0
        %3813 = vmatprep.subr.bf16.mxu0 0
        %3814 = vmatpush1.bf16.msra.mxu0 0
        %3815 = vmatprep.subr.bf16.mxu0 0
        %3816 = vmatpush1.bf16.msra.mxu0 0
        %3817 = vmatprep.subr.bf16.mxu0 0
        %3818 = vmatpush1.bf16.msra.mxu0 0
        %3819 = vmatprep.subr.bf16.mxu0 0
        %3820 = vmatpush1.bf16.msra.mxu0 0
        %3821 = vmatprep.subr.bf16.mxu0 0
        %3822 = vmatpush1.bf16.msra.mxu0 0
        %3823 = vmatprep.subr.bf16.mxu0 0
        %3824 = vmatpush1.bf16.msra.mxu0 0
        %3825 = vmatprep.subr.bf16.mxu0 0
        %3826 = vmatpush1.bf16.msra.mxu0 0
        %3827 = vmatprep.subr.bf16.mxu0 0
        %3828 = vmatpush1.bf16.msra.mxu0 0
        %3829 = vmatprep.subr.bf16.mxu0 0
        %3830 = vmatpush1.bf16.msra.mxu0 0
        %3831 = vmatprep.mubr.bf16.mxu0 0
        %3832 = vmatmul.mubr.bf16.gmra.mrb[0].mxu0 %v3003
        %v3833 = vpop.f32.mrb[0].mxu0
        %v3834 = vadd.f32 0.0, %v3833
        %v3835 = vpop.f32.mrb[0].mxu0
        %v3836 = vadd.f32 0.0, %v3835
        %v3837 = vpop.f32.mrb[0].mxu0
        %v3838 = vpop.f32.mrb[0].mxu0
        %3839 = vdwg.mxu0
        %3840 = vmatprep.subr.bf16.mxu0 %v2384
        %3841 = vmatpush1.bf16.msra.mxu0 %v2383
        %3842 = vmatprep.subr.bf16.mxu0 %v2456
        %3843 = vmatpush1.bf16.msra.mxu0 %v2455
        %3844 = vmatprep.subr.bf16.mxu0 %v2528
        %3845 = vmatpush1.bf16.msra.mxu0 %v2527
        %3846 = vmatprep.subr.bf16.mxu0 %v2600
        %3847 = vmatpush1.bf16.msra.mxu0 %v2599
        %3848 = vmatprep.subr.bf16.mxu0 %v3103
        %3849 = vmatpush1.bf16.msra.mxu0 %v3100
        %3850 = vmatprep.subr.bf16.mxu0 0
        %3851 = vmatpush1.bf16.msra.mxu0 0
        %3852 = vmatprep.subr.bf16.mxu0 0
        %3853 = vmatpush1.bf16.msra.mxu0 0
        %3854 = vmatprep.subr.bf16.mxu0 0
        %3855 = vmatpush1.bf16.msra.mxu0 0
        %3856 = vmatprep.subr.bf16.mxu0 0
        %3857 = vmatpush1.bf16.msra.mxu0 0
        %3858 = vmatprep.subr.bf16.mxu0 0
        %3859 = vmatpush1.bf16.msra.mxu0 0
        %3860 = vmatprep.subr.bf16.mxu0 0
        %3861 = vmatpush1.bf16.msra.mxu0 0
        %3862 = vmatprep.subr.bf16.mxu0 0
        %3863 = vmatpush1.bf16.msra.mxu0 0
        %3864 = vmatprep.subr.bf16.mxu0 0
        %3865 = vmatpush1.bf16.msra.mxu0 0
        %3866 = vmatprep.subr.bf16.mxu0 0
        %3867 = vmatpush1.bf16.msra.mxu0 0
        %3868 = vmatprep.subr.bf16.mxu0 0
        %3869 = vmatpush1.bf16.msra.mxu0 0
        %3870 = vmatprep.subr.bf16.mxu0 0
        %3871 = vmatpush1.bf16.msra.mxu0 0
        %3872 = vmatprep.mubr.bf16.mxu0 0
        %3873 = vmatmul.mubr.bf16.gmra.mrb[0].mxu0 %v3003
        %v3874 = vpop.f32.mrb[0].mxu0
        %v3875 = vadd.f32 0.0, %v3874
        %v3876 = vpop.f32.mrb[0].mxu0
        %v3877 = vadd.f32 0.0, %v3876
        %v3878 = vpop.f32.mrb[0].mxu0
        %v3879 = vpop.f32.mrb[0].mxu0
        %3880 = vdwg.mxu0
        %3881 = vmatprep.subr.bf16.mxu0 %v2386
        %3882 = vmatpush1.bf16.msra.mxu0 %v2385
        %3883 = vmatprep.subr.bf16.mxu0 %v2458
        %3884 = vmatpush1.bf16.msra.mxu0 %v2457
        %3885 = vmatprep.subr.bf16.mxu0 %v2530
        %3886 = vmatpush1.bf16.msra.mxu0 %v2529
        %3887 = vmatprep.subr.bf16.mxu0 %v2602
        %3888 = vmatpush1.bf16.msra.mxu0 %v2601
        %3889 = vmatprep.subr.bf16.mxu0 %v3109
        %3890 = vmatpush1.bf16.msra.mxu0 %v3106
        %3891 = vmatprep.subr.bf16.mxu0 0
        %3892 = vmatpush1.bf16.msra.mxu0 0
        %3893 = vmatprep.subr.bf16.mxu0 0
        %3894 = vmatpush1.bf16.msra.mxu0 0
        %3895 = vmatprep.subr.bf16.mxu0 0
        %3896 = vmatpush1.bf16.msra.mxu0 0
        %3897 = vmatprep.subr.bf16.mxu0 0
        %3898 = vmatpush1.bf16.msra.mxu0 0
        %3899 = vmatprep.subr.bf16.mxu0 0
        %3900 = vmatpush1.bf16.msra.mxu0 0
        %3901 = vmatprep.subr.bf16.mxu0 0
        %3902 = vmatpush1.bf16.msra.mxu0 0
        %3903 = vmatprep.subr.bf16.mxu0 0
        %3904 = vmatpush1.bf16.msra.mxu0 0
        %3905 = vmatprep.subr.bf16.mxu0 0
        %3906 = vmatpush1.bf16.msra.mxu0 0
        %3907 = vmatprep.subr.bf16.mxu0 0
        %3908 = vmatpush1.bf16.msra.mxu0 0
        %3909 = vmatprep.subr.bf16.mxu0 0
        %3910 = vmatpush1.bf16.msra.mxu0 0
        %3911 = vmatprep.subr.bf16.mxu0 0
        %3912 = vmatpush1.bf16.msra.mxu0 0
        %3913 = vmatprep.mubr.bf16.mxu0 0
        %3914 = vmatmul.mubr.bf16.gmra.mrb[0].mxu0 %v3003
        %v3915 = vpop.f32.mrb[0].mxu0
        %v3916 = vadd.f32 0.0, %v3915
        %v3917 = vpop.f32.mrb[0].mxu0
        %v3918 = vadd.f32 0.0, %v3917
        %v3919 = vpop.f32.mrb[0].mxu0
        %v3920 = vpop.f32.mrb[0].mxu0
        %3921 = vdwg.mxu0
        %3922 = vmatprep.subr.bf16.mxu0 %v2388
        %3923 = vmatpush1.bf16.msra.mxu0 %v2387
        %3924 = vmatprep.subr.bf16.mxu0 %v2460
        %3925 = vmatpush1.bf16.msra.mxu0 %v2459
        %3926 = vmatprep.subr.bf16.mxu0 %v2532
        %3927 = vmatpush1.bf16.msra.mxu0 %v2531
        %3928 = vmatprep.subr.bf16.mxu0 %v2604
        %3929 = vmatpush1.bf16.msra.mxu0 %v2603
        %3930 = vmatprep.subr.bf16.mxu0 %v3115
        %3931 = vmatpush1.bf16.msra.mxu0 %v3112
        %3932 = vmatprep.subr.bf16.mxu0 0
        %3933 = vmatpush1.bf16.msra.mxu0 0
        %3934 = vmatprep.subr.bf16.mxu0 0
        %3935 = vmatpush1.bf16.msra.mxu0 0
        %3936 = vmatprep.subr.bf16.mxu0 0
        %3937 = vmatpush1.bf16.msra.mxu0 0
        %3938 = vmatprep.subr.bf16.mxu0 0
        %3939 = vmatpush1.bf16.msra.mxu0 0
        %3940 = vmatprep.subr.bf16.mxu0 0
        %3941 = vmatpush1.bf16.msra.mxu0 0
        %3942 = vmatprep.subr.bf16.mxu0 0
        %3943 = vmatpush1.bf16.msra.mxu0 0
        %3944 = vmatprep.subr.bf16.mxu0 0
        %3945 = vmatpush1.bf16.msra.mxu0 0
        %3946 = vmatprep.subr.bf16.mxu0 0
        %3947 = vmatpush1.bf16.msra.mxu0 0
        %3948 = vmatprep.subr.bf16.mxu0 0
        %3949 = vmatpush1.bf16.msra.mxu0 0
        %3950 = vmatprep.subr.bf16.mxu0 0
        %3951 = vmatpush1.bf16.msra.mxu0 0
        %3952 = vmatprep.subr.bf16.mxu0 0
        %3953 = vmatpush1.bf16.msra.mxu0 0
        %3954 = vmatprep.mubr.bf16.mxu0 0
        %3955 = vmatmul.mubr.bf16.gmra.mrb[0].mxu0 %v3003
        %v3956 = vpop.f32.mrb[0].mxu0
        %v3957 = vadd.f32 0.0, %v3956
        %v3958 = vpop.f32.mrb[0].mxu0
        %v3959 = vadd.f32 0.0, %v3958
        %v3960 = vpop.f32.mrb[0].mxu0
        %v3961 = vpop.f32.mrb[0].mxu0
        %3962 = vdwg.mxu0
        %3963 = vmatprep.subr.bf16.mxu0 %v2390
        %3964 = vmatpush1.bf16.msra.mxu0 %v2389
        %3965 = vmatprep.subr.bf16.mxu0 %v2462
        %3966 = vmatpush1.bf16.msra.mxu0 %v2461
        %3967 = vmatprep.subr.bf16.mxu0 %v2534
        %3968 = vmatpush1.bf16.msra.mxu0 %v2533
        %3969 = vmatprep.subr.bf16.mxu0 %v2606
        %3970 = vmatpush1.bf16.msra.mxu0 %v2605
        %3971 = vmatprep.subr.bf16.mxu0 %v3121
        %3972 = vmatpush1.bf16.msra.mxu0 %v3118
        %3973 = vmatprep.subr.bf16.mxu0 0
        %3974 = vmatpush1.bf16.msra.mxu0 0
        %3975 = vmatprep.subr.bf16.mxu0 0
        %3976 = vmatpush1.bf16.msra.mxu0 0
        %3977 = vmatprep.subr.bf16.mxu0 0
        %3978 = vmatpush1.bf16.msra.mxu0 0
        %3979 = vmatprep.subr.bf16.mxu0 0
        %3980 = vmatpush1.bf16.msra.mxu0 0
        %3981 = vmatprep.subr.bf16.mxu0 0
        %3982 = vmatpush1.bf16.msra.mxu0 0
        %3983 = vmatprep.subr.bf16.mxu0 0
        %3984 = vmatpush1.bf16.msra.mxu0 0
        %3985 = vmatprep.subr.bf16.mxu0 0
        %3986 = vmatpush1.bf16.msra.mxu0 0
        %3987 = vmatprep.subr.bf16.mxu0 0
        %3988 = vmatpush1.bf16.msra.mxu0 0
        %3989 = vmatprep.subr.bf16.mxu0 0
        %3990 = vmatpush1.bf16.msra.mxu0 0
        %3991 = vmatprep.subr.bf16.mxu0 0
        %3992 = vmatpush1.bf16.msra.mxu0 0
        %3993 = vmatprep.subr.bf16.mxu0 0
        %3994 = vmatpush1.bf16.msra.mxu0 0
        %3995 = vmatprep.mubr.bf16.mxu0 0
        %3996 = vmatmul.mubr.bf16.gmra.mrb[0].mxu0 %v3003
        %v3997 = vpop.f32.mrb[0].mxu0
        %v3998 = vadd.f32 0.0, %v3997
        %v3999 = vpop.f32.mrb[0].mxu0
        %v4000 = vadd.f32 0.0, %v3999
        %v4001 = vpop.f32.mrb[0].mxu0
        %v4002 = vpop.f32.mrb[0].mxu0
        %4003 = vdwg.mxu0
        %4004 = vmatprep.subr.bf16.mxu0 %v2392
        %4005 = vmatpush1.bf16.msra.mxu0 %v2391
        %4006 = vmatprep.subr.bf16.mxu0 %v2464
        %4007 = vmatpush1.bf16.msra.mxu0 %v2463
        %4008 = vmatprep.subr.bf16.mxu0 %v2536
        %4009 = vmatpush1.bf16.msra.mxu0 %v2535
        %4010 = vmatprep.subr.bf16.mxu0 %v2608
        %4011 = vmatpush1.bf16.msra.mxu0 %v2607
        %4012 = vmatprep.subr.bf16.mxu0 %v3127
        %4013 = vmatpush1.bf16.msra.mxu0 %v3124
        %4014 = vmatprep.subr.bf16.mxu0 0
        %4015 = vmatpush1.bf16.msra.mxu0 0
        %4016 = vmatprep.subr.bf16.mxu0 0
        %4017 = vmatpush1.bf16.msra.mxu0 0
        %4018 = vmatprep.subr.bf16.mxu0 0
        %4019 = vmatpush1.bf16.msra.mxu0 0
        %4020 = vmatprep.subr.bf16.mxu0 0
        %4021 = vmatpush1.bf16.msra.mxu0 0
        %4022 = vmatprep.subr.bf16.mxu0 0
        %4023 = vmatpush1.bf16.msra.mxu0 0
        %4024 = vmatprep.subr.bf16.mxu0 0
        %4025 = vmatpush1.bf16.msra.mxu0 0
        %4026 = vmatprep.subr.bf16.mxu0 0
        %4027 = vmatpush1.bf16.msra.mxu0 0
        %4028 = vmatprep.subr.bf16.mxu0 0
        %4029 = vmatpush1.bf16.msra.mxu0 0
        %4030 = vmatprep.subr.bf16.mxu0 0
        %4031 = vmatpush1.bf16.msra.mxu0 0
        %4032 = vmatprep.subr.bf16.mxu0 0
        %4033 = vmatpush1.bf16.msra.mxu0 0
        %4034 = vmatprep.subr.bf16.mxu0 0
        %4035 = vmatpush1.bf16.msra.mxu0 0
        %4036 = vmatprep.mubr.bf16.mxu0 0
        %4037 = vmatmul.mubr.bf16.gmra.mrb[0].mxu0 %v3003
        %v4038 = vpop.f32.mrb[0].mxu0
        %v4039 = vadd.f32 0.0, %v4038
        %v4040 = vpop.f32.mrb[0].mxu0
        %v4041 = vadd.f32 0.0, %v4040
        %v4042 = vpop.f32.mrb[0].mxu0
        %v4043 = vpop.f32.mrb[0].mxu0
        %4044 = vdwg.mxu0
        %4045 = vmatprep.subr.bf16.mxu0 %v2394
        %4046 = vmatpush1.bf16.msra.mxu0 %v2393
        %4047 = vmatprep.subr.bf16.mxu0 %v2466
        %4048 = vmatpush1.bf16.msra.mxu0 %v2465
        %4049 = vmatprep.subr.bf16.mxu0 %v2538
        %4050 = vmatpush1.bf16.msra.mxu0 %v2537
        %4051 = vmatprep.subr.bf16.mxu0 %v2610
        %4052 = vmatpush1.bf16.msra.mxu0 %v2609
        %4053 = vmatprep.subr.bf16.mxu0 %v3133
        %4054 = vmatpush1.bf16.msra.mxu0 %v3130
        %4055 = vmatprep.subr.bf16.mxu0 0
        %4056 = vmatpush1.bf16.msra.mxu0 0
        %4057 = vmatprep.subr.bf16.mxu0 0
        %4058 = vmatpush1.bf16.msra.mxu0 0
        %4059 = vmatprep.subr.bf16.mxu0 0
        %4060 = vmatpush1.bf16.msra.mxu0 0
        %4061 = vmatprep.subr.bf16.mxu0 0
        %4062 = vmatpush1.bf16.msra.mxu0 0
        %4063 = vmatprep.subr.bf16.mxu0 0
        %4064 = vmatpush1.bf16.msra.mxu0 0
        %4065 = vmatprep.subr.bf16.mxu0 0
        %4066 = vmatpush1.bf16.msra.mxu0 0
        %4067 = vmatprep.subr.bf16.mxu0 0
        %4068 = vmatpush1.bf16.msra.mxu0 0
        %4069 = vmatprep.subr.bf16.mxu0 0
        %4070 = vmatpush1.bf16.msra.mxu0 0
        %4071 = vmatprep.subr.bf16.mxu0 0
        %4072 = vmatpush1.bf16.msra.mxu0 0
        %4073 = vmatprep.subr.bf16.mxu0 0
        %4074 = vmatpush1.bf16.msra.mxu0 0
        %4075 = vmatprep.subr.bf16.mxu0 0
        %4076 = vmatpush1.bf16.msra.mxu0 0
        %4077 = vmatprep.mubr.bf16.mxu0 0
        %4078 = vmatmul.mubr.bf16.gmra.mrb[0].mxu0 %v3003
        %v4079 = vpop.f32.mrb[0].mxu0
        %v4080 = vadd.f32 0.0, %v4079
        %v4081 = vpop.f32.mrb[0].mxu0
        %v4082 = vadd.f32 0.0, %v4081
        %v4083 = vpop.f32.mrb[0].mxu0
        %v4084 = vpop.f32.mrb[0].mxu0
        %4085 = vdwg.mxu0
        %4086 = vmatprep.subr.bf16.mxu0 %v2396
        %4087 = vmatpush1.bf16.msra.mxu0 %v2395
        %4088 = vmatprep.subr.bf16.mxu0 %v2468
        %4089 = vmatpush1.bf16.msra.mxu0 %v2467
        %4090 = vmatprep.subr.bf16.mxu0 %v2540
        %4091 = vmatpush1.bf16.msra.mxu0 %v2539
        %4092 = vmatprep.subr.bf16.mxu0 %v2612
        %4093 = vmatpush1.bf16.msra.mxu0 %v2611
        %4094 = vmatprep.subr.bf16.mxu0 %v3139
        %4095 = vmatpush1.bf16.msra.mxu0 %v3136
        %4096 = vmatprep.subr.bf16.mxu0 0
        %4097 = vmatpush1.bf16.msra.mxu0 0
        %4098 = vmatprep.subr.bf16.mxu0 0
        %4099 = vmatpush1.bf16.msra.mxu0 0
        %4100 = vmatprep.subr.bf16.mxu0 0
        %4101 = vmatpush1.bf16.msra.mxu0 0
        %4102 = vmatprep.subr.bf16.mxu0 0
        %4103 = vmatpush1.bf16.msra.mxu0 0
        %4104 = vmatprep.subr.bf16.mxu0 0
        %4105 = vmatpush1.bf16.msra.mxu0 0
        %4106 = vmatprep.subr.bf16.mxu0 0
        %4107 = vmatpush1.bf16.msra.mxu0 0
        %4108 = vmatprep.subr.bf16.mxu0 0
        %4109 = vmatpush1.bf16.msra.mxu0 0
        %4110 = vmatprep.subr.bf16.mxu0 0
        %4111 = vmatpush1.bf16.msra.mxu0 0
        %4112 = vmatprep.subr.bf16.mxu0 0
        %4113 = vmatpush1.bf16.msra.mxu0 0
        %4114 = vmatprep.subr.bf16.mxu0 0
        %4115 = vmatpush1.bf16.msra.mxu0 0
        %4116 = vmatprep.subr.bf16.mxu0 0
        %4117 = vmatpush1.bf16.msra.mxu0 0
        %4118 = vmatprep.mubr.bf16.mxu0 0
        %4119 = vmatmul.mubr.bf16.gmra.mrb[0].mxu0 %v3003
        %v4120 = vpop.f32.mrb[0].mxu0
        %v4121 = vadd.f32 0.0, %v4120
        %v4122 = vpop.f32.mrb[0].mxu0
        %v4123 = vadd.f32 0.0, %v4122
        %v4124 = vpop.f32.mrb[0].mxu0
        %v4125 = vpop.f32.mrb[0].mxu0
        %4126 = vdwg.mxu0
        %4127 = vmatprep.subr.bf16.mxu0 %v2398
        %4128 = vmatpush1.bf16.msra.mxu0 %v2397
        %4129 = vmatprep.subr.bf16.mxu0 %v2470
        %4130 = vmatpush1.bf16.msra.mxu0 %v2469
        %4131 = vmatprep.subr.bf16.mxu0 %v2542
        %4132 = vmatpush1.bf16.msra.mxu0 %v2541
        %4133 = vmatprep.subr.bf16.mxu0 %v2614
        %4134 = vmatpush1.bf16.msra.mxu0 %v2613
        %4135 = vmatprep.subr.bf16.mxu0 %v3145
        %4136 = vmatpush1.bf16.msra.mxu0 %v3142
        %4137 = vmatprep.subr.bf16.mxu0 0
        %4138 = vmatpush1.bf16.msra.mxu0 0
        %4139 = vmatprep.subr.bf16.mxu0 0
        %4140 = vmatpush1.bf16.msra.mxu0 0
        %4141 = vmatprep.subr.bf16.mxu0 0
        %4142 = vmatpush1.bf16.msra.mxu0 0
        %4143 = vmatprep.subr.bf16.mxu0 0
        %4144 = vmatpush1.bf16.msra.mxu0 0
        %4145 = vmatprep.subr.bf16.mxu0 0
        %4146 = vmatpush1.bf16.msra.mxu0 0
        %4147 = vmatprep.subr.bf16.mxu0 0
        %4148 = vmatpush1.bf16.msra.mxu0 0
        %4149 = vmatprep.subr.bf16.mxu0 0
        %4150 = vmatpush1.bf16.msra.mxu0 0
        %4151 = vmatprep.subr.bf16.mxu0 0
        %4152 = vmatpush1.bf16.msra.mxu0 0
        %4153 = vmatprep.subr.bf16.mxu0 0
        %4154 = vmatpush1.bf16.msra.mxu0 0
        %4155 = vmatprep.subr.bf16.mxu0 0
        %4156 = vmatpush1.bf16.msra.mxu0 0
        %4157 = vmatprep.subr.bf16.mxu0 0
        %4158 = vmatpush1.bf16.msra.mxu0 0
        %4159 = vmatprep.mubr.bf16.mxu0 0
        %4160 = vmatmul.mubr.bf16.gmra.mrb[0].mxu0 %v3003
        %v4161 = vpop.f32.mrb[0].mxu0
        %v4162 = vadd.f32 0.0, %v4161
        %v4163 = vpop.f32.mrb[0].mxu0
        %v4164 = vadd.f32 0.0, %v4163
        %v4165 = vpop.f32.mrb[0].mxu0
        %v4166 = vpop.f32.mrb[0].mxu0
        %4167 = vdwg.mxu0
        %4168 = vmatprep.subr.bf16.mxu0 %v2400
        %4169 = vmatpush1.bf16.msra.mxu0 %v2399
        %4170 = vmatprep.subr.bf16.mxu0 %v2472
        %4171 = vmatpush1.bf16.msra.mxu0 %v2471
        %4172 = vmatprep.subr.bf16.mxu0 %v2544
        %4173 = vmatpush1.bf16.msra.mxu0 %v2543
        %4174 = vmatprep.subr.bf16.mxu0 %v2616
        %4175 = vmatpush1.bf16.msra.mxu0 %v2615
        %4176 = vmatprep.subr.bf16.mxu0 %v3151
        %4177 = vmatpush1.bf16.msra.mxu0 %v3148
        %4178 = vmatprep.subr.bf16.mxu0 0
        %4179 = vmatpush1.bf16.msra.mxu0 0
        %4180 = vmatprep.subr.bf16.mxu0 0
        %4181 = vmatpush1.bf16.msra.mxu0 0
        %4182 = vmatprep.subr.bf16.mxu0 0
        %4183 = vmatpush1.bf16.msra.mxu0 0
        %4184 = vmatprep.subr.bf16.mxu0 0
        %4185 = vmatpush1.bf16.msra.mxu0 0
        %4186 = vmatprep.subr.bf16.mxu0 0
        %4187 = vmatpush1.bf16.msra.mxu0 0
        %4188 = vmatprep.subr.bf16.mxu0 0
        %4189 = vmatpush1.bf16.msra.mxu0 0
        %4190 = vmatprep.subr.bf16.mxu0 0
        %4191 = vmatpush1.bf16.msra.mxu0 0
        %4192 = vmatprep.subr.bf16.mxu0 0
        %4193 = vmatpush1.bf16.msra.mxu0 0
        %4194 = vmatprep.subr.bf16.mxu0 0
        %4195 = vmatpush1.bf16.msra.mxu0 0
        %4196 = vmatprep.subr.bf16.mxu0 0
        %4197 = vmatpush1.bf16.msra.mxu0 0
        %4198 = vmatprep.subr.bf16.mxu0 0
        %4199 = vmatpush1.bf16.msra.mxu0 0
        %4200 = vmatprep.mubr.bf16.mxu0 0
        %4201 = vmatmul.mubr.bf16.gmra.mrb[0].mxu0 %v3003
        %v4202 = vpop.f32.mrb[0].mxu0
        %v4203 = vadd.f32 0.0, %v4202
        %v4204 = vpop.f32.mrb[0].mxu0
        %v4205 = vadd.f32 0.0, %v4204
        %v4206 = vpop.f32.mrb[0].mxu0
        %v4207 = vpop.f32.mrb[0].mxu0
        %4208 = vdwg.mxu0
        %4209 = vmatprep.subr.bf16.mxu0 %v2402
        %4210 = vmatpush1.bf16.msra.mxu0 %v2401
        %4211 = vmatprep.subr.bf16.mxu0 %v2474
        %4212 = vmatpush1.bf16.msra.mxu0 %v2473
        %4213 = vmatprep.subr.bf16.mxu0 %v2546
        %4214 = vmatpush1.bf16.msra.mxu0 %v2545
        %4215 = vmatprep.subr.bf16.mxu0 %v2618
        %4216 = vmatpush1.bf16.msra.mxu0 %v2617
        %4217 = vmatprep.subr.bf16.mxu0 %v3157
        %4218 = vmatpush1.bf16.msra.mxu0 %v3154
        %4219 = vmatprep.subr.bf16.mxu0 0
        %4220 = vmatpush1.bf16.msra.mxu0 0
        %4221 = vmatprep.subr.bf16.mxu0 0
        %4222 = vmatpush1.bf16.msra.mxu0 0
        %4223 = vmatprep.subr.bf16.mxu0 0
        %4224 = vmatpush1.bf16.msra.mxu0 0
        %4225 = vmatprep.subr.bf16.mxu0 0
        %4226 = vmatpush1.bf16.msra.mxu0 0
        %4227 = vmatprep.subr.bf16.mxu0 0
        %4228 = vmatpush1.bf16.msra.mxu0 0
        %4229 = vmatprep.subr.bf16.mxu0 0
        %4230 = vmatpush1.bf16.msra.mxu0 0
        %4231 = vmatprep.subr.bf16.mxu0 0
        %4232 = vmatpush1.bf16.msra.mxu0 0
        %4233 = vmatprep.subr.bf16.mxu0 0
        %4234 = vmatpush1.bf16.msra.mxu0 0
        %4235 = vmatprep.subr.bf16.mxu0 0
        %4236 = vmatpush1.bf16.msra.mxu0 0
        %4237 = vmatprep.subr.bf16.mxu0 0
        %4238 = vmatpush1.bf16.msra.mxu0 0
        %4239 = vmatprep.subr.bf16.mxu0 0
        %4240 = vmatpush1.bf16.msra.mxu0 0
        %4241 = vmatprep.mubr.bf16.mxu0 0
        %4242 = vmatmul.mubr.bf16.gmra.mrb[0].mxu0 %v3003
        %v4243 = vpop.f32.mrb[0].mxu0
        %v4244 = vadd.f32 0.0, %v4243
        %v4245 = vpop.f32.mrb[0].mxu0
        %v4246 = vadd.f32 0.0, %v4245
        %v4247 = vpop.f32.mrb[0].mxu0
        %v4248 = vpop.f32.mrb[0].mxu0
        %4249 = vdwg.mxu0
        %4250 = vmatprep.subr.bf16.mxu0 %v2404
        %4251 = vmatpush1.bf16.msra.mxu0 %v2403
        %4252 = vmatprep.subr.bf16.mxu0 %v2476
        %4253 = vmatpush1.bf16.msra.mxu0 %v2475
        %4254 = vmatprep.subr.bf16.mxu0 %v2548
        %4255 = vmatpush1.bf16.msra.mxu0 %v2547
        %4256 = vmatprep.subr.bf16.mxu0 %v2620
        %4257 = vmatpush1.bf16.msra.mxu0 %v2619
        %4258 = vmatprep.subr.bf16.mxu0 %v3163
        %4259 = vmatpush1.bf16.msra.mxu0 %v3160
        %4260 = vmatprep.subr.bf16.mxu0 0
        %4261 = vmatpush1.bf16.msra.mxu0 0
        %4262 = vmatprep.subr.bf16.mxu0 0
        %4263 = vmatpush1.bf16.msra.mxu0 0
        %4264 = vmatprep.subr.bf16.mxu0 0
        %4265 = vmatpush1.bf16.msra.mxu0 0
        %4266 = vmatprep.subr.bf16.mxu0 0
        %4267 = vmatpush1.bf16.msra.mxu0 0
        %4268 = vmatprep.subr.bf16.mxu0 0
        %4269 = vmatpush1.bf16.msra.mxu0 0
        %4270 = vmatprep.subr.bf16.mxu0 0
        %4271 = vmatpush1.bf16.msra.mxu0 0
        %4272 = vmatprep.subr.bf16.mxu0 0
        %4273 = vmatpush1.bf16.msra.mxu0 0
        %4274 = vmatprep.subr.bf16.mxu0 0
        %4275 = vmatpush1.bf16.msra.mxu0 0
        %4276 = vmatprep.subr.bf16.mxu0 0
        %4277 = vmatpush1.bf16.msra.mxu0 0
        %4278 = vmatprep.subr.bf16.mxu0 0
        %4279 = vmatpush1.bf16.msra.mxu0 0
        %4280 = vmatprep.subr.bf16.mxu0 0
        %4281 = vmatpush1.bf16.msra.mxu0 0
        %4282 = vmatprep.mubr.bf16.mxu0 0
        %4283 = vmatmul.mubr.bf16.gmra.mrb[0].mxu0 %v3003
        %v4284 = vpop.f32.mrb[0].mxu0
        %v4285 = vadd.f32 0.0, %v4284
        %v4286 = vpop.f32.mrb[0].mxu0
        %v4287 = vadd.f32 0.0, %v4286
        %v4288 = vpop.f32.mrb[0].mxu0
        %v4289 = vpop.f32.mrb[0].mxu0
        %4290 = vdwg.mxu0
        %4291 = vmatprep.subr.bf16.mxu0 %v2406
        %4292 = vmatpush1.bf16.msra.mxu0 %v2405
        %4293 = vmatprep.subr.bf16.mxu0 %v2478
        %4294 = vmatpush1.bf16.msra.mxu0 %v2477
        %4295 = vmatprep.subr.bf16.mxu0 %v2550
        %4296 = vmatpush1.bf16.msra.mxu0 %v2549
        %4297 = vmatprep.subr.bf16.mxu0 %v2622
        %4298 = vmatpush1.bf16.msra.mxu0 %v2621
        %4299 = vmatprep.subr.bf16.mxu0 %v3169
        %4300 = vmatpush1.bf16.msra.mxu0 %v3166
        %4301 = vmatprep.subr.bf16.mxu0 0
        %4302 = vmatpush1.bf16.msra.mxu0 0
        %4303 = vmatprep.subr.bf16.mxu0 0
        %4304 = vmatpush1.bf16.msra.mxu0 0
        %4305 = vmatprep.subr.bf16.mxu0 0
        %4306 = vmatpush1.bf16.msra.mxu0 0
        %4307 = vmatprep.subr.bf16.mxu0 0
        %4308 = vmatpush1.bf16.msra.mxu0 0
        %4309 = vmatprep.subr.bf16.mxu0 0
        %4310 = vmatpush1.bf16.msra.mxu0 0
        %4311 = vmatprep.subr.bf16.mxu0 0
        %4312 = vmatpush1.bf16.msra.mxu0 0
        %4313 = vmatprep.subr.bf16.mxu0 0
        %4314 = vmatpush1.bf16.msra.mxu0 0
        %4315 = vmatprep.subr.bf16.mxu0 0
        %4316 = vmatpush1.bf16.msra.mxu0 0
        %4317 = vmatprep.subr.bf16.mxu0 0
        %4318 = vmatpush1.bf16.msra.mxu0 0
        %4319 = vmatprep.subr.bf16.mxu0 0
        %4320 = vmatpush1.bf16.msra.mxu0 0
        %4321 = vmatprep.subr.bf16.mxu0 0
        %4322 = vmatpush1.bf16.msra.mxu0 0
        %4323 = vmatprep.mubr.bf16.mxu0 0
        %4324 = vmatmul.mubr.bf16.gmra.mrb[0].mxu0 %v3003
        %v4325 = vpop.f32.mrb[0].mxu0
        %v4326 = vadd.f32 0.0, %v4325
        %v4327 = vpop.f32.mrb[0].mxu0
        %v4328 = vadd.f32 0.0, %v4327
        %v4329 = vpop.f32.mrb[0].mxu0
        %v4330 = vpop.f32.mrb[0].mxu0
        %4331 = vdwg.mxu0
        %4332 = vmatprep.subr.bf16.mxu0 %v2408
        %4333 = vmatpush1.bf16.msra.mxu0 %v2407
        %4334 = vmatprep.subr.bf16.mxu0 %v2480
        %4335 = vmatpush1.bf16.msra.mxu0 %v2479
        %4336 = vmatprep.subr.bf16.mxu0 %v2552
        %4337 = vmatpush1.bf16.msra.mxu0 %v2551
        %4338 = vmatprep.subr.bf16.mxu0 %v2624
        %4339 = vmatpush1.bf16.msra.mxu0 %v2623
        %4340 = vmatprep.subr.bf16.mxu0 %v3175
        %4341 = vmatpush1.bf16.msra.mxu0 %v3172
        %4342 = vmatprep.subr.bf16.mxu0 0
        %4343 = vmatpush1.bf16.msra.mxu0 0
        %4344 = vmatprep.subr.bf16.mxu0 0
        %4345 = vmatpush1.bf16.msra.mxu0 0
        %4346 = vmatprep.subr.bf16.mxu0 0
        %4347 = vmatpush1.bf16.msra.mxu0 0
        %4348 = vmatprep.subr.bf16.mxu0 0
        %4349 = vmatpush1.bf16.msra.mxu0 0
        %4350 = vmatprep.subr.bf16.mxu0 0
        %4351 = vmatpush1.bf16.msra.mxu0 0
        %4352 = vmatprep.subr.bf16.mxu0 0
        %4353 = vmatpush1.bf16.msra.mxu0 0
        %4354 = vmatprep.subr.bf16.mxu0 0
        %4355 = vmatpush1.bf16.msra.mxu0 0
        %4356 = vmatprep.subr.bf16.mxu0 0
        %4357 = vmatpush1.bf16.msra.mxu0 0
        %4358 = vmatprep.subr.bf16.mxu0 0
        %4359 = vmatpush1.bf16.msra.mxu0 0
        %4360 = vmatprep.subr.bf16.mxu0 0
        %4361 = vmatpush1.bf16.msra.mxu0 0
        %4362 = vmatprep.subr.bf16.mxu0 0
        %4363 = vmatpush1.bf16.msra.mxu0 0
        %4364 = vmatprep.mubr.bf16.mxu0 0
        %4365 = vmatmul.mubr.bf16.gmra.mrb[0].mxu0 %v3003
        %v4366 = vpop.f32.mrb[0].mxu0
        %v4367 = vadd.f32 0.0, %v4366
        %v4368 = vpop.f32.mrb[0].mxu0
        %v4369 = vadd.f32 0.0, %v4368
        %v4370 = vpop.f32.mrb[0].mxu0
        %v4371 = vpop.f32.mrb[0].mxu0
        %4372 = vdwg.mxu0
        %4373 = vmatprep.subr.bf16.mxu0 %v2410
        %4374 = vmatpush1.bf16.msra.mxu0 %v2409
        %4375 = vmatprep.subr.bf16.mxu0 %v2482
        %4376 = vmatpush1.bf16.msra.mxu0 %v2481
        %4377 = vmatprep.subr.bf16.mxu0 %v2554
        %4378 = vmatpush1.bf16.msra.mxu0 %v2553
        %4379 = vmatprep.subr.bf16.mxu0 %v2626
        %4380 = vmatpush1.bf16.msra.mxu0 %v2625
        %4381 = vmatprep.subr.bf16.mxu0 %v3181
        %4382 = vmatpush1.bf16.msra.mxu0 %v3178
        %4383 = vmatprep.subr.bf16.mxu0 0
        %4384 = vmatpush1.bf16.msra.mxu0 0
        %4385 = vmatprep.subr.bf16.mxu0 0
        %4386 = vmatpush1.bf16.msra.mxu0 0
        %4387 = vmatprep.subr.bf16.mxu0 0
        %4388 = vmatpush1.bf16.msra.mxu0 0
        %4389 = vmatprep.subr.bf16.mxu0 0
        %4390 = vmatpush1.bf16.msra.mxu0 0
        %4391 = vmatprep.subr.bf16.mxu0 0
        %4392 = vmatpush1.bf16.msra.mxu0 0
        %4393 = vmatprep.subr.bf16.mxu0 0
        %4394 = vmatpush1.bf16.msra.mxu0 0
        %4395 = vmatprep.subr.bf16.mxu0 0
        %4396 = vmatpush1.bf16.msra.mxu0 0
        %4397 = vmatprep.subr.bf16.mxu0 0
        %4398 = vmatpush1.bf16.msra.mxu0 0
        %4399 = vmatprep.subr.bf16.mxu0 0
        %4400 = vmatpush1.bf16.msra.mxu0 0
        %4401 = vmatprep.subr.bf16.mxu0 0
        %4402 = vmatpush1.bf16.msra.mxu0 0
        %4403 = vmatprep.subr.bf16.mxu0 0
        %4404 = vmatpush1.bf16.msra.mxu0 0
        %4405 = vmatprep.mubr.bf16.mxu0 0
        %4406 = vmatmul.mubr.bf16.gmra.mrb[0].mxu0 %v3003
        %v4407 = vpop.f32.mrb[0].mxu0
        %v4408 = vadd.f32 0.0, %v4407
        %v4409 = vpop.f32.mrb[0].mxu0
        %v4410 = vadd.f32 0.0, %v4409
        %v4411 = vpop.f32.mrb[0].mxu0
        %v4412 = vpop.f32.mrb[0].mxu0
        %4413 = vdwg.mxu0
        %4414 = vmatprep.subr.bf16.mxu0 %v2412
        %4415 = vmatpush1.bf16.msra.mxu0 %v2411
        %4416 = vmatprep.subr.bf16.mxu0 %v2484
        %4417 = vmatpush1.bf16.msra.mxu0 %v2483
        %4418 = vmatprep.subr.bf16.mxu0 %v2556
        %4419 = vmatpush1.bf16.msra.mxu0 %v2555
        %4420 = vmatprep.subr.bf16.mxu0 %v2628
        %4421 = vmatpush1.bf16.msra.mxu0 %v2627
        %4422 = vmatprep.subr.bf16.mxu0 %v3187
        %4423 = vmatpush1.bf16.msra.mxu0 %v3184
        %4424 = vmatprep.subr.bf16.mxu0 0
        %4425 = vmatpush1.bf16.msra.mxu0 0
        %4426 = vmatprep.subr.bf16.mxu0 0
        %4427 = vmatpush1.bf16.msra.mxu0 0
        %4428 = vmatprep.subr.bf16.mxu0 0
        %4429 = vmatpush1.bf16.msra.mxu0 0
        %4430 = vmatprep.subr.bf16.mxu0 0
        %4431 = vmatpush1.bf16.msra.mxu0 0
        %4432 = vmatprep.subr.bf16.mxu0 0
        %4433 = vmatpush1.bf16.msra.mxu0 0
        %4434 = vmatprep.subr.bf16.mxu0 0
        %4435 = vmatpush1.bf16.msra.mxu0 0
        %4436 = vmatprep.subr.bf16.mxu0 0
        %4437 = vmatpush1.bf16.msra.mxu0 0
        %4438 = vmatprep.subr.bf16.mxu0 0
        %4439 = vmatpush1.bf16.msra.mxu0 0
        %4440 = vmatprep.subr.bf16.mxu0 0
        %4441 = vmatpush1.bf16.msra.mxu0 0
        %4442 = vmatprep.subr.bf16.mxu0 0
        %4443 = vmatpush1.bf16.msra.mxu0 0
        %4444 = vmatprep.subr.bf16.mxu0 0
        %4445 = vmatpush1.bf16.msra.mxu0 0
        %4446 = vmatprep.mubr.bf16.mxu0 0
        %4447 = vmatmul.mubr.bf16.gmra.mrb[0].mxu0 %v3003
        %v4448 = vpop.f32.mrb[0].mxu0
        %v4449 = vadd.f32 0.0, %v4448
        %v4450 = vpop.f32.mrb[0].mxu0
        %v4451 = vadd.f32 0.0, %v4450
        %v4452 = vpop.f32.mrb[0].mxu0
        %v4453 = vpop.f32.mrb[0].mxu0
        %4454 = vdwg.mxu0
        %4455 = vmatprep.subr.bf16.mxu0 %v2414
        %4456 = vmatpush1.bf16.msra.mxu0 %v2413
        %4457 = vmatprep.subr.bf16.mxu0 %v2486
        %4458 = vmatpush1.bf16.msra.mxu0 %v2485
        %4459 = vmatprep.subr.bf16.mxu0 %v2558
        %4460 = vmatpush1.bf16.msra.mxu0 %v2557
        %4461 = vmatprep.subr.bf16.mxu0 %v2630
        %4462 = vmatpush1.bf16.msra.mxu0 %v2629
        %4463 = vmatprep.subr.bf16.mxu0 %v3193
        %4464 = vmatpush1.bf16.msra.mxu0 %v3190
        %4465 = vmatprep.subr.bf16.mxu0 0
        %4466 = vmatpush1.bf16.msra.mxu0 0
        %4467 = vmatprep.subr.bf16.mxu0 0
        %4468 = vmatpush1.bf16.msra.mxu0 0
        %4469 = vmatprep.subr.bf16.mxu0 0
        %4470 = vmatpush1.bf16.msra.mxu0 0
        %4471 = vmatprep.subr.bf16.mxu0 0
        %4472 = vmatpush1.bf16.msra.mxu0 0
        %4473 = vmatprep.subr.bf16.mxu0 0
        %4474 = vmatpush1.bf16.msra.mxu0 0
        %4475 = vmatprep.subr.bf16.mxu0 0
        %4476 = vmatpush1.bf16.msra.mxu0 0
        %4477 = vmatprep.subr.bf16.mxu0 0
        %4478 = vmatpush1.bf16.msra.mxu0 0
        %4479 = vmatprep.subr.bf16.mxu0 0
        %4480 = vmatpush1.bf16.msra.mxu0 0
        %4481 = vmatprep.subr.bf16.mxu0 0
        %4482 = vmatpush1.bf16.msra.mxu0 0
        %4483 = vmatprep.subr.bf16.mxu0 0
        %4484 = vmatpush1.bf16.msra.mxu0 0
        %4485 = vmatprep.subr.bf16.mxu0 0
        %4486 = vmatpush1.bf16.msra.mxu0 0
        %4487 = vmatprep.mubr.bf16.mxu0 0
        %4488 = vmatmul.mubr.bf16.gmra.mrb[0].mxu0 %v3003
        %v4489 = vpop.f32.mrb[0].mxu0
        %v4490 = vadd.f32 0.0, %v4489
        %v4491 = vpop.f32.mrb[0].mxu0
        %v4492 = vadd.f32 0.0, %v4491
        %v4493 = vpop.f32.mrb[0].mxu0
        %v4494 = vpop.f32.mrb[0].mxu0
        %4495 = vdwg.mxu0
        %4496 = vmatprep.subr.bf16.mxu0 %v2416
        %4497 = vmatpush1.bf16.msra.mxu0 %v2415
        %4498 = vmatprep.subr.bf16.mxu0 %v2488
        %4499 = vmatpush1.bf16.msra.mxu0 %v2487
        %4500 = vmatprep.subr.bf16.mxu0 %v2560
        %4501 = vmatpush1.bf16.msra.mxu0 %v2559
        %4502 = vmatprep.subr.bf16.mxu0 %v2632
        %4503 = vmatpush1.bf16.msra.mxu0 %v2631
        %4504 = vmatprep.subr.bf16.mxu0 %v3199
        %4505 = vmatpush1.bf16.msra.mxu0 %v3196
        %4506 = vmatprep.subr.bf16.mxu0 0
        %4507 = vmatpush1.bf16.msra.mxu0 0
        %4508 = vmatprep.subr.bf16.mxu0 0
        %4509 = vmatpush1.bf16.msra.mxu0 0
        %4510 = vmatprep.subr.bf16.mxu0 0
        %4511 = vmatpush1.bf16.msra.mxu0 0
        %4512 = vmatprep.subr.bf16.mxu0 0
        %4513 = vmatpush1.bf16.msra.mxu0 0
        %4514 = vmatprep.subr.bf16.mxu0 0
        %4515 = vmatpush1.bf16.msra.mxu0 0
        %4516 = vmatprep.subr.bf16.mxu0 0
        %4517 = vmatpush1.bf16.msra.mxu0 0
        %4518 = vmatprep.subr.bf16.mxu0 0
        %4519 = vmatpush1.bf16.msra.mxu0 0
        %4520 = vmatprep.subr.bf16.mxu0 0
        %4521 = vmatpush1.bf16.msra.mxu0 0
        %4522 = vmatprep.subr.bf16.mxu0 0
        %4523 = vmatpush1.bf16.msra.mxu0 0
        %4524 = vmatprep.subr.bf16.mxu0 0
        %4525 = vmatpush1.bf16.msra.mxu0 0
        %4526 = vmatprep.subr.bf16.mxu0 0
        %4527 = vmatpush1.bf16.msra.mxu0 0
        %4528 = vmatprep.mubr.bf16.mxu0 0
        %4529 = vmatmul.mubr.bf16.gmra.mrb[0].mxu0 %v3003
        %v4530 = vpop.f32.mrb[0].mxu0
        %v4531 = vadd.f32 0.0, %v4530
        %v4532 = vpop.f32.mrb[0].mxu0
        %v4533 = vadd.f32 0.0, %v4532
        %v4534 = vpop.f32.mrb[0].mxu0
        %v4535 = vpop.f32.mrb[0].mxu0
        %4536 = vdwg.mxu0
        %4537 = vmatprep.subr.bf16.mxu0 %v2418
        %4538 = vmatpush1.bf16.msra.mxu0 %v2417
        %4539 = vmatprep.subr.bf16.mxu0 %v2490
        %4540 = vmatpush1.bf16.msra.mxu0 %v2489
        %4541 = vmatprep.subr.bf16.mxu0 %v2562
        %4542 = vmatpush1.bf16.msra.mxu0 %v2561
        %4543 = vmatprep.subr.bf16.mxu0 %v2634
        %4544 = vmatpush1.bf16.msra.mxu0 %v2633
        %4545 = vmatprep.subr.bf16.mxu0 %v3205
        %4546 = vmatpush1.bf16.msra.mxu0 %v3202
        %4547 = vmatprep.subr.bf16.mxu0 0
        %4548 = vmatpush1.bf16.msra.mxu0 0
        %4549 = vmatprep.subr.bf16.mxu0 0
        %4550 = vmatpush1.bf16.msra.mxu0 0
        %4551 = vmatprep.subr.bf16.mxu0 0
        %4552 = vmatpush1.bf16.msra.mxu0 0
        %4553 = vmatprep.subr.bf16.mxu0 0
        %4554 = vmatpush1.bf16.msra.mxu0 0
        %4555 = vmatprep.subr.bf16.mxu0 0
        %4556 = vmatpush1.bf16.msra.mxu0 0
        %4557 = vmatprep.subr.bf16.mxu0 0
        %4558 = vmatpush1.bf16.msra.mxu0 0
        %4559 = vmatprep.subr.bf16.mxu0 0
        %4560 = vmatpush1.bf16.msra.mxu0 0
        %4561 = vmatprep.subr.bf16.mxu0 0
        %4562 = vmatpush1.bf16.msra.mxu0 0
        %4563 = vmatprep.subr.bf16.mxu0 0
        %4564 = vmatpush1.bf16.msra.mxu0 0
        %4565 = vmatprep.subr.bf16.mxu0 0
        %4566 = vmatpush1.bf16.msra.mxu0 0
        %4567 = vmatprep.subr.bf16.mxu0 0
        %4568 = vmatpush1.bf16.msra.mxu0 0
        %4569 = vmatprep.mubr.bf16.mxu0 0
        %4570 = vmatmul.mubr.bf16.gmra.mrb[0].mxu0 %v3003
        %v4571 = vpop.f32.mrb[0].mxu0
        %v4572 = vadd.f32 0.0, %v4571
        %v4573 = vpop.f32.mrb[0].mxu0
        %v4574 = vadd.f32 0.0, %v4573
        %v4575 = vpop.f32.mrb[0].mxu0
        %v4576 = vpop.f32.mrb[0].mxu0
        %4577 = vdwg.mxu0
        %4578 = vmatprep.subr.bf16.mxu0 %v2420
        %4579 = vmatpush1.bf16.msra.mxu0 %v2419
        %4580 = vmatprep.subr.bf16.mxu0 %v2492
        %4581 = vmatpush1.bf16.msra.mxu0 %v2491
        %4582 = vmatprep.subr.bf16.mxu0 %v2564
        %4583 = vmatpush1.bf16.msra.mxu0 %v2563
        %4584 = vmatprep.subr.bf16.mxu0 %v2636
        %4585 = vmatpush1.bf16.msra.mxu0 %v2635
        %4586 = vmatprep.subr.bf16.mxu0 %v3211
        %4587 = vmatpush1.bf16.msra.mxu0 %v3208
        %4588 = vmatprep.subr.bf16.mxu0 0
        %4589 = vmatpush1.bf16.msra.mxu0 0
        %4590 = vmatprep.subr.bf16.mxu0 0
        %4591 = vmatpush1.bf16.msra.mxu0 0
        %4592 = vmatprep.subr.bf16.mxu0 0
        %4593 = vmatpush1.bf16.msra.mxu0 0
        %4594 = vmatprep.subr.bf16.mxu0 0
        %4595 = vmatpush1.bf16.msra.mxu0 0
        %4596 = vmatprep.subr.bf16.mxu0 0
        %4597 = vmatpush1.bf16.msra.mxu0 0
        %4598 = vmatprep.subr.bf16.mxu0 0
        %4599 = vmatpush1.bf16.msra.mxu0 0
        %4600 = vmatprep.subr.bf16.mxu0 0
        %4601 = vmatpush1.bf16.msra.mxu0 0
        %4602 = vmatprep.subr.bf16.mxu0 0
        %4603 = vmatpush1.bf16.msra.mxu0 0
        %4604 = vmatprep.subr.bf16.mxu0 0
        %4605 = vmatpush1.bf16.msra.mxu0 0
        %4606 = vmatprep.subr.bf16.mxu0 0
        %4607 = vmatpush1.bf16.msra.mxu0 0
        %4608 = vmatprep.subr.bf16.mxu0 0
        %4609 = vmatpush1.bf16.msra.mxu0 0
        %4610 = vmatprep.mubr.bf16.mxu0 0
        %4611 = vmatmul.mubr.bf16.gmra.mrb[0].mxu0 %v3003
        %v4612 = vpop.f32.mrb[0].mxu0
        %v4613 = vadd.f32 0.0, %v4612
        %v4614 = vpop.f32.mrb[0].mxu0
        %v4615 = vadd.f32 0.0, %v4614
        %v4616 = vpop.f32.mrb[0].mxu0
        %v4617 = vpop.f32.mrb[0].mxu0
        %4618 = vdwg.mxu0
        %4619 = vmatprep.subr.bf16.mxu0 %v2422
        %4620 = vmatpush1.bf16.msra.mxu0 %v2421
        %4621 = vmatprep.subr.bf16.mxu0 %v2494
        %4622 = vmatpush1.bf16.msra.mxu0 %v2493
        %4623 = vmatprep.subr.bf16.mxu0 %v2566
        %4624 = vmatpush1.bf16.msra.mxu0 %v2565
        %4625 = vmatprep.subr.bf16.mxu0 %v2638
        %4626 = vmatpush1.bf16.msra.mxu0 %v2637
        %4627 = vmatprep.subr.bf16.mxu0 %v3217
        %4628 = vmatpush1.bf16.msra.mxu0 %v3214
        %4629 = vmatprep.subr.bf16.mxu0 0
        %4630 = vmatpush1.bf16.msra.mxu0 0
        %4631 = vmatprep.subr.bf16.mxu0 0
        %4632 = vmatpush1.bf16.msra.mxu0 0
        %4633 = vmatprep.subr.bf16.mxu0 0
        %4634 = vmatpush1.bf16.msra.mxu0 0
        %4635 = vmatprep.subr.bf16.mxu0 0
        %4636 = vmatpush1.bf16.msra.mxu0 0
        %4637 = vmatprep.subr.bf16.mxu0 0
        %4638 = vmatpush1.bf16.msra.mxu0 0
        %4639 = vmatprep.subr.bf16.mxu0 0
        %4640 = vmatpush1.bf16.msra.mxu0 0
        %4641 = vmatprep.subr.bf16.mxu0 0
        %4642 = vmatpush1.bf16.msra.mxu0 0
        %4643 = vmatprep.subr.bf16.mxu0 0
        %4644 = vmatpush1.bf16.msra.mxu0 0
        %4645 = vmatprep.subr.bf16.mxu0 0
        %4646 = vmatpush1.bf16.msra.mxu0 0
        %4647 = vmatprep.subr.bf16.mxu0 0
        %4648 = vmatpush1.bf16.msra.mxu0 0
        %4649 = vmatprep.subr.bf16.mxu0 0
        %4650 = vmatpush1.bf16.msra.mxu0 0
        %4651 = vmatprep.mubr.bf16.mxu0 0
        %4652 = vmatmul.mubr.bf16.gmra.mrb[0].mxu0 %v3003
        %v4653 = vpop.f32.mrb[0].mxu0
        %v4654 = vadd.f32 0.0, %v4653
        %v4655 = vpop.f32.mrb[0].mxu0
        %v4656 = vadd.f32 0.0, %v4655
        %v4657 = vpop.f32.mrb[0].mxu0
        %v4658 = vpop.f32.mrb[0].mxu0
        %4659 = vdwg.mxu0
        %4660 = vmatprep.subr.bf16.mxu0 %v2424
        %4661 = vmatpush1.bf16.msra.mxu0 %v2423
        %4662 = vmatprep.subr.bf16.mxu0 %v2496
        %4663 = vmatpush1.bf16.msra.mxu0 %v2495
        %4664 = vmatprep.subr.bf16.mxu0 %v2568
        %4665 = vmatpush1.bf16.msra.mxu0 %v2567
        %4666 = vmatprep.subr.bf16.mxu0 %v2640
        %4667 = vmatpush1.bf16.msra.mxu0 %v2639
        %4668 = vmatprep.subr.bf16.mxu0 %v3223
        %4669 = vmatpush1.bf16.msra.mxu0 %v3220
        %4670 = vmatprep.subr.bf16.mxu0 0
        %4671 = vmatpush1.bf16.msra.mxu0 0
        %4672 = vmatprep.subr.bf16.mxu0 0
        %4673 = vmatpush1.bf16.msra.mxu0 0
        %4674 = vmatprep.subr.bf16.mxu0 0
        %4675 = vmatpush1.bf16.msra.mxu0 0
        %4676 = vmatprep.subr.bf16.mxu0 0
        %4677 = vmatpush1.bf16.msra.mxu0 0
        %4678 = vmatprep.subr.bf16.mxu0 0
        %4679 = vmatpush1.bf16.msra.mxu0 0
        %4680 = vmatprep.subr.bf16.mxu0 0
        %4681 = vmatpush1.bf16.msra.mxu0 0
        %4682 = vmatprep.subr.bf16.mxu0 0
        %4683 = vmatpush1.bf16.msra.mxu0 0
        %4684 = vmatprep.subr.bf16.mxu0 0
        %4685 = vmatpush1.bf16.msra.mxu0 0
        %4686 = vmatprep.subr.bf16.mxu0 0
        %4687 = vmatpush1.bf16.msra.mxu0 0
        %4688 = vmatprep.subr.bf16.mxu0 0
        %4689 = vmatpush1.bf16.msra.mxu0 0
        %4690 = vmatprep.subr.bf16.mxu0 0
        %4691 = vmatpush1.bf16.msra.mxu0 0
        %4692 = vmatprep.mubr.bf16.mxu0 0
        %4693 = vmatmul.mubr.bf16.gmra.mrb[0].mxu0 %v3003
        %v4694 = vpop.f32.mrb[0].mxu0
        %v4695 = vadd.f32 0.0, %v4694
        %v4696 = vpop.f32.mrb[0].mxu0
        %v4697 = vadd.f32 0.0, %v4696
        %v4698 = vpop.f32.mrb[0].mxu0
        %v4699 = vpop.f32.mrb[0].mxu0
        %4700 = vdwg.mxu0
        %v4701 = vmax.f32 %v3260, %v3629
        %v4702 = vmax.f32 %v3262, %v3631
        %v4703 = vmax.f32 %v3301, %v3670
        %v4704 = vmax.f32 %v3303, %v3672
        %v4705 = vmax.f32 %v3342, %v3711
        %v4706 = vmax.f32 %v3344, %v3713
        %v4707 = vmax.f32 %v3383, %v3752
        %v4708 = vmax.f32 %v3385, %v3754
        %v4709 = vmax.f32 %v3424, %v3793
        %v4710 = vmax.f32 %v3426, %v3795
        %v4711 = vmax.f32 %v3465, %v3834
        %v4712 = vmax.f32 %v3467, %v3836
        %v4713 = vmax.f32 %v3506, %v3875
        %v4714 = vmax.f32 %v3508, %v3877
        %v4715 = vmax.f32 %v3547, %v3916
        %v4716 = vmax.f32 %v3549, %v3918
        %v4717 = vmax.f32 %v3588, %v3957
        %v4718 = vmax.f32 %v3590, %v3959
        %v4719 = vmax.f32 %v3998, %v4367
        %v4720 = vmax.f32 %v4000, %v4369
        %v4721 = vmax.f32 %v4039, %v4408
        %v4722 = vmax.f32 %v4041, %v4410
        %v4723 = vmax.f32 %v4080, %v4449
        %v4724 = vmax.f32 %v4082, %v4451
        %v4725 = vmax.f32 %v4121, %v4490
        %v4726 = vmax.f32 %v4123, %v4492
        %v4727 = vmax.f32 %v4162, %v4531
        %v4728 = vmax.f32 %v4164, %v4533
        %v4729 = vmax.f32 %v4203, %v4572
        %v4730 = vmax.f32 %v4205, %v4574
        %v4731 = vmax.f32 %v4244, %v4613
        %v4732 = vmax.f32 %v4246, %v4615
        %v4733 = vmax.f32 %v4285, %v4654
        %v4734 = vmax.f32 %v4287, %v4656
        %v4735 = vmax.f32 %v4326, %v4695
        %v4736 = vmax.f32 %v4328, %v4697
        %v4737 = vmax.f32 %v4701, %v4719
        %v4738 = vmax.f32 %v4702, %v4720
        %v4739 = vmax.f32 %v4703, %v4721
        %v4740 = vmax.f32 %v4704, %v4722
        %v4741 = vmax.f32 %v4705, %v4723
        %v4742 = vmax.f32 %v4706, %v4724
        %v4743 = vmax.f32 %v4707, %v4725
        %v4744 = vmax.f32 %v4708, %v4726
        %v4745 = vmax.f32 %v4709, %v4727
        %v4746 = vmax.f32 %v4710, %v4728
        %v4747 = vmax.f32 %v4711, %v4729
        %v4748 = vmax.f32 %v4712, %v4730
        %v4749 = vmax.f32 %v4713, %v4731
        %v4750 = vmax.f32 %v4714, %v4732
        %v4751 = vmax.f32 %v4715, %v4733
        %v4752 = vmax.f32 %v4716, %v4734
        %v4753 = vmax.f32 %v4717, %v4735
        %v4754 = vmax.f32 %v4718, %v4736
        %v4755 = vld [vmem:[%s2] sm:$0x3f]
        %4757 = vset.pattern.permute.xlu0 0
        %4758 = vperm.xlu0 %4757, %v4755
        %v4759 = vpop.permute.xlu0 %4758
        %v4761 = vadd.f32 %v4737, %v4759
        %v4762 = vadd.f32 %v4738, %v4759
        %v4763 = vadd.f32 %v4739, %v4759
        %v4764 = vadd.f32 %v4740, %v4759
        %v4765 = vadd.f32 %v4741, %v4759
        %v4766 = vadd.f32 %v4742, %v4759
        %v4767 = vadd.f32 %v4743, %v4759
        %v4768 = vadd.f32 %v4744, %v4759
        %v4769 = vadd.f32 %v4745, %v4759
        %v4770 = vadd.f32 %v4746, %v4759
        %v4771 = vadd.f32 %v4747, %v4759
        %v4772 = vadd.f32 %v4748, %v4759
        %v4773 = vadd.f32 %v4749, %v4759
        %v4774 = vadd.f32 %v4750, %v4759
        %v4775 = vadd.f32 %v4751, %v4759
        %v4776 = vadd.f32 %v4752, %v4759
        %v4777 = vadd.f32 %v4753, %v4759
        %v4778 = vadd.f32 %v4754, %v4759
        %v4779 = vmax.f32 %v4761, 0.0
        %v4780 = vmax.f32 %v4762, 0.0
        %v4781 = vmax.f32 %v4763, 0.0
        %v4782 = vmax.f32 %v4764, 0.0
        %v4783 = vmax.f32 %v4765, 0.0
        %v4784 = vmax.f32 %v4766, 0.0
        %v4785 = vmax.f32 %v4767, 0.0
        %v4786 = vmax.f32 %v4768, 0.0
        %v4787 = vmax.f32 %v4769, 0.0
        %v4788 = vmax.f32 %v4770, 0.0
        %v4789 = vmax.f32 %v4771, 0.0
        %v4790 = vmax.f32 %v4772, 0.0
        %v4791 = vmax.f32 %v4773, 0.0
        %v4792 = vmax.f32 %v4774, 0.0
        %v4793 = vmax.f32 %v4775, 0.0
        %v4794 = vmax.f32 %v4776, 0.0
        %v4795 = vmax.f32 %v4777, 0.0
        %v4796 = vmax.f32 %v4778, 0.0
        %4797 = vst [vmem:[%s909] sm:$0x3f] %v4779
        %4798 = vst [vmem:[%s909 + $0x8] sm:$0x3f] %v4780
        %4799 = vst [vmem:[%s909 + $0x10] sm:$0x3f] %v4781
        %4800 = vst [vmem:[%s909 + $0x18] sm:$0x3f] %v4782
        %4801 = vst [vmem:[%s909 + $0x20] sm:$0x3f] %v4783
        %4802 = vst [vmem:[%s909 + $0x28] sm:$0x3f] %v4784
        %4803 = vst [vmem:[%s909 + $0x30] sm:$0x3f] %v4785
        %4804 = vst [vmem:[%s909 + $0x38] sm:$0x3f] %v4786
        %4805 = vst [vmem:[%s909 + $0x40] sm:$0x3f] %v4787
        %4806 = vst [vmem:[%s909 + $0x48] sm:$0x3f] %v4788
        %4807 = vst [vmem:[%s909 + $0x50] sm:$0x3f] %v4789
        %4808 = vst [vmem:[%s909 + $0x58] sm:$0x3f] %v4790
        %4809 = vst [vmem:[%s909 + $0x60] sm:$0x3f] %v4791
        %4810 = vst [vmem:[%s909 + $0x68] sm:$0x3f] %v4792
        %4811 = vst [vmem:[%s909 + $0x70] sm:$0x3f] %v4793
        %4812 = vst [vmem:[%s909 + $0x78] sm:$0x3f] %v4794
        %4813 = vst [vmem:[%s909 + $0x80] sm:$0x3f] %v4795
        %4814 = vst [vmem:[%s909 + $0x88] sm:$0x3f] %v4796
        %s4815 = smul.u32 18, %s14
        %p4816 = scmp.lt.s32.totalorder %s4815, 35
        %s4817 = scalar_select %p4816, %s4815, 35
        %s4818 = smul.addr %s4817, 8
        %s4819 = scalar_lea.vmem %s3, %s4818
        // Predicated region
        $region56: #{net_forward.3} parent=50 // pred_check
          %p4820 = pneg %p100
        $region57: #{net_forward.3} parent=50 // pred_check_branch
          %4822 = sbr.rel (%p4820) target = $region59
        $region58: #{net_forward.3} parent=50 // pred_region
          %s4823 = smul.u32 18, %s14
        $region59: #{net_forward.3} parent=50 // pred_fallthru
          _
      $region51: #{net_forward.3} parent=5 // pred_fallthru
        _
      %p4824 = scmp.le.s32.totalorder 2, %s9
      // Predicated region
      $region60: #{net_forward.3} parent=5 // pred_check
        %p4825 = pneg %p4824
      $region61: #{net_forward.3} parent=5 // pred_check_branch
        %4827 = sbr.rel (%p4825) target = $region63
      $region62: #{net_forward.3} parent=5 // pred_region
        %s4828 = ssub.s32 %s9, 2
        // Predicated region
        $region64: #{net_forward.3} parent=62 // pred_check
          %p4829 = pneg %p106
        $region65: #{net_forward.3} parent=62 // pred_check_branch
          %4831 = sbr.rel (%p4829) target = $region67
        $region66: #{net_forward.3} parent=62 // pred_region
          %s4832 = smul.u32 18, %s15
          %p4833 = scmp.lt.s32.totalorder %s4832, 35
          %s4834 = scalar_select %p4833, %s4832, 35
          %s4835 = smul.addr %s4834, 8
          %s4836 = scalar_lea.vmem %s3, %s4835
        $region67: #{net_forward.3} parent=62 // pred_fallthru
          _
      $region63: #{net_forward.3} parent=5 // pred_fallthru
        _
    $region6: #{net_forward.3} parent=1 // loop_footer
      %s13 = sadd.s32 1, %s9
    $region7: #{net_forward.3} parent=1 // loop_footer_branch
      %8 = sbr.rel target = $region3
    $region8: #{net_forward.3} parent=1 // loop_exit
      _

// kernel: net_forward.4
$region0: #{net_forward.4}
  #allocation0 [shape = 'u32[]', space=smem, size = 0x4, offset = 0x4, fixed_abs, tag = 'smem constant byte address 0x4 - core index']
  #allocation1 [shape = 'u32[144,128]{1,0:T(1,128)}', space=vmem, size = 0x12000, scoped, tag = 'internal scratch']
  %s0 = inlined_call_operand.vmem [shape: bf16[150,4096], index: 0, kind: input, shape index: {}]
  %s1 = inlined_call_operand.vmem [shape: bf16[16,150], index: 1, kind: input, shape index: {}]
  %s2 = inlined_call_operand.vmem [shape: f32[16,1], index: 2, kind: input, shape index: {}]
  %s3 = inlined_call_operand.vmem [shape: f32[16,1024], index: 3, kind: output, shape index: {}]
  %s4 = sld [smem:[#allocation0]]
  $region87: #{net_forward.4} parent=0
    _
  %s6 = ssub.s32 1, %s4
  %s7 = scalar_select 0, %s6, %s4
  $region1: #{net_forward.4} parent=0
    #allocation2 [shape = 'u8[1245184]{0}', space=vmem, size = 0x130000, scoped, tag = 'input window, operand 0']
    #allocation3 [shape = 'u8[65536]{0}', space=vmem, size = 0x10000, scoped, tag = 'output window, operand 0']
    loop: start=0, step=1, limit=4
    $region2: #{net_forward.4} parent=1 // loop_pre_header
      _
    $region3: #{net_forward.4} parent=1 // loop_header
      %s9 = sphi 0, %s13
      %p10 = scmp.ge.s32.totalorder %s9, 4
      %s19 = sphi 0, %s21
      %s22 = sphi 0, %s19
      %s23 = sphi 0, %s22
      %s39 = sphi 0, %s23
      %s43 = sphi 0, %s43
      %s45 = sphi 0, %s43
      %s46 = sphi 0, %s45
      %s60 = sphi 0, %s46
      %s64 = sphi 0, %s64
      %s66 = sphi 0, %s64
      %s67 = sphi 0, %s66
      %s81 = sphi 0, %s67
      %s87 = sphi 0, %s89
      %s90 = sphi 0, %s87
      %s91 = sphi 0, %s90
      %s107 = sphi 0, %s91
    $region4: #{net_forward.4} parent=1 // loop_header_branch
      %12 = sbr.rel (%p10) target = $region8
    $region5: #{net_forward.4} parent=1 // loop_body
      %s14 = ssub.s32 %s9, 1
      %s15 = ssub.s32 %s9, 2
      %s16 = sadd.s32 %s9, 1
      %s17 = ssub.s32 %s9, %s16
      %p18 = scmp.eq.s32.totalorder %s17, 0
      %s20 = sadd.s32 %s19, 1
      %s21 = scalar_select %p18, %s19, %s20
      %p24 = pneg %p18
      %p25 = scmp.eq.s32.totalorder %s9, 1
      %p26 = por %p24, %p25
      %p27 = scmp.ne.s32.totalorder %s19, %s22
      %p28 = scmp.eq.s32.totalorder %s9, 0
      %p29 = por %p27, %p28
      %p30 = scmp.ne.s32.totalorder %s19, %s22
      %p31 = scmp.eq.s32.totalorder %s14, 1
      %p32 = por %p30, %p31
      %p33 = scmp.ne.s32.totalorder %s22, %s23
      %p34 = scmp.eq.s32.totalorder %s14, 0
      %p35 = por %p33, %p34
      %p36 = scmp.ne.s32.totalorder %s22, %s23
      %p37 = scmp.eq.s32.totalorder %s15, 1
      %p38 = por %p36, %p37
      %p40 = scmp.ne.s32.totalorder %s23, %s39
      %p41 = scmp.eq.s32.totalorder %s15, 0
      %p42 = por %p40, %p41
      %s44 = sadd.s32 %s43, 1
      %p47 = scmp.eq.s32.totalorder %s9, 1
      %p48 = scmp.ne.s32.totalorder %s43, %s45
      %p49 = scmp.eq.s32.totalorder %s9, 0
      %p50 = por %p48, %p49
      %p51 = scmp.ne.s32.totalorder %s43, %s45
      %p52 = scmp.eq.s32.totalorder %s14, 1
      %p53 = por %p51, %p52
      %p54 = scmp.ne.s32.totalorder %s45, %s46
      %p55 = scmp.eq.s32.totalorder %s14, 0
      %p56 = por %p54, %p55
      %p57 = scmp.ne.s32.totalorder %s45, %s46
      %p58 = scmp.eq.s32.totalorder %s15, 1
      %p59 = por %p57, %p58
      %p61 = scmp.ne.s32.totalorder %s46, %s60
      %p62 = scmp.eq.s32.totalorder %s15, 0
      %p63 = por %p61, %p62
      %s65 = sadd.s32 %s64, 1
      %p68 = scmp.eq.s32.totalorder %s9, 1
      %p69 = scmp.ne.s32.totalorder %s64, %s66
      %p70 = scmp.eq.s32.totalorder %s9, 0
      %p71 = por %p69, %p70
      %p72 = scmp.ne.s32.totalorder %s64, %s66
      %p73 = scmp.eq.s32.totalorder %s14, 1
      %p74 = por %p72, %p73
      %p75 = scmp.ne.s32.totalorder %s66, %s67
      %p76 = scmp.eq.s32.totalorder %s14, 0
      %p77 = por %p75, %p76
      %p78 = scmp.ne.s32.totalorder %s66, %s67
      %p79 = scmp.eq.s32.totalorder %s15, 1
      %p80 = por %p78, %p79
      %p82 = scmp.ne.s32.totalorder %s67, %s81
      %p83 = scmp.eq.s32.totalorder %s15, 0
      %p84 = por %p82, %p83
      %s85 = ssub.s32 %s9, %s16
      %p86 = scmp.eq.s32.totalorder %s85, 0
      %s88 = sadd.s32 %s87, 1
      %s89 = scalar_select %p86, %s87, %s88
      %p92 = pneg %p86
      %p93 = scmp.eq.s32.totalorder %s9, 1
      %p94 = por %p92, %p93
      %p95 = scmp.ne.s32.totalorder %s87, %s90
      %p96 = scmp.eq.s32.totalorder %s9, 0
      %p97 = por %p95, %p96
      %p98 = scmp.ne.s32.totalorder %s87, %s90
      %p99 = scmp.eq.s32.totalorder %s14, 1
      %p100 = por %p98, %p99
      %p101 = scmp.ne.s32.totalorder %s90, %s91
      %p102 = scmp.eq.s32.totalorder %s14, 0
      %p103 = por %p101, %p102
      %p104 = scmp.ne.s32.totalorder %s90, %s91
      %p105 = scmp.eq.s32.totalorder %s15, 1
      %p106 = por %p104, %p105
      %p108 = scmp.ne.s32.totalorder %s91, %s107
      %p109 = scmp.eq.s32.totalorder %s15, 0
      %p110 = por %p108, %p109
      %p111 = scmp.le.s32.totalorder 1, %s9
      %p112 = scmp.lt.s32.totalorder %s9, 3
      %p113 = pnand %p111, %p112
      %p114 = pneg %p113
      // Predicated region
      $region9: #{net_forward.4} parent=5 // pred_check
        _
      $region10: #{net_forward.4} parent=5 // pred_check_branch
        %116 = sbr.rel (%p113) target = $region12
      $region11: #{net_forward.4} parent=5 // pred_region
        %s117 = ssub.s32 %s9, 1
        // Predicated region
        $region13: #{net_forward.4} parent=11 // pred_check
          %p118 = pneg %p56
        $region14: #{net_forward.4} parent=11 // pred_check_branch
          %120 = sbr.rel (%p118) target = $region16
        $region15: #{net_forward.4} parent=11 // pred_region
          _
        $region16: #{net_forward.4} parent=11 // pred_fallthru
          _
        // Predicated region
        $region17: #{net_forward.4} parent=11 // pred_check
          %p121 = pneg %p77
        $region18: #{net_forward.4} parent=11 // pred_check_branch
          %123 = sbr.rel (%p121) target = $region20
        $region19: #{net_forward.4} parent=11 // pred_region
          _
        $region20: #{net_forward.4} parent=11 // pred_fallthru
          _
      $region12: #{net_forward.4} parent=5 // pred_fallthru
        _
      %p124 = scmp.lt.s32.totalorder %s9, 2
      // Predicated region
      $region21: #{net_forward.4} parent=5 // pred_check
        %p125 = pneg %p124
      $region22: #{net_forward.4} parent=5 // pred_check_branch
        %127 = sbr.rel (%p125) target = $region24
      $region23: #{net_forward.4} parent=5 // pred_region
        // Predicated region
        $region25: #{net_forward.4} parent=23 // pred_check
          %p128 = pneg %p29
        $region26: #{net_forward.4} parent=23 // pred_check_branch
          %130 = sbr.rel (%p128) target = $region28
        $region27: #{net_forward.4} parent=23 // pred_region
          %s131 = sand.u32 %s19, 1
          %s132 = sand.u32 %s19, 1
          %s133 = smul.addr %s132, 1216
          %s134 = scalar_lea.vmem [#allocation2], %s133
          %s135 = smul.u32 16, %s9
          %s136 = smul.addr %s135, 4
          %s137 = scalar_lea.vmem %s0, %s136
          // Predicated region
          $region29: #{net_forward.4} parent=27 // pred_check
            _
          $region30: #{net_forward.4} parent=27 // pred_check_branch
            %139 = sbr.rel (0) target = $region32
          $region31: #{net_forward.4} parent=27 // pred_region
            // Predicated region
            $region33: #{net_forward.4} parent=31 // pred_check
              _
            $region34: #{net_forward.4} parent=31 // pred_check_branch
              %141 = sbr.rel (0) target = $region36
            $region35: #{net_forward.4} parent=31 // pred_region
              loop: start=0, step=1, limit=1
              $region37: #{net_forward.4} parent=35 // loop_pre_header
                _
              $region38: #{net_forward.4} parent=35 // loop_header
                %s143 = sphi 0, %s147
                %p144 = scmp.ge.s32.totalorder %s143, 1
                %s148 = sphi %s137, %s137
                %s149 = sphi %s134, %s134
              $region39: #{net_forward.4} parent=35 // loop_header_branch
                %146 = sbr.rel (%p144) target = $region43
              $region40: #{net_forward.4} parent=35 // loop_body
                %v150 = vld [vmem:[%s148] sm:$0xff]
                %151 = vst [vmem:[%s149] sm:$0xff] %v150
                %v152 = vld [vmem:[%s148 + $0x8] sm:$0xff]
                %153 = vst [vmem:[%s149 + $0x8] sm:$0xff] %v152
                %v154 = vld [vmem:[%s148 + $0x10] sm:$0xff]
                %155 = vst [vmem:[%s149 + $0x10] sm:$0xff] %v154
                %v156 = vld [vmem:[%s148 + $0x18] sm:$0xff]
                %157 = vst [vmem:[%s149 + $0x18] sm:$0xff] %v156
                %v158 = vld [vmem:[%s148 + $0x20] sm:$0xff]
                %159 = vst [vmem:[%s149 + $0x20] sm:$0xff] %v158
                %v160 = vld [vmem:[%s148 + $0x28] sm:$0xff]
                %161 = vst [vmem:[%s149 + $0x28] sm:$0xff] %v160
                %v162 = vld [vmem:[%s148 + $0x30] sm:$0xff]
                %163 = vst [vmem:[%s149 + $0x30] sm:$0xff] %v162
                %v164 = vld [vmem:[%s148 + $0x38] sm:$0xff]
                %165 = vst [vmem:[%s149 + $0x38] sm:$0xff] %v164
                %v166 = vld [vmem:[%s148 + $0x80] sm:$0xff]
                %167 = vst [vmem:[%s149 + $0x40] sm:$0xff] %v166
                %v168 = vld [vmem:[%s148 + $0x88] sm:$0xff]
                %169 = vst [vmem:[%s149 + $0x48] sm:$0xff] %v168
                %v170 = vld [vmem:[%s148 + $0x90] sm:$0xff]
                %171 = vst [vmem:[%s149 + $0x50] sm:$0xff] %v170
                %v172 = vld [vmem:[%s148 + $0x98] sm:$0xff]
                %173 = vst [vmem:[%s149 + $0x58] sm:$0xff] %v172
                %v174 = vld [vmem:[%s148 + $0xa0] sm:$0xff]
                %175 = vst [vmem:[%s149 + $0x60] sm:$0xff] %v174
                %v176 = vld [vmem:[%s148 + $0xa8] sm:$0xff]
                %177 = vst [vmem:[%s149 + $0x68] sm:$0xff] %v176
                %v178 = vld [vmem:[%s148 + $0xb0] sm:$0xff]
                %179 = vst [vmem:[%s149 + $0x70] sm:$0xff] %v178
                %v180 = vld [vmem:[%s148 + $0xb8] sm:$0xff]
                %181 = vst [vmem:[%s149 + $0x78] sm:$0xff] %v180
                %v182 = vld [vmem:[%s148 + $0x100] sm:$0xff]
                %183 = vst [vmem:[%s149 + $0x80] sm:$0xff] %v182
                %v184 = vld [vmem:[%s148 + $0x108] sm:$0xff]
                %185 = vst [vmem:[%s149 + $0x88] sm:$0xff] %v184
                %v186 = vld [vmem:[%s148 + $0x110] sm:$0xff]
                %187 = vst [vmem:[%s149 + $0x90] sm:$0xff] %v186
                %v188 = vld [vmem:[%s148 + $0x118] sm:$0xff]
                %189 = vst [vmem:[%s149 + $0x98] sm:$0xff] %v188
                %v190 = vld [vmem:[%s148 + $0x120] sm:$0xff]
                %191 = vst [vmem:[%s149 + $0xa0] sm:$0xff] %v190
                %v192 = vld [vmem:[%s148 + $0x128] sm:$0xff]
                %193 = vst [vmem:[%s149 + $0xa8] sm:$0xff] %v192
                %v194 = vld [vmem:[%s148 + $0x130] sm:$0xff]
                %195 = vst [vmem:[%s149 + $0xb0] sm:$0xff] %v194
                %v196 = vld [vmem:[%s148 + $0x138] sm:$0xff]
                %197 = vst [vmem:[%s149 + $0xb8] sm:$0xff] %v196
                %v198 = vld [vmem:[%s148 + $0x180] sm:$0xff]
                %199 = vst [vmem:[%s149 + $0xc0] sm:$0xff] %v198
                %v200 = vld [vmem:[%s148 + $0x188] sm:$0xff]
                %201 = vst [vmem:[%s149 + $0xc8] sm:$0xff] %v200
                %v202 = vld [vmem:[%s148 + $0x190] sm:$0xff]
                %203 = vst [vmem:[%s149 + $0xd0] sm:$0xff] %v202
                %v204 = vld [vmem:[%s148 + $0x198] sm:$0xff]
                %205 = vst [vmem:[%s149 + $0xd8] sm:$0xff] %v204
                %v206 = vld [vmem:[%s148 + $0x1a0] sm:$0xff]
                %207 = vst [vmem:[%s149 + $0xe0] sm:$0xff] %v206
                %v208 = vld [vmem:[%s148 + $0x1a8] sm:$0xff]
                %209 = vst [vmem:[%s149 + $0xe8] sm:$0xff] %v208
                %v210 = vld [vmem:[%s148 + $0x1b0] sm:$0xff]
                %211 = vst [vmem:[%s149 + $0xf0] sm:$0xff] %v210
                %v212 = vld [vmem:[%s148 + $0x1b8] sm:$0xff]
                %213 = vst [vmem:[%s149 + $0xf8] sm:$0xff] %v212
                %v214 = vld [vmem:[%s148 + $0x200] sm:$0xff]
                %215 = vst [vmem:[%s149 + $0x100] sm:$0xff] %v214
                %v216 = vld [vmem:[%s148 + $0x208] sm:$0xff]
                %217 = vst [vmem:[%s149 + $0x108] sm:$0xff] %v216
                %v218 = vld [vmem:[%s148 + $0x210] sm:$0xff]
                %219 = vst [vmem:[%s149 + $0x110] sm:$0xff] %v218
                %v220 = vld [vmem:[%s148 + $0x218] sm:$0xff]
                %221 = vst [vmem:[%s149 + $0x118] sm:$0xff] %v220
                %v222 = vld [vmem:[%s148 + $0x220] sm:$0xff]
                %223 = vst [vmem:[%s149 + $0x120] sm:$0xff] %v222
                %v224 = vld [vmem:[%s148 + $0x228] sm:$0xff]
                %225 = vst [vmem:[%s149 + $0x128] sm:$0xff] %v224
                %v226 = vld [vmem:[%s148 + $0x230] sm:$0xff]
                %227 = vst [vmem:[%s149 + $0x130] sm:$0xff] %v226
                %v228 = vld [vmem:[%s148 + $0x238] sm:$0xff]
                %229 = vst [vmem:[%s149 + $0x138] sm:$0xff] %v228
                %v230 = vld [vmem:[%s148 + $0x280] sm:$0xff]
                %231 = vst [vmem:[%s149 + $0x140] sm:$0xff] %v230
                %v232 = vld [vmem:[%s148 + $0x288] sm:$0xff]
                %233 = vst [vmem:[%s149 + $0x148] sm:$0xff] %v232
                %v234 = vld [vmem:[%s148 + $0x290] sm:$0xff]
                %235 = vst [vmem:[%s149 + $0x150] sm:$0xff] %v234
                %v236 = vld [vmem:[%s148 + $0x298] sm:$0xff]
                %237 = vst [vmem:[%s149 + $0x158] sm:$0xff] %v236
                %v238 = vld [vmem:[%s148 + $0x2a0] sm:$0xff]
                %239 = vst [vmem:[%s149 + $0x160] sm:$0xff] %v238
                %v240 = vld [vmem:[%s148 + $0x2a8] sm:$0xff]
                %241 = vst [vmem:[%s149 + $0x168] sm:$0xff] %v240
                %v242 = vld [vmem:[%s148 + $0x2b0] sm:$0xff]
                %243 = vst [vmem:[%s149 + $0x170] sm:$0xff] %v242
                %v244 = vld [vmem:[%s148 + $0x2b8] sm:$0xff]
                %245 = vst [vmem:[%s149 + $0x178] sm:$0xff] %v244
                %v246 = vld [vmem:[%s148 + $0x300] sm:$0xff]
                %247 = vst [vmem:[%s149 + $0x180] sm:$0xff] %v246
                %v248 = vld [vmem:[%s148 + $0x308] sm:$0xff]
                %249 = vst [vmem:[%s149 + $0x188] sm:$0xff] %v248
                %v250 = vld [vmem:[%s148 + $0x310] sm:$0xff]
                %251 = vst [vmem:[%s149 + $0x190] sm:$0xff] %v250
                %v252 = vld [vmem:[%s148 + $0x318] sm:$0xff]
                %253 = vst [vmem:[%s149 + $0x198] sm:$0xff] %v252
                %v254 = vld [vmem:[%s148 + $0x320] sm:$0xff]
                %255 = vst [vmem:[%s149 + $0x1a0] sm:$0xff] %v254
                %v256 = vld [vmem:[%s148 + $0x328] sm:$0xff]
                %257 = vst [vmem:[%s149 + $0x1a8] sm:$0xff] %v256
                %v258 = vld [vmem:[%s148 + $0x330] sm:$0xff]
                %259 = vst [vmem:[%s149 + $0x1b0] sm:$0xff] %v258
                %v260 = vld [vmem:[%s148 + $0x338] sm:$0xff]
                %261 = vst [vmem:[%s149 + $0x1b8] sm:$0xff] %v260
                %v262 = vld [vmem:[%s148 + $0x380] sm:$0xff]
                %263 = vst [vmem:[%s149 + $0x1c0] sm:$0xff] %v262
                %v264 = vld [vmem:[%s148 + $0x388] sm:$0xff]
                %265 = vst [vmem:[%s149 + $0x1c8] sm:$0xff] %v264
                %v266 = vld [vmem:[%s148 + $0x390] sm:$0xff]
                %267 = vst [vmem:[%s149 + $0x1d0] sm:$0xff] %v266
                %v268 = vld [vmem:[%s148 + $0x398] sm:$0xff]
                %269 = vst [vmem:[%s149 + $0x1d8] sm:$0xff] %v268
                %v270 = vld [vmem:[%s148 + $0x3a0] sm:$0xff]
                %271 = vst [vmem:[%s149 + $0x1e0] sm:$0xff] %v270
                %v272 = vld [vmem:[%s148 + $0x3a8] sm:$0xff]
                %273 = vst [vmem:[%s149 + $0x1e8] sm:$0xff] %v272
                %v274 = vld [vmem:[%s148 + $0x3b0] sm:$0xff]
                %275 = vst [vmem:[%s149 + $0x1f0] sm:$0xff] %v274
                %v276 = vld [vmem:[%s148 + $0x3b8] sm:$0xff]
                %277 = vst [vmem:[%s149 + $0x1f8] sm:$0xff] %v276
                %v278 = vld [vmem:[%s148 + $0x400] sm:$0xff]
                %279 = vst [vmem:[%s149 + $0x200] sm:$0xff] %v278
                %v280 = vld [vmem:[%s148 + $0x408] sm:$0xff]
                %281 = vst [vmem:[%s149 + $0x208] sm:$0xff] %v280
                %v282 = vld [vmem:[%s148 + $0x410] sm:$0xff]
                %283 = vst [vmem:[%s149 + $0x210] sm:$0xff] %v282
                %v284 = vld [vmem:[%s148 + $0x418] sm:$0xff]
                %285 = vst [vmem:[%s149 + $0x218] sm:$0xff] %v284
                %v286 = vld [vmem:[%s148 + $0x420] sm:$0xff]
                %287 = vst [vmem:[%s149 + $0x220] sm:$0xff] %v286
                %v288 = vld [vmem:[%s148 + $0x428] sm:$0xff]
                %289 = vst [vmem:[%s149 + $0x228] sm:$0xff] %v288
                %v290 = vld [vmem:[%s148 + $0x430] sm:$0xff]
                %291 = vst [vmem:[%s149 + $0x230] sm:$0xff] %v290
                %v292 = vld [vmem:[%s148 + $0x438] sm:$0xff]
                %293 = vst [vmem:[%s149 + $0x238] sm:$0xff] %v292
                %v294 = vld [vmem:[%s148 + $0x480] sm:$0xff]
                %295 = vst [vmem:[%s149 + $0x240] sm:$0xff] %v294
                %v296 = vld [vmem:[%s148 + $0x488] sm:$0xff]
                %297 = vst [vmem:[%s149 + $0x248] sm:$0xff] %v296
                %v298 = vld [vmem:[%s148 + $0x490] sm:$0xff]
                %299 = vst [vmem:[%s149 + $0x250] sm:$0xff] %v298
                %v300 = vld [vmem:[%s148 + $0x498] sm:$0xff]
                %301 = vst [vmem:[%s149 + $0x258] sm:$0xff] %v300
                %v302 = vld [vmem:[%s148 + $0x4a0] sm:$0xff]
                %303 = vst [vmem:[%s149 + $0x260] sm:$0xff] %v302
                %v304 = vld [vmem:[%s148 + $0x4a8] sm:$0xff]
                %305 = vst [vmem:[%s149 + $0x268] sm:$0xff] %v304
                %v306 = vld [vmem:[%s148 + $0x4b0] sm:$0xff]
                %307 = vst [vmem:[%s149 + $0x270] sm:$0xff] %v306
                %v308 = vld [vmem:[%s148 + $0x4b8] sm:$0xff]
                %309 = vst [vmem:[%s149 + $0x278] sm:$0xff] %v308
                %v310 = vld [vmem:[%s148 + $0x500] sm:$0xff]
                %311 = vst [vmem:[%s149 + $0x280] sm:$0xff] %v310
                %v312 = vld [vmem:[%s148 + $0x508] sm:$0xff]
                %313 = vst [vmem:[%s149 + $0x288] sm:$0xff] %v312
                %v314 = vld [vmem:[%s148 + $0x510] sm:$0xff]
                %315 = vst [vmem:[%s149 + $0x290] sm:$0xff] %v314
                %v316 = vld [vmem:[%s148 + $0x518] sm:$0xff]
                %317 = vst [vmem:[%s149 + $0x298] sm:$0xff] %v316
                %v318 = vld [vmem:[%s148 + $0x520] sm:$0xff]
                %319 = vst [vmem:[%s149 + $0x2a0] sm:$0xff] %v318
                %v320 = vld [vmem:[%s148 + $0x528] sm:$0xff]
                %321 = vst [vmem:[%s149 + $0x2a8] sm:$0xff] %v320
                %v322 = vld [vmem:[%s148 + $0x530] sm:$0xff]
                %323 = vst [vmem:[%s149 + $0x2b0] sm:$0xff] %v322
                %v324 = vld [vmem:[%s148 + $0x538] sm:$0xff]
                %325 = vst [vmem:[%s149 + $0x2b8] sm:$0xff] %v324
                %v326 = vld [vmem:[%s148 + $0x580] sm:$0xff]
                %327 = vst [vmem:[%s149 + $0x2c0] sm:$0xff] %v326
                %v328 = vld [vmem:[%s148 + $0x588] sm:$0xff]
                %329 = vst [vmem:[%s149 + $0x2c8] sm:$0xff] %v328
                %v330 = vld [vmem:[%s148 + $0x590] sm:$0xff]
                %331 = vst [vmem:[%s149 + $0x2d0] sm:$0xff] %v330
                %v332 = vld [vmem:[%s148 + $0x598] sm:$0xff]
                %333 = vst [vmem:[%s149 + $0x2d8] sm:$0xff] %v332
                %v334 = vld [vmem:[%s148 + $0x5a0] sm:$0xff]
                %335 = vst [vmem:[%s149 + $0x2e0] sm:$0xff] %v334
                %v336 = vld [vmem:[%s148 + $0x5a8] sm:$0xff]
                %337 = vst [vmem:[%s149 + $0x2e8] sm:$0xff] %v336
                %v338 = vld [vmem:[%s148 + $0x5b0] sm:$0xff]
                %339 = vst [vmem:[%s149 + $0x2f0] sm:$0xff] %v338
                %v340 = vld [vmem:[%s148 + $0x5b8] sm:$0xff]
                %341 = vst [vmem:[%s149 + $0x2f8] sm:$0xff] %v340
                %v342 = vld [vmem:[%s148 + $0x600] sm:$0xff]
                %343 = vst [vmem:[%s149 + $0x300] sm:$0xff] %v342
                %v344 = vld [vmem:[%s148 + $0x608] sm:$0xff]
                %345 = vst [vmem:[%s149 + $0x308] sm:$0xff] %v344
                %v346 = vld [vmem:[%s148 + $0x610] sm:$0xff]
                %347 = vst [vmem:[%s149 + $0x310] sm:$0xff] %v346
                %v348 = vld [vmem:[%s148 + $0x618] sm:$0xff]
                %349 = vst [vmem:[%s149 + $0x318] sm:$0xff] %v348
                %v350 = vld [vmem:[%s148 + $0x620] sm:$0xff]
                %351 = vst [vmem:[%s149 + $0x320] sm:$0xff] %v350
                %v352 = vld [vmem:[%s148 + $0x628] sm:$0xff]
                %353 = vst [vmem:[%s149 + $0x328] sm:$0xff] %v352
                %v354 = vld [vmem:[%s148 + $0x630] sm:$0xff]
                %355 = vst [vmem:[%s149 + $0x330] sm:$0xff] %v354
                %v356 = vld [vmem:[%s148 + $0x638] sm:$0xff]
                %357 = vst [vmem:[%s149 + $0x338] sm:$0xff] %v356
                %v358 = vld [vmem:[%s148 + $0x680] sm:$0xff]
                %359 = vst [vmem:[%s149 + $0x340] sm:$0xff] %v358
                %v360 = vld [vmem:[%s148 + $0x688] sm:$0xff]
                %361 = vst [vmem:[%s149 + $0x348] sm:$0xff] %v360
                %v362 = vld [vmem:[%s148 + $0x690] sm:$0xff]
                %363 = vst [vmem:[%s149 + $0x350] sm:$0xff] %v362
                %v364 = vld [vmem:[%s148 + $0x698] sm:$0xff]
                %365 = vst [vmem:[%s149 + $0x358] sm:$0xff] %v364
                %v366 = vld [vmem:[%s148 + $0x6a0] sm:$0xff]
                %367 = vst [vmem:[%s149 + $0x360] sm:$0xff] %v366
                %v368 = vld [vmem:[%s148 + $0x6a8] sm:$0xff]
                %369 = vst [vmem:[%s149 + $0x368] sm:$0xff] %v368
                %v370 = vld [vmem:[%s148 + $0x6b0] sm:$0xff]
                %371 = vst [vmem:[%s149 + $0x370] sm:$0xff] %v370
                %v372 = vld [vmem:[%s148 + $0x6b8] sm:$0xff]
                %373 = vst [vmem:[%s149 + $0x378] sm:$0xff] %v372
                %v374 = vld [vmem:[%s148 + $0x700] sm:$0xff]
                %375 = vst [vmem:[%s149 + $0x380] sm:$0xff] %v374
                %v376 = vld [vmem:[%s148 + $0x708] sm:$0xff]
                %377 = vst [vmem:[%s149 + $0x388] sm:$0xff] %v376
                %v378 = vld [vmem:[%s148 + $0x710] sm:$0xff]
                %379 = vst [vmem:[%s149 + $0x390] sm:$0xff] %v378
                %v380 = vld [vmem:[%s148 + $0x718] sm:$0xff]
                %381 = vst [vmem:[%s149 + $0x398] sm:$0xff] %v380
                %v382 = vld [vmem:[%s148 + $0x720] sm:$0xff]
                %383 = vst [vmem:[%s149 + $0x3a0] sm:$0xff] %v382
                %v384 = vld [vmem:[%s148 + $0x728] sm:$0xff]
                %385 = vst [vmem:[%s149 + $0x3a8] sm:$0xff] %v384
                %v386 = vld [vmem:[%s148 + $0x730] sm:$0xff]
                %387 = vst [vmem:[%s149 + $0x3b0] sm:$0xff] %v386
                %v388 = vld [vmem:[%s148 + $0x738] sm:$0xff]
                %389 = vst [vmem:[%s149 + $0x3b8] sm:$0xff] %v388
                %v390 = vld [vmem:[%s148 + $0x780] sm:$0xff]
                %391 = vst [vmem:[%s149 + $0x3c0] sm:$0xff] %v390
                %v392 = vld [vmem:[%s148 + $0x788] sm:$0xff]
                %393 = vst [vmem:[%s149 + $0x3c8] sm:$0xff] %v392
                %v394 = vld [vmem:[%s148 + $0x790] sm:$0xff]
                %395 = vst [vmem:[%s149 + $0x3d0] sm:$0xff] %v394
                %v396 = vld [vmem:[%s148 + $0x798] sm:$0xff]
                %397 = vst [vmem:[%s149 + $0x3d8] sm:$0xff] %v396
                %v398 = vld [vmem:[%s148 + $0x7a0] sm:$0xff]
                %399 = vst [vmem:[%s149 + $0x3e0] sm:$0xff] %v398
                %v400 = vld [vmem:[%s148 + $0x7a8] sm:$0xff]
                %401 = vst [vmem:[%s149 + $0x3e8] sm:$0xff] %v400
                %v402 = vld [vmem:[%s148 + $0x7b0] sm:$0xff]
                %403 = vst [vmem:[%s149 + $0x3f0] sm:$0xff] %v402
                %v404 = vld [vmem:[%s148 + $0x7b8] sm:$0xff]
                %405 = vst [vmem:[%s149 + $0x3f8] sm:$0xff] %v404
                %v406 = vld [vmem:[%s148 + $0x800] sm:$0xff]
                %407 = vst [vmem:[%s149 + $0x400] sm:$0xff] %v406
                %v408 = vld [vmem:[%s148 + $0x808] sm:$0xff]
                %409 = vst [vmem:[%s149 + $0x408] sm:$0xff] %v408
                %v410 = vld [vmem:[%s148 + $0x810] sm:$0xff]
                %411 = vst [vmem:[%s149 + $0x410] sm:$0xff] %v410
                %v412 = vld [vmem:[%s148 + $0x818] sm:$0xff]
                %413 = vst [vmem:[%s149 + $0x418] sm:$0xff] %v412
                %v414 = vld [vmem:[%s148 + $0x820] sm:$0xff]
                %415 = vst [vmem:[%s149 + $0x420] sm:$0xff] %v414
                %v416 = vld [vmem:[%s148 + $0x828] sm:$0xff]
                %417 = vst [vmem:[%s149 + $0x428] sm:$0xff] %v416
                %v418 = vld [vmem:[%s148 + $0x830] sm:$0xff]
                %419 = vst [vmem:[%s149 + $0x430] sm:$0xff] %v418
                %v420 = vld [vmem:[%s148 + $0x838] sm:$0xff]
                %421 = vst [vmem:[%s149 + $0x438] sm:$0xff] %v420
                %v422 = vld [vmem:[%s148 + $0x880] sm:$0xff]
                %423 = vst [vmem:[%s149 + $0x440] sm:$0xff] %v422
                %v424 = vld [vmem:[%s148 + $0x888] sm:$0xff]
                %425 = vst [vmem:[%s149 + $0x448] sm:$0xff] %v424
                %v426 = vld [vmem:[%s148 + $0x890] sm:$0xff]
                %427 = vst [vmem:[%s149 + $0x450] sm:$0xff] %v426
                %v428 = vld [vmem:[%s148 + $0x898] sm:$0xff]
                %429 = vst [vmem:[%s149 + $0x458] sm:$0xff] %v428
                %v430 = vld [vmem:[%s148 + $0x8a0] sm:$0xff]
                %431 = vst [vmem:[%s149 + $0x460] sm:$0xff] %v430
                %v432 = vld [vmem:[%s148 + $0x8a8] sm:$0xff]
                %433 = vst [vmem:[%s149 + $0x468] sm:$0xff] %v432
                %v434 = vld [vmem:[%s148 + $0x8b0] sm:$0xff]
                %435 = vst [vmem:[%s149 + $0x470] sm:$0xff] %v434
                %v436 = vld [vmem:[%s148 + $0x8b8] sm:$0xff]
                %437 = vst [vmem:[%s149 + $0x478] sm:$0xff] %v436
                %v438 = vld [vmem:[%s148 + $0x900] sm:$0xff]
                %439 = vst [vmem:[%s149 + $0x480] sm:$0xff] %v438
                %v440 = vld [vmem:[%s148 + $0x908] sm:$0xff]
                %441 = vst [vmem:[%s149 + $0x488] sm:$0xff] %v440
                %v442 = vld [vmem:[%s148 + $0x910] sm:$0xff]
                %443 = vst [vmem:[%s149 + $0x490] sm:$0xff] %v442
                %v444 = vld [vmem:[%s148 + $0x918] sm:$0xff]
                %445 = vst [vmem:[%s149 + $0x498] sm:$0xff] %v444
                %v446 = vld [vmem:[%s148 + $0x920] sm:$0xff]
                %447 = vst [vmem:[%s149 + $0x4a0] sm:$0xff] %v446
                %v448 = vld [vmem:[%s148 + $0x928] sm:$0xff]
                %449 = vst [vmem:[%s149 + $0x4a8] sm:$0xff] %v448
                %v450 = vld [vmem:[%s148 + $0x930] sm:$0xff]
                %451 = vst [vmem:[%s149 + $0x4b0] sm:$0xff] %v450
                %v452 = vld [vmem:[%s148 + $0x938] sm:$0xff]
                %453 = vst [vmem:[%s149 + $0x4b8] sm:$0xff] %v452
              $region41: #{net_forward.4} parent=35 // loop_footer
                %s147 = sadd.s32 1, %s143
              $region42: #{net_forward.4} parent=35 // loop_footer_branch
                %142 = sbr.rel target = $region38
              $region43: #{net_forward.4} parent=35 // loop_exit
                _
            $region36: #{net_forward.4} parent=31 // pred_fallthru
              _
            // Predicated region
            $region44: #{net_forward.4} parent=31 // pred_check
              _
            $region45: #{net_forward.4} parent=31 // pred_check_branch
              %455 = sbr.rel target = $region47
            $region46: #{net_forward.4} parent=31 // pred_region
              _
            $region47: #{net_forward.4} parent=31 // pred_fallthru
              _
          $region32: #{net_forward.4} parent=27 // pred_fallthru
            _
          %456 = vnop
        $region28: #{net_forward.4} parent=23 // pred_fallthru
          _
      $region24: #{net_forward.4} parent=5 // pred_fallthru
        _
      %p457 = scmp.le.s32.totalorder 1, %s9
      %p458 = scmp.lt.s32.totalorder %s9, 3
      %p459 = pnand %p457, %p458
      %p460 = pneg %p459
      // Predicated region
      $region48: #{net_forward.4} parent=5 // pred_check
        _
      $region49: #{net_forward.4} parent=5 // pred_check_branch
        %462 = sbr.rel (%p459) target = $region51
      $region50: #{net_forward.4} parent=5 // pred_region
        %s463 = ssub.s32 %s9, 1
        %s464 = sand.u32 %s22, 1
        %s465 = sand.u32 %s22, 1
        %s466 = smul.addr %s465, 1216
        %s467 = scalar_lea.vmem [#allocation2], %s466
        // Predicated region
        $region52: #{net_forward.4} parent=50 // pred_check
          %p468 = pneg %p35
        $region53: #{net_forward.4} parent=50 // pred_check_branch
          %470 = sbr.rel (%p468) target = $region55
        $region54: #{net_forward.4} parent=50 // pred_region
          _
        $region55: #{net_forward.4} parent=50 // pred_fallthru
          _
        %s471 = sand.u32 %s22, 1
        %s472 = sand.u32 %s22, 1
        %s473 = smul.addr %s472, 1216
        %s474 = scalar_lea.vmem [#allocation2], %s473
        %p475 = pneg %p35
        %p476 = pneg %p32
        %p477 = pneg %p56
        %p478 = pneg %p53
        %p479 = pneg %p77
        %p480 = pneg %p74
        %p481 = pneg %p103
        %p482 = pneg %p100
        %s483 = sand.u32 %s90, 1
        %s484 = sand.u32 %s90, 1
        %s485 = smul.addr %s484, 64
        %s486 = scalar_lea.vmem [#allocation3], %s485
        %s487 = smul.u32 16, %s14
        %s488 = smul.u32 4, %s14
        %v490 = vld [vmem:[%s1] sm:$0xff]
        %v491 = vld [vmem:[%s1 + $0x8] sm:$0xff]
        %v492 = vld [vmem:[%s467] sm:$0xff]
        %v493 = vld [vmem:[%s467 + $0x8] sm:$0xff]
        %v494 = vld [vmem:[%s467 + $0x10] sm:$0xff]
        %v495 = vld [vmem:[%s467 + $0x18] sm:$0xff]
        %v496 = vld [vmem:[%s467 + $0x20] sm:$0xff]
        %v497 = vld [vmem:[%s467 + $0x28] sm:$0xff]
        %v498 = vld [vmem:[%s467 + $0x30] sm:$0xff]
        %v499 = vld [vmem:[%s467 + $0x38] sm:$0xff]
        %v500 = vld [vmem:[%s467 + $0x40] sm:$0xff]
        %v501 = vld [vmem:[%s467 + $0x48] sm:$0xff]
        %v502 = vld [vmem:[%s467 + $0x50] sm:$0xff]
        %v503 = vld [vmem:[%s467 + $0x58] sm:$0xff]
        %v504 = vld [vmem:[%s467 + $0x60] sm:$0xff]
        %v505 = vld [vmem:[%s467 + $0x68] sm:$0xff]
        %v506 = vld [vmem:[%s467 + $0x70] sm:$0xff]
        %v507 = vld [vmem:[%s467 + $0x78] sm:$0xff]
        %v508 = vld [vmem:[%s467 + $0x80] sm:$0xff]
        %v509 = vld [vmem:[%s467 + $0x88] sm:$0xff]
        %v510 = vld [vmem:[%s467 + $0x90] sm:$0xff]
        %v511 = vld [vmem:[%s467 + $0x98] sm:$0xff]
        %v512 = vld [vmem:[%s467 + $0xa0] sm:$0xff]
        %v513 = vld [vmem:[%s467 + $0xa8] sm:$0xff]
        %v514 = vld [vmem:[%s467 + $0xb0] sm:$0xff]
        %v515 = vld [vmem:[%s467 + $0xb8] sm:$0xff]
        %v516 = vld [vmem:[%s467 + $0xc0] sm:$0xff]
        %v517 = vld [vmem:[%s467 + $0xc8] sm:$0xff]
        %v518 = vld [vmem:[%s467 + $0xd0] sm:$0xff]
        %v519 = vld [vmem:[%s467 + $0xd8] sm:$0xff]
        %v520 = vld [vmem:[%s467 + $0xe0] sm:$0xff]
        %v521 = vld [vmem:[%s467 + $0xe8] sm:$0xff]
        %v522 = vld [vmem:[%s467 + $0xf0] sm:$0xff]
        %v523 = vld [vmem:[%s467 + $0xf8] sm:$0xff]
        %v524 = vld [vmem:[%s467 + $0x100] sm:$0xff]
        %v525 = vld [vmem:[%s467 + $0x108] sm:$0xff]
        %v526 = vld [vmem:[%s467 + $0x110] sm:$0xff]
        %v527 = vld [vmem:[%s467 + $0x118] sm:$0xff]
        %v528 = vld [vmem:[%s467 + $0x120] sm:$0xff]
        %v529 = vld [vmem:[%s467 + $0x128] sm:$0xff]
        %v530 = vld [vmem:[%s467 + $0x130] sm:$0xff]
        %v531 = vld [vmem:[%s467 + $0x138] sm:$0xff]
        %v532 = vld [vmem:[%s467 + $0x140] sm:$0xff]
        %v533 = vld [vmem:[%s467 + $0x148] sm:$0xff]
        %v534 = vld [vmem:[%s467 + $0x150] sm:$0xff]
        %v535 = vld [vmem:[%s467 + $0x158] sm:$0xff]
        %v536 = vld [vmem:[%s467 + $0x160] sm:$0xff]
        %v537 = vld [vmem:[%s467 + $0x168] sm:$0xff]
        %v538 = vld [vmem:[%s467 + $0x170] sm:$0xff]
        %v539 = vld [vmem:[%s467 + $0x178] sm:$0xff]
        %v540 = vld [vmem:[%s467 + $0x180] sm:$0xff]
        %v541 = vld [vmem:[%s467 + $0x188] sm:$0xff]
        %v542 = vld [vmem:[%s467 + $0x190] sm:$0xff]
        %v543 = vld [vmem:[%s467 + $0x198] sm:$0xff]
        %v544 = vld [vmem:[%s467 + $0x1a0] sm:$0xff]
        %v545 = vld [vmem:[%s467 + $0x1a8] sm:$0xff]
        %v546 = vld [vmem:[%s467 + $0x1b0] sm:$0xff]
        %v547 = vld [vmem:[%s467 + $0x1b8] sm:$0xff]
        %v548 = vld [vmem:[%s467 + $0x1c0] sm:$0xff]
        %v549 = vld [vmem:[%s467 + $0x1c8] sm:$0xff]
        %v550 = vld [vmem:[%s467 + $0x1d0] sm:$0xff]
        %v551 = vld [vmem:[%s467 + $0x1d8] sm:$0xff]
        %v552 = vld [vmem:[%s467 + $0x1e0] sm:$0xff]
        %v553 = vld [vmem:[%s467 + $0x1e8] sm:$0xff]
        %v554 = vld [vmem:[%s467 + $0x1f0] sm:$0xff]
        %v555 = vld [vmem:[%s467 + $0x1f8] sm:$0xff]
        %v556 = vld [vmem:[%s467 + $0x200] sm:$0xff]
        %v557 = vld [vmem:[%s467 + $0x208] sm:$0xff]
        %v558 = vld [vmem:[%s467 + $0x210] sm:$0xff]
        %v559 = vld [vmem:[%s467 + $0x218] sm:$0xff]
        %v560 = vld [vmem:[%s467 + $0x220] sm:$0xff]
        %v561 = vld [vmem:[%s467 + $0x228] sm:$0xff]
        %v562 = vld [vmem:[%s467 + $0x230] sm:$0xff]
        %v563 = vld [vmem:[%s467 + $0x238] sm:$0xff]
        %v564 = vld [vmem:[%s467 + $0x240] sm:$0xff]
        %v565 = vld [vmem:[%s467 + $0x248] sm:$0xff]
        %v566 = vld [vmem:[%s467 + $0x250] sm:$0xff]
        %v567 = vld [vmem:[%s467 + $0x258] sm:$0xff]
        %v568 = vld [vmem:[%s467 + $0x260] sm:$0xff]
        %v569 = vld [vmem:[%s467 + $0x268] sm:$0xff]
        %v570 = vld [vmem:[%s467 + $0x270] sm:$0xff]
        %v571 = vld [vmem:[%s467 + $0x278] sm:$0xff]
        %v572 = vld [vmem:[%s467 + $0x280] sm:$0xff]
        %v573 = vld [vmem:[%s467 + $0x288] sm:$0xff]
        %v574 = vld [vmem:[%s467 + $0x290] sm:$0xff]
        %v575 = vld [vmem:[%s467 + $0x298] sm:$0xff]
        %v576 = vld [vmem:[%s467 + $0x2a0] sm:$0xff]
        %v577 = vld [vmem:[%s467 + $0x2a8] sm:$0xff]
        %v578 = vld [vmem:[%s467 + $0x2b0] sm:$0xff]
        %v579 = vld [vmem:[%s467 + $0x2b8] sm:$0xff]
        %v580 = vld [vmem:[%s467 + $0x2c0] sm:$0xff]
        %v581 = vld [vmem:[%s467 + $0x2c8] sm:$0xff]
        %v582 = vld [vmem:[%s467 + $0x2d0] sm:$0xff]
        %v583 = vld [vmem:[%s467 + $0x2d8] sm:$0xff]
        %v584 = vld [vmem:[%s467 + $0x2e0] sm:$0xff]
        %v585 = vld [vmem:[%s467 + $0x2e8] sm:$0xff]
        %v586 = vld [vmem:[%s467 + $0x2f0] sm:$0xff]
        %v587 = vld [vmem:[%s467 + $0x2f8] sm:$0xff]
        %v588 = vld [vmem:[%s467 + $0x300] sm:$0xff]
        %v589 = vld [vmem:[%s467 + $0x308] sm:$0xff]
        %v590 = vld [vmem:[%s467 + $0x310] sm:$0xff]
        %v591 = vld [vmem:[%s467 + $0x318] sm:$0xff]
        %v592 = vld [vmem:[%s467 + $0x320] sm:$0xff]
        %v593 = vld [vmem:[%s467 + $0x328] sm:$0xff]
        %v594 = vld [vmem:[%s467 + $0x330] sm:$0xff]
        %v595 = vld [vmem:[%s467 + $0x338] sm:$0xff]
        %v596 = vld [vmem:[%s467 + $0x340] sm:$0xff]
        %v597 = vld [vmem:[%s467 + $0x348] sm:$0xff]
        %v598 = vld [vmem:[%s467 + $0x350] sm:$0xff]
        %v599 = vld [vmem:[%s467 + $0x358] sm:$0xff]
        %v600 = vld [vmem:[%s467 + $0x360] sm:$0xff]
        %v601 = vld [vmem:[%s467 + $0x368] sm:$0xff]
        %v602 = vld [vmem:[%s467 + $0x370] sm:$0xff]
        %v603 = vld [vmem:[%s467 + $0x378] sm:$0xff]
        %v604 = vld [vmem:[%s467 + $0x380] sm:$0xff]
        %v605 = vld [vmem:[%s467 + $0x388] sm:$0xff]
        %v606 = vld [vmem:[%s467 + $0x390] sm:$0xff]
        %v607 = vld [vmem:[%s467 + $0x398] sm:$0xff]
        %v608 = vld [vmem:[%s467 + $0x3a0] sm:$0xff]
        %v609 = vld [vmem:[%s467 + $0x3a8] sm:$0xff]
        %v610 = vld [vmem:[%s467 + $0x3b0] sm:$0xff]
        %v611 = vld [vmem:[%s467 + $0x3b8] sm:$0xff]
        %v612 = vld [vmem:[%s467 + $0x3c0] sm:$0xff]
        %v613 = vld [vmem:[%s467 + $0x3c8] sm:$0xff]
        %v614 = vld [vmem:[%s467 + $0x3d0] sm:$0xff]
        %v615 = vld [vmem:[%s467 + $0x3d8] sm:$0xff]
        %v616 = vld [vmem:[%s467 + $0x3e0] sm:$0xff]
        %v617 = vld [vmem:[%s467 + $0x3e8] sm:$0xff]
        %v618 = vld [vmem:[%s467 + $0x3f0] sm:$0xff]
        %v619 = vld [vmem:[%s467 + $0x3f8] sm:$0xff]
        %v620 = vld [vmem:[%s467 + $0x400] sm:$0xff]
        %v621 = vld [vmem:[%s467 + $0x408] sm:$0xff]
        %v622 = vld [vmem:[%s467 + $0x410] sm:$0xff]
        %v623 = vld [vmem:[%s467 + $0x418] sm:$0xff]
        %v624 = vld [vmem:[%s467 + $0x420] sm:$0xff]
        %v625 = vld [vmem:[%s467 + $0x428] sm:$0xff]
        %v626 = vld [vmem:[%s467 + $0x430] sm:$0xff]
        %v627 = vld [vmem:[%s467 + $0x438] sm:$0xff]
        %v628 = vld [vmem:[%s467 + $0x440] sm:$0xff]
        %v629 = vld [vmem:[%s467 + $0x448] sm:$0xff]
        %v630 = vld [vmem:[%s467 + $0x450] sm:$0xff]
        %v631 = vld [vmem:[%s467 + $0x458] sm:$0xff]
        %v632 = vld [vmem:[%s467 + $0x460] sm:$0xff]
        %v633 = vld [vmem:[%s467 + $0x468] sm:$0xff]
        %v634 = vld [vmem:[%s467 + $0x470] sm:$0xff]
        %v635 = vld [vmem:[%s467 + $0x478] sm:$0xff]
        %v636 = vld [vmem:[%s467 + $0x480] sm:$0x77]
        %v637 = vld [vmem:[%s467 + $0x488] sm:$0x77]
        %v638 = vld [vmem:[%s467 + $0x490] sm:$0x77]
        %v639 = vld [vmem:[%s467 + $0x498] sm:$0x77]
        %v640 = vld [vmem:[%s467 + $0x4a0] sm:$0x77]
        %v641 = vld [vmem:[%s467 + $0x4a8] sm:$0x77]
        %v642 = vld [vmem:[%s467 + $0x4b0] sm:$0x77]
        %v643 = vld [vmem:[%s467 + $0x4b8] sm:$0x77]
        %v646 = vunpack.c.l.b16 %v490
        %v647 = vunpack.c.h.b16 %v490
        %v648 = vunpack.c.l.b16 %v491
        %v649 = vunpack.c.h.b16 %v491
        %v650 = vpack.c.b16 %v648, %v646
        %v651 = vpack.c.b16 %v649, %v647
        %v805 = vunpack.c.l.b16 %v492
        %v806 = vunpack.c.h.b16 %v492
        %v807 = vunpack.c.l.b16 %v493
        %v808 = vunpack.c.h.b16 %v493
        %v809 = vunpack.c.l.b16 %v494
        %v810 = vunpack.c.h.b16 %v494
        %v811 = vunpack.c.l.b16 %v495
        %v812 = vunpack.c.h.b16 %v495
        %v813 = vunpack.c.l.b16 %v496
        %v814 = vunpack.c.h.b16 %v496
        %v815 = vunpack.c.l.b16 %v497
        %v816 = vunpack.c.h.b16 %v497
        %v817 = vunpack.c.l.b16 %v498
        %v818 = vunpack.c.h.b16 %v498
        %v819 = vunpack.c.l.b16 %v499
        %v820 = vunpack.c.h.b16 %v499
        %v821 = vunpack.c.l.b16 %v500
        %v822 = vunpack.c.h.b16 %v500
        %v823 = vunpack.c.l.b16 %v501
        %v824 = vunpack.c.h.b16 %v501
        %v825 = vunpack.c.l.b16 %v502
        %v826 = vunpack.c.h.b16 %v502
        %v827 = vunpack.c.l.b16 %v503
        %v828 = vunpack.c.h.b16 %v503
        %v829 = vunpack.c.l.b16 %v504
        %v830 = vunpack.c.h.b16 %v504
        %v831 = vunpack.c.l.b16 %v505
        %v832 = vunpack.c.h.b16 %v505
        %v833 = vunpack.c.l.b16 %v506
        %v834 = vunpack.c.h.b16 %v506
        %v835 = vunpack.c.l.b16 %v507
        %v836 = vunpack.c.h.b16 %v507
        %v837 = vunpack.c.l.b16 %v508
        %v838 = vunpack.c.h.b16 %v508
        %v839 = vunpack.c.l.b16 %v509
        %v840 = vunpack.c.h.b16 %v509
        %v841 = vunpack.c.l.b16 %v510
        %v842 = vunpack.c.h.b16 %v510
        %v843 = vunpack.c.l.b16 %v511
        %v844 = vunpack.c.h.b16 %v511
        %v845 = vunpack.c.l.b16 %v512
        %v846 = vunpack.c.h.b16 %v512
        %v847 = vunpack.c.l.b16 %v513
        %v848 = vunpack.c.h.b16 %v513
        %v849 = vunpack.c.l.b16 %v514
        %v850 = vunpack.c.h.b16 %v514
        %v851 = vunpack.c.l.b16 %v515
        %v852 = vunpack.c.h.b16 %v515
        %v853 = vunpack.c.l.b16 %v516
        %v854 = vunpack.c.h.b16 %v516
        %v855 = vunpack.c.l.b16 %v517
        %v856 = vunpack.c.h.b16 %v517
        %v857 = vunpack.c.l.b16 %v518
        %v858 = vunpack.c.h.b16 %v518
        %v859 = vunpack.c.l.b16 %v519
        %v860 = vunpack.c.h.b16 %v519
        %v861 = vunpack.c.l.b16 %v520
        %v862 = vunpack.c.h.b16 %v520
        %v863 = vunpack.c.l.b16 %v521
        %v864 = vunpack.c.h.b16 %v521
        %v865 = vunpack.c.l.b16 %v522
        %v866 = vunpack.c.h.b16 %v522
        %v867 = vunpack.c.l.b16 %v523
        %v868 = vunpack.c.h.b16 %v523
        %v869 = vunpack.c.l.b16 %v524
        %v870 = vunpack.c.h.b16 %v524
        %v871 = vunpack.c.l.b16 %v525
        %v872 = vunpack.c.h.b16 %v525
        %v873 = vunpack.c.l.b16 %v526
        %v874 = vunpack.c.h.b16 %v526
        %v875 = vunpack.c.l.b16 %v527
        %v876 = vunpack.c.h.b16 %v527
        %v877 = vunpack.c.l.b16 %v528
        %v878 = vunpack.c.h.b16 %v528
        %v879 = vunpack.c.l.b16 %v529
        %v880 = vunpack.c.h.b16 %v529
        %v881 = vunpack.c.l.b16 %v530
        %v882 = vunpack.c.h.b16 %v530
        %v883 = vunpack.c.l.b16 %v531
        %v884 = vunpack.c.h.b16 %v531
        %v885 = vunpack.c.l.b16 %v532
        %v886 = vunpack.c.h.b16 %v532
        %v887 = vunpack.c.l.b16 %v533
        %v888 = vunpack.c.h.b16 %v533
        %v889 = vunpack.c.l.b16 %v534
        %v890 = vunpack.c.h.b16 %v534
        %v891 = vunpack.c.l.b16 %v535
        %v892 = vunpack.c.h.b16 %v535
        %v893 = vunpack.c.l.b16 %v536
        %v894 = vunpack.c.h.b16 %v536
        %v895 = vunpack.c.l.b16 %v537
        %v896 = vunpack.c.h.b16 %v537
        %v897 = vunpack.c.l.b16 %v538
        %v898 = vunpack.c.h.b16 %v538
        %v899 = vunpack.c.l.b16 %v539
        %v900 = vunpack.c.h.b16 %v539
        %v901 = vunpack.c.l.b16 %v540
        %v902 = vunpack.c.h.b16 %v540
        %v903 = vunpack.c.l.b16 %v541
        %v904 = vunpack.c.h.b16 %v541
        %v905 = vunpack.c.l.b16 %v542
        %v906 = vunpack.c.h.b16 %v542
        %v907 = vunpack.c.l.b16 %v543
        %v908 = vunpack.c.h.b16 %v543
        %v909 = vunpack.c.l.b16 %v544
        %v910 = vunpack.c.h.b16 %v544
        %v911 = vunpack.c.l.b16 %v545
        %v912 = vunpack.c.h.b16 %v545
        %v913 = vunpack.c.l.b16 %v546
        %v914 = vunpack.c.h.b16 %v546
        %v915 = vunpack.c.l.b16 %v547
        %v916 = vunpack.c.h.b16 %v547
        %v917 = vunpack.c.l.b16 %v548
        %v918 = vunpack.c.h.b16 %v548
        %v919 = vunpack.c.l.b16 %v549
        %v920 = vunpack.c.h.b16 %v549
        %v921 = vunpack.c.l.b16 %v550
        %v922 = vunpack.c.h.b16 %v550
        %v923 = vunpack.c.l.b16 %v551
        %v924 = vunpack.c.h.b16 %v551
        %v925 = vunpack.c.l.b16 %v552
        %v926 = vunpack.c.h.b16 %v552
        %v927 = vunpack.c.l.b16 %v553
        %v928 = vunpack.c.h.b16 %v553
        %v929 = vunpack.c.l.b16 %v554
        %v930 = vunpack.c.h.b16 %v554
        %v931 = vunpack.c.l.b16 %v555
        %v932 = vunpack.c.h.b16 %v555
        %v933 = vunpack.c.l.b16 %v556
        %v934 = vunpack.c.h.b16 %v556
        %v935 = vunpack.c.l.b16 %v557
        %v936 = vunpack.c.h.b16 %v557
        %v937 = vunpack.c.l.b16 %v558
        %v938 = vunpack.c.h.b16 %v558
        %v939 = vunpack.c.l.b16 %v559
        %v940 = vunpack.c.h.b16 %v559
        %v941 = vunpack.c.l.b16 %v560
        %v942 = vunpack.c.h.b16 %v560
        %v943 = vunpack.c.l.b16 %v561
        %v944 = vunpack.c.h.b16 %v561
        %v945 = vunpack.c.l.b16 %v562
        %v946 = vunpack.c.h.b16 %v562
        %v947 = vunpack.c.l.b16 %v563
        %v948 = vunpack.c.h.b16 %v563
        %v949 = vunpack.c.l.b16 %v564
        %v950 = vunpack.c.h.b16 %v564
        %v951 = vunpack.c.l.b16 %v565
        %v952 = vunpack.c.h.b16 %v565
        %v953 = vunpack.c.l.b16 %v566
        %v954 = vunpack.c.h.b16 %v566
        %v955 = vunpack.c.l.b16 %v567
        %v956 = vunpack.c.h.b16 %v567
        %v957 = vunpack.c.l.b16 %v568
        %v958 = vunpack.c.h.b16 %v568
        %v959 = vunpack.c.l.b16 %v569
        %v960 = vunpack.c.h.b16 %v569
        %v961 = vunpack.c.l.b16 %v570
        %v962 = vunpack.c.h.b16 %v570
        %v963 = vunpack.c.l.b16 %v571
        %v964 = vunpack.c.h.b16 %v571
        %v965 = vunpack.c.l.b16 %v572
        %v966 = vunpack.c.h.b16 %v572
        %v967 = vunpack.c.l.b16 %v573
        %v968 = vunpack.c.h.b16 %v573
        %v969 = vunpack.c.l.b16 %v574
        %v970 = vunpack.c.h.b16 %v574
        %v971 = vunpack.c.l.b16 %v575
        %v972 = vunpack.c.h.b16 %v575
        %v973 = vunpack.c.l.b16 %v576
        %v974 = vunpack.c.h.b16 %v576
        %v975 = vunpack.c.l.b16 %v577
        %v976 = vunpack.c.h.b16 %v577
        %v977 = vunpack.c.l.b16 %v578
        %v978 = vunpack.c.h.b16 %v578
        %v979 = vunpack.c.l.b16 %v579
        %v980 = vunpack.c.h.b16 %v579
        %v981 = vunpack.c.l.b16 %v580
        %v982 = vunpack.c.h.b16 %v580
        %v983 = vunpack.c.l.b16 %v581
        %v984 = vunpack.c.h.b16 %v581
        %v985 = vunpack.c.l.b16 %v582
        %v986 = vunpack.c.h.b16 %v582
        %v987 = vunpack.c.l.b16 %v583
        %v988 = vunpack.c.h.b16 %v583
        %v989 = vunpack.c.l.b16 %v584
        %v990 = vunpack.c.h.b16 %v584
        %v991 = vunpack.c.l.b16 %v585
        %v992 = vunpack.c.h.b16 %v585
        %v993 = vunpack.c.l.b16 %v586
        %v994 = vunpack.c.h.b16 %v586
        %v995 = vunpack.c.l.b16 %v587
        %v996 = vunpack.c.h.b16 %v587
        %v997 = vunpack.c.l.b16 %v588
        %v998 = vunpack.c.h.b16 %v588
        %v999 = vunpack.c.l.b16 %v589
        %v1000 = vunpack.c.h.b16 %v589
        %v1001 = vunpack.c.l.b16 %v590
        %v1002 = vunpack.c.h.b16 %v590
        %v1003 = vunpack.c.l.b16 %v591
        %v1004 = vunpack.c.h.b16 %v591
        %v1005 = vunpack.c.l.b16 %v592
        %v1006 = vunpack.c.h.b16 %v592
        %v1007 = vunpack.c.l.b16 %v593
        %v1008 = vunpack.c.h.b16 %v593
        %v1009 = vunpack.c.l.b16 %v594
        %v1010 = vunpack.c.h.b16 %v594
        %v1011 = vunpack.c.l.b16 %v595
        %v1012 = vunpack.c.h.b16 %v595
        %v1013 = vunpack.c.l.b16 %v596
        %v1014 = vunpack.c.h.b16 %v596
        %v1015 = vunpack.c.l.b16 %v597
        %v1016 = vunpack.c.h.b16 %v597
        %v1017 = vunpack.c.l.b16 %v598
        %v1018 = vunpack.c.h.b16 %v598
        %v1019 = vunpack.c.l.b16 %v599
        %v1020 = vunpack.c.h.b16 %v599
        %v1021 = vunpack.c.l.b16 %v600
        %v1022 = vunpack.c.h.b16 %v600
        %v1023 = vunpack.c.l.b16 %v601
        %v1024 = vunpack.c.h.b16 %v601
        %v1025 = vunpack.c.l.b16 %v602
        %v1026 = vunpack.c.h.b16 %v602
        %v1027 = vunpack.c.l.b16 %v603
        %v1028 = vunpack.c.h.b16 %v603
        %v1029 = vunpack.c.l.b16 %v604
        %v1030 = vunpack.c.h.b16 %v604
        %v1031 = vunpack.c.l.b16 %v605
        %v1032 = vunpack.c.h.b16 %v605
        %v1033 = vunpack.c.l.b16 %v606
        %v1034 = vunpack.c.h.b16 %v606
        %v1035 = vunpack.c.l.b16 %v607
        %v1036 = vunpack.c.h.b16 %v607
        %v1037 = vunpack.c.l.b16 %v608
        %v1038 = vunpack.c.h.b16 %v608
        %v1039 = vunpack.c.l.b16 %v609
        %v1040 = vunpack.c.h.b16 %v609
        %v1041 = vunpack.c.l.b16 %v610
        %v1042 = vunpack.c.h.b16 %v610
        %v1043 = vunpack.c.l.b16 %v611
        %v1044 = vunpack.c.h.b16 %v611
        %v1045 = vunpack.c.l.b16 %v612
        %v1046 = vunpack.c.h.b16 %v612
        %v1047 = vunpack.c.l.b16 %v613
        %v1048 = vunpack.c.h.b16 %v613
        %v1049 = vunpack.c.l.b16 %v614
        %v1050 = vunpack.c.h.b16 %v614
        %v1051 = vunpack.c.l.b16 %v615
        %v1052 = vunpack.c.h.b16 %v615
        %v1053 = vunpack.c.l.b16 %v616
        %v1054 = vunpack.c.h.b16 %v616
        %v1055 = vunpack.c.l.b16 %v617
        %v1056 = vunpack.c.h.b16 %v617
        %v1057 = vunpack.c.l.b16 %v618
        %v1058 = vunpack.c.h.b16 %v618
        %v1059 = vunpack.c.l.b16 %v619
        %v1060 = vunpack.c.h.b16 %v619
        %v1061 = vunpack.c.l.b16 %v620
        %v1062 = vunpack.c.h.b16 %v620
        %v1063 = vunpack.c.l.b16 %v621
        %v1064 = vunpack.c.h.b16 %v621
        %v1065 = vunpack.c.l.b16 %v622
        %v1066 = vunpack.c.h.b16 %v622
        %v1067 = vunpack.c.l.b16 %v623
        %v1068 = vunpack.c.h.b16 %v623
        %v1069 = vunpack.c.l.b16 %v624
        %v1070 = vunpack.c.h.b16 %v624
        %v1071 = vunpack.c.l.b16 %v625
        %v1072 = vunpack.c.h.b16 %v625
        %v1073 = vunpack.c.l.b16 %v626
        %v1074 = vunpack.c.h.b16 %v626
        %v1075 = vunpack.c.l.b16 %v627
        %v1076 = vunpack.c.h.b16 %v627
        %v1077 = vunpack.c.l.b16 %v628
        %v1078 = vunpack.c.h.b16 %v628
        %v1079 = vunpack.c.l.b16 %v629
        %v1080 = vunpack.c.h.b16 %v629
        %v1081 = vunpack.c.l.b16 %v630
        %v1082 = vunpack.c.h.b16 %v630
        %v1083 = vunpack.c.l.b16 %v631
        %v1084 = vunpack.c.h.b16 %v631
        %v1085 = vunpack.c.l.b16 %v632
        %v1086 = vunpack.c.h.b16 %v632
        %v1087 = vunpack.c.l.b16 %v633
        %v1088 = vunpack.c.h.b16 %v633
        %v1089 = vunpack.c.l.b16 %v634
        %v1090 = vunpack.c.h.b16 %v634
        %v1091 = vunpack.c.l.b16 %v635
        %v1092 = vunpack.c.h.b16 %v635
        %v1093 = vunpack.c.l.b16 %v636
        %v1094 = vunpack.c.h.b16 %v636
        %v1095 = vunpack.c.l.b16 %v637
        %v1096 = vunpack.c.h.b16 %v637
        %v1097 = vunpack.c.l.b16 %v638
        %v1098 = vunpack.c.h.b16 %v638
        %v1099 = vunpack.c.l.b16 %v639
        %v1100 = vunpack.c.h.b16 %v639
        %v1101 = vunpack.c.l.b16 %v640
        %v1102 = vunpack.c.h.b16 %v640
        %v1103 = vunpack.c.l.b16 %v641
        %v1104 = vunpack.c.h.b16 %v641
        %v1105 = vunpack.c.l.b16 %v642
        %v1106 = vunpack.c.h.b16 %v642
        %v1107 = vunpack.c.l.b16 %v643
        %v1108 = vunpack.c.h.b16 %v643
        %v1109 = vpack.c.b16 %v821, %v805
        %v1110 = vpack.c.b16 %v822, %v806
        %v1111 = vpack.c.b16 %v823, %v807
        %v1112 = vpack.c.b16 %v824, %v808
        %v1113 = vpack.c.b16 %v825, %v809
        %v1114 = vpack.c.b16 %v826, %v810
        %v1115 = vpack.c.b16 %v827, %v811
        %v1116 = vpack.c.b16 %v828, %v812
        %v1117 = vpack.c.b16 %v829, %v813
        %v1118 = vpack.c.b16 %v830, %v814
        %v1119 = vpack.c.b16 %v831, %v815
        %v1120 = vpack.c.b16 %v832, %v816
        %v1121 = vpack.c.b16 %v833, %v817
        %v1122 = vpack.c.b16 %v834, %v818
        %v1123 = vpack.c.b16 %v835, %v819
        %v1124 = vpack.c.b16 %v836, %v820
        %v1125 = vpack.c.b16 %v853, %v837
        %v1126 = vpack.c.b16 %v854, %v838
        %v1127 = vpack.c.b16 %v855, %v839
        %v1128 = vpack.c.b16 %v856, %v840
        %v1129 = vpack.c.b16 %v857, %v841
        %v1130 = vpack.c.b16 %v858, %v842
        %v1131 = vpack.c.b16 %v859, %v843
        %v1132 = vpack.c.b16 %v860, %v844
        %v1133 = vpack.c.b16 %v861, %v845
        %v1134 = vpack.c.b16 %v862, %v846
        %v1135 = vpack.c.b16 %v863, %v847
        %v1136 = vpack.c.b16 %v864, %v848
        %v1137 = vpack.c.b16 %v865, %v849
        %v1138 = vpack.c.b16 %v866, %v850
        %v1139 = vpack.c.b16 %v867, %v851
        %v1140 = vpack.c.b16 %v868, %v852
        %v1141 = vpack.c.b16 %v885, %v869
        %v1142 = vpack.c.b16 %v886, %v870
        %v1143 = vpack.c.b16 %v887, %v871
        %v1144 = vpack.c.b16 %v888, %v872
        %v1145 = vpack.c.b16 %v889, %v873
        %v1146 = vpack.c.b16 %v890, %v874
        %v1147 = vpack.c.b16 %v891, %v875
        %v1148 = vpack.c.b16 %v892, %v876
        %v1149 = vpack.c.b16 %v893, %v877
        %v1150 = vpack.c.b16 %v894, %v878
        %v1151 = vpack.c.b16 %v895, %v879
        %v1152 = vpack.c.b16 %v896, %v880
        %v1153 = vpack.c.b16 %v897, %v881
        %v1154 = vpack.c.b16 %v898, %v882
        %v1155 = vpack.c.b16 %v899, %v883
        %v1156 = vpack.c.b16 %v900, %v884
        %v1157 = vpack.c.b16 %v917, %v901
        %v1158 = vpack.c.b16 %v918, %v902
        %v1159 = vpack.c.b16 %v919, %v903
        %v1160 = vpack.c.b16 %v920, %v904
        %v1161 = vpack.c.b16 %v921, %v905
        %v1162 = vpack.c.b16 %v922, %v906
        %v1163 = vpack.c.b16 %v923, %v907
        %v1164 = vpack.c.b16 %v924, %v908
        %v1165 = vpack.c.b16 %v925, %v909
        %v1166 = vpack.c.b16 %v926, %v910
        %v1167 = vpack.c.b16 %v927, %v911
        %v1168 = vpack.c.b16 %v928, %v912
        %v1169 = vpack.c.b16 %v929, %v913
        %v1170 = vpack.c.b16 %v930, %v914
        %v1171 = vpack.c.b16 %v931, %v915
        %v1172 = vpack.c.b16 %v932, %v916
        %v1173 = vpack.c.b16 %v949, %v933
        %v1174 = vpack.c.b16 %v950, %v934
        %v1175 = vpack.c.b16 %v951, %v935
        %v1176 = vpack.c.b16 %v952, %v936
        %v1177 = vpack.c.b16 %v953, %v937
        %v1178 = vpack.c.b16 %v954, %v938
        %v1179 = vpack.c.b16 %v955, %v939
        %v1180 = vpack.c.b16 %v956, %v940
        %v1181 = vpack.c.b16 %v957, %v941
        %v1182 = vpack.c.b16 %v958, %v942
        %v1183 = vpack.c.b16 %v959, %v943
        %v1184 = vpack.c.b16 %v960, %v944
        %v1185 = vpack.c.b16 %v961, %v945
        %v1186 = vpack.c.b16 %v962, %v946
        %v1187 = vpack.c.b16 %v963, %v947
        %v1188 = vpack.c.b16 %v964, %v948
        %v1189 = vpack.c.b16 %v981, %v965
        %v1190 = vpack.c.b16 %v982, %v966
        %v1191 = vpack.c.b16 %v983, %v967
        %v1192 = vpack.c.b16 %v984, %v968
        %v1193 = vpack.c.b16 %v985, %v969
        %v1194 = vpack.c.b16 %v986, %v970
        %v1195 = vpack.c.b16 %v987, %v971
        %v1196 = vpack.c.b16 %v988, %v972
        %v1197 = vpack.c.b16 %v989, %v973
        %v1198 = vpack.c.b16 %v990, %v974
        %v1199 = vpack.c.b16 %v991, %v975
        %v1200 = vpack.c.b16 %v992, %v976
        %v1201 = vpack.c.b16 %v993, %v977
        %v1202 = vpack.c.b16 %v994, %v978
        %v1203 = vpack.c.b16 %v995, %v979
        %v1204 = vpack.c.b16 %v996, %v980
        %v1205 = vpack.c.b16 %v1013, %v997
        %v1206 = vpack.c.b16 %v1014, %v998
        %v1207 = vpack.c.b16 %v1015, %v999
        %v1208 = vpack.c.b16 %v1016, %v1000
        %v1209 = vpack.c.b16 %v1017, %v1001
        %v1210 = vpack.c.b16 %v1018, %v1002
        %v1211 = vpack.c.b16 %v1019, %v1003
        %v1212 = vpack.c.b16 %v1020, %v1004
        %v1213 = vpack.c.b16 %v1021, %v1005
        %v1214 = vpack.c.b16 %v1022, %v1006
        %v1215 = vpack.c.b16 %v1023, %v1007
        %v1216 = vpack.c.b16 %v1024, %v1008
        %v1217 = vpack.c.b16 %v1025, %v1009
        %v1218 = vpack.c.b16 %v1026, %v1010
        %v1219 = vpack.c.b16 %v1027, %v1011
        %v1220 = vpack.c.b16 %v1028, %v1012
        %v1221 = vpack.c.b16 %v1045, %v1029
        %v1222 = vpack.c.b16 %v1046, %v1030
        %v1223 = vpack.c.b16 %v1047, %v1031
        %v1224 = vpack.c.b16 %v1048, %v1032
        %v1225 = vpack.c.b16 %v1049, %v1033
        %v1226 = vpack.c.b16 %v1050, %v1034
        %v1227 = vpack.c.b16 %v1051, %v1035
        %v1228 = vpack.c.b16 %v1052, %v1036
        %v1229 = vpack.c.b16 %v1053, %v1037
        %v1230 = vpack.c.b16 %v1054, %v1038
        %v1231 = vpack.c.b16 %v1055, %v1039
        %v1232 = vpack.c.b16 %v1056, %v1040
        %v1233 = vpack.c.b16 %v1057, %v1041
        %v1234 = vpack.c.b16 %v1058, %v1042
        %v1235 = vpack.c.b16 %v1059, %v1043
        %v1236 = vpack.c.b16 %v1060, %v1044
        %v1237 = vpack.c.b16 %v1077, %v1061
        %v1238 = vpack.c.b16 %v1078, %v1062
        %v1239 = vpack.c.b16 %v1079, %v1063
        %v1240 = vpack.c.b16 %v1080, %v1064
        %v1241 = vpack.c.b16 %v1081, %v1065
        %v1242 = vpack.c.b16 %v1082, %v1066
        %v1243 = vpack.c.b16 %v1083, %v1067
        %v1244 = vpack.c.b16 %v1084, %v1068
        %v1245 = vpack.c.b16 %v1085, %v1069
        %v1246 = vpack.c.b16 %v1086, %v1070
        %v1247 = vpack.c.b16 %v1087, %v1071
        %v1248 = vpack.c.b16 %v1088, %v1072
        %v1249 = vpack.c.b16 %v1089, %v1073
        %v1250 = vpack.c.b16 %v1090, %v1074
        %v1251 = vpack.c.b16 %v1091, %v1075
        %v1252 = vpack.c.b16 %v1092, %v1076
        %v1253 = vpack.c.b16 %v1093, %v1093
        %v1254 = vpack.c.b16 %v1094, %v1094
        %v1255 = vpack.c.b16 %v1095, %v1095
        %v1256 = vpack.c.b16 %v1096, %v1096
        %v1257 = vpack.c.b16 %v1097, %v1097
        %v1258 = vpack.c.b16 %v1098, %v1098
        %v1259 = vpack.c.b16 %v1099, %v1099
        %v1260 = vpack.c.b16 %v1100, %v1100
        %v1261 = vpack.c.b16 %v1101, %v1101
        %v1262 = vpack.c.b16 %v1102, %v1102
        %v1263 = vpack.c.b16 %v1103, %v1103
        %v1264 = vpack.c.b16 %v1104, %v1104
        %v1265 = vpack.c.b16 %v1105, %v1105
        %v1266 = vpack.c.b16 %v1106, %v1106
        %v1267 = vpack.c.b16 %v1107, %v1107
        %v1268 = vpack.c.b16 %v1108, %v1108
        %vm1413 = vcmask 179200
        %v1415 = vsel %vm1413, %v651, 0
        %vm1417 = vcmask 1042432
        %v1419 = vsel %vm1417, %v1253, 0
        %v1422 = vsel %vm1417, %v1254, 0
        %v1425 = vsel %vm1417, %v1255, 0
        %v1428 = vsel %vm1417, %v1256, 0
        %v1431 = vsel %vm1417, %v1257, 0
        %v1434 = vsel %vm1417, %v1258, 0
        %v1437 = vsel %vm1417, %v1259, 0
        %v1440 = vsel %vm1417, %v1260, 0
        %v1443 = vsel %vm1417, %v1261, 0
        %v1446 = vsel %vm1417, %v1262, 0
        %v1449 = vsel %vm1417, %v1263, 0
        %v1452 = vsel %vm1417, %v1264, 0
        %v1455 = vsel %vm1417, %v1265, 0
        %v1458 = vsel %vm1417, %v1266, 0
        %v1461 = vsel %vm1417, %v1267, 0
        %v1464 = vsel %vm1417, %v1268, 0
        %1466 = vmatprep.subr.bf16.mxu0 %v1110
        %1467 = vmatpush1.bf16.msra.mxu0 %v1109
        %1468 = vmatprep.subr.bf16.mxu0 %v1126
        %1469 = vmatpush1.bf16.msra.mxu0 %v1125
        %1470 = vmatprep.subr.bf16.mxu0 %v1142
        %1471 = vmatpush1.bf16.msra.mxu0 %v1141
        %1472 = vmatprep.subr.bf16.mxu0 %v1158
        %1473 = vmatpush1.bf16.msra.mxu0 %v1157
        %1474 = vmatprep.subr.bf16.mxu0 %v1174
        %1475 = vmatpush1.bf16.msra.mxu0 %v1173
        %1476 = vmatprep.subr.bf16.mxu0 %v1190
        %1477 = vmatpush1.bf16.msra.mxu0 %v1189
        %1478 = vmatprep.subr.bf16.mxu0 %v1206
        %1479 = vmatpush1.bf16.msra.mxu0 %v1205
        %1480 = vmatprep.subr.bf16.mxu0 %v1222
        %1481 = vmatpush1.bf16.msra.mxu0 %v1221
        %1482 = vmatprep.subr.bf16.mxu0 %v1238
        %1483 = vmatpush1.bf16.msra.mxu0 %v1237
        %1484 = vmatprep.subr.bf16.mxu0 %v1422
        %1485 = vmatpush1.bf16.msra.mxu0 %v1419
        %1486 = vmatprep.subr.bf16.mxu0 0
        %1487 = vmatpush1.bf16.msra.mxu0 0
        %1488 = vmatprep.subr.bf16.mxu0 0
        %1489 = vmatpush1.bf16.msra.mxu0 0
        %1490 = vmatprep.subr.bf16.mxu0 0
        %1491 = vmatpush1.bf16.msra.mxu0 0
        %1492 = vmatprep.subr.bf16.mxu0 0
        %1493 = vmatpush1.bf16.msra.mxu0 0
        %1494 = vmatprep.subr.bf16.mxu0 0
        %1495 = vmatpush1.bf16.msra.mxu0 0
        %1496 = vmatprep.subr.bf16.mxu0 0
        %1497 = vmatpush1.bf16.msra.mxu0 0
        %1498 = vmatprep.mubr.bf16.mxu0 %v1415
        %1499 = vmatmul.mubr.bf16.gmra.mrb[0].mxu0 %v650
        %v1500 = vpop.f32.mrb[0].mxu0
        %v1501 = vadd.f32 0.0, %v1500
        %v1502 = vpop.f32.mrb[0].mxu0
        %v1503 = vadd.f32 0.0, %v1502
        %v1504 = vpop.f32.mrb[0].mxu0
        %v1505 = vadd.f32 0.0, %v1504
        %v1506 = vpop.f32.mrb[0].mxu0
        %v1507 = vadd.f32 0.0, %v1506
        %1508 = vdwg.mxu0
        %1509 = vmatprep.subr.bf16.mxu0 %v1112
        %1510 = vmatpush1.bf16.msra.mxu0 %v1111
        %1511 = vmatprep.subr.bf16.mxu0 %v1128
        %1512 = vmatpush1.bf16.msra.mxu0 %v1127
        %1513 = vmatprep.subr.bf16.mxu0 %v1144
        %1514 = vmatpush1.bf16.msra.mxu0 %v1143
        %1515 = vmatprep.subr.bf16.mxu0 %v1160
        %1516 = vmatpush1.bf16.msra.mxu0 %v1159
        %1517 = vmatprep.subr.bf16.mxu0 %v1176
        %1518 = vmatpush1.bf16.msra.mxu0 %v1175
        %1519 = vmatprep.subr.bf16.mxu0 %v1192
        %1520 = vmatpush1.bf16.msra.mxu0 %v1191
        %1521 = vmatprep.subr.bf16.mxu0 %v1208
        %1522 = vmatpush1.bf16.msra.mxu0 %v1207
        %1523 = vmatprep.subr.bf16.mxu0 %v1224
        %1524 = vmatpush1.bf16.msra.mxu0 %v1223
        %1525 = vmatprep.subr.bf16.mxu0 %v1240
        %1526 = vmatpush1.bf16.msra.mxu0 %v1239
        %1527 = vmatprep.subr.bf16.mxu0 %v1428
        %1528 = vmatpush1.bf16.msra.mxu0 %v1425
        %1529 = vmatprep.subr.bf16.mxu0 0
        %1530 = vmatpush1.bf16.msra.mxu0 0
        %1531 = vmatprep.subr.bf16.mxu0 0
        %1532 = vmatpush1.bf16.msra.mxu0 0
        %1533 = vmatprep.subr.bf16.mxu0 0
        %1534 = vmatpush1.bf16.msra.mxu0 0
        %1535 = vmatprep.subr.bf16.mxu0 0
        %1536 = vmatpush1.bf16.msra.mxu0 0
        %1537 = vmatprep.subr.bf16.mxu0 0
        %1538 = vmatpush1.bf16.msra.mxu0 0
        %1539 = vmatprep.subr.bf16.mxu0 0
        %1540 = vmatpush1.bf16.msra.mxu0 0
        %1541 = vmatprep.mubr.bf16.mxu0 %v1415
        %1542 = vmatmul.mubr.bf16.gmra.mrb[0].mxu0 %v650
        %v1543 = vpop.f32.mrb[0].mxu0
        %v1544 = vadd.f32 0.0, %v1543
        %v1545 = vpop.f32.mrb[0].mxu0
        %v1546 = vadd.f32 0.0, %v1545
        %v1547 = vpop.f32.mrb[0].mxu0
        %v1548 = vadd.f32 0.0, %v1547
        %v1549 = vpop.f32.mrb[0].mxu0
        %v1550 = vadd.f32 0.0, %v1549
        %1551 = vdwg.mxu0
        %1552 = vmatprep.subr.bf16.mxu0 %v1114
        %1553 = vmatpush1.bf16.msra.mxu0 %v1113
        %1554 = vmatprep.subr.bf16.mxu0 %v1130
        %1555 = vmatpush1.bf16.msra.mxu0 %v1129
        %1556 = vmatprep.subr.bf16.mxu0 %v1146
        %1557 = vmatpush1.bf16.msra.mxu0 %v1145
        %1558 = vmatprep.subr.bf16.mxu0 %v1162
        %1559 = vmatpush1.bf16.msra.mxu0 %v1161
        %1560 = vmatprep.subr.bf16.mxu0 %v1178
        %1561 = vmatpush1.bf16.msra.mxu0 %v1177
        %1562 = vmatprep.subr.bf16.mxu0 %v1194
        %1563 = vmatpush1.bf16.msra.mxu0 %v1193
        %1564 = vmatprep.subr.bf16.mxu0 %v1210
        %1565 = vmatpush1.bf16.msra.mxu0 %v1209
        %1566 = vmatprep.subr.bf16.mxu0 %v1226
        %1567 = vmatpush1.bf16.msra.mxu0 %v1225
        %1568 = vmatprep.subr.bf16.mxu0 %v1242
        %1569 = vmatpush1.bf16.msra.mxu0 %v1241
        %1570 = vmatprep.subr.bf16.mxu0 %v1434
        %1571 = vmatpush1.bf16.msra.mxu0 %v1431
        %1572 = vmatprep.subr.bf16.mxu0 0
        %1573 = vmatpush1.bf16.msra.mxu0 0
        %1574 = vmatprep.subr.bf16.mxu0 0
        %1575 = vmatpush1.bf16.msra.mxu0 0
        %1576 = vmatprep.subr.bf16.mxu0 0
        %1577 = vmatpush1.bf16.msra.mxu0 0
        %1578 = vmatprep.subr.bf16.mxu0 0
        %1579 = vmatpush1.bf16.msra.mxu0 0
        %1580 = vmatprep.subr.bf16.mxu0 0
        %1581 = vmatpush1.bf16.msra.mxu0 0
        %1582 = vmatprep.subr.bf16.mxu0 0
        %1583 = vmatpush1.bf16.msra.mxu0 0
        %1584 = vmatprep.mubr.bf16.mxu0 %v1415
        %1585 = vmatmul.mubr.bf16.gmra.mrb[0].mxu0 %v650
        %v1586 = vpop.f32.mrb[0].mxu0
        %v1587 = vadd.f32 0.0, %v1586
        %v1588 = vpop.f32.mrb[0].mxu0
        %v1589 = vadd.f32 0.0, %v1588
        %v1590 = vpop.f32.mrb[0].mxu0
        %v1591 = vadd.f32 0.0, %v1590
        %v1592 = vpop.f32.mrb[0].mxu0
        %v1593 = vadd.f32 0.0, %v1592
        %1594 = vdwg.mxu0
        %1595 = vmatprep.subr.bf16.mxu0 %v1116
        %1596 = vmatpush1.bf16.msra.mxu0 %v1115
        %1597 = vmatprep.subr.bf16.mxu0 %v1132
        %1598 = vmatpush1.bf16.msra.mxu0 %v1131
        %1599 = vmatprep.subr.bf16.mxu0 %v1148
        %1600 = vmatpush1.bf16.msra.mxu0 %v1147
        %1601 = vmatprep.subr.bf16.mxu0 %v1164
        %1602 = vmatpush1.bf16.msra.mxu0 %v1163
        %1603 = vmatprep.subr.bf16.mxu0 %v1180
        %1604 = vmatpush1.bf16.msra.mxu0 %v1179
        %1605 = vmatprep.subr.bf16.mxu0 %v1196
        %1606 = vmatpush1.bf16.msra.mxu0 %v1195
        %1607 = vmatprep.subr.bf16.mxu0 %v1212
        %1608 = vmatpush1.bf16.msra.mxu0 %v1211
        %1609 = vmatprep.subr.bf16.mxu0 %v1228
        %1610 = vmatpush1.bf16.msra.mxu0 %v1227
        %1611 = vmatprep.subr.bf16.mxu0 %v1244
        %1612 = vmatpush1.bf16.msra.mxu0 %v1243
        %1613 = vmatprep.subr.bf16.mxu0 %v1440
        %1614 = vmatpush1.bf16.msra.mxu0 %v1437
        %1615 = vmatprep.subr.bf16.mxu0 0
        %1616 = vmatpush1.bf16.msra.mxu0 0
        %1617 = vmatprep.subr.bf16.mxu0 0
        %1618 = vmatpush1.bf16.msra.mxu0 0
        %1619 = vmatprep.subr.bf16.mxu0 0
        %1620 = vmatpush1.bf16.msra.mxu0 0
        %1621 = vmatprep.subr.bf16.mxu0 0
        %1622 = vmatpush1.bf16.msra.mxu0 0
        %1623 = vmatprep.subr.bf16.mxu0 0
        %1624 = vmatpush1.bf16.msra.mxu0 0
        %1625 = vmatprep.subr.bf16.mxu0 0
        %1626 = vmatpush1.bf16.msra.mxu0 0
        %1627 = vmatprep.mubr.bf16.mxu0 %v1415
        %1628 = vmatmul.mubr.bf16.gmra.mrb[0].mxu0 %v650
        %v1629 = vpop.f32.mrb[0].mxu0
        %v1630 = vadd.f32 0.0, %v1629
        %v1631 = vpop.f32.mrb[0].mxu0
        %v1632 = vadd.f32 0.0, %v1631
        %v1633 = vpop.f32.mrb[0].mxu0
        %v1634 = vadd.f32 0.0, %v1633
        %v1635 = vpop.f32.mrb[0].mxu0
        %v1636 = vadd.f32 0.0, %v1635
        %1637 = vdwg.mxu0
        %1638 = vmatprep.subr.bf16.mxu0 %v1118
        %1639 = vmatpush1.bf16.msra.mxu0 %v1117
        %1640 = vmatprep.subr.bf16.mxu0 %v1134
        %1641 = vmatpush1.bf16.msra.mxu0 %v1133
        %1642 = vmatprep.subr.bf16.mxu0 %v1150
        %1643 = vmatpush1.bf16.msra.mxu0 %v1149
        %1644 = vmatprep.subr.bf16.mxu0 %v1166
        %1645 = vmatpush1.bf16.msra.mxu0 %v1165
        %1646 = vmatprep.subr.bf16.mxu0 %v1182
        %1647 = vmatpush1.bf16.msra.mxu0 %v1181
        %1648 = vmatprep.subr.bf16.mxu0 %v1198
        %1649 = vmatpush1.bf16.msra.mxu0 %v1197
        %1650 = vmatprep.subr.bf16.mxu0 %v1214
        %1651 = vmatpush1.bf16.msra.mxu0 %v1213
        %1652 = vmatprep.subr.bf16.mxu0 %v1230
        %1653 = vmatpush1.bf16.msra.mxu0 %v1229
        %1654 = vmatprep.subr.bf16.mxu0 %v1246
        %1655 = vmatpush1.bf16.msra.mxu0 %v1245
        %1656 = vmatprep.subr.bf16.mxu0 %v1446
        %1657 = vmatpush1.bf16.msra.mxu0 %v1443
        %1658 = vmatprep.subr.bf16.mxu0 0
        %1659 = vmatpush1.bf16.msra.mxu0 0
        %1660 = vmatprep.subr.bf16.mxu0 0
        %1661 = vmatpush1.bf16.msra.mxu0 0
        %1662 = vmatprep.subr.bf16.mxu0 0
        %1663 = vmatpush1.bf16.msra.mxu0 0
        %1664 = vmatprep.subr.bf16.mxu0 0
        %1665 = vmatpush1.bf16.msra.mxu0 0
        %1666 = vmatprep.subr.bf16.mxu0 0
        %1667 = vmatpush1.bf16.msra.mxu0 0
        %1668 = vmatprep.subr.bf16.mxu0 0
        %1669 = vmatpush1.bf16.msra.mxu0 0
        %1670 = vmatprep.mubr.bf16.mxu0 %v1415
        %1671 = vmatmul.mubr.bf16.gmra.mrb[0].mxu0 %v650
        %v1672 = vpop.f32.mrb[0].mxu0
        %v1673 = vadd.f32 0.0, %v1672
        %v1674 = vpop.f32.mrb[0].mxu0
        %v1675 = vadd.f32 0.0, %v1674
        %v1676 = vpop.f32.mrb[0].mxu0
        %v1677 = vadd.f32 0.0, %v1676
        %v1678 = vpop.f32.mrb[0].mxu0
        %v1679 = vadd.f32 0.0, %v1678
        %1680 = vdwg.mxu0
        %1681 = vmatprep.subr.bf16.mxu0 %v1120
        %1682 = vmatpush1.bf16.msra.mxu0 %v1119
        %1683 = vmatprep.subr.bf16.mxu0 %v1136
        %1684 = vmatpush1.bf16.msra.mxu0 %v1135
        %1685 = vmatprep.subr.bf16.mxu0 %v1152
        %1686 = vmatpush1.bf16.msra.mxu0 %v1151
        %1687 = vmatprep.subr.bf16.mxu0 %v1168
        %1688 = vmatpush1.bf16.msra.mxu0 %v1167
        %1689 = vmatprep.subr.bf16.mxu0 %v1184
        %1690 = vmatpush1.bf16.msra.mxu0 %v1183
        %1691 = vmatprep.subr.bf16.mxu0 %v1200
        %1692 = vmatpush1.bf16.msra.mxu0 %v1199
        %1693 = vmatprep.subr.bf16.mxu0 %v1216
        %1694 = vmatpush1.bf16.msra.mxu0 %v1215
        %1695 = vmatprep.subr.bf16.mxu0 %v1232
        %1696 = vmatpush1.bf16.msra.mxu0 %v1231
        %1697 = vmatprep.subr.bf16.mxu0 %v1248
        %1698 = vmatpush1.bf16.msra.mxu0 %v1247
        %1699 = vmatprep.subr.bf16.mxu0 %v1452
        %1700 = vmatpush1.bf16.msra.mxu0 %v1449
        %1701 = vmatprep.subr.bf16.mxu0 0
        %1702 = vmatpush1.bf16.msra.mxu0 0
        %1703 = vmatprep.subr.bf16.mxu0 0
        %1704 = vmatpush1.bf16.msra.mxu0 0
        %1705 = vmatprep.subr.bf16.mxu0 0
        %1706 = vmatpush1.bf16.msra.mxu0 0
        %1707 = vmatprep.subr.bf16.mxu0 0
        %1708 = vmatpush1.bf16.msra.mxu0 0
        %1709 = vmatprep.subr.bf16.mxu0 0
        %1710 = vmatpush1.bf16.msra.mxu0 0
        %1711 = vmatprep.subr.bf16.mxu0 0
        %1712 = vmatpush1.bf16.msra.mxu0 0
        %1713 = vmatprep.mubr.bf16.mxu0 %v1415
        %1714 = vmatmul.mubr.bf16.gmra.mrb[0].mxu0 %v650
        %v1715 = vpop.f32.mrb[0].mxu0
        %v1716 = vadd.f32 0.0, %v1715
        %v1717 = vpop.f32.mrb[0].mxu0
        %v1718 = vadd.f32 0.0, %v1717
        %v1719 = vpop.f32.mrb[0].mxu0
        %v1720 = vadd.f32 0.0, %v1719
        %v1721 = vpop.f32.mrb[0].mxu0
        %v1722 = vadd.f32 0.0, %v1721
        %1723 = vdwg.mxu0
        %1724 = vmatprep.subr.bf16.mxu0 %v1122
        %1725 = vmatpush1.bf16.msra.mxu0 %v1121
        %1726 = vmatprep.subr.bf16.mxu0 %v1138
        %1727 = vmatpush1.bf16.msra.mxu0 %v1137
        %1728 = vmatprep.subr.bf16.mxu0 %v1154
        %1729 = vmatpush1.bf16.msra.mxu0 %v1153
        %1730 = vmatprep.subr.bf16.mxu0 %v1170
        %1731 = vmatpush1.bf16.msra.mxu0 %v1169
        %1732 = vmatprep.subr.bf16.mxu0 %v1186
        %1733 = vmatpush1.bf16.msra.mxu0 %v1185
        %1734 = vmatprep.subr.bf16.mxu0 %v1202
        %1735 = vmatpush1.bf16.msra.mxu0 %v1201
        %1736 = vmatprep.subr.bf16.mxu0 %v1218
        %1737 = vmatpush1.bf16.msra.mxu0 %v1217
        %1738 = vmatprep.subr.bf16.mxu0 %v1234
        %1739 = vmatpush1.bf16.msra.mxu0 %v1233
        %1740 = vmatprep.subr.bf16.mxu0 %v1250
        %1741 = vmatpush1.bf16.msra.mxu0 %v1249
        %1742 = vmatprep.subr.bf16.mxu0 %v1458
        %1743 = vmatpush1.bf16.msra.mxu0 %v1455
        %1744 = vmatprep.subr.bf16.mxu0 0
        %1745 = vmatpush1.bf16.msra.mxu0 0
        %1746 = vmatprep.subr.bf16.mxu0 0
        %1747 = vmatpush1.bf16.msra.mxu0 0
        %1748 = vmatprep.subr.bf16.mxu0 0
        %1749 = vmatpush1.bf16.msra.mxu0 0
        %1750 = vmatprep.subr.bf16.mxu0 0
        %1751 = vmatpush1.bf16.msra.mxu0 0
        %1752 = vmatprep.subr.bf16.mxu0 0
        %1753 = vmatpush1.bf16.msra.mxu0 0
        %1754 = vmatprep.subr.bf16.mxu0 0
        %1755 = vmatpush1.bf16.msra.mxu0 0
        %1756 = vmatprep.mubr.bf16.mxu0 %v1415
        %1757 = vmatmul.mubr.bf16.gmra.mrb[0].mxu0 %v650
        %v1758 = vpop.f32.mrb[0].mxu0
        %v1759 = vadd.f32 0.0, %v1758
        %v1760 = vpop.f32.mrb[0].mxu0
        %v1761 = vadd.f32 0.0, %v1760
        %v1762 = vpop.f32.mrb[0].mxu0
        %v1763 = vadd.f32 0.0, %v1762
        %v1764 = vpop.f32.mrb[0].mxu0
        %v1765 = vadd.f32 0.0, %v1764
        %1766 = vdwg.mxu0
        %1767 = vmatprep.subr.bf16.mxu0 %v1124
        %1768 = vmatpush1.bf16.msra.mxu0 %v1123
        %1769 = vmatprep.subr.bf16.mxu0 %v1140
        %1770 = vmatpush1.bf16.msra.mxu0 %v1139
        %1771 = vmatprep.subr.bf16.mxu0 %v1156
        %1772 = vmatpush1.bf16.msra.mxu0 %v1155
        %1773 = vmatprep.subr.bf16.mxu0 %v1172
        %1774 = vmatpush1.bf16.msra.mxu0 %v1171
        %1775 = vmatprep.subr.bf16.mxu0 %v1188
        %1776 = vmatpush1.bf16.msra.mxu0 %v1187
        %1777 = vmatprep.subr.bf16.mxu0 %v1204
        %1778 = vmatpush1.bf16.msra.mxu0 %v1203
        %1779 = vmatprep.subr.bf16.mxu0 %v1220
        %1780 = vmatpush1.bf16.msra.mxu0 %v1219
        %1781 = vmatprep.subr.bf16.mxu0 %v1236
        %1782 = vmatpush1.bf16.msra.mxu0 %v1235
        %1783 = vmatprep.subr.bf16.mxu0 %v1252
        %1784 = vmatpush1.bf16.msra.mxu0 %v1251
        %1785 = vmatprep.subr.bf16.mxu0 %v1464
        %1786 = vmatpush1.bf16.msra.mxu0 %v1461
        %1787 = vmatprep.subr.bf16.mxu0 0
        %1788 = vmatpush1.bf16.msra.mxu0 0
        %1789 = vmatprep.subr.bf16.mxu0 0
        %1790 = vmatpush1.bf16.msra.mxu0 0
        %1791 = vmatprep.subr.bf16.mxu0 0
        %1792 = vmatpush1.bf16.msra.mxu0 0
        %1793 = vmatprep.subr.bf16.mxu0 0
        %1794 = vmatpush1.bf16.msra.mxu0 0
        %1795 = vmatprep.subr.bf16.mxu0 0
        %1796 = vmatpush1.bf16.msra.mxu0 0
        %1797 = vmatprep.subr.bf16.mxu0 0
        %1798 = vmatpush1.bf16.msra.mxu0 0
        %1799 = vmatprep.mubr.bf16.mxu0 %v1415
        %1800 = vmatmul.mubr.bf16.gmra.mrb[0].mxu0 %v650
        %v1801 = vpop.f32.mrb[0].mxu0
        %v1802 = vadd.f32 0.0, %v1801
        %v1803 = vpop.f32.mrb[0].mxu0
        %v1804 = vadd.f32 0.0, %v1803
        %v1805 = vpop.f32.mrb[0].mxu0
        %v1806 = vadd.f32 0.0, %v1805
        %v1807 = vpop.f32.mrb[0].mxu0
        %v1808 = vadd.f32 0.0, %v1807
        %1809 = vdwg.mxu0
        %v1810 = vmax.f32 %v1501, %v1587
        %v1811 = vmax.f32 %v1503, %v1589
        %v1812 = vmax.f32 %v1544, %v1630
        %v1813 = vmax.f32 %v1546, %v1632
        %v1814 = vmax.f32 %v1505, %v1591
        %v1815 = vmax.f32 %v1507, %v1593
        %v1816 = vmax.f32 %v1548, %v1634
        %v1817 = vmax.f32 %v1550, %v1636
        %v1818 = vmax.f32 %v1673, %v1759
        %v1819 = vmax.f32 %v1675, %v1761
        %v1820 = vmax.f32 %v1716, %v1802
        %v1821 = vmax.f32 %v1718, %v1804
        %v1822 = vmax.f32 %v1677, %v1763
        %v1823 = vmax.f32 %v1679, %v1765
        %v1824 = vmax.f32 %v1720, %v1806
        %v1825 = vmax.f32 %v1722, %v1808
        %v1826 = vmax.f32 %v1810, %v1818
        %v1827 = vmax.f32 %v1811, %v1819
        %v1828 = vmax.f32 %v1812, %v1820
        %v1829 = vmax.f32 %v1813, %v1821
        %v1830 = vmax.f32 %v1814, %v1822
        %v1831 = vmax.f32 %v1815, %v1823
        %v1832 = vmax.f32 %v1816, %v1824
        %v1833 = vmax.f32 %v1817, %v1825
        %v1834 = vld [vmem:[%s2] sm:$0xff]
        %v1835 = vld [vmem:[%s2 + $0x8] sm:$0xff]
        %1837 = vset.pattern.permute.xlu0 0
        %1838 = vperm.xlu0 %1837, %v1834
        %v1839 = vpop.permute.xlu0 %1838
        %1842 = vset.pattern.permute.xlu0 0
        %1843 = vperm.xlu0 %1842, %v1835
        %v1844 = vpop.permute.xlu0 %1843
        %v1846 = vadd.f32 %v1826, %v1839
        %v1847 = vadd.f32 %v1827, %v1839
        %v1848 = vadd.f32 %v1828, %v1839
        %v1849 = vadd.f32 %v1829, %v1839
        %v1850 = vadd.f32 %v1830, %v1844
        %v1851 = vadd.f32 %v1831, %v1844
        %v1852 = vadd.f32 %v1832, %v1844
        %v1853 = vadd.f32 %v1833, %v1844
        %v1854 = vmax.f32 %v1846, 0.0
        %v1855 = vmax.f32 %v1847, 0.0
        %v1856 = vmax.f32 %v1848, 0.0
        %v1857 = vmax.f32 %v1849, 0.0
        %v1858 = vmax.f32 %v1850, 0.0
        %v1859 = vmax.f32 %v1851, 0.0
        %v1860 = vmax.f32 %v1852, 0.0
        %v1861 = vmax.f32 %v1853, 0.0
        %1862 = vst [vmem:[%s486] sm:$0xff] %v1854
        %1863 = vst [vmem:[%s486 + $0x8] sm:$0xff] %v1855
        %1864 = vst [vmem:[%s486 + $0x10] sm:$0xff] %v1856
        %1865 = vst [vmem:[%s486 + $0x18] sm:$0xff] %v1857
        %1866 = vst [vmem:[%s486 + $0x20] sm:$0xff] %v1858
        %1867 = vst [vmem:[%s486 + $0x28] sm:$0xff] %v1859
        %1868 = vst [vmem:[%s486 + $0x30] sm:$0xff] %v1860
        %1869 = vst [vmem:[%s486 + $0x38] sm:$0xff] %v1861
        %s1870 = sand.u32 %s90, 1
        %s1871 = sand.u32 %s90, 1
        %s1872 = smul.addr %s1871, 64
        %s1873 = scalar_lea.vmem [#allocation3], %s1872
        // Predicated region
        $region56: #{net_forward.4} parent=50 // pred_check
          %p1874 = pneg %p100
        $region57: #{net_forward.4} parent=50 // pred_check_branch
          %1876 = sbr.rel (%p1874) target = $region59
        $region58: #{net_forward.4} parent=50 // pred_region
          %s1877 = smul.u32 4, %s14
          %s1878 = smul.addr %s1877, 8
          %s1879 = scalar_lea.vmem %s3, %s1878
          // Predicated region
          $region60: #{net_forward.4} parent=58 // pred_check
            _
          $region61: #{net_forward.4} parent=58 // pred_check_branch
            %1881 = sbr.rel (0) target = $region63
          $region62: #{net_forward.4} parent=58 // pred_region
            // Predicated region
            $region64: #{net_forward.4} parent=62 // pred_check
              _
            $region65: #{net_forward.4} parent=62 // pred_check_branch
              %1883 = sbr.rel (0) target = $region67
            $region66: #{net_forward.4} parent=62 // pred_region
              loop: start=0, step=1, limit=1
              $region68: #{net_forward.4} parent=66 // loop_pre_header
                _
              $region69: #{net_forward.4} parent=66 // loop_header
                %s1885 = sphi 0, %s1889
                %p1886 = scmp.ge.s32.totalorder %s1885, 1
                %s1890 = sphi %s1873, %s1873
                %s1891 = sphi %s1879, %s1879
              $region70: #{net_forward.4} parent=66 // loop_header_branch
                %1888 = sbr.rel (%p1886) target = $region74
              $region71: #{net_forward.4} parent=66 // loop_body
                %v1892 = vld [vmem:[%s1890] sm:$0xff]
                %1893 = vst [vmem:[%s1891] sm:$0xff] %v1892
                %v1894 = vld [vmem:[%s1890 + $0x8] sm:$0xff]
                %1895 = vst [vmem:[%s1891 + $0x8] sm:$0xff] %v1894
                %v1896 = vld [vmem:[%s1890 + $0x10] sm:$0xff]
                %1897 = vst [vmem:[%s1891 + $0x10] sm:$0xff] %v1896
                %v1898 = vld [vmem:[%s1890 + $0x18] sm:$0xff]
                %1899 = vst [vmem:[%s1891 + $0x18] sm:$0xff] %v1898
                %v1900 = vld [vmem:[%s1890 + $0x20] sm:$0xff]
                %1901 = vst [vmem:[%s1891 + $0x40] sm:$0xff] %v1900
                %v1902 = vld [vmem:[%s1890 + $0x28] sm:$0xff]
                %1903 = vst [vmem:[%s1891 + $0x48] sm:$0xff] %v1902
                %v1904 = vld [vmem:[%s1890 + $0x30] sm:$0xff]
                %1905 = vst [vmem:[%s1891 + $0x50] sm:$0xff] %v1904
                %v1906 = vld [vmem:[%s1890 + $0x38] sm:$0xff]
                %1907 = vst [vmem:[%s1891 + $0x58] sm:$0xff] %v1906
              $region72: #{net_forward.4} parent=66 // loop_footer
                %s1889 = sadd.s32 1, %s1885
              $region73: #{net_forward.4} parent=66 // loop_footer_branch
                %1884 = sbr.rel target = $region69
              $region74: #{net_forward.4} parent=66 // loop_exit
                _
            $region67: #{net_forward.4} parent=62 // pred_fallthru
              _
            // Predicated region
            $region75: #{net_forward.4} parent=62 // pred_check
              _
            $region76: #{net_forward.4} parent=62 // pred_check_branch
              %1909 = sbr.rel target = $region78
            $region77: #{net_forward.4} parent=62 // pred_region
              _
            $region78: #{net_forward.4} parent=62 // pred_fallthru
              _
          $region63: #{net_forward.4} parent=58 // pred_fallthru
            _
          %1910 = vnop
        $region59: #{net_forward.4} parent=50 // pred_fallthru
          _
      $region51: #{net_forward.4} parent=5 // pred_fallthru
        _
      %p1911 = scmp.le.s32.totalorder 2, %s9
      // Predicated region
      $region79: #{net_forward.4} parent=5 // pred_check
        %p1912 = pneg %p1911
      $region80: #{net_forward.4} parent=5 // pred_check_branch
        %1914 = sbr.rel (%p1912) target = $region82
      $region81: #{net_forward.4} parent=5 // pred_region
        %s1915 = ssub.s32 %s9, 2
        // Predicated region
        $region83: #{net_forward.4} parent=81 // pred_check
          %p1916 = pneg %p106
        $region84: #{net_forward.4} parent=81 // pred_check_branch
          %1918 = sbr.rel (%p1916) target = $region86
        $region85: #{net_forward.4} parent=81 // pred_region
          %s1919 = sand.u32 %s91, 1
          %s1920 = sand.u32 %s91, 1
          %s1921 = smul.addr %s1920, 64
          %s1922 = scalar_lea.vmem [#allocation3], %s1921
        $region86: #{net_forward.4} parent=81 // pred_fallthru
          _
      $region82: #{net_forward.4} parent=5 // pred_fallthru
        _
    $region6: #{net_forward.4} parent=1 // loop_footer
      %s13 = sadd.s32 1, %s9
    $region7: #{net_forward.4} parent=1 // loop_footer_branch
      %8 = sbr.rel target = $region3
    $region8: #{net_forward.4} parent=1 // loop_exit
      _

// kernel: net_forward.5
$region0: #{net_forward.5}
  #allocation0 [shape = 'u32[]', space=smem, size = 0x4, offset = 0x4, fixed_abs, tag = 'smem constant byte address 0x4 - core index']
  #allocation1 [shape = 'u32[144,128]{1,0:T(1,128)}', space=vmem, size = 0x12000, scoped, tag = 'internal scratch']
  %s0 = inlined_call_operand.vmem [shape: bf16[2,7744], index: 0, kind: input, shape index: {}]
  %s1 = inlined_call_operand.vmem [shape: bf16[7744,120], index: 1, kind: input, shape index: {}]
  %s2 = inlined_call_operand.vmem [shape: f32[1,120], index: 2, kind: input, shape index: {}]
  %s3 = inlined_call_operand.vmem [shape: bf16[120,84], index: 3, kind: input, shape index: {}]
  %s4 = inlined_call_operand.vmem [shape: f32[1,84], index: 4, kind: input, shape index: {}]
  %s5 = inlined_call_operand.vmem [shape: bf16[84,10], index: 5, kind: input, shape index: {}]
  %s6 = inlined_call_operand.vmem [shape: f32[1,10], index: 6, kind: input, shape index: {}]
  %s7 = inlined_call_operand.hbm [shape: f32[2,10], index: 7, kind: output, shape index: {}]
  %s8 = sld [smem:[#allocation0]]
  $region38: #{net_forward.5} parent=0
    _
  %s10 = ssub.s32 1, %s8
  %s11 = scalar_select 0, %s10, %s8
  $region1: #{net_forward.5} parent=0
    #allocation2 [shape = 'u8[1024]{0}', space=vmem, size = 0x400, scoped, tag = 'output window, operand 0, single buffered']
    #allocation3 [shape = 's32[1]{0}', space=sflag, size = 0x4, scoped, tag = 'scoped memory for net_forward.5']
    %12 = vsyncpa [#allocation3], 0
    // Predicated region
    $region2: #{net_forward.5} parent=1 // pred_check
      _
    $region3: #{net_forward.5} parent=1 // pred_check_branch
      %14 = sbr.rel (0) target = $region5
    $region4: #{net_forward.5} parent=1 // pred_region
      _
    $region5: #{net_forward.5} parent=1 // pred_fallthru
      _
    // Predicated region
    $region6: #{net_forward.5} parent=1 // pred_check
      _
    $region7: #{net_forward.5} parent=1 // pred_check_branch
      %16 = sbr.rel (0) target = $region9
    $region8: #{net_forward.5} parent=1 // pred_region
      _
    $region9: #{net_forward.5} parent=1 // pred_fallthru
      _
    // Predicated region
    $region10: #{net_forward.5} parent=1 // pred_check
      _
    $region11: #{net_forward.5} parent=1 // pred_check_branch
      %18 = sbr.rel (0) target = $region13
    $region12: #{net_forward.5} parent=1 // pred_region
      _
    $region13: #{net_forward.5} parent=1 // pred_fallthru
      _
    // Predicated region
    $region14: #{net_forward.5} parent=1 // pred_check
      _
    $region15: #{net_forward.5} parent=1 // pred_check_branch
      %20 = sbr.rel (0) target = $region17
    $region16: #{net_forward.5} parent=1 // pred_region
      _
    $region17: #{net_forward.5} parent=1 // pred_fallthru
      _
    // Predicated region
    $region18: #{net_forward.5} parent=1 // pred_check
      _
    $region19: #{net_forward.5} parent=1 // pred_check_branch
      %22 = sbr.rel (0) target = $region21
    $region20: #{net_forward.5} parent=1 // pred_region
      _
    $region21: #{net_forward.5} parent=1 // pred_fallthru
      _
    // Predicated region
    $region22: #{net_forward.5} parent=1 // pred_check
      _
    $region23: #{net_forward.5} parent=1 // pred_check_branch
      %24 = sbr.rel (0) target = $region25
    $region24: #{net_forward.5} parent=1 // pred_region
      _
    $region25: #{net_forward.5} parent=1 // pred_fallthru
      _
    // Predicated region
    $region26: #{net_forward.5} parent=1 // pred_check
      _
    $region27: #{net_forward.5} parent=1 // pred_check_branch
      %26 = sbr.rel (0) target = $region29
    $region28: #{net_forward.5} parent=1 // pred_region
      _
    $region29: #{net_forward.5} parent=1 // pred_fallthru
      _
    %v28 = vld [vmem:[%s0] sm:$0xff]
    %v29 = vld [vmem:[%s0 + $0x8] sm:$0xff]
    %v30 = vld [vmem:[%s0 + $0x10] sm:$0xff]
    %v31 = vld [vmem:[%s0 + $0x18] sm:$0xff]
    %v32 = vld [vmem:[%s0 + $0x20] sm:$0xff]
    %v33 = vld [vmem:[%s0 + $0x28] sm:$0xff]
    %v34 = vld [vmem:[%s0 + $0x30] sm:$0xff]
    %v35 = vld [vmem:[%s0 + $0x38] sm:$0x1f]
    %v36 = vld [vmem:[%s1] sm:$0xf]
    %v37 = vld [vmem:[%s1 + $0x4] sm:$0xf]
    %v38 = vld [vmem:[%s1 + $0x8] sm:$0xf]
    %v39 = vld [vmem:[%s1 + $0xc] sm:$0xf]
    %v40 = vld [vmem:[%s1 + $0x10] sm:$0xf]
    %v41 = vld [vmem:[%s1 + $0x14] sm:$0xf]
    %v42 = vld [vmem:[%s1 + $0x18] sm:$0xf]
    %v43 = vld [vmem:[%s1 + $0x1c] sm:$0xf]
    %v44 = vld [vmem:[%s1 + $0x20] sm:$0xf]
    %v45 = vld [vmem:[%s1 + $0x24] sm:$0xf]
    %v46 = vld [vmem:[%s1 + $0x28] sm:$0xf]
    %v47 = vld [vmem:[%s1 + $0x2c] sm:$0xf]
    %v48 = vld [vmem:[%s1 + $0x30] sm:$0xf]
    %v49 = vld [vmem:[%s1 + $0x34] sm:$0xf]
    %v50 = vld [vmem:[%s1 + $0x38] sm:$0xf]
    %v51 = vld [vmem:[%s1 + $0x3c] sm:$0xf]
    %v52 = vld [vmem:[%s1 + $0x40] sm:$0xf]
    %v53 = vld [vmem:[%s1 + $0x44] sm:$0xf]
    %v54 = vld [vmem:[%s1 + $0x48] sm:$0xf]
    %v55 = vld [vmem:[%s1 + $0x4c] sm:$0xf]
    %v56 = vld [vmem:[%s1 + $0x50] sm:$0xf]
    %v57 = vld [vmem:[%s1 + $0x54] sm:$0xf]
    %v58 = vld [vmem:[%s1 + $0x58] sm:$0xf]
    %v59 = vld [vmem:[%s1 + $0x5c] sm:$0xf]
    %v60 = vld [vmem:[%s1 + $0x60] sm:$0xf]
    %v61 = vld [vmem:[%s1 + $0x64] sm:$0xf]
    %v62 = vld [vmem:[%s1 + $0x68] sm:$0xf]
    %v63 = vld [vmem:[%s1 + $0x6c] sm:$0xf]
    %v64 = vld [vmem:[%s1 + $0x70] sm:$0xf]
    %v65 = vld [vmem:[%s1 + $0x74] sm:$0xf]
    %v66 = vld [vmem:[%s1 + $0x78] sm:$0xf]
    %v67 = vld [vmem:[%s1 + $0x7c] sm:$0xf]
    %v68 = vld [vmem:[%s1 + $0x80] sm:$0xf]
    %v69 = vld [vmem:[%s1 + $0x84] sm:$0xf]
    %v70 = vld [vmem:[%s1 + $0x88] sm:$0xf]
    %v71 = vld [vmem:[%s1 + $0x8c] sm:$0xf]
    %v72 = vld [vmem:[%s1 + $0x90] sm:$0xf]
    %v73 = vld [vmem:[%s1 + $0x94] sm:$0xf]
    %v74 = vld [vmem:[%s1 + $0x98] sm:$0xf]
    %v75 = vld [vmem:[%s1 + $0x9c] sm:$0xf]
    %v76 = vld [vmem:[%s1 + $0xa0] sm:$0xf]
    %v77 = vld [vmem:[%s1 + $0xa4] sm:$0xf]
    %v78 = vld [vmem:[%s1 + $0xa8] sm:$0xf]
    %v79 = vld [vmem:[%s1 + $0xac] sm:$0xf]
    %v80 = vld [vmem:[%s1 + $0xb0] sm:$0xf]
    %v81 = vld [vmem:[%s1 + $0xb4] sm:$0xf]
    %v82 = vld [vmem:[%s1 + $0xb8] sm:$0xf]
    %v83 = vld [vmem:[%s1 + $0xbc] sm:$0xf]
    %v84 = vld [vmem:[%s1 + $0xc0] sm:$0xf]
    %v85 = vld [vmem:[%s1 + $0xc4] sm:$0xf]
    %v86 = vld [vmem:[%s1 + $0xc8] sm:$0xf]
    %v87 = vld [vmem:[%s1 + $0xcc] sm:$0xf]
    %v88 = vld [vmem:[%s1 + $0xd0] sm:$0xf]
    %v89 = vld [vmem:[%s1 + $0xd4] sm:$0xf]
    %v90 = vld [vmem:[%s1 + $0xd8] sm:$0xf]
    %v91 = vld [vmem:[%s1 + $0xdc] sm:$0xf]
    %v92 = vld [vmem:[%s1 + $0xe0] sm:$0xf]
    %v93 = vld [vmem:[%s1 + $0xe4] sm:$0xf]
    %v94 = vld [vmem:[%s1 + $0xe8] sm:$0xf]
    %v95 = vld [vmem:[%s1 + $0xec] sm:$0xf]
    %v96 = vld [vmem:[%s1 + $0xf0] sm:$0xf]
    %v97 = vld [vmem:[%s1 + $0xf4] sm:$0xf]
    %v98 = vld [vmem:[%s1 + $0xf8] sm:$0xf]
    %v99 = vld [vmem:[%s1 + $0xfc] sm:$0xf]
    %v100 = vld [vmem:[%s1 + $0x100] sm:$0xf]
    %v101 = vld [vmem:[%s1 + $0x104] sm:$0xf]
    %v102 = vld [vmem:[%s1 + $0x108] sm:$0xf]
    %v103 = vld [vmem:[%s1 + $0x10c] sm:$0xf]
    %v104 = vld [vmem:[%s1 + $0x110] sm:$0xf]
    %v105 = vld [vmem:[%s1 + $0x114] sm:$0xf]
    %v106 = vld [vmem:[%s1 + $0x118] sm:$0xf]
    %v107 = vld [vmem:[%s1 + $0x11c] sm:$0xf]
    %v108 = vld [vmem:[%s1 + $0x120] sm:$0xf]
    %v109 = vld [vmem:[%s1 + $0x124] sm:$0xf]
    %v110 = vld [vmem:[%s1 + $0x128] sm:$0xf]
    %v111 = vld [vmem:[%s1 + $0x12c] sm:$0xf]
    %v112 = vld [vmem:[%s1 + $0x130] sm:$0xf]
    %v113 = vld [vmem:[%s1 + $0x134] sm:$0xf]
    %v114 = vld [vmem:[%s1 + $0x138] sm:$0xf]
    %v115 = vld [vmem:[%s1 + $0x13c] sm:$0xf]
    %v116 = vld [vmem:[%s1 + $0x140] sm:$0xf]
    %v117 = vld [vmem:[%s1 + $0x144] sm:$0xf]
    %v118 = vld [vmem:[%s1 + $0x148] sm:$0xf]
    %v119 = vld [vmem:[%s1 + $0x14c] sm:$0xf]
    %v120 = vld [vmem:[%s1 + $0x150] sm:$0xf]
    %v121 = vld [vmem:[%s1 + $0x154] sm:$0xf]
    %v122 = vld [vmem:[%s1 + $0x158] sm:$0xf]
    %v123 = vld [vmem:[%s1 + $0x15c] sm:$0xf]
    %v124 = vld [vmem:[%s1 + $0x160] sm:$0xf]
    %v125 = vld [vmem:[%s1 + $0x164] sm:$0xf]
    %v126 = vld [vmem:[%s1 + $0x168] sm:$0xf]
    %v127 = vld [vmem:[%s1 + $0x16c] sm:$0xf]
    %v128 = vld [vmem:[%s1 + $0x170] sm:$0xf]
    %v129 = vld [vmem:[%s1 + $0x174] sm:$0xf]
    %v130 = vld [vmem:[%s1 + $0x178] sm:$0xf]
    %v131 = vld [vmem:[%s1 + $0x17c] sm:$0xf]
    %v132 = vld [vmem:[%s1 + $0x180] sm:$0xf]
    %v133 = vld [vmem:[%s1 + $0x184] sm:$0xf]
    %v134 = vld [vmem:[%s1 + $0x188] sm:$0xf]
    %v135 = vld [vmem:[%s1 + $0x18c] sm:$0xf]
    %v136 = vld [vmem:[%s1 + $0x190] sm:$0xf]
    %v137 = vld [vmem:[%s1 + $0x194] sm:$0xf]
    %v138 = vld [vmem:[%s1 + $0x198] sm:$0xf]
    %v139 = vld [vmem:[%s1 + $0x19c] sm:$0xf]
    %v140 = vld [vmem:[%s1 + $0x1a0] sm:$0xf]
    %v141 = vld [vmem:[%s1 + $0x1a4] sm:$0xf]
    %v142 = vld [vmem:[%s1 + $0x1a8] sm:$0xf]
    %v143 = vld [vmem:[%s1 + $0x1ac] sm:$0xf]
    %v144 = vld [vmem:[%s1 + $0x1b0] sm:$0xf]
    %v145 = vld [vmem:[%s1 + $0x1b4] sm:$0xf]
    %v146 = vld [vmem:[%s1 + $0x1b8] sm:$0xf]
    %v147 = vld [vmem:[%s1 + $0x1bc] sm:$0xf]
    %v148 = vld [vmem:[%s1 + $0x1c0] sm:$0xf]
    %v149 = vld [vmem:[%s1 + $0x1c4] sm:$0xf]
    %v150 = vld [vmem:[%s1 + $0x1c8] sm:$0xf]
    %v151 = vld [vmem:[%s1 + $0x1cc] sm:$0xf]
    %v152 = vld [vmem:[%s1 + $0x1d0] sm:$0xf]
    %v153 = vld [vmem:[%s1 + $0x1d4] sm:$0xf]
    %v154 = vld [vmem:[%s1 + $0x1d8] sm:$0xf]
    %v155 = vld [vmem:[%s1 + $0x1dc] sm:$0xf]
    %v156 = vld [vmem:[%s1 + $0x1e0] sm:$0xf]
    %v157 = vld [vmem:[%s1 + $0x1e4] sm:$0xf]
    %v158 = vld [vmem:[%s1 + $0x1e8] sm:$0xf]
    %v159 = vld [vmem:[%s1 + $0x1ec] sm:$0xf]
    %v160 = vld [vmem:[%s1 + $0x1f0] sm:$0xf]
    %v161 = vld [vmem:[%s1 + $0x1f4] sm:$0xf]
    %v162 = vld [vmem:[%s1 + $0x1f8] sm:$0xf]
    %v163 = vld [vmem:[%s1 + $0x1fc] sm:$0xf]
    %v164 = vld [vmem:[%s1 + $0x200] sm:$0xf]
    %v165 = vld [vmem:[%s1 + $0x204] sm:$0xf]
    %v166 = vld [vmem:[%s1 + $0x208] sm:$0xf]
    %v167 = vld [vmem:[%s1 + $0x20c] sm:$0xf]
    %v168 = vld [vmem:[%s1 + $0x210] sm:$0xf]
    %v169 = vld [vmem:[%s1 + $0x214] sm:$0xf]
    %v170 = vld [vmem:[%s1 + $0x218] sm:$0xf]
    %v171 = vld [vmem:[%s1 + $0x21c] sm:$0xf]
    %v172 = vld [vmem:[%s1 + $0x220] sm:$0xf]
    %v173 = vld [vmem:[%s1 + $0x224] sm:$0xf]
    %v174 = vld [vmem:[%s1 + $0x228] sm:$0xf]
    %v175 = vld [vmem:[%s1 + $0x22c] sm:$0xf]
    %v176 = vld [vmem:[%s1 + $0x230] sm:$0xf]
    %v177 = vld [vmem:[%s1 + $0x234] sm:$0xf]
    %v178 = vld [vmem:[%s1 + $0x238] sm:$0xf]
    %v179 = vld [vmem:[%s1 + $0x23c] sm:$0xf]
    %v180 = vld [vmem:[%s1 + $0x240] sm:$0xf]
    %v181 = vld [vmem:[%s1 + $0x244] sm:$0xf]
    %v182 = vld [vmem:[%s1 + $0x248] sm:$0xf]
    %v183 = vld [vmem:[%s1 + $0x24c] sm:$0xf]
    %v184 = vld [vmem:[%s1 + $0x250] sm:$0xf]
    %v185 = vld [vmem:[%s1 + $0x254] sm:$0xf]
    %v186 = vld [vmem:[%s1 + $0x258] sm:$0xf]
    %v187 = vld [vmem:[%s1 + $0x25c] sm:$0xf]
    %v188 = vld [vmem:[%s1 + $0x260] sm:$0xf]
    %v189 = vld [vmem:[%s1 + $0x264] sm:$0xf]
    %v190 = vld [vmem:[%s1 + $0x268] sm:$0xf]
    %v191 = vld [vmem:[%s1 + $0x26c] sm:$0xf]
    %v192 = vld [vmem:[%s1 + $0x270] sm:$0xf]
    %v193 = vld [vmem:[%s1 + $0x274] sm:$0xf]
    %v194 = vld [vmem:[%s1 + $0x278] sm:$0xf]
    %v195 = vld [vmem:[%s1 + $0x27c] sm:$0xf]
    %v196 = vld [vmem:[%s1 + $0x280] sm:$0xf]
    %v197 = vld [vmem:[%s1 + $0x284] sm:$0xf]
    %v198 = vld [vmem:[%s1 + $0x288] sm:$0xf]
    %v199 = vld [vmem:[%s1 + $0x28c] sm:$0xf]
    %v200 = vld [vmem:[%s1 + $0x290] sm:$0xf]
    %v201 = vld [vmem:[%s1 + $0x294] sm:$0xf]
    %v202 = vld [vmem:[%s1 + $0x298] sm:$0xf]
    %v203 = vld [vmem:[%s1 + $0x29c] sm:$0xf]
    %v204 = vld [vmem:[%s1 + $0x2a0] sm:$0xf]
    %v205 = vld [vmem:[%s1 + $0x2a4] sm:$0xf]
    %v206 = vld [vmem:[%s1 + $0x2a8] sm:$0xf]
    %v207 = vld [vmem:[%s1 + $0x2ac] sm:$0xf]
    %v208 = vld [vmem:[%s1 + $0x2b0] sm:$0xf]
    %v209 = vld [vmem:[%s1 + $0x2b4] sm:$0xf]
    %v210 = vld [vmem:[%s1 + $0x2b8] sm:$0xf]
    %v211 = vld [vmem:[%s1 + $0x2bc] sm:$0xf]
    %v212 = vld [vmem:[%s1 + $0x2c0] sm:$0xf]
    %v213 = vld [vmem:[%s1 + $0x2c4] sm:$0xf]
    %v214 = vld [vmem:[%s1 + $0x2c8] sm:$0xf]
    %v215 = vld [vmem:[%s1 + $0x2cc] sm:$0xf]
    %v216 = vld [vmem:[%s1 + $0x2d0] sm:$0xf]
    %v217 = vld [vmem:[%s1 + $0x2d4] sm:$0xf]
    %v218 = vld [vmem:[%s1 + $0x2d8] sm:$0xf]
    %v219 = vld [vmem:[%s1 + $0x2dc] sm:$0xf]
    %v220 = vld [vmem:[%s1 + $0x2e0] sm:$0xf]
    %v221 = vld [vmem:[%s1 + $0x2e4] sm:$0xf]
    %v222 = vld [vmem:[%s1 + $0x2e8] sm:$0xf]
    %v223 = vld [vmem:[%s1 + $0x2ec] sm:$0xf]
    %v224 = vld [vmem:[%s1 + $0x2f0] sm:$0xf]
    %v225 = vld [vmem:[%s1 + $0x2f4] sm:$0xf]
    %v226 = vld [vmem:[%s1 + $0x2f8] sm:$0xf]
    %v227 = vld [vmem:[%s1 + $0x2fc] sm:$0xf]
    %v228 = vld [vmem:[%s1 + $0x300] sm:$0xf]
    %v229 = vld [vmem:[%s1 + $0x304] sm:$0xf]
    %v230 = vld [vmem:[%s1 + $0x308] sm:$0xf]
    %v231 = vld [vmem:[%s1 + $0x30c] sm:$0xf]
    %v232 = vld [vmem:[%s1 + $0x310] sm:$0xf]
    %v233 = vld [vmem:[%s1 + $0x314] sm:$0xf]
    %v234 = vld [vmem:[%s1 + $0x318] sm:$0xf]
    %v235 = vld [vmem:[%s1 + $0x31c] sm:$0xf]
    %v236 = vld [vmem:[%s1 + $0x320] sm:$0xf]
    %v237 = vld [vmem:[%s1 + $0x324] sm:$0xf]
    %v238 = vld [vmem:[%s1 + $0x328] sm:$0xf]
    %v239 = vld [vmem:[%s1 + $0x32c] sm:$0xf]
    %v240 = vld [vmem:[%s1 + $0x330] sm:$0xf]
    %v241 = vld [vmem:[%s1 + $0x334] sm:$0xf]
    %v242 = vld [vmem:[%s1 + $0x338] sm:$0xf]
    %v243 = vld [vmem:[%s1 + $0x33c] sm:$0xf]
    %v244 = vld [vmem:[%s1 + $0x340] sm:$0xf]
    %v245 = vld [vmem:[%s1 + $0x344] sm:$0xf]
    %v246 = vld [vmem:[%s1 + $0x348] sm:$0xf]
    %v247 = vld [vmem:[%s1 + $0x34c] sm:$0xf]
    %v248 = vld [vmem:[%s1 + $0x350] sm:$0xf]
    %v249 = vld [vmem:[%s1 + $0x354] sm:$0xf]
    %v250 = vld [vmem:[%s1 + $0x358] sm:$0xf]
    %v251 = vld [vmem:[%s1 + $0x35c] sm:$0xf]
    %v252 = vld [vmem:[%s1 + $0x360] sm:$0xf]
    %v253 = vld [vmem:[%s1 + $0x364] sm:$0xf]
    %v254 = vld [vmem:[%s1 + $0x368] sm:$0xf]
    %v255 = vld [vmem:[%s1 + $0x36c] sm:$0xf]
    %v256 = vld [vmem:[%s1 + $0x370] sm:$0xf]
    %v257 = vld [vmem:[%s1 + $0x374] sm:$0xf]
    %v258 = vld [vmem:[%s1 + $0x378] sm:$0xf]
    %v259 = vld [vmem:[%s1 + $0x37c] sm:$0xf]
    %v260 = vld [vmem:[%s1 + $0x380] sm:$0xf]
    %v261 = vld [vmem:[%s1 + $0x384] sm:$0xf]
    %v262 = vld [vmem:[%s1 + $0x388] sm:$0xf]
    %v263 = vld [vmem:[%s1 + $0x38c] sm:$0xf]
    %v264 = vld [vmem:[%s1 + $0x390] sm:$0xf]
    %v265 = vld [vmem:[%s1 + $0x394] sm:$0xf]
    %v266 = vld [vmem:[%s1 + $0x398] sm:$0xf]
    %v267 = vld [vmem:[%s1 + $0x39c] sm:$0xf]
    %v268 = vld [vmem:[%s1 + $0x3a0] sm:$0xf]
    %v269 = vld [vmem:[%s1 + $0x3a4] sm:$0xf]
    %v270 = vld [vmem:[%s1 + $0x3a8] sm:$0xf]
    %v271 = vld [vmem:[%s1 + $0x3ac] sm:$0xf]
    %v272 = vld [vmem:[%s1 + $0x3b0] sm:$0xf]
    %v273 = vld [vmem:[%s1 + $0x3b4] sm:$0xf]
    %v274 = vld [vmem:[%s1 + $0x3b8] sm:$0xf]
    %v275 = vld [vmem:[%s1 + $0x3bc] sm:$0xf]
    %v276 = vld [vmem:[%s1 + $0x3c0] sm:$0xf]
    %v277 = vld [vmem:[%s1 + $0x3c4] sm:$0xf]
    %v278 = vld [vmem:[%s1 + $0x3c8] sm:$0xf]
    %v279 = vld [vmem:[%s1 + $0x3cc] sm:$0xf]
    %v280 = vld [vmem:[%s1 + $0x3d0] sm:$0xf]
    %v281 = vld [vmem:[%s1 + $0x3d4] sm:$0xf]
    %v282 = vld [vmem:[%s1 + $0x3d8] sm:$0xf]
    %v283 = vld [vmem:[%s1 + $0x3dc] sm:$0xf]
    %v284 = vld [vmem:[%s1 + $0x3e0] sm:$0xf]
    %v285 = vld [vmem:[%s1 + $0x3e4] sm:$0xf]
    %v286 = vld [vmem:[%s1 + $0x3e8] sm:$0xf]
    %v287 = vld [vmem:[%s1 + $0x3ec] sm:$0xf]
    %v288 = vld [vmem:[%s1 + $0x3f0] sm:$0xf]
    %v289 = vld [vmem:[%s1 + $0x3f4] sm:$0xf]
    %v290 = vld [vmem:[%s1 + $0x3f8] sm:$0xf]
    %v291 = vld [vmem:[%s1 + $0x3fc] sm:$0xf]
    %v292 = vld [vmem:[%s1 + $0x400] sm:$0xf]
    %v293 = vld [vmem:[%s1 + $0x404] sm:$0xf]
    %v294 = vld [vmem:[%s1 + $0x408] sm:$0xf]
    %v295 = vld [vmem:[%s1 + $0x40c] sm:$0xf]
    %v296 = vld [vmem:[%s1 + $0x410] sm:$0xf]
    %v297 = vld [vmem:[%s1 + $0x414] sm:$0xf]
    %v298 = vld [vmem:[%s1 + $0x418] sm:$0xf]
    %v299 = vld [vmem:[%s1 + $0x41c] sm:$0xf]
    %v300 = vld [vmem:[%s1 + $0x420] sm:$0xf]
    %v301 = vld [vmem:[%s1 + $0x424] sm:$0xf]
    %v302 = vld [vmem:[%s1 + $0x428] sm:$0xf]
    %v303 = vld [vmem:[%s1 + $0x42c] sm:$0xf]
    %v304 = vld [vmem:[%s1 + $0x430] sm:$0xf]
    %v305 = vld [vmem:[%s1 + $0x434] sm:$0xf]
    %v306 = vld [vmem:[%s1 + $0x438] sm:$0xf]
    %v307 = vld [vmem:[%s1 + $0x43c] sm:$0xf]
    %v308 = vld [vmem:[%s1 + $0x440] sm:$0xf]
    %v309 = vld [vmem:[%s1 + $0x444] sm:$0xf]
    %v310 = vld [vmem:[%s1 + $0x448] sm:$0xf]
    %v311 = vld [vmem:[%s1 + $0x44c] sm:$0xf]
    %v312 = vld [vmem:[%s1 + $0x450] sm:$0xf]
    %v313 = vld [vmem:[%s1 + $0x454] sm:$0xf]
    %v314 = vld [vmem:[%s1 + $0x458] sm:$0xf]
    %v315 = vld [vmem:[%s1 + $0x45c] sm:$0xf]
    %v316 = vld [vmem:[%s1 + $0x460] sm:$0xf]
    %v317 = vld [vmem:[%s1 + $0x464] sm:$0xf]
    %v318 = vld [vmem:[%s1 + $0x468] sm:$0xf]
    %v319 = vld [vmem:[%s1 + $0x46c] sm:$0xf]
    %v320 = vld [vmem:[%s1 + $0x470] sm:$0xf]
    %v321 = vld [vmem:[%s1 + $0x474] sm:$0xf]
    %v322 = vld [vmem:[%s1 + $0x478] sm:$0xf]
    %v323 = vld [vmem:[%s1 + $0x47c] sm:$0xf]
    %v324 = vld [vmem:[%s1 + $0x480] sm:$0xf]
    %v325 = vld [vmem:[%s1 + $0x484] sm:$0xf]
    %v326 = vld [vmem:[%s1 + $0x488] sm:$0xf]
    %v327 = vld [vmem:[%s1 + $0x48c] sm:$0xf]
    %v328 = vld [vmem:[%s1 + $0x490] sm:$0xf]
    %v329 = vld [vmem:[%s1 + $0x494] sm:$0xf]
    %v330 = vld [vmem:[%s1 + $0x498] sm:$0xf]
    %v331 = vld [vmem:[%s1 + $0x49c] sm:$0xf]
    %v332 = vld [vmem:[%s1 + $0x4a0] sm:$0xf]
    %v333 = vld [vmem:[%s1 + $0x4a4] sm:$0xf]
    %v334 = vld [vmem:[%s1 + $0x4a8] sm:$0xf]
    %v335 = vld [vmem:[%s1 + $0x4ac] sm:$0xf]
    %v336 = vld [vmem:[%s1 + $0x4b0] sm:$0xf]
    %v337 = vld [vmem:[%s1 + $0x4b4] sm:$0xf]
    %v338 = vld [vmem:[%s1 + $0x4b8] sm:$0xf]
    %v339 = vld [vmem:[%s1 + $0x4bc] sm:$0xf]
    %v340 = vld [vmem:[%s1 + $0x4c0] sm:$0xf]
    %v341 = vld [vmem:[%s1 + $0x4c4] sm:$0xf]
    %v342 = vld [vmem:[%s1 + $0x4c8] sm:$0xf]
    %v343 = vld [vmem:[%s1 + $0x4cc] sm:$0xf]
    %v344 = vld [vmem:[%s1 + $0x4d0] sm:$0xf]
    %v345 = vld [vmem:[%s1 + $0x4d4] sm:$0xf]
    %v346 = vld [vmem:[%s1 + $0x4d8] sm:$0xf]
    %v347 = vld [vmem:[%s1 + $0x4dc] sm:$0xf]
    %v348 = vld [vmem:[%s1 + $0x4e0] sm:$0xf]
    %v349 = vld [vmem:[%s1 + $0x4e4] sm:$0xf]
    %v350 = vld [vmem:[%s1 + $0x4e8] sm:$0xf]
    %v351 = vld [vmem:[%s1 + $0x4ec] sm:$0xf]
    %v352 = vld [vmem:[%s1 + $0x4f0] sm:$0xf]
    %v353 = vld [vmem:[%s1 + $0x4f4] sm:$0xf]
    %v354 = vld [vmem:[%s1 + $0x4f8] sm:$0xf]
    %v355 = vld [vmem:[%s1 + $0x4fc] sm:$0xf]
    %v356 = vld [vmem:[%s1 + $0x500] sm:$0xf]
    %v357 = vld [vmem:[%s1 + $0x504] sm:$0xf]
    %v358 = vld [vmem:[%s1 + $0x508] sm:$0xf]
    %v359 = vld [vmem:[%s1 + $0x50c] sm:$0xf]
    %v360 = vld [vmem:[%s1 + $0x510] sm:$0xf]
    %v361 = vld [vmem:[%s1 + $0x514] sm:$0xf]
    %v362 = vld [vmem:[%s1 + $0x518] sm:$0xf]
    %v363 = vld [vmem:[%s1 + $0x51c] sm:$0xf]
    %v364 = vld [vmem:[%s1 + $0x520] sm:$0xf]
    %v365 = vld [vmem:[%s1 + $0x524] sm:$0xf]
    %v366 = vld [vmem:[%s1 + $0x528] sm:$0xf]
    %v367 = vld [vmem:[%s1 + $0x52c] sm:$0xf]
    %v368 = vld [vmem:[%s1 + $0x530] sm:$0xf]
    %v369 = vld [vmem:[%s1 + $0x534] sm:$0xf]
    %v370 = vld [vmem:[%s1 + $0x538] sm:$0xf]
    %v371 = vld [vmem:[%s1 + $0x53c] sm:$0xf]
    %v372 = vld [vmem:[%s1 + $0x540] sm:$0xf]
    %v373 = vld [vmem:[%s1 + $0x544] sm:$0xf]
    %v374 = vld [vmem:[%s1 + $0x548] sm:$0xf]
    %v375 = vld [vmem:[%s1 + $0x54c] sm:$0xf]
    %v376 = vld [vmem:[%s1 + $0x550] sm:$0xf]
    %v377 = vld [vmem:[%s1 + $0x554] sm:$0xf]
    %v378 = vld [vmem:[%s1 + $0x558] sm:$0xf]
    %v379 = vld [vmem:[%s1 + $0x55c] sm:$0xf]
    %v380 = vld [vmem:[%s1 + $0x560] sm:$0xf]
    %v381 = vld [vmem:[%s1 + $0x564] sm:$0xf]
    %v382 = vld [vmem:[%s1 + $0x568] sm:$0xf]
    %v383 = vld [vmem:[%s1 + $0x56c] sm:$0xf]
    %v384 = vld [vmem:[%s1 + $0x570] sm:$0xf]
    %v385 = vld [vmem:[%s1 + $0x574] sm:$0xf]
    %v386 = vld [vmem:[%s1 + $0x578] sm:$0xf]
    %v387 = vld [vmem:[%s1 + $0x57c] sm:$0xf]
    %v388 = vld [vmem:[%s1 + $0x580] sm:$0xf]
    %v389 = vld [vmem:[%s1 + $0x584] sm:$0xf]
    %v390 = vld [vmem:[%s1 + $0x588] sm:$0xf]
    %v391 = vld [vmem:[%s1 + $0x58c] sm:$0xf]
    %v392 = vld [vmem:[%s1 + $0x590] sm:$0xf]
    %v393 = vld [vmem:[%s1 + $0x594] sm:$0xf]
    %v394 = vld [vmem:[%s1 + $0x598] sm:$0xf]
    %v395 = vld [vmem:[%s1 + $0x59c] sm:$0xf]
    %v396 = vld [vmem:[%s1 + $0x5a0] sm:$0xf]
    %v397 = vld [vmem:[%s1 + $0x5a4] sm:$0xf]
    %v398 = vld [vmem:[%s1 + $0x5a8] sm:$0xf]
    %v399 = vld [vmem:[%s1 + $0x5ac] sm:$0xf]
    %v400 = vld [vmem:[%s1 + $0x5b0] sm:$0xf]
    %v401 = vld [vmem:[%s1 + $0x5b4] sm:$0xf]
    %v402 = vld [vmem:[%s1 + $0x5b8] sm:$0xf]
    %v403 = vld [vmem:[%s1 + $0x5bc] sm:$0xf]
    %v404 = vld [vmem:[%s1 + $0x5c0] sm:$0xf]
    %v405 = vld [vmem:[%s1 + $0x5c4] sm:$0xf]
    %v406 = vld [vmem:[%s1 + $0x5c8] sm:$0xf]
    %v407 = vld [vmem:[%s1 + $0x5cc] sm:$0xf]
    %v408 = vld [vmem:[%s1 + $0x5d0] sm:$0xf]
    %v409 = vld [vmem:[%s1 + $0x5d4] sm:$0xf]
    %v410 = vld [vmem:[%s1 + $0x5d8] sm:$0xf]
    %v411 = vld [vmem:[%s1 + $0x5dc] sm:$0xf]
    %v412 = vld [vmem:[%s1 + $0x5e0] sm:$0xf]
    %v413 = vld [vmem:[%s1 + $0x5e4] sm:$0xf]
    %v414 = vld [vmem:[%s1 + $0x5e8] sm:$0xf]
    %v415 = vld [vmem:[%s1 + $0x5ec] sm:$0xf]
    %v416 = vld [vmem:[%s1 + $0x5f0] sm:$0xf]
    %v417 = vld [vmem:[%s1 + $0x5f4] sm:$0xf]
    %v418 = vld [vmem:[%s1 + $0x5f8] sm:$0xf]
    %v419 = vld [vmem:[%s1 + $0x5fc] sm:$0xf]
    %v420 = vld [vmem:[%s1 + $0x600] sm:$0xf]
    %v421 = vld [vmem:[%s1 + $0x604] sm:$0xf]
    %v422 = vld [vmem:[%s1 + $0x608] sm:$0xf]
    %v423 = vld [vmem:[%s1 + $0x60c] sm:$0xf]
    %v424 = vld [vmem:[%s1 + $0x610] sm:$0xf]
    %v425 = vld [vmem:[%s1 + $0x614] sm:$0xf]
    %v426 = vld [vmem:[%s1 + $0x618] sm:$0xf]
    %v427 = vld [vmem:[%s1 + $0x61c] sm:$0xf]
    %v428 = vld [vmem:[%s1 + $0x620] sm:$0xf]
    %v429 = vld [vmem:[%s1 + $0x624] sm:$0xf]
    %v430 = vld [vmem:[%s1 + $0x628] sm:$0xf]
    %v431 = vld [vmem:[%s1 + $0x62c] sm:$0xf]
    %v432 = vld [vmem:[%s1 + $0x630] sm:$0xf]
    %v433 = vld [vmem:[%s1 + $0x634] sm:$0xf]
    %v434 = vld [vmem:[%s1 + $0x638] sm:$0xf]
    %v435 = vld [vmem:[%s1 + $0x63c] sm:$0xf]
    %v436 = vld [vmem:[%s1 + $0x640] sm:$0xf]
    %v437 = vld [vmem:[%s1 + $0x644] sm:$0xf]
    %v438 = vld [vmem:[%s1 + $0x648] sm:$0xf]
    %v439 = vld [vmem:[%s1 + $0x64c] sm:$0xf]
    %v440 = vld [vmem:[%s1 + $0x650] sm:$0xf]
    %v441 = vld [vmem:[%s1 + $0x654] sm:$0xf]
    %v442 = vld [vmem:[%s1 + $0x658] sm:$0xf]
    %v443 = vld [vmem:[%s1 + $0x65c] sm:$0xf]
    %v444 = vld [vmem:[%s1 + $0x660] sm:$0xf]
    %v445 = vld [vmem:[%s1 + $0x664] sm:$0xf]
    %v446 = vld [vmem:[%s1 + $0x668] sm:$0xf]
    %v447 = vld [vmem:[%s1 + $0x66c] sm:$0xf]
    %v448 = vld [vmem:[%s1 + $0x670] sm:$0xf]
    %v449 = vld [vmem:[%s1 + $0x674] sm:$0xf]
    %v450 = vld [vmem:[%s1 + $0x678] sm:$0xf]
    %v451 = vld [vmem:[%s1 + $0x67c] sm:$0xf]
    %v452 = vld [vmem:[%s1 + $0x680] sm:$0xf]
    %v453 = vld [vmem:[%s1 + $0x684] sm:$0xf]
    %v454 = vld [vmem:[%s1 + $0x688] sm:$0xf]
    %v455 = vld [vmem:[%s1 + $0x68c] sm:$0xf]
    %v456 = vld [vmem:[%s1 + $0x690] sm:$0xf]
    %v457 = vld [vmem:[%s1 + $0x694] sm:$0xf]
    %v458 = vld [vmem:[%s1 + $0x698] sm:$0xf]
    %v459 = vld [vmem:[%s1 + $0x69c] sm:$0xf]
    %v460 = vld [vmem:[%s1 + $0x6a0] sm:$0xf]
    %v461 = vld [vmem:[%s1 + $0x6a4] sm:$0xf]
    %v462 = vld [vmem:[%s1 + $0x6a8] sm:$0xf]
    %v463 = vld [vmem:[%s1 + $0x6ac] sm:$0xf]
    %v464 = vld [vmem:[%s1 + $0x6b0] sm:$0xf]
    %v465 = vld [vmem:[%s1 + $0x6b4] sm:$0xf]
    %v466 = vld [vmem:[%s1 + $0x6b8] sm:$0xf]
    %v467 = vld [vmem:[%s1 + $0x6bc] sm:$0xf]
    %v468 = vld [vmem:[%s1 + $0x6c0] sm:$0xf]
    %v469 = vld [vmem:[%s1 + $0x6c4] sm:$0xf]
    %v470 = vld [vmem:[%s1 + $0x6c8] sm:$0xf]
    %v471 = vld [vmem:[%s1 + $0x6cc] sm:$0xf]
    %v472 = vld [vmem:[%s1 + $0x6d0] sm:$0xf]
    %v473 = vld [vmem:[%s1 + $0x6d4] sm:$0xf]
    %v474 = vld [vmem:[%s1 + $0x6d8] sm:$0xf]
    %v475 = vld [vmem:[%s1 + $0x6dc] sm:$0xf]
    %v476 = vld [vmem:[%s1 + $0x6e0] sm:$0xf]
    %v477 = vld [vmem:[%s1 + $0x6e4] sm:$0xf]
    %v478 = vld [vmem:[%s1 + $0x6e8] sm:$0xf]
    %v479 = vld [vmem:[%s1 + $0x6ec] sm:$0xf]
    %v480 = vld [vmem:[%s1 + $0x6f0] sm:$0xf]
    %v481 = vld [vmem:[%s1 + $0x6f4] sm:$0xf]
    %v482 = vld [vmem:[%s1 + $0x6f8] sm:$0xf]
    %v483 = vld [vmem:[%s1 + $0x6fc] sm:$0xf]
    %v484 = vld [vmem:[%s1 + $0x700] sm:$0xf]
    %v485 = vld [vmem:[%s1 + $0x704] sm:$0xf]
    %v486 = vld [vmem:[%s1 + $0x708] sm:$0xf]
    %v487 = vld [vmem:[%s1 + $0x70c] sm:$0xf]
    %v488 = vld [vmem:[%s1 + $0x710] sm:$0xf]
    %v489 = vld [vmem:[%s1 + $0x714] sm:$0xf]
    %v490 = vld [vmem:[%s1 + $0x718] sm:$0xf]
    %v491 = vld [vmem:[%s1 + $0x71c] sm:$0xf]
    %v492 = vld [vmem:[%s1 + $0x720] sm:$0xf]
    %v493 = vld [vmem:[%s1 + $0x724] sm:$0xf]
    %v494 = vld [vmem:[%s1 + $0x728] sm:$0xf]
    %v495 = vld [vmem:[%s1 + $0x72c] sm:$0xf]
    %v496 = vld [vmem:[%s1 + $0x730] sm:$0xf]
    %v497 = vld [vmem:[%s1 + $0x734] sm:$0xf]
    %v498 = vld [vmem:[%s1 + $0x738] sm:$0xf]
    %v499 = vld [vmem:[%s1 + $0x73c] sm:$0xf]
    %v500 = vld [vmem:[%s1 + $0x740] sm:$0xf]
    %v501 = vld [vmem:[%s1 + $0x744] sm:$0xf]
    %v502 = vld [vmem:[%s1 + $0x748] sm:$0xf]
    %v503 = vld [vmem:[%s1 + $0x74c] sm:$0xf]
    %v504 = vld [vmem:[%s1 + $0x750] sm:$0xf]
    %v505 = vld [vmem:[%s1 + $0x754] sm:$0xf]
    %v506 = vld [vmem:[%s1 + $0x758] sm:$0xf]
    %v507 = vld [vmem:[%s1 + $0x75c] sm:$0xf]
    %v508 = vld [vmem:[%s1 + $0x760] sm:$0xf]
    %v509 = vld [vmem:[%s1 + $0x764] sm:$0xf]
    %v510 = vld [vmem:[%s1 + $0x768] sm:$0xf]
    %v511 = vld [vmem:[%s1 + $0x76c] sm:$0xf]
    %v512 = vld [vmem:[%s1 + $0x770] sm:$0xf]
    %v513 = vld [vmem:[%s1 + $0x774] sm:$0xf]
    %v514 = vld [vmem:[%s1 + $0x778] sm:$0xf]
    %v515 = vld [vmem:[%s1 + $0x77c] sm:$0xf]
    %v516 = vld [vmem:[%s1 + $0x780] sm:$0xf]
    %v517 = vld [vmem:[%s1 + $0x784] sm:$0xf]
    %v518 = vld [vmem:[%s1 + $0x788] sm:$0xf]
    %v519 = vld [vmem:[%s1 + $0x78c] sm:$0xf]
    %v520 = vld [vmem:[%s1 + $0x790] sm:$0xf]
    %v521 = vld [vmem:[%s1 + $0x794] sm:$0xf]
    %v522 = vld [vmem:[%s1 + $0x798] sm:$0xf]
    %v523 = vld [vmem:[%s1 + $0x79c] sm:$0xf]
    %v524 = vld [vmem:[%s1 + $0x7a0] sm:$0xf]
    %v525 = vld [vmem:[%s1 + $0x7a4] sm:$0xf]
    %v526 = vld [vmem:[%s1 + $0x7a8] sm:$0xf]
    %v527 = vld [vmem:[%s1 + $0x7ac] sm:$0xf]
    %v528 = vld [vmem:[%s1 + $0x7b0] sm:$0xf]
    %v529 = vld [vmem:[%s1 + $0x7b4] sm:$0xf]
    %v530 = vld [vmem:[%s1 + $0x7b8] sm:$0xf]
    %v531 = vld [vmem:[%s1 + $0x7bc] sm:$0xf]
    %v532 = vld [vmem:[%s1 + $0x7c0] sm:$0xf]
    %v533 = vld [vmem:[%s1 + $0x7c4] sm:$0xf]
    %v534 = vld [vmem:[%s1 + $0x7c8] sm:$0xf]
    %v535 = vld [vmem:[%s1 + $0x7cc] sm:$0xf]
    %v536 = vld [vmem:[%s1 + $0x7d0] sm:$0xf]
    %v537 = vld [vmem:[%s1 + $0x7d4] sm:$0xf]
    %v538 = vld [vmem:[%s1 + $0x7d8] sm:$0xf]
    %v539 = vld [vmem:[%s1 + $0x7dc] sm:$0xf]
    %v540 = vld [vmem:[%s1 + $0x7e0] sm:$0xf]
    %v541 = vld [vmem:[%s1 + $0x7e4] sm:$0xf]
    %v542 = vld [vmem:[%s1 + $0x7e8] sm:$0xf]
    %v543 = vld [vmem:[%s1 + $0x7ec] sm:$0xf]
    %v544 = vld [vmem:[%s1 + $0x7f0] sm:$0xf]
    %v545 = vld [vmem:[%s1 + $0x7f4] sm:$0xf]
    %v546 = vld [vmem:[%s1 + $0x7f8] sm:$0xf]
    %v547 = vld [vmem:[%s1 + $0x7fc] sm:$0xf]
    %v548 = vld [vmem:[%s1 + $0x800] sm:$0xf]
    %v549 = vld [vmem:[%s1 + $0x804] sm:$0xf]
    %v550 = vld [vmem:[%s1 + $0x808] sm:$0xf]
    %v551 = vld [vmem:[%s1 + $0x80c] sm:$0xf]
    %v552 = vld [vmem:[%s1 + $0x810] sm:$0xf]
    %v553 = vld [vmem:[%s1 + $0x814] sm:$0xf]
    %v554 = vld [vmem:[%s1 + $0x818] sm:$0xf]
    %v555 = vld [vmem:[%s1 + $0x81c] sm:$0xf]
    %v556 = vld [vmem:[%s1 + $0x820] sm:$0xf]
    %v557 = vld [vmem:[%s1 + $0x824] sm:$0xf]
    %v558 = vld [vmem:[%s1 + $0x828] sm:$0xf]
    %v559 = vld [vmem:[%s1 + $0x82c] sm:$0xf]
    %v560 = vld [vmem:[%s1 + $0x830] sm:$0xf]
    %v561 = vld [vmem:[%s1 + $0x834] sm:$0xf]
    %v562 = vld [vmem:[%s1 + $0x838] sm:$0xf]
    %v563 = vld [vmem:[%s1 + $0x83c] sm:$0xf]
    %v564 = vld [vmem:[%s1 + $0x840] sm:$0xf]
    %v565 = vld [vmem:[%s1 + $0x844] sm:$0xf]
    %v566 = vld [vmem:[%s1 + $0x848] sm:$0xf]
    %v567 = vld [vmem:[%s1 + $0x84c] sm:$0xf]
    %v568 = vld [vmem:[%s1 + $0x850] sm:$0xf]
    %v569 = vld [vmem:[%s1 + $0x854] sm:$0xf]
    %v570 = vld [vmem:[%s1 + $0x858] sm:$0xf]
    %v571 = vld [vmem:[%s1 + $0x85c] sm:$0xf]
    %v572 = vld [vmem:[%s1 + $0x860] sm:$0xf]
    %v573 = vld [vmem:[%s1 + $0x864] sm:$0xf]
    %v574 = vld [vmem:[%s1 + $0x868] sm:$0xf]
    %v575 = vld [vmem:[%s1 + $0x86c] sm:$0xf]
    %v576 = vld [vmem:[%s1 + $0x870] sm:$0xf]
    %v577 = vld [vmem:[%s1 + $0x874] sm:$0xf]
    %v578 = vld [vmem:[%s1 + $0x878] sm:$0xf]
    %v579 = vld [vmem:[%s1 + $0x87c] sm:$0xf]
    %v580 = vld [vmem:[%s1 + $0x880] sm:$0xf]
    %v581 = vld [vmem:[%s1 + $0x884] sm:$0xf]
    %v582 = vld [vmem:[%s1 + $0x888] sm:$0xf]
    %v583 = vld [vmem:[%s1 + $0x88c] sm:$0xf]
    %v584 = vld [vmem:[%s1 + $0x890] sm:$0xf]
    %v585 = vld [vmem:[%s1 + $0x894] sm:$0xf]
    %v586 = vld [vmem:[%s1 + $0x898] sm:$0xf]
    %v587 = vld [vmem:[%s1 + $0x89c] sm:$0xf]
    %v588 = vld [vmem:[%s1 + $0x8a0] sm:$0xf]
    %v589 = vld [vmem:[%s1 + $0x8a4] sm:$0xf]
    %v590 = vld [vmem:[%s1 + $0x8a8] sm:$0xf]
    %v591 = vld [vmem:[%s1 + $0x8ac] sm:$0xf]
    %v592 = vld [vmem:[%s1 + $0x8b0] sm:$0xf]
    %v593 = vld [vmem:[%s1 + $0x8b4] sm:$0xf]
    %v594 = vld [vmem:[%s1 + $0x8b8] sm:$0xf]
    %v595 = vld [vmem:[%s1 + $0x8bc] sm:$0xf]
    %v596 = vld [vmem:[%s1 + $0x8c0] sm:$0xf]
    %v597 = vld [vmem:[%s1 + $0x8c4] sm:$0xf]
    %v598 = vld [vmem:[%s1 + $0x8c8] sm:$0xf]
    %v599 = vld [vmem:[%s1 + $0x8cc] sm:$0xf]
    %v600 = vld [vmem:[%s1 + $0x8d0] sm:$0xf]
    %v601 = vld [vmem:[%s1 + $0x8d4] sm:$0xf]
    %v602 = vld [vmem:[%s1 + $0x8d8] sm:$0xf]
    %v603 = vld [vmem:[%s1 + $0x8dc] sm:$0xf]
    %v604 = vld [vmem:[%s1 + $0x8e0] sm:$0xf]
    %v605 = vld [vmem:[%s1 + $0x8e4] sm:$0xf]
    %v606 = vld [vmem:[%s1 + $0x8e8] sm:$0xf]
    %v607 = vld [vmem:[%s1 + $0x8ec] sm:$0xf]
    %v608 = vld [vmem:[%s1 + $0x8f0] sm:$0xf]
    %v609 = vld [vmem:[%s1 + $0x8f4] sm:$0xf]
    %v610 = vld [vmem:[%s1 + $0x8f8] sm:$0xf]
    %v611 = vld [vmem:[%s1 + $0x8fc] sm:$0xf]
    %v612 = vld [vmem:[%s1 + $0x900] sm:$0xf]
    %v613 = vld [vmem:[%s1 + $0x904] sm:$0xf]
    %v614 = vld [vmem:[%s1 + $0x908] sm:$0xf]
    %v615 = vld [vmem:[%s1 + $0x90c] sm:$0xf]
    %v616 = vld [vmem:[%s1 + $0x910] sm:$0xf]
    %v617 = vld [vmem:[%s1 + $0x914] sm:$0xf]
    %v618 = vld [vmem:[%s1 + $0x918] sm:$0xf]
    %v619 = vld [vmem:[%s1 + $0x91c] sm:$0xf]
    %v620 = vld [vmem:[%s1 + $0x920] sm:$0xf]
    %v621 = vld [vmem:[%s1 + $0x924] sm:$0xf]
    %v622 = vld [vmem:[%s1 + $0x928] sm:$0xf]
    %v623 = vld [vmem:[%s1 + $0x92c] sm:$0xf]
    %v624 = vld [vmem:[%s1 + $0x930] sm:$0xf]
    %v625 = vld [vmem:[%s1 + $0x934] sm:$0xf]
    %v626 = vld [vmem:[%s1 + $0x938] sm:$0xf]
    %v627 = vld [vmem:[%s1 + $0x93c] sm:$0xf]
    %v628 = vld [vmem:[%s1 + $0x940] sm:$0xf]
    %v629 = vld [vmem:[%s1 + $0x944] sm:$0xf]
    %v630 = vld [vmem:[%s1 + $0x948] sm:$0xf]
    %v631 = vld [vmem:[%s1 + $0x94c] sm:$0xf]
    %v632 = vld [vmem:[%s1 + $0x950] sm:$0xf]
    %v633 = vld [vmem:[%s1 + $0x954] sm:$0xf]
    %v634 = vld [vmem:[%s1 + $0x958] sm:$0xf]
    %v635 = vld [vmem:[%s1 + $0x95c] sm:$0xf]
    %v636 = vld [vmem:[%s1 + $0x960] sm:$0xf]
    %v637 = vld [vmem:[%s1 + $0x964] sm:$0xf]
    %v638 = vld [vmem:[%s1 + $0x968] sm:$0xf]
    %v639 = vld [vmem:[%s1 + $0x96c] sm:$0xf]
    %v640 = vld [vmem:[%s1 + $0x970] sm:$0xf]
    %v641 = vld [vmem:[%s1 + $0x974] sm:$0xf]
    %v642 = vld [vmem:[%s1 + $0x978] sm:$0xf]
    %v643 = vld [vmem:[%s1 + $0x97c] sm:$0xf]
    %v644 = vld [vmem:[%s1 + $0x980] sm:$0xf]
    %v645 = vld [vmem:[%s1 + $0x984] sm:$0xf]
    %v646 = vld [vmem:[%s1 + $0x988] sm:$0xf]
    %v647 = vld [vmem:[%s1 + $0x98c] sm:$0xf]
    %v648 = vld [vmem:[%s1 + $0x990] sm:$0xf]
    %v649 = vld [vmem:[%s1 + $0x994] sm:$0xf]
    %v650 = vld [vmem:[%s1 + $0x998] sm:$0xf]
    %v651 = vld [vmem:[%s1 + $0x99c] sm:$0xf]
    %v652 = vld [vmem:[%s1 + $0x9a0] sm:$0xf]
    %v653 = vld [vmem:[%s1 + $0x9a4] sm:$0xf]
    %v654 = vld [vmem:[%s1 + $0x9a8] sm:$0xf]
    %v655 = vld [vmem:[%s1 + $0x9ac] sm:$0xf]
    %v656 = vld [vmem:[%s1 + $0x9b0] sm:$0xf]
    %v657 = vld [vmem:[%s1 + $0x9b4] sm:$0xf]
    %v658 = vld [vmem:[%s1 + $0x9b8] sm:$0xf]
    %v659 = vld [vmem:[%s1 + $0x9bc] sm:$0xf]
    %v660 = vld [vmem:[%s1 + $0x9c0] sm:$0xf]
    %v661 = vld [vmem:[%s1 + $0x9c4] sm:$0xf]
    %v662 = vld [vmem:[%s1 + $0x9c8] sm:$0xf]
    %v663 = vld [vmem:[%s1 + $0x9cc] sm:$0xf]
    %v664 = vld [vmem:[%s1 + $0x9d0] sm:$0xf]
    %v665 = vld [vmem:[%s1 + $0x9d4] sm:$0xf]
    %v666 = vld [vmem:[%s1 + $0x9d8] sm:$0xf]
    %v667 = vld [vmem:[%s1 + $0x9dc] sm:$0xf]
    %v668 = vld [vmem:[%s1 + $0x9e0] sm:$0xf]
    %v669 = vld [vmem:[%s1 + $0x9e4] sm:$0xf]
    %v670 = vld [vmem:[%s1 + $0x9e8] sm:$0xf]
    %v671 = vld [vmem:[%s1 + $0x9ec] sm:$0xf]
    %v672 = vld [vmem:[%s1 + $0x9f0] sm:$0xf]
    %v673 = vld [vmem:[%s1 + $0x9f4] sm:$0xf]
    %v674 = vld [vmem:[%s1 + $0x9f8] sm:$0xf]
    %v675 = vld [vmem:[%s1 + $0x9fc] sm:$0xf]
    %v676 = vld [vmem:[%s1 + $0xa00] sm:$0xf]
    %v677 = vld [vmem:[%s1 + $0xa04] sm:$0xf]
    %v678 = vld [vmem:[%s1 + $0xa08] sm:$0xf]
    %v679 = vld [vmem:[%s1 + $0xa0c] sm:$0xf]
    %v680 = vld [vmem:[%s1 + $0xa10] sm:$0xf]
    %v681 = vld [vmem:[%s1 + $0xa14] sm:$0xf]
    %v682 = vld [vmem:[%s1 + $0xa18] sm:$0xf]
    %v683 = vld [vmem:[%s1 + $0xa1c] sm:$0xf]
    %v684 = vld [vmem:[%s1 + $0xa20] sm:$0xf]
    %v685 = vld [vmem:[%s1 + $0xa24] sm:$0xf]
    %v686 = vld [vmem:[%s1 + $0xa28] sm:$0xf]
    %v687 = vld [vmem:[%s1 + $0xa2c] sm:$0xf]
    %v688 = vld [vmem:[%s1 + $0xa30] sm:$0xf]
    %v689 = vld [vmem:[%s1 + $0xa34] sm:$0xf]
    %v690 = vld [vmem:[%s1 + $0xa38] sm:$0xf]
    %v691 = vld [vmem:[%s1 + $0xa3c] sm:$0xf]
    %v692 = vld [vmem:[%s1 + $0xa40] sm:$0xf]
    %v693 = vld [vmem:[%s1 + $0xa44] sm:$0xf]
    %v694 = vld [vmem:[%s1 + $0xa48] sm:$0xf]
    %v695 = vld [vmem:[%s1 + $0xa4c] sm:$0xf]
    %v696 = vld [vmem:[%s1 + $0xa50] sm:$0xf]
    %v697 = vld [vmem:[%s1 + $0xa54] sm:$0xf]
    %v698 = vld [vmem:[%s1 + $0xa58] sm:$0xf]
    %v699 = vld [vmem:[%s1 + $0xa5c] sm:$0xf]
    %v700 = vld [vmem:[%s1 + $0xa60] sm:$0xf]
    %v701 = vld [vmem:[%s1 + $0xa64] sm:$0xf]
    %v702 = vld [vmem:[%s1 + $0xa68] sm:$0xf]
    %v703 = vld [vmem:[%s1 + $0xa6c] sm:$0xf]
    %v704 = vld [vmem:[%s1 + $0xa70] sm:$0xf]
    %v705 = vld [vmem:[%s1 + $0xa74] sm:$0xf]
    %v706 = vld [vmem:[%s1 + $0xa78] sm:$0xf]
    %v707 = vld [vmem:[%s1 + $0xa7c] sm:$0xf]
    %v708 = vld [vmem:[%s1 + $0xa80] sm:$0xf]
    %v709 = vld [vmem:[%s1 + $0xa84] sm:$0xf]
    %v710 = vld [vmem:[%s1 + $0xa88] sm:$0xf]
    %v711 = vld [vmem:[%s1 + $0xa8c] sm:$0xf]
    %v712 = vld [vmem:[%s1 + $0xa90] sm:$0xf]
    %v713 = vld [vmem:[%s1 + $0xa94] sm:$0xf]
    %v714 = vld [vmem:[%s1 + $0xa98] sm:$0xf]
    %v715 = vld [vmem:[%s1 + $0xa9c] sm:$0xf]
    %v716 = vld [vmem:[%s1 + $0xaa0] sm:$0xf]
    %v717 = vld [vmem:[%s1 + $0xaa4] sm:$0xf]
    %v718 = vld [vmem:[%s1 + $0xaa8] sm:$0xf]
    %v719 = vld [vmem:[%s1 + $0xaac] sm:$0xf]
    %v720 = vld [vmem:[%s1 + $0xab0] sm:$0xf]
    %v721 = vld [vmem:[%s1 + $0xab4] sm:$0xf]
    %v722 = vld [vmem:[%s1 + $0xab8] sm:$0xf]
    %v723 = vld [vmem:[%s1 + $0xabc] sm:$0xf]
    %v724 = vld [vmem:[%s1 + $0xac0] sm:$0xf]
    %v725 = vld [vmem:[%s1 + $0xac4] sm:$0xf]
    %v726 = vld [vmem:[%s1 + $0xac8] sm:$0xf]
    %v727 = vld [vmem:[%s1 + $0xacc] sm:$0xf]
    %v728 = vld [vmem:[%s1 + $0xad0] sm:$0xf]
    %v729 = vld [vmem:[%s1 + $0xad4] sm:$0xf]
    %v730 = vld [vmem:[%s1 + $0xad8] sm:$0xf]
    %v731 = vld [vmem:[%s1 + $0xadc] sm:$0xf]
    %v732 = vld [vmem:[%s1 + $0xae0] sm:$0xf]
    %v733 = vld [vmem:[%s1 + $0xae4] sm:$0xf]
    %v734 = vld [vmem:[%s1 + $0xae8] sm:$0xf]
    %v735 = vld [vmem:[%s1 + $0xaec] sm:$0xf]
    %v736 = vld [vmem:[%s1 + $0xaf0] sm:$0xf]
    %v737 = vld [vmem:[%s1 + $0xaf4] sm:$0xf]
    %v738 = vld [vmem:[%s1 + $0xaf8] sm:$0xf]
    %v739 = vld [vmem:[%s1 + $0xafc] sm:$0xf]
    %v740 = vld [vmem:[%s1 + $0xb00] sm:$0xf]
    %v741 = vld [vmem:[%s1 + $0xb04] sm:$0xf]
    %v742 = vld [vmem:[%s1 + $0xb08] sm:$0xf]
    %v743 = vld [vmem:[%s1 + $0xb0c] sm:$0xf]
    %v744 = vld [vmem:[%s1 + $0xb10] sm:$0xf]
    %v745 = vld [vmem:[%s1 + $0xb14] sm:$0xf]
    %v746 = vld [vmem:[%s1 + $0xb18] sm:$0xf]
    %v747 = vld [vmem:[%s1 + $0xb1c] sm:$0xf]
    %v748 = vld [vmem:[%s1 + $0xb20] sm:$0xf]
    %v749 = vld [vmem:[%s1 + $0xb24] sm:$0xf]
    %v750 = vld [vmem:[%s1 + $0xb28] sm:$0xf]
    %v751 = vld [vmem:[%s1 + $0xb2c] sm:$0xf]
    %v752 = vld [vmem:[%s1 + $0xb30] sm:$0xf]
    %v753 = vld [vmem:[%s1 + $0xb34] sm:$0xf]
    %v754 = vld [vmem:[%s1 + $0xb38] sm:$0xf]
    %v755 = vld [vmem:[%s1 + $0xb3c] sm:$0xf]
    %v756 = vld [vmem:[%s1 + $0xb40] sm:$0xf]
    %v757 = vld [vmem:[%s1 + $0xb44] sm:$0xf]
    %v758 = vld [vmem:[%s1 + $0xb48] sm:$0xf]
    %v759 = vld [vmem:[%s1 + $0xb4c] sm:$0xf]
    %v760 = vld [vmem:[%s1 + $0xb50] sm:$0xf]
    %v761 = vld [vmem:[%s1 + $0xb54] sm:$0xf]
    %v762 = vld [vmem:[%s1 + $0xb58] sm:$0xf]
    %v763 = vld [vmem:[%s1 + $0xb5c] sm:$0xf]
    %v764 = vld [vmem:[%s1 + $0xb60] sm:$0xf]
    %v765 = vld [vmem:[%s1 + $0xb64] sm:$0xf]
    %v766 = vld [vmem:[%s1 + $0xb68] sm:$0xf]
    %v767 = vld [vmem:[%s1 + $0xb6c] sm:$0xf]
    %v768 = vld [vmem:[%s1 + $0xb70] sm:$0xf]
    %v769 = vld [vmem:[%s1 + $0xb74] sm:$0xf]
    %v770 = vld [vmem:[%s1 + $0xb78] sm:$0xf]
    %v771 = vld [vmem:[%s1 + $0xb7c] sm:$0xf]
    %v772 = vld [vmem:[%s1 + $0xb80] sm:$0xf]
    %v773 = vld [vmem:[%s1 + $0xb84] sm:$0xf]
    %v774 = vld [vmem:[%s1 + $0xb88] sm:$0xf]
    %v775 = vld [vmem:[%s1 + $0xb8c] sm:$0xf]
    %v776 = vld [vmem:[%s1 + $0xb90] sm:$0xf]
    %v777 = vld [vmem:[%s1 + $0xb94] sm:$0xf]
    %v778 = vld [vmem:[%s1 + $0xb98] sm:$0xf]
    %v779 = vld [vmem:[%s1 + $0xb9c] sm:$0xf]
    %v780 = vld [vmem:[%s1 + $0xba0] sm:$0xf]
    %v781 = vld [vmem:[%s1 + $0xba4] sm:$0xf]
    %v782 = vld [vmem:[%s1 + $0xba8] sm:$0xf]
    %v783 = vld [vmem:[%s1 + $0xbac] sm:$0xf]
    %v784 = vld [vmem:[%s1 + $0xbb0] sm:$0xf]
    %v785 = vld [vmem:[%s1 + $0xbb4] sm:$0xf]
    %v786 = vld [vmem:[%s1 + $0xbb8] sm:$0xf]
    %v787 = vld [vmem:[%s1 + $0xbbc] sm:$0xf]
    %v788 = vld [vmem:[%s1 + $0xbc0] sm:$0xf]
    %v789 = vld [vmem:[%s1 + $0xbc4] sm:$0xf]
    %v790 = vld [vmem:[%s1 + $0xbc8] sm:$0xf]
    %v791 = vld [vmem:[%s1 + $0xbcc] sm:$0xf]
    %v792 = vld [vmem:[%s1 + $0xbd0] sm:$0xf]
    %v793 = vld [vmem:[%s1 + $0xbd4] sm:$0xf]
    %v794 = vld [vmem:[%s1 + $0xbd8] sm:$0xf]
    %v795 = vld [vmem:[%s1 + $0xbdc] sm:$0xf]
    %v796 = vld [vmem:[%s1 + $0xbe0] sm:$0xf]
    %v797 = vld [vmem:[%s1 + $0xbe4] sm:$0xf]
    %v798 = vld [vmem:[%s1 + $0xbe8] sm:$0xf]
    %v799 = vld [vmem:[%s1 + $0xbec] sm:$0xf]
    %v800 = vld [vmem:[%s1 + $0xbf0] sm:$0xf]
    %v801 = vld [vmem:[%s1 + $0xbf4] sm:$0xf]
    %v802 = vld [vmem:[%s1 + $0xbf8] sm:$0xf]
    %v803 = vld [vmem:[%s1 + $0xbfc] sm:$0xf]
    %v804 = vld [vmem:[%s1 + $0xc00] sm:$0xf]
    %v805 = vld [vmem:[%s1 + $0xc04] sm:$0xf]
    %v806 = vld [vmem:[%s1 + $0xc08] sm:$0xf]
    %v807 = vld [vmem:[%s1 + $0xc0c] sm:$0xf]
    %v808 = vld [vmem:[%s1 + $0xc10] sm:$0xf]
    %v809 = vld [vmem:[%s1 + $0xc14] sm:$0xf]
    %v810 = vld [vmem:[%s1 + $0xc18] sm:$0xf]
    %v811 = vld [vmem:[%s1 + $0xc1c] sm:$0xf]
    %v812 = vld [vmem:[%s1 + $0xc20] sm:$0xf]
    %v813 = vld [vmem:[%s1 + $0xc24] sm:$0xf]
    %v814 = vld [vmem:[%s1 + $0xc28] sm:$0xf]
    %v815 = vld [vmem:[%s1 + $0xc2c] sm:$0xf]
    %v816 = vld [vmem:[%s1 + $0xc30] sm:$0xf]
    %v817 = vld [vmem:[%s1 + $0xc34] sm:$0xf]
    %v818 = vld [vmem:[%s1 + $0xc38] sm:$0xf]
    %v819 = vld [vmem:[%s1 + $0xc3c] sm:$0xf]
    %v820 = vld [vmem:[%s1 + $0xc40] sm:$0xf]
    %v821 = vld [vmem:[%s1 + $0xc44] sm:$0xf]
    %v822 = vld [vmem:[%s1 + $0xc48] sm:$0xf]
    %v823 = vld [vmem:[%s1 + $0xc4c] sm:$0xf]
    %v824 = vld [vmem:[%s1 + $0xc50] sm:$0xf]
    %v825 = vld [vmem:[%s1 + $0xc54] sm:$0xf]
    %v826 = vld [vmem:[%s1 + $0xc58] sm:$0xf]
    %v827 = vld [vmem:[%s1 + $0xc5c] sm:$0xf]
    %v828 = vld [vmem:[%s1 + $0xc60] sm:$0xf]
    %v829 = vld [vmem:[%s1 + $0xc64] sm:$0xf]
    %v830 = vld [vmem:[%s1 + $0xc68] sm:$0xf]
    %v831 = vld [vmem:[%s1 + $0xc6c] sm:$0xf]
    %v832 = vld [vmem:[%s1 + $0xc70] sm:$0xf]
    %v833 = vld [vmem:[%s1 + $0xc74] sm:$0xf]
    %v834 = vld [vmem:[%s1 + $0xc78] sm:$0xf]
    %v835 = vld [vmem:[%s1 + $0xc7c] sm:$0xf]
    %v836 = vld [vmem:[%s1 + $0xc80] sm:$0xf]
    %v837 = vld [vmem:[%s1 + $0xc84] sm:$0xf]
    %v838 = vld [vmem:[%s1 + $0xc88] sm:$0xf]
    %v839 = vld [vmem:[%s1 + $0xc8c] sm:$0xf]
    %v840 = vld [vmem:[%s1 + $0xc90] sm:$0xf]
    %v841 = vld [vmem:[%s1 + $0xc94] sm:$0xf]
    %v842 = vld [vmem:[%s1 + $0xc98] sm:$0xf]
    %v843 = vld [vmem:[%s1 + $0xc9c] sm:$0xf]
    %v844 = vld [vmem:[%s1 + $0xca0] sm:$0xf]
    %v845 = vld [vmem:[%s1 + $0xca4] sm:$0xf]
    %v846 = vld [vmem:[%s1 + $0xca8] sm:$0xf]
    %v847 = vld [vmem:[%s1 + $0xcac] sm:$0xf]
    %v848 = vld [vmem:[%s1 + $0xcb0] sm:$0xf]
    %v849 = vld [vmem:[%s1 + $0xcb4] sm:$0xf]
    %v850 = vld [vmem:[%s1 + $0xcb8] sm:$0xf]
    %v851 = vld [vmem:[%s1 + $0xcbc] sm:$0xf]
    %v852 = vld [vmem:[%s1 + $0xcc0] sm:$0xf]
    %v853 = vld [vmem:[%s1 + $0xcc4] sm:$0xf]
    %v854 = vld [vmem:[%s1 + $0xcc8] sm:$0xf]
    %v855 = vld [vmem:[%s1 + $0xccc] sm:$0xf]
    %v856 = vld [vmem:[%s1 + $0xcd0] sm:$0xf]
    %v857 = vld [vmem:[%s1 + $0xcd4] sm:$0xf]
    %v858 = vld [vmem:[%s1 + $0xcd8] sm:$0xf]
    %v859 = vld [vmem:[%s1 + $0xcdc] sm:$0xf]
    %v860 = vld [vmem:[%s1 + $0xce0] sm:$0xf]
    %v861 = vld [vmem:[%s1 + $0xce4] sm:$0xf]
    %v862 = vld [vmem:[%s1 + $0xce8] sm:$0xf]
    %v863 = vld [vmem:[%s1 + $0xcec] sm:$0xf]
    %v864 = vld [vmem:[%s1 + $0xcf0] sm:$0xf]
    %v865 = vld [vmem:[%s1 + $0xcf4] sm:$0xf]
    %v866 = vld [vmem:[%s1 + $0xcf8] sm:$0xf]
    %v867 = vld [vmem:[%s1 + $0xcfc] sm:$0xf]
    %v868 = vld [vmem:[%s1 + $0xd00] sm:$0xf]
    %v869 = vld [vmem:[%s1 + $0xd04] sm:$0xf]
    %v870 = vld [vmem:[%s1 + $0xd08] sm:$0xf]
    %v871 = vld [vmem:[%s1 + $0xd0c] sm:$0xf]
    %v872 = vld [vmem:[%s1 + $0xd10] sm:$0xf]
    %v873 = vld [vmem:[%s1 + $0xd14] sm:$0xf]
    %v874 = vld [vmem:[%s1 + $0xd18] sm:$0xf]
    %v875 = vld [vmem:[%s1 + $0xd1c] sm:$0xf]
    %v876 = vld [vmem:[%s1 + $0xd20] sm:$0xf]
    %v877 = vld [vmem:[%s1 + $0xd24] sm:$0xf]
    %v878 = vld [vmem:[%s1 + $0xd28] sm:$0xf]
    %v879 = vld [vmem:[%s1 + $0xd2c] sm:$0xf]
    %v880 = vld [vmem:[%s1 + $0xd30] sm:$0xf]
    %v881 = vld [vmem:[%s1 + $0xd34] sm:$0xf]
    %v882 = vld [vmem:[%s1 + $0xd38] sm:$0xf]
    %v883 = vld [vmem:[%s1 + $0xd3c] sm:$0xf]
    %v884 = vld [vmem:[%s1 + $0xd40] sm:$0xf]
    %v885 = vld [vmem:[%s1 + $0xd44] sm:$0xf]
    %v886 = vld [vmem:[%s1 + $0xd48] sm:$0xf]
    %v887 = vld [vmem:[%s1 + $0xd4c] sm:$0xf]
    %v888 = vld [vmem:[%s1 + $0xd50] sm:$0xf]
    %v889 = vld [vmem:[%s1 + $0xd54] sm:$0xf]
    %v890 = vld [vmem:[%s1 + $0xd58] sm:$0xf]
    %v891 = vld [vmem:[%s1 + $0xd5c] sm:$0xf]
    %v892 = vld [vmem:[%s1 + $0xd60] sm:$0xf]
    %v893 = vld [vmem:[%s1 + $0xd64] sm:$0xf]
    %v894 = vld [vmem:[%s1 + $0xd68] sm:$0xf]
    %v895 = vld [vmem:[%s1 + $0xd6c] sm:$0xf]
    %v896 = vld [vmem:[%s1 + $0xd70] sm:$0xf]
    %v897 = vld [vmem:[%s1 + $0xd74] sm:$0xf]
    %v898 = vld [vmem:[%s1 + $0xd78] sm:$0xf]
    %v899 = vld [vmem:[%s1 + $0xd7c] sm:$0xf]
    %v900 = vld [vmem:[%s1 + $0xd80] sm:$0xf]
    %v901 = vld [vmem:[%s1 + $0xd84] sm:$0xf]
    %v902 = vld [vmem:[%s1 + $0xd88] sm:$0xf]
    %v903 = vld [vmem:[%s1 + $0xd8c] sm:$0xf]
    %v904 = vld [vmem:[%s1 + $0xd90] sm:$0xf]
    %v905 = vld [vmem:[%s1 + $0xd94] sm:$0xf]
    %v906 = vld [vmem:[%s1 + $0xd98] sm:$0xf]
    %v907 = vld [vmem:[%s1 + $0xd9c] sm:$0xf]
    %v908 = vld [vmem:[%s1 + $0xda0] sm:$0xf]
    %v909 = vld [vmem:[%s1 + $0xda4] sm:$0xf]
    %v910 = vld [vmem:[%s1 + $0xda8] sm:$0xf]
    %v911 = vld [vmem:[%s1 + $0xdac] sm:$0xf]
    %v912 = vld [vmem:[%s1 + $0xdb0] sm:$0xf]
    %v913 = vld [vmem:[%s1 + $0xdb4] sm:$0xf]
    %v914 = vld [vmem:[%s1 + $0xdb8] sm:$0xf]
    %v915 = vld [vmem:[%s1 + $0xdbc] sm:$0xf]
    %v916 = vld [vmem:[%s1 + $0xdc0] sm:$0xf]
    %v917 = vld [vmem:[%s1 + $0xdc4] sm:$0xf]
    %v918 = vld [vmem:[%s1 + $0xdc8] sm:$0xf]
    %v919 = vld [vmem:[%s1 + $0xdcc] sm:$0xf]
    %v920 = vld [vmem:[%s1 + $0xdd0] sm:$0xf]
    %v921 = vld [vmem:[%s1 + $0xdd4] sm:$0xf]
    %v922 = vld [vmem:[%s1 + $0xdd8] sm:$0xf]
    %v923 = vld [vmem:[%s1 + $0xddc] sm:$0xf]
    %v924 = vld [vmem:[%s1 + $0xde0] sm:$0xf]
    %v925 = vld [vmem:[%s1 + $0xde4] sm:$0xf]
    %v926 = vld [vmem:[%s1 + $0xde8] sm:$0xf]
    %v927 = vld [vmem:[%s1 + $0xdec] sm:$0xf]
    %v928 = vld [vmem:[%s1 + $0xdf0] sm:$0xf]
    %v929 = vld [vmem:[%s1 + $0xdf4] sm:$0xf]
    %v930 = vld [vmem:[%s1 + $0xdf8] sm:$0xf]
    %v931 = vld [vmem:[%s1 + $0xdfc] sm:$0xf]
    %v932 = vld [vmem:[%s1 + $0xe00] sm:$0xf]
    %v933 = vld [vmem:[%s1 + $0xe04] sm:$0xf]
    %v934 = vld [vmem:[%s1 + $0xe08] sm:$0xf]
    %v935 = vld [vmem:[%s1 + $0xe0c] sm:$0xf]
    %v936 = vld [vmem:[%s1 + $0xe10] sm:$0xf]
    %v937 = vld [vmem:[%s1 + $0xe14] sm:$0xf]
    %v938 = vld [vmem:[%s1 + $0xe18] sm:$0xf]
    %v939 = vld [vmem:[%s1 + $0xe1c] sm:$0xf]
    %v940 = vld [vmem:[%s1 + $0xe20] sm:$0xf]
    %v941 = vld [vmem:[%s1 + $0xe24] sm:$0xf]
    %v942 = vld [vmem:[%s1 + $0xe28] sm:$0xf]
    %v943 = vld [vmem:[%s1 + $0xe2c] sm:$0xf]
    %v944 = vld [vmem:[%s1 + $0xe30] sm:$0xf]
    %v945 = vld [vmem:[%s1 + $0xe34] sm:$0xf]
    %v946 = vld [vmem:[%s1 + $0xe38] sm:$0xf]
    %v947 = vld [vmem:[%s1 + $0xe3c] sm:$0xf]
    %v948 = vld [vmem:[%s1 + $0xe40] sm:$0xf]
    %v949 = vld [vmem:[%s1 + $0xe44] sm:$0xf]
    %v950 = vld [vmem:[%s1 + $0xe48] sm:$0xf]
    %v951 = vld [vmem:[%s1 + $0xe4c] sm:$0xf]
    %v952 = vld [vmem:[%s1 + $0xe50] sm:$0xf]
    %v953 = vld [vmem:[%s1 + $0xe54] sm:$0xf]
    %v954 = vld [vmem:[%s1 + $0xe58] sm:$0xf]
    %v955 = vld [vmem:[%s1 + $0xe5c] sm:$0xf]
    %v956 = vld [vmem:[%s1 + $0xe60] sm:$0xf]
    %v957 = vld [vmem:[%s1 + $0xe64] sm:$0xf]
    %v958 = vld [vmem:[%s1 + $0xe68] sm:$0xf]
    %v959 = vld [vmem:[%s1 + $0xe6c] sm:$0xf]
    %v960 = vld [vmem:[%s1 + $0xe70] sm:$0xf]
    %v961 = vld [vmem:[%s1 + $0xe74] sm:$0xf]
    %v962 = vld [vmem:[%s1 + $0xe78] sm:$0xf]
    %v963 = vld [vmem:[%s1 + $0xe7c] sm:$0xf]
    %v964 = vld [vmem:[%s1 + $0xe80] sm:$0xf]
    %v965 = vld [vmem:[%s1 + $0xe84] sm:$0xf]
    %v966 = vld [vmem:[%s1 + $0xe88] sm:$0xf]
    %v967 = vld [vmem:[%s1 + $0xe8c] sm:$0xf]
    %v968 = vld [vmem:[%s1 + $0xe90] sm:$0xf]
    %v969 = vld [vmem:[%s1 + $0xe94] sm:$0xf]
    %v970 = vld [vmem:[%s1 + $0xe98] sm:$0xf]
    %v971 = vld [vmem:[%s1 + $0xe9c] sm:$0xf]
    %v972 = vld [vmem:[%s1 + $0xea0] sm:$0xf]
    %v973 = vld [vmem:[%s1 + $0xea4] sm:$0xf]
    %v974 = vld [vmem:[%s1 + $0xea8] sm:$0xf]
    %v975 = vld [vmem:[%s1 + $0xeac] sm:$0xf]
    %v976 = vld [vmem:[%s1 + $0xeb0] sm:$0xf]
    %v977 = vld [vmem:[%s1 + $0xeb4] sm:$0xf]
    %v978 = vld [vmem:[%s1 + $0xeb8] sm:$0xf]
    %v979 = vld [vmem:[%s1 + $0xebc] sm:$0xf]
    %v980 = vld [vmem:[%s1 + $0xec0] sm:$0xf]
    %v981 = vld [vmem:[%s1 + $0xec4] sm:$0xf]
    %v982 = vld [vmem:[%s1 + $0xec8] sm:$0xf]
    %v983 = vld [vmem:[%s1 + $0xecc] sm:$0xf]
    %v984 = vld [vmem:[%s1 + $0xed0] sm:$0xf]
    %v985 = vld [vmem:[%s1 + $0xed4] sm:$0xf]
    %v986 = vld [vmem:[%s1 + $0xed8] sm:$0xf]
    %v987 = vld [vmem:[%s1 + $0xedc] sm:$0xf]
    %v988 = vld [vmem:[%s1 + $0xee0] sm:$0xf]
    %v989 = vld [vmem:[%s1 + $0xee4] sm:$0xf]
    %v990 = vld [vmem:[%s1 + $0xee8] sm:$0xf]
    %v991 = vld [vmem:[%s1 + $0xeec] sm:$0xf]
    %v992 = vld [vmem:[%s1 + $0xef0] sm:$0xf]
    %v993 = vld [vmem:[%s1 + $0xef4] sm:$0xf]
    %v994 = vld [vmem:[%s1 + $0xef8] sm:$0xf]
    %v995 = vld [vmem:[%s1 + $0xefc] sm:$0xf]
    %v996 = vld [vmem:[%s1 + $0xf00] sm:$0xf]
    %v997 = vld [vmem:[%s1 + $0xf04] sm:$0xf]
    %v998 = vld [vmem:[%s1 + $0xf08] sm:$0xf]
    %v999 = vld [vmem:[%s1 + $0xf0c] sm:$0xf]
    %v1000 = vld [vmem:[%s1 + $0xf10] sm:$0xf]
    %v1001 = vld [vmem:[%s1 + $0xf14] sm:$0xf]
    %v1002 = vld [vmem:[%s1 + $0xf18] sm:$0xf]
    %v1003 = vld [vmem:[%s1 + $0xf1c] sm:$0xf]
    %v1004 = vld [vmem:[%s2] sm:$0x1]
    %v1006 = vlaneseq
    %v1007 = vshrl.u32 %v1006, 7
    %v1008 = vsub.s32 0, %v1007
    %v1009 = vrot.slane %v1004, %v1008
    %v1019 = vcombine.high %v28, %v28
    %v1021 = vunpack.c.l.s4 1966171168
    %v1022 = vunpack.c.0.s8 %v1021
    %v1023 = vlaneseq
    %v1024 = vshrl.u32 %v1023, 7
    %v1025 = vsub.s32 %v1022, %v1024
    %v1026 = vrot.slane %v28, %v1025
    %v1028 = vunpack.c.l.s4 1966171168
    %v1029 = vunpack.c.0.s8 %v1028
    %v1030 = vlaneseq
    %v1031 = vshrl.u32 %v1030, 7
    %v1032 = vsub.s32 %v1029, %v1031
    %v1033 = vrot.slane %v1019, %v1032
    %v1034 = vcombine.high %v1026, %v1026
    %v1035 = vcombine.high %v1033, %v1033
    %v1037 = vunpack.c.l.s4 1966171168
    %v1038 = vunpack.c.0.s8 %v1037
    %v1039 = vlaneseq
    %v1040 = vshrl.u32 %v1039, 7
    %v1041 = vsub.s32 %v1038, %v1040
    %v1042 = vrot.slane %v1026, %v1041
    %v1044 = vunpack.c.l.s4 1966171168
    %v1045 = vunpack.c.0.s8 %v1044
    %v1046 = vlaneseq
    %v1047 = vshrl.u32 %v1046, 7
    %v1048 = vsub.s32 %v1045, %v1047
    %v1049 = vrot.slane %v1033, %v1048
    %v1051 = vunpack.c.l.s4 1966171168
    %v1052 = vunpack.c.0.s8 %v1051
    %v1053 = vlaneseq
    %v1054 = vshrl.u32 %v1053, 7
    %v1055 = vsub.s32 %v1052, %v1054
    %v1056 = vrot.slane %v1034, %v1055
    %v1058 = vunpack.c.l.s4 1966171168
    %v1059 = vunpack.c.0.s8 %v1058
    %v1060 = vlaneseq
    %v1061 = vshrl.u32 %v1060, 7
    %v1062 = vsub.s32 %v1059, %v1061
    %v1063 = vrot.slane %v1035, %v1062
    %v1064 = vcombine.high %v1042, %v1042
    %v1065 = vcombine.high %v1049, %v1049
    %v1066 = vcombine.high %v1056, %v1056
    %v1067 = vcombine.high %v1063, %v1063
    %v1068 = vcombine.high %v29, %v29
    %v1070 = vunpack.c.l.s4 1966171168
    %v1071 = vunpack.c.0.s8 %v1070
    %v1072 = vlaneseq
    %v1073 = vshrl.u32 %v1072, 7
    %v1074 = vsub.s32 %v1071, %v1073
    %v1075 = vrot.slane %v29, %v1074
    %v1077 = vunpack.c.l.s4 1966171168
    %v1078 = vunpack.c.0.s8 %v1077
    %v1079 = vlaneseq
    %v1080 = vshrl.u32 %v1079, 7
    %v1081 = vsub.s32 %v1078, %v1080
    %v1082 = vrot.slane %v1068, %v1081
    %v1083 = vcombine.high %v1075, %v1075
    %v1084 = vcombine.high %v1082, %v1082
    %v1086 = vunpack.c.l.s4 1966171168
    %v1087 = vunpack.c.0.s8 %v1086
    %v1088 = vlaneseq
    %v1089 = vshrl.u32 %v1088, 7
    %v1090 = vsub.s32 %v1087, %v1089
    %v1091 = vrot.slane %v1075, %v1090
    %v1093 = vunpack.c.l.s4 1966171168
    %v1094 = vunpack.c.0.s8 %v1093
    %v1095 = vlaneseq
    %v1096 = vshrl.u32 %v1095, 7
    %v1097 = vsub.s32 %v1094, %v1096
    %v1098 = vrot.slane %v1082, %v1097
    %v1100 = vunpack.c.l.s4 1966171168
    %v1101 = vunpack.c.0.s8 %v1100
    %v1102 = vlaneseq
    %v1103 = vshrl.u32 %v1102, 7
    %v1104 = vsub.s32 %v1101, %v1103
    %v1105 = vrot.slane %v1083, %v1104
    %v1107 = vunpack.c.l.s4 1966171168
    %v1108 = vunpack.c.0.s8 %v1107
    %v1109 = vlaneseq
    %v1110 = vshrl.u32 %v1109, 7
    %v1111 = vsub.s32 %v1108, %v1110
    %v1112 = vrot.slane %v1084, %v1111
    %v1113 = vcombine.high %v1091, %v1091
    %v1114 = vcombine.high %v1098, %v1098
    %v1115 = vcombine.high %v1105, %v1105
    %v1116 = vcombine.high %v1112, %v1112
    %v1117 = vcombine.high %v30, %v30
    %v1119 = vunpack.c.l.s4 1966171168
    %v1120 = vunpack.c.0.s8 %v1119
    %v1121 = vlaneseq
    %v1122 = vshrl.u32 %v1121, 7
    %v1123 = vsub.s32 %v1120, %v1122
    %v1124 = vrot.slane %v30, %v1123
    %v1126 = vunpack.c.l.s4 1966171168
    %v1127 = vunpack.c.0.s8 %v1126
    %v1128 = vlaneseq
    %v1129 = vshrl.u32 %v1128, 7
    %v1130 = vsub.s32 %v1127, %v1129
    %v1131 = vrot.slane %v1117, %v1130
    %v1132 = vcombine.high %v1124, %v1124
    %v1133 = vcombine.high %v1131, %v1131
    %v1135 = vunpack.c.l.s4 1966171168
    %v1136 = vunpack.c.0.s8 %v1135
    %v1137 = vlaneseq
    %v1138 = vshrl.u32 %v1137, 7
    %v1139 = vsub.s32 %v1136, %v1138
    %v1140 = vrot.slane %v1124, %v1139
    %v1142 = vunpack.c.l.s4 1966171168
    %v1143 = vunpack.c.0.s8 %v1142
    %v1144 = vlaneseq
    %v1145 = vshrl.u32 %v1144, 7
    %v1146 = vsub.s32 %v1143, %v1145
    %v1147 = vrot.slane %v1131, %v1146
    %v1149 = vunpack.c.l.s4 1966171168
    %v1150 = vunpack.c.0.s8 %v1149
    %v1151 = vlaneseq
    %v1152 = vshrl.u32 %v1151, 7
    %v1153 = vsub.s32 %v1150, %v1152
    %v1154 = vrot.slane %v1132, %v1153
    %v1156 = vunpack.c.l.s4 1966171168
    %v1157 = vunpack.c.0.s8 %v1156
    %v1158 = vlaneseq
    %v1159 = vshrl.u32 %v1158, 7
    %v1160 = vsub.s32 %v1157, %v1159
    %v1161 = vrot.slane %v1133, %v1160
    %v1162 = vcombine.high %v1140, %v1140
    %v1163 = vcombine.high %v1147, %v1147
    %v1164 = vcombine.high %v1154, %v1154
    %v1165 = vcombine.high %v1161, %v1161
    %v1166 = vcombine.high %v31, %v31
    %v1168 = vunpack.c.l.s4 1966171168
    %v1169 = vunpack.c.0.s8 %v1168
    %v1170 = vlaneseq
    %v1171 = vshrl.u32 %v1170, 7
    %v1172 = vsub.s32 %v1169, %v1171
    %v1173 = vrot.slane %v31, %v1172
    %v1175 = vunpack.c.l.s4 1966171168
    %v1176 = vunpack.c.0.s8 %v1175
    %v1177 = vlaneseq
    %v1178 = vshrl.u32 %v1177, 7
    %v1179 = vsub.s32 %v1176, %v1178
    %v1180 = vrot.slane %v1166, %v1179
    %v1181 = vcombine.high %v1173, %v1173
    %v1182 = vcombine.high %v1180, %v1180
    %v1184 = vunpack.c.l.s4 1966171168
    %v1185 = vunpack.c.0.s8 %v1184
    %v1186 = vlaneseq
    %v1187 = vshrl.u32 %v1186, 7
    %v1188 = vsub.s32 %v1185, %v1187
    %v1189 = vrot.slane %v1173, %v1188
    %v1191 = vunpack.c.l.s4 1966171168
    %v1192 = vunpack.c.0.s8 %v1191
    %v1193 = vlaneseq
    %v1194 = vshrl.u32 %v1193, 7
    %v1195 = vsub.s32 %v1192, %v1194
    %v1196 = vrot.slane %v1180, %v1195
    %v1198 = vunpack.c.l.s4 1966171168
    %v1199 = vunpack.c.0.s8 %v1198
    %v1200 = vlaneseq
    %v1201 = vshrl.u32 %v1200, 7
    %v1202 = vsub.s32 %v1199, %v1201
    %v1203 = vrot.slane %v1181, %v1202
    %v1205 = vunpack.c.l.s4 1966171168
    %v1206 = vunpack.c.0.s8 %v1205
    %v1207 = vlaneseq
    %v1208 = vshrl.u32 %v1207, 7
    %v1209 = vsub.s32 %v1206, %v1208
    %v1210 = vrot.slane %v1182, %v1209
    %v1211 = vcombine.high %v1189, %v1189
    %v1212 = vcombine.high %v1196, %v1196
    %v1213 = vcombine.high %v1203, %v1203
    %v1214 = vcombine.high %v1210, %v1210
    %v1215 = vcombine.high %v32, %v32
    %v1217 = vunpack.c.l.s4 1966171168
    %v1218 = vunpack.c.0.s8 %v1217
    %v1219 = vlaneseq
    %v1220 = vshrl.u32 %v1219, 7
    %v1221 = vsub.s32 %v1218, %v1220
    %v1222 = vrot.slane %v32, %v1221
    %v1224 = vunpack.c.l.s4 1966171168
    %v1225 = vunpack.c.0.s8 %v1224
    %v1226 = vlaneseq
    %v1227 = vshrl.u32 %v1226, 7
    %v1228 = vsub.s32 %v1225, %v1227
    %v1229 = vrot.slane %v1215, %v1228
    %v1230 = vcombine.high %v1222, %v1222
    %v1231 = vcombine.high %v1229, %v1229
    %v1233 = vunpack.c.l.s4 1966171168
    %v1234 = vunpack.c.0.s8 %v1233
    %v1235 = vlaneseq
    %v1236 = vshrl.u32 %v1235, 7
    %v1237 = vsub.s32 %v1234, %v1236
    %v1238 = vrot.slane %v1222, %v1237
    %v1240 = vunpack.c.l.s4 1966171168
    %v1241 = vunpack.c.0.s8 %v1240
    %v1242 = vlaneseq
    %v1243 = vshrl.u32 %v1242, 7
    %v1244 = vsub.s32 %v1241, %v1243
    %v1245 = vrot.slane %v1229, %v1244
    %v1247 = vunpack.c.l.s4 1966171168
    %v1248 = vunpack.c.0.s8 %v1247
    %v1249 = vlaneseq
    %v1250 = vshrl.u32 %v1249, 7
    %v1251 = vsub.s32 %v1248, %v1250
    %v1252 = vrot.slane %v1230, %v1251
    %v1254 = vunpack.c.l.s4 1966171168
    %v1255 = vunpack.c.0.s8 %v1254
    %v1256 = vlaneseq
    %v1257 = vshrl.u32 %v1256, 7
    %v1258 = vsub.s32 %v1255, %v1257
    %v1259 = vrot.slane %v1231, %v1258
    %v1260 = vcombine.high %v1238, %v1238
    %v1261 = vcombine.high %v1245, %v1245
    %v1262 = vcombine.high %v1252, %v1252
    %v1263 = vcombine.high %v1259, %v1259
    %v1264 = vcombine.high %v33, %v33
    %v1266 = vunpack.c.l.s4 1966171168
    %v1267 = vunpack.c.0.s8 %v1266
    %v1268 = vlaneseq
    %v1269 = vshrl.u32 %v1268, 7
    %v1270 = vsub.s32 %v1267, %v1269
    %v1271 = vrot.slane %v33, %v1270
    %v1273 = vunpack.c.l.s4 1966171168
    %v1274 = vunpack.c.0.s8 %v1273
    %v1275 = vlaneseq
    %v1276 = vshrl.u32 %v1275, 7
    %v1277 = vsub.s32 %v1274, %v1276
    %v1278 = vrot.slane %v1264, %v1277
    %v1279 = vcombine.high %v1271, %v1271
    %v1280 = vcombine.high %v1278, %v1278
    %v1282 = vunpack.c.l.s4 1966171168
    %v1283 = vunpack.c.0.s8 %v1282
    %v1284 = vlaneseq
    %v1285 = vshrl.u32 %v1284, 7
    %v1286 = vsub.s32 %v1283, %v1285
    %v1287 = vrot.slane %v1271, %v1286
    %v1289 = vunpack.c.l.s4 1966171168
    %v1290 = vunpack.c.0.s8 %v1289
    %v1291 = vlaneseq
    %v1292 = vshrl.u32 %v1291, 7
    %v1293 = vsub.s32 %v1290, %v1292
    %v1294 = vrot.slane %v1278, %v1293
    %v1296 = vunpack.c.l.s4 1966171168
    %v1297 = vunpack.c.0.s8 %v1296
    %v1298 = vlaneseq
    %v1299 = vshrl.u32 %v1298, 7
    %v1300 = vsub.s32 %v1297, %v1299
    %v1301 = vrot.slane %v1279, %v1300
    %v1303 = vunpack.c.l.s4 1966171168
    %v1304 = vunpack.c.0.s8 %v1303
    %v1305 = vlaneseq
    %v1306 = vshrl.u32 %v1305, 7
    %v1307 = vsub.s32 %v1304, %v1306
    %v1308 = vrot.slane %v1280, %v1307
    %v1309 = vcombine.high %v1287, %v1287
    %v1310 = vcombine.high %v1294, %v1294
    %v1311 = vcombine.high %v1301, %v1301
    %v1312 = vcombine.high %v1308, %v1308
    %v1313 = vcombine.high %v34, %v34
    %v1315 = vunpack.c.l.s4 1966171168
    %v1316 = vunpack.c.0.s8 %v1315
    %v1317 = vlaneseq
    %v1318 = vshrl.u32 %v1317, 7
    %v1319 = vsub.s32 %v1316, %v1318
    %v1320 = vrot.slane %v34, %v1319
    %v1322 = vunpack.c.l.s4 1966171168
    %v1323 = vunpack.c.0.s8 %v1322
    %v1324 = vlaneseq
    %v1325 = vshrl.u32 %v1324, 7
    %v1326 = vsub.s32 %v1323, %v1325
    %v1327 = vrot.slane %v1313, %v1326
    %v1328 = vcombine.high %v1320, %v1320
    %v1329 = vcombine.high %v1327, %v1327
    %v1331 = vunpack.c.l.s4 1966171168
    %v1332 = vunpack.c.0.s8 %v1331
    %v1333 = vlaneseq
    %v1334 = vshrl.u32 %v1333, 7
    %v1335 = vsub.s32 %v1332, %v1334
    %v1336 = vrot.slane %v1320, %v1335
    %v1338 = vunpack.c.l.s4 1966171168
    %v1339 = vunpack.c.0.s8 %v1338
    %v1340 = vlaneseq
    %v1341 = vshrl.u32 %v1340, 7
    %v1342 = vsub.s32 %v1339, %v1341
    %v1343 = vrot.slane %v1327, %v1342
    %v1345 = vunpack.c.l.s4 1966171168
    %v1346 = vunpack.c.0.s8 %v1345
    %v1347 = vlaneseq
    %v1348 = vshrl.u32 %v1347, 7
    %v1349 = vsub.s32 %v1346, %v1348
    %v1350 = vrot.slane %v1328, %v1349
    %v1352 = vunpack.c.l.s4 1966171168
    %v1353 = vunpack.c.0.s8 %v1352
    %v1354 = vlaneseq
    %v1355 = vshrl.u32 %v1354, 7
    %v1356 = vsub.s32 %v1353, %v1355
    %v1357 = vrot.slane %v1329, %v1356
    %v1358 = vcombine.high %v1336, %v1336
    %v1359 = vcombine.high %v1343, %v1343
    %v1360 = vcombine.high %v1350, %v1350
    %v1361 = vcombine.high %v1357, %v1357
    %v1362 = vcombine.high %v35, %v35
    %v1364 = vunpack.c.l.s4 1966171168
    %v1365 = vunpack.c.0.s8 %v1364
    %v1366 = vlaneseq
    %v1367 = vshrl.u32 %v1366, 7
    %v1368 = vsub.s32 %v1365, %v1367
    %v1369 = vrot.slane %v35, %v1368
    %v1371 = vunpack.c.l.s4 1966171168
    %v1372 = vunpack.c.0.s8 %v1371
    %v1373 = vlaneseq
    %v1374 = vshrl.u32 %v1373, 7
    %v1375 = vsub.s32 %v1372, %v1374
    %v1376 = vrot.slane %v1362, %v1375
    %v1377 = vcombine.high %v1369, %v1369
    %v1379 = vunpack.c.l.s4 1966171168
    %v1380 = vunpack.c.0.s8 %v1379
    %v1381 = vlaneseq
    %v1382 = vshrl.u32 %v1381, 7
    %v1383 = vsub.s32 %v1380, %v1382
    %v1384 = vrot.slane %v1369, %v1383
    %v1386 = vunpack.c.l.s4 1966171168
    %v1387 = vunpack.c.0.s8 %v1386
    %v1388 = vlaneseq
    %v1389 = vshrl.u32 %v1388, 7
    %v1390 = vsub.s32 %v1387, %v1389
    %v1391 = vrot.slane %v1376, %v1390
    %v1393 = vunpack.c.l.s4 1966171168
    %v1394 = vunpack.c.0.s8 %v1393
    %v1395 = vlaneseq
    %v1396 = vshrl.u32 %v1395, 7
    %v1397 = vsub.s32 %v1394, %v1396
    %v1398 = vrot.slane %v1377, %v1397
    %v1399 = vcombine.high %v1384, %v1384
    %v1400 = vcombine.high %v1398, %v1398
    %v2429 = vunpack.c.l.b16 %v36
    %v2430 = vunpack.c.l.b16 %v37
    %v2431 = vunpack.c.l.b16 %v38
    %v2432 = vunpack.c.l.b16 %v39
    %v2433 = vunpack.c.l.b16 %v40
    %v2434 = vunpack.c.l.b16 %v41
    %v2435 = vunpack.c.l.b16 %v42
    %v2436 = vunpack.c.l.b16 %v43
    %v2437 = vunpack.c.l.b16 %v44
    %v2438 = vunpack.c.l.b16 %v45
    %v2439 = vunpack.c.l.b16 %v46
    %v2440 = vunpack.c.l.b16 %v47
    %v2441 = vunpack.c.l.b16 %v48
    %v2442 = vunpack.c.l.b16 %v49
    %v2443 = vunpack.c.l.b16 %v50
    %v2444 = vunpack.c.l.b16 %v51
    %v2445 = vunpack.c.l.b16 %v52
    %v2446 = vunpack.c.l.b16 %v53
    %v2447 = vunpack.c.l.b16 %v54
    %v2448 = vunpack.c.l.b16 %v55
    %v2449 = vunpack.c.l.b16 %v56
    %v2450 = vunpack.c.l.b16 %v57
    %v2451 = vunpack.c.l.b16 %v58
    %v2452 = vunpack.c.l.b16 %v59
    %v2453 = vunpack.c.l.b16 %v60
    %v2454 = vunpack.c.l.b16 %v61
    %v2455 = vunpack.c.l.b16 %v62
    %v2456 = vunpack.c.l.b16 %v63
    %v2457 = vunpack.c.l.b16 %v64
    %v2458 = vunpack.c.l.b16 %v65
    %v2459 = vunpack.c.l.b16 %v66
    %v2460 = vunpack.c.l.b16 %v67
    %v2461 = vunpack.c.l.b16 %v68
    %v2462 = vunpack.c.l.b16 %v69
    %v2463 = vunpack.c.l.b16 %v70
    %v2464 = vunpack.c.l.b16 %v71
    %v2465 = vunpack.c.l.b16 %v72
    %v2466 = vunpack.c.l.b16 %v73
    %v2467 = vunpack.c.l.b16 %v74
    %v2468 = vunpack.c.l.b16 %v75
    %v2469 = vunpack.c.l.b16 %v76
    %v2470 = vunpack.c.l.b16 %v77
    %v2471 = vunpack.c.l.b16 %v78
    %v2472 = vunpack.c.l.b16 %v79
    %v2473 = vunpack.c.l.b16 %v80
    %v2474 = vunpack.c.l.b16 %v81
    %v2475 = vunpack.c.l.b16 %v82
    %v2476 = vunpack.c.l.b16 %v83
    %v2477 = vunpack.c.l.b16 %v84
    %v2478 = vunpack.c.l.b16 %v85
    %v2479 = vunpack.c.l.b16 %v86
    %v2480 = vunpack.c.l.b16 %v87
    %v2481 = vunpack.c.l.b16 %v88
    %v2482 = vunpack.c.l.b16 %v89
    %v2483 = vunpack.c.l.b16 %v90
    %v2484 = vunpack.c.l.b16 %v91
    %v2485 = vunpack.c.l.b16 %v92
    %v2486 = vunpack.c.l.b16 %v93
    %v2487 = vunpack.c.l.b16 %v94
    %v2488 = vunpack.c.l.b16 %v95
    %v2489 = vunpack.c.l.b16 %v96
    %v2490 = vunpack.c.l.b16 %v97
    %v2491 = vunpack.c.l.b16 %v98
    %v2492 = vunpack.c.l.b16 %v99
    %v2493 = vunpack.c.l.b16 %v100
    %v2494 = vunpack.c.l.b16 %v101
    %v2495 = vunpack.c.l.b16 %v102
    %v2496 = vunpack.c.l.b16 %v103
    %v2497 = vunpack.c.l.b16 %v104
    %v2498 = vunpack.c.l.b16 %v105
    %v2499 = vunpack.c.l.b16 %v106
    %v2500 = vunpack.c.l.b16 %v107
    %v2501 = vunpack.c.l.b16 %v108
    %v2502 = vunpack.c.l.b16 %v109
    %v2503 = vunpack.c.l.b16 %v110
    %v2504 = vunpack.c.l.b16 %v111
    %v2505 = vunpack.c.l.b16 %v112
    %v2506 = vunpack.c.l.b16 %v113
    %v2507 = vunpack.c.l.b16 %v114
    %v2508 = vunpack.c.l.b16 %v115
    %v2509 = vunpack.c.l.b16 %v116
    %v2510 = vunpack.c.l.b16 %v117
    %v2511 = vunpack.c.l.b16 %v118
    %v2512 = vunpack.c.l.b16 %v119
    %v2513 = vunpack.c.l.b16 %v120
    %v2514 = vunpack.c.l.b16 %v121
    %v2515 = vunpack.c.l.b16 %v122
    %v2516 = vunpack.c.l.b16 %v123
    %v2517 = vunpack.c.l.b16 %v124
    %v2518 = vunpack.c.l.b16 %v125
    %v2519 = vunpack.c.l.b16 %v126
    %v2520 = vunpack.c.l.b16 %v127
    %v2521 = vunpack.c.l.b16 %v128
    %v2522 = vunpack.c.l.b16 %v129
    %v2523 = vunpack.c.l.b16 %v130
    %v2524 = vunpack.c.l.b16 %v131
    %v2525 = vunpack.c.l.b16 %v132
    %v2526 = vunpack.c.l.b16 %v133
    %v2527 = vunpack.c.l.b16 %v134
    %v2528 = vunpack.c.l.b16 %v135
    %v2529 = vunpack.c.l.b16 %v136
    %v2530 = vunpack.c.l.b16 %v137
    %v2531 = vunpack.c.l.b16 %v138
    %v2532 = vunpack.c.l.b16 %v139
    %v2533 = vunpack.c.l.b16 %v140
    %v2534 = vunpack.c.l.b16 %v141
    %v2535 = vunpack.c.l.b16 %v142
    %v2536 = vunpack.c.l.b16 %v143
    %v2537 = vunpack.c.l.b16 %v144
    %v2538 = vunpack.c.l.b16 %v145
    %v2539 = vunpack.c.l.b16 %v146
    %v2540 = vunpack.c.l.b16 %v147
    %v2541 = vunpack.c.l.b16 %v148
    %v2542 = vunpack.c.l.b16 %v149
    %v2543 = vunpack.c.l.b16 %v150
    %v2544 = vunpack.c.l.b16 %v151
    %v2545 = vunpack.c.l.b16 %v152
    %v2546 = vunpack.c.l.b16 %v153
    %v2547 = vunpack.c.l.b16 %v154
    %v2548 = vunpack.c.l.b16 %v155
    %v2549 = vunpack.c.l.b16 %v156
    %v2550 = vunpack.c.l.b16 %v157
    %v2551 = vunpack.c.l.b16 %v158
    %v2552 = vunpack.c.l.b16 %v159
    %v2553 = vunpack.c.l.b16 %v160
    %v2554 = vunpack.c.l.b16 %v161
    %v2555 = vunpack.c.l.b16 %v162
    %v2556 = vunpack.c.l.b16 %v163
    %v2557 = vunpack.c.l.b16 %v164
    %v2558 = vunpack.c.l.b16 %v165
    %v2559 = vunpack.c.l.b16 %v166
    %v2560 = vunpack.c.l.b16 %v167
    %v2561 = vunpack.c.l.b16 %v168
    %v2562 = vunpack.c.l.b16 %v169
    %v2563 = vunpack.c.l.b16 %v170
    %v2564 = vunpack.c.l.b16 %v171
    %v2565 = vunpack.c.l.b16 %v172
    %v2566 = vunpack.c.l.b16 %v173
    %v2567 = vunpack.c.l.b16 %v174
    %v2568 = vunpack.c.l.b16 %v175
    %v2569 = vunpack.c.l.b16 %v176
    %v2570 = vunpack.c.l.b16 %v177
    %v2571 = vunpack.c.l.b16 %v178
    %v2572 = vunpack.c.l.b16 %v179
    %v2573 = vunpack.c.l.b16 %v180
    %v2574 = vunpack.c.l.b16 %v181
    %v2575 = vunpack.c.l.b16 %v182
    %v2576 = vunpack.c.l.b16 %v183
    %v2577 = vunpack.c.l.b16 %v184
    %v2578 = vunpack.c.l.b16 %v185
    %v2579 = vunpack.c.l.b16 %v186
    %v2580 = vunpack.c.l.b16 %v187
    %v2581 = vunpack.c.l.b16 %v188
    %v2582 = vunpack.c.l.b16 %v189
    %v2583 = vunpack.c.l.b16 %v190
    %v2584 = vunpack.c.l.b16 %v191
    %v2585 = vunpack.c.l.b16 %v192
    %v2586 = vunpack.c.l.b16 %v193
    %v2587 = vunpack.c.l.b16 %v194
    %v2588 = vunpack.c.l.b16 %v195
    %v2589 = vunpack.c.l.b16 %v196
    %v2590 = vunpack.c.l.b16 %v197
    %v2591 = vunpack.c.l.b16 %v198
    %v2592 = vunpack.c.l.b16 %v199
    %v2593 = vunpack.c.l.b16 %v200
    %v2594 = vunpack.c.l.b16 %v201
    %v2595 = vunpack.c.l.b16 %v202
    %v2596 = vunpack.c.l.b16 %v203
    %v2597 = vunpack.c.l.b16 %v204
    %v2598 = vunpack.c.l.b16 %v205
    %v2599 = vunpack.c.l.b16 %v206
    %v2600 = vunpack.c.l.b16 %v207
    %v2601 = vunpack.c.l.b16 %v208
    %v2602 = vunpack.c.l.b16 %v209
    %v2603 = vunpack.c.l.b16 %v210
    %v2604 = vunpack.c.l.b16 %v211
    %v2605 = vunpack.c.l.b16 %v212
    %v2606 = vunpack.c.l.b16 %v213
    %v2607 = vunpack.c.l.b16 %v214
    %v2608 = vunpack.c.l.b16 %v215
    %v2609 = vunpack.c.l.b16 %v216
    %v2610 = vunpack.c.l.b16 %v217
    %v2611 = vunpack.c.l.b16 %v218
    %v2612 = vunpack.c.l.b16 %v219
    %v2613 = vunpack.c.l.b16 %v220
    %v2614 = vunpack.c.l.b16 %v221
    %v2615 = vunpack.c.l.b16 %v222
    %v2616 = vunpack.c.l.b16 %v223
    %v2617 = vunpack.c.l.b16 %v224
    %v2618 = vunpack.c.l.b16 %v225
    %v2619 = vunpack.c.l.b16 %v226
    %v2620 = vunpack.c.l.b16 %v227
    %v2621 = vunpack.c.l.b16 %v228
    %v2622 = vunpack.c.l.b16 %v229
    %v2623 = vunpack.c.l.b16 %v230
    %v2624 = vunpack.c.l.b16 %v231
    %v2625 = vunpack.c.l.b16 %v232
    %v2626 = vunpack.c.l.b16 %v233
    %v2627 = vunpack.c.l.b16 %v234
    %v2628 = vunpack.c.l.b16 %v235
    %v2629 = vunpack.c.l.b16 %v236
    %v2630 = vunpack.c.l.b16 %v237
    %v2631 = vunpack.c.l.b16 %v238
    %v2632 = vunpack.c.l.b16 %v239
    %v2633 = vunpack.c.l.b16 %v240
    %v2634 = vunpack.c.l.b16 %v241
    %v2635 = vunpack.c.l.b16 %v242
    %v2636 = vunpack.c.l.b16 %v243
    %v2637 = vunpack.c.l.b16 %v244
    %v2638 = vunpack.c.l.b16 %v245
    %v2639 = vunpack.c.l.b16 %v246
    %v2640 = vunpack.c.l.b16 %v247
    %v2641 = vunpack.c.l.b16 %v248
    %v2642 = vunpack.c.l.b16 %v249
    %v2643 = vunpack.c.l.b16 %v250
    %v2644 = vunpack.c.l.b16 %v251
    %v2645 = vunpack.c.l.b16 %v252
    %v2646 = vunpack.c.l.b16 %v253
    %v2647 = vunpack.c.l.b16 %v254
    %v2648 = vunpack.c.l.b16 %v255
    %v2649 = vunpack.c.l.b16 %v256
    %v2650 = vunpack.c.l.b16 %v257
    %v2651 = vunpack.c.l.b16 %v258
    %v2652 = vunpack.c.l.b16 %v259
    %v2653 = vunpack.c.l.b16 %v260
    %v2654 = vunpack.c.l.b16 %v261
    %v2655 = vunpack.c.l.b16 %v262
    %v2656 = vunpack.c.l.b16 %v263
    %v2657 = vunpack.c.l.b16 %v264
    %v2658 = vunpack.c.l.b16 %v265
    %v2659 = vunpack.c.l.b16 %v266
    %v2660 = vunpack.c.l.b16 %v267
    %v2661 = vunpack.c.l.b16 %v268
    %v2662 = vunpack.c.l.b16 %v269
    %v2663 = vunpack.c.l.b16 %v270
    %v2664 = vunpack.c.l.b16 %v271
    %v2665 = vunpack.c.l.b16 %v272
    %v2666 = vunpack.c.l.b16 %v273
    %v2667 = vunpack.c.l.b16 %v274
    %v2668 = vunpack.c.l.b16 %v275
    %v2669 = vunpack.c.l.b16 %v276
    %v2670 = vunpack.c.l.b16 %v277
    %v2671 = vunpack.c.l.b16 %v278
    %v2672 = vunpack.c.l.b16 %v279
    %v2673 = vunpack.c.l.b16 %v280
    %v2674 = vunpack.c.l.b16 %v281
    %v2675 = vunpack.c.l.b16 %v282
    %v2676 = vunpack.c.l.b16 %v283
    %v2677 = vunpack.c.l.b16 %v284
    %v2678 = vunpack.c.l.b16 %v285
    %v2679 = vunpack.c.l.b16 %v286
    %v2680 = vunpack.c.l.b16 %v287
    %v2681 = vunpack.c.l.b16 %v288
    %v2682 = vunpack.c.l.b16 %v289
    %v2683 = vunpack.c.l.b16 %v290
    %v2684 = vunpack.c.l.b16 %v291
    %v2685 = vunpack.c.l.b16 %v292
    %v2686 = vunpack.c.l.b16 %v293
    %v2687 = vunpack.c.l.b16 %v294
    %v2688 = vunpack.c.l.b16 %v295
    %v2689 = vunpack.c.l.b16 %v296
    %v2690 = vunpack.c.l.b16 %v297
    %v2691 = vunpack.c.l.b16 %v298
    %v2692 = vunpack.c.l.b16 %v299
    %v2693 = vunpack.c.l.b16 %v300
    %v2694 = vunpack.c.l.b16 %v301
    %v2695 = vunpack.c.l.b16 %v302
    %v2696 = vunpack.c.l.b16 %v303
    %v2697 = vunpack.c.l.b16 %v304
    %v2698 = vunpack.c.l.b16 %v305
    %v2699 = vunpack.c.l.b16 %v306
    %v2700 = vunpack.c.l.b16 %v307
    %v2701 = vunpack.c.l.b16 %v308
    %v2702 = vunpack.c.l.b16 %v309
    %v2703 = vunpack.c.l.b16 %v310
    %v2704 = vunpack.c.l.b16 %v311
    %v2705 = vunpack.c.l.b16 %v312
    %v2706 = vunpack.c.l.b16 %v313
    %v2707 = vunpack.c.l.b16 %v314
    %v2708 = vunpack.c.l.b16 %v315
    %v2709 = vunpack.c.l.b16 %v316
    %v2710 = vunpack.c.l.b16 %v317
    %v2711 = vunpack.c.l.b16 %v318
    %v2712 = vunpack.c.l.b16 %v319
    %v2713 = vunpack.c.l.b16 %v320
    %v2714 = vunpack.c.l.b16 %v321
    %v2715 = vunpack.c.l.b16 %v322
    %v2716 = vunpack.c.l.b16 %v323
    %v2717 = vunpack.c.l.b16 %v324
    %v2718 = vunpack.c.l.b16 %v325
    %v2719 = vunpack.c.l.b16 %v326
    %v2720 = vunpack.c.l.b16 %v327
    %v2721 = vunpack.c.l.b16 %v328
    %v2722 = vunpack.c.l.b16 %v329
    %v2723 = vunpack.c.l.b16 %v330
    %v2724 = vunpack.c.l.b16 %v331
    %v2725 = vunpack.c.l.b16 %v332
    %v2726 = vunpack.c.l.b16 %v333
    %v2727 = vunpack.c.l.b16 %v334
    %v2728 = vunpack.c.l.b16 %v335
    %v2729 = vunpack.c.l.b16 %v336
    %v2730 = vunpack.c.l.b16 %v337
    %v2731 = vunpack.c.l.b16 %v338
    %v2732 = vunpack.c.l.b16 %v339
    %v2733 = vunpack.c.l.b16 %v340
    %v2734 = vunpack.c.l.b16 %v341
    %v2735 = vunpack.c.l.b16 %v342
    %v2736 = vunpack.c.l.b16 %v343
    %v2737 = vunpack.c.l.b16 %v344
    %v2738 = vunpack.c.l.b16 %v345
    %v2739 = vunpack.c.l.b16 %v346
    %v2740 = vunpack.c.l.b16 %v347
    %v2741 = vunpack.c.l.b16 %v348
    %v2742 = vunpack.c.l.b16 %v349
    %v2743 = vunpack.c.l.b16 %v350
    %v2744 = vunpack.c.l.b16 %v351
    %v2745 = vunpack.c.l.b16 %v352
    %v2746 = vunpack.c.l.b16 %v353
    %v2747 = vunpack.c.l.b16 %v354
    %v2748 = vunpack.c.l.b16 %v355
    %v2749 = vunpack.c.l.b16 %v356
    %v2750 = vunpack.c.l.b16 %v357
    %v2751 = vunpack.c.l.b16 %v358
    %v2752 = vunpack.c.l.b16 %v359
    %v2753 = vunpack.c.l.b16 %v360
    %v2754 = vunpack.c.l.b16 %v361
    %v2755 = vunpack.c.l.b16 %v362
    %v2756 = vunpack.c.l.b16 %v363
    %v2757 = vunpack.c.l.b16 %v364
    %v2758 = vunpack.c.l.b16 %v365
    %v2759 = vunpack.c.l.b16 %v366
    %v2760 = vunpack.c.l.b16 %v367
    %v2761 = vunpack.c.l.b16 %v368
    %v2762 = vunpack.c.l.b16 %v369
    %v2763 = vunpack.c.l.b16 %v370
    %v2764 = vunpack.c.l.b16 %v371
    %v2765 = vunpack.c.l.b16 %v372
    %v2766 = vunpack.c.l.b16 %v373
    %v2767 = vunpack.c.l.b16 %v374
    %v2768 = vunpack.c.l.b16 %v375
    %v2769 = vunpack.c.l.b16 %v376
    %v2770 = vunpack.c.l.b16 %v377
    %v2771 = vunpack.c.l.b16 %v378
    %v2772 = vunpack.c.l.b16 %v379
    %v2773 = vunpack.c.l.b16 %v380
    %v2774 = vunpack.c.l.b16 %v381
    %v2775 = vunpack.c.l.b16 %v382
    %v2776 = vunpack.c.l.b16 %v383
    %v2777 = vunpack.c.l.b16 %v384
    %v2778 = vunpack.c.l.b16 %v385
    %v2779 = vunpack.c.l.b16 %v386
    %v2780 = vunpack.c.l.b16 %v387
    %v2781 = vunpack.c.l.b16 %v388
    %v2782 = vunpack.c.l.b16 %v389
    %v2783 = vunpack.c.l.b16 %v390
    %v2784 = vunpack.c.l.b16 %v391
    %v2785 = vunpack.c.l.b16 %v392
    %v2786 = vunpack.c.l.b16 %v393
    %v2787 = vunpack.c.l.b16 %v394
    %v2788 = vunpack.c.l.b16 %v395
    %v2789 = vunpack.c.l.b16 %v396
    %v2790 = vunpack.c.l.b16 %v397
    %v2791 = vunpack.c.l.b16 %v398
    %v2792 = vunpack.c.l.b16 %v399
    %v2793 = vunpack.c.l.b16 %v400
    %v2794 = vunpack.c.l.b16 %v401
    %v2795 = vunpack.c.l.b16 %v402
    %v2796 = vunpack.c.l.b16 %v403
    %v2797 = vunpack.c.l.b16 %v404
    %v2798 = vunpack.c.l.b16 %v405
    %v2799 = vunpack.c.l.b16 %v406
    %v2800 = vunpack.c.l.b16 %v407
    %v2801 = vunpack.c.l.b16 %v408
    %v2802 = vunpack.c.l.b16 %v409
    %v2803 = vunpack.c.l.b16 %v410
    %v2804 = vunpack.c.l.b16 %v411
    %v2805 = vunpack.c.l.b16 %v412
    %v2806 = vunpack.c.l.b16 %v413
    %v2807 = vunpack.c.l.b16 %v414
    %v2808 = vunpack.c.l.b16 %v415
    %v2809 = vunpack.c.l.b16 %v416
    %v2810 = vunpack.c.l.b16 %v417
    %v2811 = vunpack.c.l.b16 %v418
    %v2812 = vunpack.c.l.b16 %v419
    %v2813 = vunpack.c.l.b16 %v420
    %v2814 = vunpack.c.l.b16 %v421
    %v2815 = vunpack.c.l.b16 %v422
    %v2816 = vunpack.c.l.b16 %v423
    %v2817 = vunpack.c.l.b16 %v424
    %v2818 = vunpack.c.l.b16 %v425
    %v2819 = vunpack.c.l.b16 %v426
    %v2820 = vunpack.c.l.b16 %v427
    %v2821 = vunpack.c.l.b16 %v428
    %v2822 = vunpack.c.l.b16 %v429
    %v2823 = vunpack.c.l.b16 %v430
    %v2824 = vunpack.c.l.b16 %v431
    %v2825 = vunpack.c.l.b16 %v432
    %v2826 = vunpack.c.l.b16 %v433
    %v2827 = vunpack.c.l.b16 %v434
    %v2828 = vunpack.c.l.b16 %v435
    %v2829 = vunpack.c.l.b16 %v436
    %v2830 = vunpack.c.l.b16 %v437
    %v2831 = vunpack.c.l.b16 %v438
    %v2832 = vunpack.c.l.b16 %v439
    %v2833 = vunpack.c.l.b16 %v440
    %v2834 = vunpack.c.l.b16 %v441
    %v2835 = vunpack.c.l.b16 %v442
    %v2836 = vunpack.c.l.b16 %v443
    %v2837 = vunpack.c.l.b16 %v444
    %v2838 = vunpack.c.l.b16 %v445
    %v2839 = vunpack.c.l.b16 %v446
    %v2840 = vunpack.c.l.b16 %v447
    %v2841 = vunpack.c.l.b16 %v448
    %v2842 = vunpack.c.l.b16 %v449
    %v2843 = vunpack.c.l.b16 %v450
    %v2844 = vunpack.c.l.b16 %v451
    %v2845 = vunpack.c.l.b16 %v452
    %v2846 = vunpack.c.l.b16 %v453
    %v2847 = vunpack.c.l.b16 %v454
    %v2848 = vunpack.c.l.b16 %v455
    %v2849 = vunpack.c.l.b16 %v456
    %v2850 = vunpack.c.l.b16 %v457
    %v2851 = vunpack.c.l.b16 %v458
    %v2852 = vunpack.c.l.b16 %v459
    %v2853 = vunpack.c.l.b16 %v460
    %v2854 = vunpack.c.l.b16 %v461
    %v2855 = vunpack.c.l.b16 %v462
    %v2856 = vunpack.c.l.b16 %v463
    %v2857 = vunpack.c.l.b16 %v464
    %v2858 = vunpack.c.l.b16 %v465
    %v2859 = vunpack.c.l.b16 %v466
    %v2860 = vunpack.c.l.b16 %v467
    %v2861 = vunpack.c.l.b16 %v468
    %v2862 = vunpack.c.l.b16 %v469
    %v2863 = vunpack.c.l.b16 %v470
    %v2864 = vunpack.c.l.b16 %v471
    %v2865 = vunpack.c.l.b16 %v472
    %v2866 = vunpack.c.l.b16 %v473
    %v2867 = vunpack.c.l.b16 %v474
    %v2868 = vunpack.c.l.b16 %v475
    %v2869 = vunpack.c.l.b16 %v476
    %v2870 = vunpack.c.l.b16 %v477
    %v2871 = vunpack.c.l.b16 %v478
    %v2872 = vunpack.c.l.b16 %v479
    %v2873 = vunpack.c.l.b16 %v480
    %v2874 = vunpack.c.l.b16 %v481
    %v2875 = vunpack.c.l.b16 %v482
    %v2876 = vunpack.c.l.b16 %v483
    %v2877 = vunpack.c.l.b16 %v484
    %v2878 = vunpack.c.l.b16 %v485
    %v2879 = vunpack.c.l.b16 %v486
    %v2880 = vunpack.c.l.b16 %v487
    %v2881 = vunpack.c.l.b16 %v488
    %v2882 = vunpack.c.l.b16 %v489
    %v2883 = vunpack.c.l.b16 %v490
    %v2884 = vunpack.c.l.b16 %v491
    %v2885 = vunpack.c.l.b16 %v492
    %v2886 = vunpack.c.l.b16 %v493
    %v2887 = vunpack.c.l.b16 %v494
    %v2888 = vunpack.c.l.b16 %v495
    %v2889 = vunpack.c.l.b16 %v496
    %v2890 = vunpack.c.l.b16 %v497
    %v2891 = vunpack.c.l.b16 %v498
    %v2892 = vunpack.c.l.b16 %v499
    %v2893 = vunpack.c.l.b16 %v500
    %v2894 = vunpack.c.l.b16 %v501
    %v2895 = vunpack.c.l.b16 %v502
    %v2896 = vunpack.c.l.b16 %v503
    %v2897 = vunpack.c.l.b16 %v504
    %v2898 = vunpack.c.l.b16 %v505
    %v2899 = vunpack.c.l.b16 %v506
    %v2900 = vunpack.c.l.b16 %v507
    %v2901 = vunpack.c.l.b16 %v508
    %v2902 = vunpack.c.l.b16 %v509
    %v2903 = vunpack.c.l.b16 %v510
    %v2904 = vunpack.c.l.b16 %v511
    %v2905 = vunpack.c.l.b16 %v512
    %v2906 = vunpack.c.l.b16 %v513
    %v2907 = vunpack.c.l.b16 %v514
    %v2908 = vunpack.c.l.b16 %v515
    %v2909 = vunpack.c.l.b16 %v516
    %v2910 = vunpack.c.l.b16 %v517
    %v2911 = vunpack.c.l.b16 %v518
    %v2912 = vunpack.c.l.b16 %v519
    %v2913 = vunpack.c.l.b16 %v520
    %v2914 = vunpack.c.l.b16 %v521
    %v2915 = vunpack.c.l.b16 %v522
    %v2916 = vunpack.c.l.b16 %v523
    %v2917 = vunpack.c.l.b16 %v524
    %v2918 = vunpack.c.l.b16 %v525
    %v2919 = vunpack.c.l.b16 %v526
    %v2920 = vunpack.c.l.b16 %v527
    %v2921 = vunpack.c.l.b16 %v528
    %v2922 = vunpack.c.l.b16 %v529
    %v2923 = vunpack.c.l.b16 %v530
    %v2924 = vunpack.c.l.b16 %v531
    %v2925 = vunpack.c.l.b16 %v532
    %v2926 = vunpack.c.l.b16 %v533
    %v2927 = vunpack.c.l.b16 %v534
    %v2928 = vunpack.c.l.b16 %v535
    %v2929 = vunpack.c.l.b16 %v536
    %v2930 = vunpack.c.l.b16 %v537
    %v2931 = vunpack.c.l.b16 %v538
    %v2932 = vunpack.c.l.b16 %v539
    %v2933 = vunpack.c.l.b16 %v540
    %v2934 = vunpack.c.l.b16 %v541
    %v2935 = vunpack.c.l.b16 %v542
    %v2936 = vunpack.c.l.b16 %v543
    %v2937 = vunpack.c.l.b16 %v544
    %v2938 = vunpack.c.l.b16 %v545
    %v2939 = vunpack.c.l.b16 %v546
    %v2940 = vunpack.c.l.b16 %v547
    %v2941 = vunpack.c.l.b16 %v548
    %v2942 = vunpack.c.l.b16 %v549
    %v2943 = vunpack.c.l.b16 %v550
    %v2944 = vunpack.c.l.b16 %v551
    %v2945 = vunpack.c.l.b16 %v552
    %v2946 = vunpack.c.l.b16 %v553
    %v2947 = vunpack.c.l.b16 %v554
    %v2948 = vunpack.c.l.b16 %v555
    %v2949 = vunpack.c.l.b16 %v556
    %v2950 = vunpack.c.l.b16 %v557
    %v2951 = vunpack.c.l.b16 %v558
    %v2952 = vunpack.c.l.b16 %v559
    %v2953 = vunpack.c.l.b16 %v560
    %v2954 = vunpack.c.l.b16 %v561
    %v2955 = vunpack.c.l.b16 %v562
    %v2956 = vunpack.c.l.b16 %v563
    %v2957 = vunpack.c.l.b16 %v564
    %v2958 = vunpack.c.l.b16 %v565
    %v2959 = vunpack.c.l.b16 %v566
    %v2960 = vunpack.c.l.b16 %v567
    %v2961 = vunpack.c.l.b16 %v568
    %v2962 = vunpack.c.l.b16 %v569
    %v2963 = vunpack.c.l.b16 %v570
    %v2964 = vunpack.c.l.b16 %v571
    %v2965 = vunpack.c.l.b16 %v572
    %v2966 = vunpack.c.l.b16 %v573
    %v2967 = vunpack.c.l.b16 %v574
    %v2968 = vunpack.c.l.b16 %v575
    %v2969 = vunpack.c.l.b16 %v576
    %v2970 = vunpack.c.l.b16 %v577
    %v2971 = vunpack.c.l.b16 %v578
    %v2972 = vunpack.c.l.b16 %v579
    %v2973 = vunpack.c.l.b16 %v580
    %v2974 = vunpack.c.l.b16 %v581
    %v2975 = vunpack.c.l.b16 %v582
    %v2976 = vunpack.c.l.b16 %v583
    %v2977 = vunpack.c.l.b16 %v584
    %v2978 = vunpack.c.l.b16 %v585
    %v2979 = vunpack.c.l.b16 %v586
    %v2980 = vunpack.c.l.b16 %v587
    %v2981 = vunpack.c.l.b16 %v588
    %v2982 = vunpack.c.l.b16 %v589
    %v2983 = vunpack.c.l.b16 %v590
    %v2984 = vunpack.c.l.b16 %v591
    %v2985 = vunpack.c.l.b16 %v592
    %v2986 = vunpack.c.l.b16 %v593
    %v2987 = vunpack.c.l.b16 %v594
    %v2988 = vunpack.c.l.b16 %v595
    %v2989 = vunpack.c.l.b16 %v596
    %v2990 = vunpack.c.l.b16 %v597
    %v2991 = vunpack.c.l.b16 %v598
    %v2992 = vunpack.c.l.b16 %v599
    %v2993 = vunpack.c.l.b16 %v600
    %v2994 = vunpack.c.l.b16 %v601
    %v2995 = vunpack.c.l.b16 %v602
    %v2996 = vunpack.c.l.b16 %v603
    %v2997 = vunpack.c.l.b16 %v604
    %v2998 = vunpack.c.l.b16 %v605
    %v2999 = vunpack.c.l.b16 %v606
    %v3000 = vunpack.c.l.b16 %v607
    %v3001 = vunpack.c.l.b16 %v608
    %v3002 = vunpack.c.l.b16 %v609
    %v3003 = vunpack.c.l.b16 %v610
    %v3004 = vunpack.c.l.b16 %v611
    %v3005 = vunpack.c.l.b16 %v612
    %v3006 = vunpack.c.l.b16 %v613
    %v3007 = vunpack.c.l.b16 %v614
    %v3008 = vunpack.c.l.b16 %v615
    %v3009 = vunpack.c.l.b16 %v616
    %v3010 = vunpack.c.l.b16 %v617
    %v3011 = vunpack.c.l.b16 %v618
    %v3012 = vunpack.c.l.b16 %v619
    %v3013 = vunpack.c.l.b16 %v620
    %v3014 = vunpack.c.l.b16 %v621
    %v3015 = vunpack.c.l.b16 %v622
    %v3016 = vunpack.c.l.b16 %v623
    %v3017 = vunpack.c.l.b16 %v624
    %v3018 = vunpack.c.l.b16 %v625
    %v3019 = vunpack.c.l.b16 %v626
    %v3020 = vunpack.c.l.b16 %v627
    %v3021 = vunpack.c.l.b16 %v628
    %v3022 = vunpack.c.l.b16 %v629
    %v3023 = vunpack.c.l.b16 %v630
    %v3024 = vunpack.c.l.b16 %v631
    %v3025 = vunpack.c.l.b16 %v632
    %v3026 = vunpack.c.l.b16 %v633
    %v3027 = vunpack.c.l.b16 %v634
    %v3028 = vunpack.c.l.b16 %v635
    %v3029 = vunpack.c.l.b16 %v636
    %v3030 = vunpack.c.l.b16 %v637
    %v3031 = vunpack.c.l.b16 %v638
    %v3032 = vunpack.c.l.b16 %v639
    %v3033 = vunpack.c.l.b16 %v640
    %v3034 = vunpack.c.l.b16 %v641
    %v3035 = vunpack.c.l.b16 %v642
    %v3036 = vunpack.c.l.b16 %v643
    %v3037 = vunpack.c.l.b16 %v644
    %v3038 = vunpack.c.l.b16 %v645
    %v3039 = vunpack.c.l.b16 %v646
    %v3040 = vunpack.c.l.b16 %v647
    %v3041 = vunpack.c.l.b16 %v648
    %v3042 = vunpack.c.l.b16 %v649
    %v3043 = vunpack.c.l.b16 %v650
    %v3044 = vunpack.c.l.b16 %v651
    %v3045 = vunpack.c.l.b16 %v652
    %v3046 = vunpack.c.l.b16 %v653
    %v3047 = vunpack.c.l.b16 %v654
    %v3048 = vunpack.c.l.b16 %v655
    %v3049 = vunpack.c.l.b16 %v656
    %v3050 = vunpack.c.l.b16 %v657
    %v3051 = vunpack.c.l.b16 %v658
    %v3052 = vunpack.c.l.b16 %v659
    %v3053 = vunpack.c.l.b16 %v660
    %v3054 = vunpack.c.l.b16 %v661
    %v3055 = vunpack.c.l.b16 %v662
    %v3056 = vunpack.c.l.b16 %v663
    %v3057 = vunpack.c.l.b16 %v664
    %v3058 = vunpack.c.l.b16 %v665
    %v3059 = vunpack.c.l.b16 %v666
    %v3060 = vunpack.c.l.b16 %v667
    %v3061 = vunpack.c.l.b16 %v668
    %v3062 = vunpack.c.l.b16 %v669
    %v3063 = vunpack.c.l.b16 %v670
    %v3064 = vunpack.c.l.b16 %v671
    %v3065 = vunpack.c.l.b16 %v672
    %v3066 = vunpack.c.l.b16 %v673
    %v3067 = vunpack.c.l.b16 %v674
    %v3068 = vunpack.c.l.b16 %v675
    %v3069 = vunpack.c.l.b16 %v676
    %v3070 = vunpack.c.l.b16 %v677
    %v3071 = vunpack.c.l.b16 %v678
    %v3072 = vunpack.c.l.b16 %v679
    %v3073 = vunpack.c.l.b16 %v680
    %v3074 = vunpack.c.l.b16 %v681
    %v3075 = vunpack.c.l.b16 %v682
    %v3076 = vunpack.c.l.b16 %v683
    %v3077 = vunpack.c.l.b16 %v684
    %v3078 = vunpack.c.l.b16 %v685
    %v3079 = vunpack.c.l.b16 %v686
    %v3080 = vunpack.c.l.b16 %v687
    %v3081 = vunpack.c.l.b16 %v688
    %v3082 = vunpack.c.l.b16 %v689
    %v3083 = vunpack.c.l.b16 %v690
    %v3084 = vunpack.c.l.b16 %v691
    %v3085 = vunpack.c.l.b16 %v692
    %v3086 = vunpack.c.l.b16 %v693
    %v3087 = vunpack.c.l.b16 %v694
    %v3088 = vunpack.c.l.b16 %v695
    %v3089 = vunpack.c.l.b16 %v696
    %v3090 = vunpack.c.l.b16 %v697
    %v3091 = vunpack.c.l.b16 %v698
    %v3092 = vunpack.c.l.b16 %v699
    %v3093 = vunpack.c.l.b16 %v700
    %v3094 = vunpack.c.l.b16 %v701
    %v3095 = vunpack.c.l.b16 %v702
    %v3096 = vunpack.c.l.b16 %v703
    %v3097 = vunpack.c.l.b16 %v704
    %v3098 = vunpack.c.l.b16 %v705
    %v3099 = vunpack.c.l.b16 %v706
    %v3100 = vunpack.c.l.b16 %v707
    %v3101 = vunpack.c.l.b16 %v708
    %v3102 = vunpack.c.l.b16 %v709
    %v3103 = vunpack.c.l.b16 %v710
    %v3104 = vunpack.c.l.b16 %v711
    %v3105 = vunpack.c.l.b16 %v712
    %v3106 = vunpack.c.l.b16 %v713
    %v3107 = vunpack.c.l.b16 %v714
    %v3108 = vunpack.c.l.b16 %v715
    %v3109 = vunpack.c.l.b16 %v716
    %v3110 = vunpack.c.l.b16 %v717
    %v3111 = vunpack.c.l.b16 %v718
    %v3112 = vunpack.c.l.b16 %v719
    %v3113 = vunpack.c.l.b16 %v720
    %v3114 = vunpack.c.l.b16 %v721
    %v3115 = vunpack.c.l.b16 %v722
    %v3116 = vunpack.c.l.b16 %v723
    %v3117 = vunpack.c.l.b16 %v724
    %v3118 = vunpack.c.l.b16 %v725
    %v3119 = vunpack.c.l.b16 %v726
    %v3120 = vunpack.c.l.b16 %v727
    %v3121 = vunpack.c.l.b16 %v728
    %v3122 = vunpack.c.l.b16 %v729
    %v3123 = vunpack.c.l.b16 %v730
    %v3124 = vunpack.c.l.b16 %v731
    %v3125 = vunpack.c.l.b16 %v732
    %v3126 = vunpack.c.l.b16 %v733
    %v3127 = vunpack.c.l.b16 %v734
    %v3128 = vunpack.c.l.b16 %v735
    %v3129 = vunpack.c.l.b16 %v736
    %v3130 = vunpack.c.l.b16 %v737
    %v3131 = vunpack.c.l.b16 %v738
    %v3132 = vunpack.c.l.b16 %v739
    %v3133 = vunpack.c.l.b16 %v740
    %v3134 = vunpack.c.l.b16 %v741
    %v3135 = vunpack.c.l.b16 %v742
    %v3136 = vunpack.c.l.b16 %v743
    %v3137 = vunpack.c.l.b16 %v744
    %v3138 = vunpack.c.l.b16 %v745
    %v3139 = vunpack.c.l.b16 %v746
    %v3140 = vunpack.c.l.b16 %v747
    %v3141 = vunpack.c.l.b16 %v748
    %v3142 = vunpack.c.l.b16 %v749
    %v3143 = vunpack.c.l.b16 %v750
    %v3144 = vunpack.c.l.b16 %v751
    %v3145 = vunpack.c.l.b16 %v752
    %v3146 = vunpack.c.l.b16 %v753
    %v3147 = vunpack.c.l.b16 %v754
    %v3148 = vunpack.c.l.b16 %v755
    %v3149 = vunpack.c.l.b16 %v756
    %v3150 = vunpack.c.l.b16 %v757
    %v3151 = vunpack.c.l.b16 %v758
    %v3152 = vunpack.c.l.b16 %v759
    %v3153 = vunpack.c.l.b16 %v760
    %v3154 = vunpack.c.l.b16 %v761
    %v3155 = vunpack.c.l.b16 %v762
    %v3156 = vunpack.c.l.b16 %v763
    %v3157 = vunpack.c.l.b16 %v764
    %v3158 = vunpack.c.l.b16 %v765
    %v3159 = vunpack.c.l.b16 %v766
    %v3160 = vunpack.c.l.b16 %v767
    %v3161 = vunpack.c.l.b16 %v768
    %v3162 = vunpack.c.l.b16 %v769
    %v3163 = vunpack.c.l.b16 %v770
    %v3164 = vunpack.c.l.b16 %v771
    %v3165 = vunpack.c.l.b16 %v772
    %v3166 = vunpack.c.l.b16 %v773
    %v3167 = vunpack.c.l.b16 %v774
    %v3168 = vunpack.c.l.b16 %v775
    %v3169 = vunpack.c.l.b16 %v776
    %v3170 = vunpack.c.l.b16 %v777
    %v3171 = vunpack.c.l.b16 %v778
    %v3172 = vunpack.c.l.b16 %v779
    %v3173 = vunpack.c.l.b16 %v780
    %v3174 = vunpack.c.l.b16 %v781
    %v3175 = vunpack.c.l.b16 %v782
    %v3176 = vunpack.c.l.b16 %v783
    %v3177 = vunpack.c.l.b16 %v784
    %v3178 = vunpack.c.l.b16 %v785
    %v3179 = vunpack.c.l.b16 %v786
    %v3180 = vunpack.c.l.b16 %v787
    %v3181 = vunpack.c.l.b16 %v788
    %v3182 = vunpack.c.l.b16 %v789
    %v3183 = vunpack.c.l.b16 %v790
    %v3184 = vunpack.c.l.b16 %v791
    %v3185 = vunpack.c.l.b16 %v792
    %v3186 = vunpack.c.l.b16 %v793
    %v3187 = vunpack.c.l.b16 %v794
    %v3188 = vunpack.c.l.b16 %v795
    %v3189 = vunpack.c.l.b16 %v796
    %v3190 = vunpack.c.l.b16 %v797
    %v3191 = vunpack.c.l.b16 %v798
    %v3192 = vunpack.c.l.b16 %v799
    %v3193 = vunpack.c.l.b16 %v800
    %v3194 = vunpack.c.l.b16 %v801
    %v3195 = vunpack.c.l.b16 %v802
    %v3196 = vunpack.c.l.b16 %v803
    %v3197 = vunpack.c.l.b16 %v804
    %v3198 = vunpack.c.l.b16 %v805
    %v3199 = vunpack.c.l.b16 %v806
    %v3200 = vunpack.c.l.b16 %v807
    %v3201 = vunpack.c.l.b16 %v808
    %v3202 = vunpack.c.l.b16 %v809
    %v3203 = vunpack.c.l.b16 %v810
    %v3204 = vunpack.c.l.b16 %v811
    %v3205 = vunpack.c.l.b16 %v812
    %v3206 = vunpack.c.l.b16 %v813
    %v3207 = vunpack.c.l.b16 %v814
    %v3208 = vunpack.c.l.b16 %v815
    %v3209 = vunpack.c.l.b16 %v816
    %v3210 = vunpack.c.l.b16 %v817
    %v3211 = vunpack.c.l.b16 %v818
    %v3212 = vunpack.c.l.b16 %v819
    %v3213 = vunpack.c.l.b16 %v820
    %v3214 = vunpack.c.l.b16 %v821
    %v3215 = vunpack.c.l.b16 %v822
    %v3216 = vunpack.c.l.b16 %v823
    %v3217 = vunpack.c.l.b16 %v824
    %v3218 = vunpack.c.l.b16 %v825
    %v3219 = vunpack.c.l.b16 %v826
    %v3220 = vunpack.c.l.b16 %v827
    %v3221 = vunpack.c.l.b16 %v828
    %v3222 = vunpack.c.l.b16 %v829
    %v3223 = vunpack.c.l.b16 %v830
    %v3224 = vunpack.c.l.b16 %v831
    %v3225 = vunpack.c.l.b16 %v832
    %v3226 = vunpack.c.l.b16 %v833
    %v3227 = vunpack.c.l.b16 %v834
    %v3228 = vunpack.c.l.b16 %v835
    %v3229 = vunpack.c.l.b16 %v836
    %v3230 = vunpack.c.l.b16 %v837
    %v3231 = vunpack.c.l.b16 %v838
    %v3232 = vunpack.c.l.b16 %v839
    %v3233 = vunpack.c.l.b16 %v840
    %v3234 = vunpack.c.l.b16 %v841
    %v3235 = vunpack.c.l.b16 %v842
    %v3236 = vunpack.c.l.b16 %v843
    %v3237 = vunpack.c.l.b16 %v844
    %v3238 = vunpack.c.l.b16 %v845
    %v3239 = vunpack.c.l.b16 %v846
    %v3240 = vunpack.c.l.b16 %v847
    %v3241 = vunpack.c.l.b16 %v848
    %v3242 = vunpack.c.l.b16 %v849
    %v3243 = vunpack.c.l.b16 %v850
    %v3244 = vunpack.c.l.b16 %v851
    %v3245 = vunpack.c.l.b16 %v852
    %v3246 = vunpack.c.l.b16 %v853
    %v3247 = vunpack.c.l.b16 %v854
    %v3248 = vunpack.c.l.b16 %v855
    %v3249 = vunpack.c.l.b16 %v856
    %v3250 = vunpack.c.l.b16 %v857
    %v3251 = vunpack.c.l.b16 %v858
    %v3252 = vunpack.c.l.b16 %v859
    %v3253 = vunpack.c.l.b16 %v860
    %v3254 = vunpack.c.l.b16 %v861
    %v3255 = vunpack.c.l.b16 %v862
    %v3256 = vunpack.c.l.b16 %v863
    %v3257 = vunpack.c.l.b16 %v864
    %v3258 = vunpack.c.l.b16 %v865
    %v3259 = vunpack.c.l.b16 %v866
    %v3260 = vunpack.c.l.b16 %v867
    %v3261 = vunpack.c.l.b16 %v868
    %v3262 = vunpack.c.l.b16 %v869
    %v3263 = vunpack.c.l.b16 %v870
    %v3264 = vunpack.c.l.b16 %v871
    %v3265 = vunpack.c.l.b16 %v872
    %v3266 = vunpack.c.l.b16 %v873
    %v3267 = vunpack.c.l.b16 %v874
    %v3268 = vunpack.c.l.b16 %v875
    %v3269 = vunpack.c.l.b16 %v876
    %v3270 = vunpack.c.l.b16 %v877
    %v3271 = vunpack.c.l.b16 %v878
    %v3272 = vunpack.c.l.b16 %v879
    %v3273 = vunpack.c.l.b16 %v880
    %v3274 = vunpack.c.l.b16 %v881
    %v3275 = vunpack.c.l.b16 %v882
    %v3276 = vunpack.c.l.b16 %v883
    %v3277 = vunpack.c.l.b16 %v884
    %v3278 = vunpack.c.l.b16 %v885
    %v3279 = vunpack.c.l.b16 %v886
    %v3280 = vunpack.c.l.b16 %v887
    %v3281 = vunpack.c.l.b16 %v888
    %v3282 = vunpack.c.l.b16 %v889
    %v3283 = vunpack.c.l.b16 %v890
    %v3284 = vunpack.c.l.b16 %v891
    %v3285 = vunpack.c.l.b16 %v892
    %v3286 = vunpack.c.l.b16 %v893
    %v3287 = vunpack.c.l.b16 %v894
    %v3288 = vunpack.c.l.b16 %v895
    %v3289 = vunpack.c.l.b16 %v896
    %v3290 = vunpack.c.l.b16 %v897
    %v3291 = vunpack.c.l.b16 %v898
    %v3292 = vunpack.c.l.b16 %v899
    %v3293 = vunpack.c.l.b16 %v900
    %v3294 = vunpack.c.l.b16 %v901
    %v3295 = vunpack.c.l.b16 %v902
    %v3296 = vunpack.c.l.b16 %v903
    %v3297 = vunpack.c.l.b16 %v904
    %v3298 = vunpack.c.l.b16 %v905
    %v3299 = vunpack.c.l.b16 %v906
    %v3300 = vunpack.c.l.b16 %v907
    %v3301 = vunpack.c.l.b16 %v908
    %v3302 = vunpack.c.l.b16 %v909
    %v3303 = vunpack.c.l.b16 %v910
    %v3304 = vunpack.c.l.b16 %v911
    %v3305 = vunpack.c.l.b16 %v912
    %v3306 = vunpack.c.l.b16 %v913
    %v3307 = vunpack.c.l.b16 %v914
    %v3308 = vunpack.c.l.b16 %v915
    %v3309 = vunpack.c.l.b16 %v916
    %v3310 = vunpack.c.l.b16 %v917
    %v3311 = vunpack.c.l.b16 %v918
    %v3312 = vunpack.c.l.b16 %v919
    %v3313 = vunpack.c.l.b16 %v920
    %v3314 = vunpack.c.l.b16 %v921
    %v3315 = vunpack.c.l.b16 %v922
    %v3316 = vunpack.c.l.b16 %v923
    %v3317 = vunpack.c.l.b16 %v924
    %v3318 = vunpack.c.l.b16 %v925
    %v3319 = vunpack.c.l.b16 %v926
    %v3320 = vunpack.c.l.b16 %v927
    %v3321 = vunpack.c.l.b16 %v928
    %v3322 = vunpack.c.l.b16 %v929
    %v3323 = vunpack.c.l.b16 %v930
    %v3324 = vunpack.c.l.b16 %v931
    %v3325 = vunpack.c.l.b16 %v932
    %v3326 = vunpack.c.l.b16 %v933
    %v3327 = vunpack.c.l.b16 %v934
    %v3328 = vunpack.c.l.b16 %v935
    %v3329 = vunpack.c.l.b16 %v936
    %v3330 = vunpack.c.l.b16 %v937
    %v3331 = vunpack.c.l.b16 %v938
    %v3332 = vunpack.c.l.b16 %v939
    %v3333 = vunpack.c.l.b16 %v940
    %v3334 = vunpack.c.l.b16 %v941
    %v3335 = vunpack.c.l.b16 %v942
    %v3336 = vunpack.c.l.b16 %v943
    %v3337 = vunpack.c.l.b16 %v944
    %v3338 = vunpack.c.l.b16 %v945
    %v3339 = vunpack.c.l.b16 %v946
    %v3340 = vunpack.c.l.b16 %v947
    %v3341 = vunpack.c.l.b16 %v948
    %v3342 = vunpack.c.l.b16 %v949
    %v3343 = vunpack.c.l.b16 %v950
    %v3344 = vunpack.c.l.b16 %v951
    %v3345 = vunpack.c.l.b16 %v952
    %v3346 = vunpack.c.l.b16 %v953
    %v3347 = vunpack.c.l.b16 %v954
    %v3348 = vunpack.c.l.b16 %v955
    %v3349 = vunpack.c.l.b16 %v956
    %v3350 = vunpack.c.l.b16 %v957
    %v3351 = vunpack.c.l.b16 %v958
    %v3352 = vunpack.c.l.b16 %v959
    %v3353 = vunpack.c.l.b16 %v960
    %v3354 = vunpack.c.l.b16 %v961
    %v3355 = vunpack.c.l.b16 %v962
    %v3356 = vunpack.c.l.b16 %v963
    %v3357 = vunpack.c.l.b16 %v964
    %v3358 = vunpack.c.l.b16 %v965
    %v3359 = vunpack.c.l.b16 %v966
    %v3360 = vunpack.c.l.b16 %v967
    %v3361 = vunpack.c.l.b16 %v968
    %v3362 = vunpack.c.l.b16 %v969
    %v3363 = vunpack.c.l.b16 %v970
    %v3364 = vunpack.c.l.b16 %v971
    %v3365 = vunpack.c.l.b16 %v972
    %v3366 = vunpack.c.l.b16 %v973
    %v3367 = vunpack.c.l.b16 %v974
    %v3368 = vunpack.c.l.b16 %v975
    %v3369 = vunpack.c.l.b16 %v976
    %v3370 = vunpack.c.l.b16 %v977
    %v3371 = vunpack.c.l.b16 %v978
    %v3372 = vunpack.c.l.b16 %v979
    %v3373 = vunpack.c.l.b16 %v980
    %v3374 = vunpack.c.l.b16 %v981
    %v3375 = vunpack.c.l.b16 %v982
    %v3376 = vunpack.c.l.b16 %v983
    %v3377 = vunpack.c.l.b16 %v984
    %v3378 = vunpack.c.l.b16 %v985
    %v3379 = vunpack.c.l.b16 %v986
    %v3380 = vunpack.c.l.b16 %v987
    %v3381 = vunpack.c.l.b16 %v988
    %v3382 = vunpack.c.l.b16 %v989
    %v3383 = vunpack.c.l.b16 %v990
    %v3384 = vunpack.c.l.b16 %v991
    %v3385 = vunpack.c.l.b16 %v992
    %v3386 = vunpack.c.l.b16 %v993
    %v3387 = vunpack.c.l.b16 %v994
    %v3388 = vunpack.c.l.b16 %v995
    %v3389 = vunpack.c.l.b16 %v996
    %v3390 = vunpack.c.l.b16 %v997
    %v3391 = vunpack.c.l.b16 %v998
    %v3392 = vunpack.c.l.b16 %v999
    %v3393 = vunpack.c.l.b16 %v1000
    %v3394 = vunpack.c.l.b16 %v1001
    %v3395 = vunpack.c.l.b16 %v1002
    %v3396 = vunpack.c.l.b16 %v1003
    %v3397 = vpack.c.b16 %v2430, %v2429
    %v3398 = vpack.c.b16 %v2432, %v2431
    %v3399 = vpack.c.b16 %v2434, %v2433
    %v3400 = vpack.c.b16 %v2436, %v2435
    %v3401 = vpack.c.b16 %v2438, %v2437
    %v3402 = vpack.c.b16 %v2440, %v2439
    %v3403 = vpack.c.b16 %v2442, %v2441
    %v3404 = vpack.c.b16 %v2444, %v2443
    %v3405 = vpack.c.b16 %v2446, %v2445
    %v3406 = vpack.c.b16 %v2448, %v2447
    %v3407 = vpack.c.b16 %v2450, %v2449
    %v3408 = vpack.c.b16 %v2452, %v2451
    %v3409 = vpack.c.b16 %v2454, %v2453
    %v3410 = vpack.c.b16 %v2456, %v2455
    %v3411 = vpack.c.b16 %v2458, %v2457
    %v3412 = vpack.c.b16 %v2460, %v2459
    %v3413 = vpack.c.b16 %v2462, %v2461
    %v3414 = vpack.c.b16 %v2464, %v2463
    %v3415 = vpack.c.b16 %v2466, %v2465
    %v3416 = vpack.c.b16 %v2468, %v2467
    %v3417 = vpack.c.b16 %v2470, %v2469
    %v3418 = vpack.c.b16 %v2472, %v2471
    %v3419 = vpack.c.b16 %v2474, %v2473
    %v3420 = vpack.c.b16 %v2476, %v2475
    %v3421 = vpack.c.b16 %v2478, %v2477
    %v3422 = vpack.c.b16 %v2480, %v2479
    %v3423 = vpack.c.b16 %v2482, %v2481
    %v3424 = vpack.c.b16 %v2484, %v2483
    %v3425 = vpack.c.b16 %v2486, %v2485
    %v3426 = vpack.c.b16 %v2488, %v2487
    %v3427 = vpack.c.b16 %v2490, %v2489
    %v3428 = vpack.c.b16 %v2492, %v2491
    %v3429 = vpack.c.b16 %v2494, %v2493
    %v3430 = vpack.c.b16 %v2496, %v2495
    %v3431 = vpack.c.b16 %v2498, %v2497
    %v3432 = vpack.c.b16 %v2500, %v2499
    %v3433 = vpack.c.b16 %v2502, %v2501
    %v3434 = vpack.c.b16 %v2504, %v2503
    %v3435 = vpack.c.b16 %v2506, %v2505
    %v3436 = vpack.c.b16 %v2508, %v2507
    %v3437 = vpack.c.b16 %v2510, %v2509
    %v3438 = vpack.c.b16 %v2512, %v2511
    %v3439 = vpack.c.b16 %v2514, %v2513
    %v3440 = vpack.c.b16 %v2516, %v2515
    %v3441 = vpack.c.b16 %v2518, %v2517
    %v3442 = vpack.c.b16 %v2520, %v2519
    %v3443 = vpack.c.b16 %v2522, %v2521
    %v3444 = vpack.c.b16 %v2524, %v2523
    %v3445 = vpack.c.b16 %v2526, %v2525
    %v3446 = vpack.c.b16 %v2528, %v2527
    %v3447 = vpack.c.b16 %v2530, %v2529
    %v3448 = vpack.c.b16 %v2532, %v2531
    %v3449 = vpack.c.b16 %v2534, %v2533
    %v3450 = vpack.c.b16 %v2536, %v2535
    %v3451 = vpack.c.b16 %v2538, %v2537
    %v3452 = vpack.c.b16 %v2540, %v2539
    %v3453 = vpack.c.b16 %v2542, %v2541
    %v3454 = vpack.c.b16 %v2544, %v2543
    %v3455 = vpack.c.b16 %v2546, %v2545
    %v3456 = vpack.c.b16 %v2548, %v2547
    %v3457 = vpack.c.b16 %v2550, %v2549
    %v3458 = vpack.c.b16 %v2552, %v2551
    %v3459 = vpack.c.b16 %v2554, %v2553
    %v3460 = vpack.c.b16 %v2556, %v2555
    %v3461 = vpack.c.b16 %v2558, %v2557
    %v3462 = vpack.c.b16 %v2560, %v2559
    %v3463 = vpack.c.b16 %v2562, %v2561
    %v3464 = vpack.c.b16 %v2564, %v2563
    %v3465 = vpack.c.b16 %v2566, %v2565
    %v3466 = vpack.c.b16 %v2568, %v2567
    %v3467 = vpack.c.b16 %v2570, %v2569
    %v3468 = vpack.c.b16 %v2572, %v2571
    %v3469 = vpack.c.b16 %v2574, %v2573
    %v3470 = vpack.c.b16 %v2576, %v2575
    %v3471 = vpack.c.b16 %v2578, %v2577
    %v3472 = vpack.c.b16 %v2580, %v2579
    %v3473 = vpack.c.b16 %v2582, %v2581
    %v3474 = vpack.c.b16 %v2584, %v2583
    %v3475 = vpack.c.b16 %v2586, %v2585
    %v3476 = vpack.c.b16 %v2588, %v2587
    %v3477 = vpack.c.b16 %v2590, %v2589
    %v3478 = vpack.c.b16 %v2592, %v2591
    %v3479 = vpack.c.b16 %v2594, %v2593
    %v3480 = vpack.c.b16 %v2596, %v2595
    %v3481 = vpack.c.b16 %v2598, %v2597
    %v3482 = vpack.c.b16 %v2600, %v2599
    %v3483 = vpack.c.b16 %v2602, %v2601
    %v3484 = vpack.c.b16 %v2604, %v2603
    %v3485 = vpack.c.b16 %v2606, %v2605
    %v3486 = vpack.c.b16 %v2608, %v2607
    %v3487 = vpack.c.b16 %v2610, %v2609
    %v3488 = vpack.c.b16 %v2612, %v2611
    %v3489 = vpack.c.b16 %v2614, %v2613
    %v3490 = vpack.c.b16 %v2616, %v2615
    %v3491 = vpack.c.b16 %v2618, %v2617
    %v3492 = vpack.c.b16 %v2620, %v2619
    %v3493 = vpack.c.b16 %v2622, %v2621
    %v3494 = vpack.c.b16 %v2624, %v2623
    %v3495 = vpack.c.b16 %v2626, %v2625
    %v3496 = vpack.c.b16 %v2628, %v2627
    %v3497 = vpack.c.b16 %v2630, %v2629
    %v3498 = vpack.c.b16 %v2632, %v2631
    %v3499 = vpack.c.b16 %v2634, %v2633
    %v3500 = vpack.c.b16 %v2636, %v2635
    %v3501 = vpack.c.b16 %v2638, %v2637
    %v3502 = vpack.c.b16 %v2640, %v2639
    %v3503 = vpack.c.b16 %v2642, %v2641
    %v3504 = vpack.c.b16 %v2644, %v2643
    %v3505 = vpack.c.b16 %v2646, %v2645
    %v3506 = vpack.c.b16 %v2648, %v2647
    %v3507 = vpack.c.b16 %v2650, %v2649
    %v3508 = vpack.c.b16 %v2652, %v2651
    %v3509 = vpack.c.b16 %v2654, %v2653
    %v3510 = vpack.c.b16 %v2656, %v2655
    %v3511 = vpack.c.b16 %v2658, %v2657
    %v3512 = vpack.c.b16 %v2660, %v2659
    %v3513 = vpack.c.b16 %v2662, %v2661
    %v3514 = vpack.c.b16 %v2664, %v2663
    %v3515 = vpack.c.b16 %v2666, %v2665
    %v3516 = vpack.c.b16 %v2668, %v2667
    %v3517 = vpack.c.b16 %v2670, %v2669
    %v3518 = vpack.c.b16 %v2672, %v2671
    %v3519 = vpack.c.b16 %v2674, %v2673
    %v3520 = vpack.c.b16 %v2676, %v2675
    %v3521 = vpack.c.b16 %v2678, %v2677
    %v3522 = vpack.c.b16 %v2680, %v2679
    %v3523 = vpack.c.b16 %v2682, %v2681
    %v3524 = vpack.c.b16 %v2684, %v2683
    %v3525 = vpack.c.b16 %v2686, %v2685
    %v3526 = vpack.c.b16 %v2688, %v2687
    %v3527 = vpack.c.b16 %v2690, %v2689
    %v3528 = vpack.c.b16 %v2692, %v2691
    %v3529 = vpack.c.b16 %v2694, %v2693
    %v3530 = vpack.c.b16 %v2696, %v2695
    %v3531 = vpack.c.b16 %v2698, %v2697
    %v3532 = vpack.c.b16 %v2700, %v2699
    %v3533 = vpack.c.b16 %v2702, %v2701
    %v3534 = vpack.c.b16 %v2704, %v2703
    %v3535 = vpack.c.b16 %v2706, %v2705
    %v3536 = vpack.c.b16 %v2708, %v2707
    %v3537 = vpack.c.b16 %v2710, %v2709
    %v3538 = vpack.c.b16 %v2712, %v2711
    %v3539 = vpack.c.b16 %v2714, %v2713
    %v3540 = vpack.c.b16 %v2716, %v2715
    %v3541 = vpack.c.b16 %v2718, %v2717
    %v3542 = vpack.c.b16 %v2720, %v2719
    %v3543 = vpack.c.b16 %v2722, %v2721
    %v3544 = vpack.c.b16 %v2724, %v2723
    %v3545 = vpack.c.b16 %v2726, %v2725
    %v3546 = vpack.c.b16 %v2728, %v2727
    %v3547 = vpack.c.b16 %v2730, %v2729
    %v3548 = vpack.c.b16 %v2732, %v2731
    %v3549 = vpack.c.b16 %v2734, %v2733
    %v3550 = vpack.c.b16 %v2736, %v2735
    %v3551 = vpack.c.b16 %v2738, %v2737
    %v3552 = vpack.c.b16 %v2740, %v2739
    %v3553 = vpack.c.b16 %v2742, %v2741
    %v3554 = vpack.c.b16 %v2744, %v2743
    %v3555 = vpack.c.b16 %v2746, %v2745
    %v3556 = vpack.c.b16 %v2748, %v2747
    %v3557 = vpack.c.b16 %v2750, %v2749
    %v3558 = vpack.c.b16 %v2752, %v2751
    %v3559 = vpack.c.b16 %v2754, %v2753
    %v3560 = vpack.c.b16 %v2756, %v2755
    %v3561 = vpack.c.b16 %v2758, %v2757
    %v3562 = vpack.c.b16 %v2760, %v2759
    %v3563 = vpack.c.b16 %v2762, %v2761
    %v3564 = vpack.c.b16 %v2764, %v2763
    %v3565 = vpack.c.b16 %v2766, %v2765
    %v3566 = vpack.c.b16 %v2768, %v2767
    %v3567 = vpack.c.b16 %v2770, %v2769
    %v3568 = vpack.c.b16 %v2772, %v2771
    %v3569 = vpack.c.b16 %v2774, %v2773
    %v3570 = vpack.c.b16 %v2776, %v2775
    %v3571 = vpack.c.b16 %v2778, %v2777
    %v3572 = vpack.c.b16 %v2780, %v2779
    %v3573 = vpack.c.b16 %v2782, %v2781
    %v3574 = vpack.c.b16 %v2784, %v2783
    %v3575 = vpack.c.b16 %v2786, %v2785
    %v3576 = vpack.c.b16 %v2788, %v2787
    %v3577 = vpack.c.b16 %v2790, %v2789
    %v3578 = vpack.c.b16 %v2792, %v2791
    %v3579 = vpack.c.b16 %v2794, %v2793
    %v3580 = vpack.c.b16 %v2796, %v2795
    %v3581 = vpack.c.b16 %v2798, %v2797
    %v3582 = vpack.c.b16 %v2800, %v2799
    %v3583 = vpack.c.b16 %v2802, %v2801
    %v3584 = vpack.c.b16 %v2804, %v2803
    %v3585 = vpack.c.b16 %v2806, %v2805
    %v3586 = vpack.c.b16 %v2808, %v2807
    %v3587 = vpack.c.b16 %v2810, %v2809
    %v3588 = vpack.c.b16 %v2812, %v2811
    %v3589 = vpack.c.b16 %v2814, %v2813
    %v3590 = vpack.c.b16 %v2816, %v2815
    %v3591 = vpack.c.b16 %v2818, %v2817
    %v3592 = vpack.c.b16 %v2820, %v2819
    %v3593 = vpack.c.b16 %v2822, %v2821
    %v3594 = vpack.c.b16 %v2824, %v2823
    %v3595 = vpack.c.b16 %v2826, %v2825
    %v3596 = vpack.c.b16 %v2828, %v2827
    %v3597 = vpack.c.b16 %v2830, %v2829
    %v3598 = vpack.c.b16 %v2832, %v2831
    %v3599 = vpack.c.b16 %v2834, %v2833
    %v3600 = vpack.c.b16 %v2836, %v2835
    %v3601 = vpack.c.b16 %v2838, %v2837
    %v3602 = vpack.c.b16 %v2840, %v2839
    %v3603 = vpack.c.b16 %v2842, %v2841
    %v3604 = vpack.c.b16 %v2844, %v2843
    %v3605 = vpack.c.b16 %v2846, %v2845
    %v3606 = vpack.c.b16 %v2848, %v2847
    %v3607 = vpack.c.b16 %v2850, %v2849
    %v3608 = vpack.c.b16 %v2852, %v2851
    %v3609 = vpack.c.b16 %v2854, %v2853
    %v3610 = vpack.c.b16 %v2856, %v2855
    %v3611 = vpack.c.b16 %v2858, %v2857
    %v3612 = vpack.c.b16 %v2860, %v2859
    %v3613 = vpack.c.b16 %v2862, %v2861
    %v3614 = vpack.c.b16 %v2864, %v2863
    %v3615 = vpack.c.b16 %v2866, %v2865
    %v3616 = vpack.c.b16 %v2868, %v2867
    %v3617 = vpack.c.b16 %v2870, %v2869
    %v3618 = vpack.c.b16 %v2872, %v2871
    %v3619 = vpack.c.b16 %v2874, %v2873
    %v3620 = vpack.c.b16 %v2876, %v2875
    %v3621 = vpack.c.b16 %v2878, %v2877
    %v3622 = vpack.c.b16 %v2880, %v2879
    %v3623 = vpack.c.b16 %v2882, %v2881
    %v3624 = vpack.c.b16 %v2884, %v2883
    %v3625 = vpack.c.b16 %v2886, %v2885
    %v3626 = vpack.c.b16 %v2888, %v2887
    %v3627 = vpack.c.b16 %v2890, %v2889
    %v3628 = vpack.c.b16 %v2892, %v2891
    %v3629 = vpack.c.b16 %v2894, %v2893
    %v3630 = vpack.c.b16 %v2896, %v2895
    %v3631 = vpack.c.b16 %v2898, %v2897
    %v3632 = vpack.c.b16 %v2900, %v2899
    %v3633 = vpack.c.b16 %v2902, %v2901
    %v3634 = vpack.c.b16 %v2904, %v2903
    %v3635 = vpack.c.b16 %v2906, %v2905
    %v3636 = vpack.c.b16 %v2908, %v2907
    %v3637 = vpack.c.b16 %v2910, %v2909
    %v3638 = vpack.c.b16 %v2912, %v2911
    %v3639 = vpack.c.b16 %v2914, %v2913
    %v3640 = vpack.c.b16 %v2916, %v2915
    %v3641 = vpack.c.b16 %v2918, %v2917
    %v3642 = vpack.c.b16 %v2920, %v2919
    %v3643 = vpack.c.b16 %v2922, %v2921
    %v3644 = vpack.c.b16 %v2924, %v2923
    %v3645 = vpack.c.b16 %v2926, %v2925
    %v3646 = vpack.c.b16 %v2928, %v2927
    %v3647 = vpack.c.b16 %v2930, %v2929
    %v3648 = vpack.c.b16 %v2932, %v2931
    %v3649 = vpack.c.b16 %v2934, %v2933
    %v3650 = vpack.c.b16 %v2936, %v2935
    %v3651 = vpack.c.b16 %v2938, %v2937
    %v3652 = vpack.c.b16 %v2940, %v2939
    %v3653 = vpack.c.b16 %v2942, %v2941
    %v3654 = vpack.c.b16 %v2944, %v2943
    %v3655 = vpack.c.b16 %v2946, %v2945
    %v3656 = vpack.c.b16 %v2948, %v2947
    %v3657 = vpack.c.b16 %v2950, %v2949
    %v3658 = vpack.c.b16 %v2952, %v2951
    %v3659 = vpack.c.b16 %v2954, %v2953
    %v3660 = vpack.c.b16 %v2956, %v2955
    %v3661 = vpack.c.b16 %v2958, %v2957
    %v3662 = vpack.c.b16 %v2960, %v2959
    %v3663 = vpack.c.b16 %v2962, %v2961
    %v3664 = vpack.c.b16 %v2964, %v2963
    %v3665 = vpack.c.b16 %v2966, %v2965
    %v3666 = vpack.c.b16 %v2968, %v2967
    %v3667 = vpack.c.b16 %v2970, %v2969
    %v3668 = vpack.c.b16 %v2972, %v2971
    %v3669 = vpack.c.b16 %v2974, %v2973
    %v3670 = vpack.c.b16 %v2976, %v2975
    %v3671 = vpack.c.b16 %v2978, %v2977
    %v3672 = vpack.c.b16 %v2980, %v2979
    %v3673 = vpack.c.b16 %v2982, %v2981
    %v3674 = vpack.c.b16 %v2984, %v2983
    %v3675 = vpack.c.b16 %v2986, %v2985
    %v3676 = vpack.c.b16 %v2988, %v2987
    %v3677 = vpack.c.b16 %v2990, %v2989
    %v3678 = vpack.c.b16 %v2992, %v2991
    %v3679 = vpack.c.b16 %v2994, %v2993
    %v3680 = vpack.c.b16 %v2996, %v2995
    %v3681 = vpack.c.b16 %v2998, %v2997
    %v3682 = vpack.c.b16 %v3000, %v2999
    %v3683 = vpack.c.b16 %v3002, %v3001
    %v3684 = vpack.c.b16 %v3004, %v3003
    %v3685 = vpack.c.b16 %v3006, %v3005
    %v3686 = vpack.c.b16 %v3008, %v3007
    %v3687 = vpack.c.b16 %v3010, %v3009
    %v3688 = vpack.c.b16 %v3012, %v3011
    %v3689 = vpack.c.b16 %v3014, %v3013
    %v3690 = vpack.c.b16 %v3016, %v3015
    %v3691 = vpack.c.b16 %v3018, %v3017
    %v3692 = vpack.c.b16 %v3020, %v3019
    %v3693 = vpack.c.b16 %v3022, %v3021
    %v3694 = vpack.c.b16 %v3024, %v3023
    %v3695 = vpack.c.b16 %v3026, %v3025
    %v3696 = vpack.c.b16 %v3028, %v3027
    %v3697 = vpack.c.b16 %v3030, %v3029
    %v3698 = vpack.c.b16 %v3032, %v3031
    %v3699 = vpack.c.b16 %v3034, %v3033
    %v3700 = vpack.c.b16 %v3036, %v3035
    %v3701 = vpack.c.b16 %v3038, %v3037
    %v3702 = vpack.c.b16 %v3040, %v3039
    %v3703 = vpack.c.b16 %v3042, %v3041
    %v3704 = vpack.c.b16 %v3044, %v3043
    %v3705 = vpack.c.b16 %v3046, %v3045
    %v3706 = vpack.c.b16 %v3048, %v3047
    %v3707 = vpack.c.b16 %v3050, %v3049
    %v3708 = vpack.c.b16 %v3052, %v3051
    %v3709 = vpack.c.b16 %v3054, %v3053
    %v3710 = vpack.c.b16 %v3056, %v3055
    %v3711 = vpack.c.b16 %v3058, %v3057
    %v3712 = vpack.c.b16 %v3060, %v3059
    %v3713 = vpack.c.b16 %v3062, %v3061
    %v3714 = vpack.c.b16 %v3064, %v3063
    %v3715 = vpack.c.b16 %v3066, %v3065
    %v3716 = vpack.c.b16 %v3068, %v3067
    %v3717 = vpack.c.b16 %v3070, %v3069
    %v3718 = vpack.c.b16 %v3072, %v3071
    %v3719 = vpack.c.b16 %v3074, %v3073
    %v3720 = vpack.c.b16 %v3076, %v3075
    %v3721 = vpack.c.b16 %v3078, %v3077
    %v3722 = vpack.c.b16 %v3080, %v3079
    %v3723 = vpack.c.b16 %v3082, %v3081
    %v3724 = vpack.c.b16 %v3084, %v3083
    %v3725 = vpack.c.b16 %v3086, %v3085
    %v3726 = vpack.c.b16 %v3088, %v3087
    %v3727 = vpack.c.b16 %v3090, %v3089
    %v3728 = vpack.c.b16 %v3092, %v3091
    %v3729 = vpack.c.b16 %v3094, %v3093
    %v3730 = vpack.c.b16 %v3096, %v3095
    %v3731 = vpack.c.b16 %v3098, %v3097
    %v3732 = vpack.c.b16 %v3100, %v3099
    %v3733 = vpack.c.b16 %v3102, %v3101
    %v3734 = vpack.c.b16 %v3104, %v3103
    %v3735 = vpack.c.b16 %v3106, %v3105
    %v3736 = vpack.c.b16 %v3108, %v3107
    %v3737 = vpack.c.b16 %v3110, %v3109
    %v3738 = vpack.c.b16 %v3112, %v3111
    %v3739 = vpack.c.b16 %v3114, %v3113
    %v3740 = vpack.c.b16 %v3116, %v3115
    %v3741 = vpack.c.b16 %v3118, %v3117
    %v3742 = vpack.c.b16 %v3120, %v3119
    %v3743 = vpack.c.b16 %v3122, %v3121
    %v3744 = vpack.c.b16 %v3124, %v3123
    %v3745 = vpack.c.b16 %v3126, %v3125
    %v3746 = vpack.c.b16 %v3128, %v3127
    %v3747 = vpack.c.b16 %v3130, %v3129
    %v3748 = vpack.c.b16 %v3132, %v3131
    %v3749 = vpack.c.b16 %v3134, %v3133
    %v3750 = vpack.c.b16 %v3136, %v3135
    %v3751 = vpack.c.b16 %v3138, %v3137
    %v3752 = vpack.c.b16 %v3140, %v3139
    %v3753 = vpack.c.b16 %v3142, %v3141
    %v3754 = vpack.c.b16 %v3144, %v3143
    %v3755 = vpack.c.b16 %v3146, %v3145
    %v3756 = vpack.c.b16 %v3148, %v3147
    %v3757 = vpack.c.b16 %v3150, %v3149
    %v3758 = vpack.c.b16 %v3152, %v3151
    %v3759 = vpack.c.b16 %v3154, %v3153
    %v3760 = vpack.c.b16 %v3156, %v3155
    %v3761 = vpack.c.b16 %v3158, %v3157
    %v3762 = vpack.c.b16 %v3160, %v3159
    %v3763 = vpack.c.b16 %v3162, %v3161
    %v3764 = vpack.c.b16 %v3164, %v3163
    %v3765 = vpack.c.b16 %v3166, %v3165
    %v3766 = vpack.c.b16 %v3168, %v3167
    %v3767 = vpack.c.b16 %v3170, %v3169
    %v3768 = vpack.c.b16 %v3172, %v3171
    %v3769 = vpack.c.b16 %v3174, %v3173
    %v3770 = vpack.c.b16 %v3176, %v3175
    %v3771 = vpack.c.b16 %v3178, %v3177
    %v3772 = vpack.c.b16 %v3180, %v3179
    %v3773 = vpack.c.b16 %v3182, %v3181
    %v3774 = vpack.c.b16 %v3184, %v3183
    %v3775 = vpack.c.b16 %v3186, %v3185
    %v3776 = vpack.c.b16 %v3188, %v3187
    %v3777 = vpack.c.b16 %v3190, %v3189
    %v3778 = vpack.c.b16 %v3192, %v3191
    %v3779 = vpack.c.b16 %v3194, %v3193
    %v3780 = vpack.c.b16 %v3196, %v3195
    %v3781 = vpack.c.b16 %v3198, %v3197
    %v3782 = vpack.c.b16 %v3200, %v3199
    %v3783 = vpack.c.b16 %v3202, %v3201
    %v3784 = vpack.c.b16 %v3204, %v3203
    %v3785 = vpack.c.b16 %v3206, %v3205
    %v3786 = vpack.c.b16 %v3208, %v3207
    %v3787 = vpack.c.b16 %v3210, %v3209
    %v3788 = vpack.c.b16 %v3212, %v3211
    %v3789 = vpack.c.b16 %v3214, %v3213
    %v3790 = vpack.c.b16 %v3216, %v3215
    %v3791 = vpack.c.b16 %v3218, %v3217
    %v3792 = vpack.c.b16 %v3220, %v3219
    %v3793 = vpack.c.b16 %v3222, %v3221
    %v3794 = vpack.c.b16 %v3224, %v3223
    %v3795 = vpack.c.b16 %v3226, %v3225
    %v3796 = vpack.c.b16 %v3228, %v3227
    %v3797 = vpack.c.b16 %v3230, %v3229
    %v3798 = vpack.c.b16 %v3232, %v3231
    %v3799 = vpack.c.b16 %v3234, %v3233
    %v3800 = vpack.c.b16 %v3236, %v3235
    %v3801 = vpack.c.b16 %v3238, %v3237
    %v3802 = vpack.c.b16 %v3240, %v3239
    %v3803 = vpack.c.b16 %v3242, %v3241
    %v3804 = vpack.c.b16 %v3244, %v3243
    %v3805 = vpack.c.b16 %v3246, %v3245
    %v3806 = vpack.c.b16 %v3248, %v3247
    %v3807 = vpack.c.b16 %v3250, %v3249
    %v3808 = vpack.c.b16 %v3252, %v3251
    %v3809 = vpack.c.b16 %v3254, %v3253
    %v3810 = vpack.c.b16 %v3256, %v3255
    %v3811 = vpack.c.b16 %v3258, %v3257
    %v3812 = vpack.c.b16 %v3260, %v3259
    %v3813 = vpack.c.b16 %v3262, %v3261
    %v3814 = vpack.c.b16 %v3264, %v3263
    %v3815 = vpack.c.b16 %v3266, %v3265
    %v3816 = vpack.c.b16 %v3268, %v3267
    %v3817 = vpack.c.b16 %v3270, %v3269
    %v3818 = vpack.c.b16 %v3272, %v3271
    %v3819 = vpack.c.b16 %v3274, %v3273
    %v3820 = vpack.c.b16 %v3276, %v3275
    %v3821 = vpack.c.b16 %v3278, %v3277
    %v3822 = vpack.c.b16 %v3280, %v3279
    %v3823 = vpack.c.b16 %v3282, %v3281
    %v3824 = vpack.c.b16 %v3284, %v3283
    %v3825 = vpack.c.b16 %v3286, %v3285
    %v3826 = vpack.c.b16 %v3288, %v3287
    %v3827 = vpack.c.b16 %v3290, %v3289
    %v3828 = vpack.c.b16 %v3292, %v3291
    %v3829 = vpack.c.b16 %v3294, %v3293
    %v3830 = vpack.c.b16 %v3296, %v3295
    %v3831 = vpack.c.b16 %v3298, %v3297
    %v3832 = vpack.c.b16 %v3300, %v3299
    %v3833 = vpack.c.b16 %v3302, %v3301
    %v3834 = vpack.c.b16 %v3304, %v3303
    %v3835 = vpack.c.b16 %v3306, %v3305
    %v3836 = vpack.c.b16 %v3308, %v3307
    %v3837 = vpack.c.b16 %v3310, %v3309
    %v3838 = vpack.c.b16 %v3312, %v3311
    %v3839 = vpack.c.b16 %v3314, %v3313
    %v3840 = vpack.c.b16 %v3316, %v3315
    %v3841 = vpack.c.b16 %v3318, %v3317
    %v3842 = vpack.c.b16 %v3320, %v3319
    %v3843 = vpack.c.b16 %v3322, %v3321
    %v3844 = vpack.c.b16 %v3324, %v3323
    %v3845 = vpack.c.b16 %v3326, %v3325
    %v3846 = vpack.c.b16 %v3328, %v3327
    %v3847 = vpack.c.b16 %v3330, %v3329
    %v3848 = vpack.c.b16 %v3332, %v3331
    %v3849 = vpack.c.b16 %v3334, %v3333
    %v3850 = vpack.c.b16 %v3336, %v3335
    %v3851 = vpack.c.b16 %v3338, %v3337
    %v3852 = vpack.c.b16 %v3340, %v3339
    %v3853 = vpack.c.b16 %v3342, %v3341
    %v3854 = vpack.c.b16 %v3344, %v3343
    %v3855 = vpack.c.b16 %v3346, %v3345
    %v3856 = vpack.c.b16 %v3348, %v3347
    %v3857 = vpack.c.b16 %v3350, %v3349
    %v3858 = vpack.c.b16 %v3352, %v3351
    %v3859 = vpack.c.b16 %v3354, %v3353
    %v3860 = vpack.c.b16 %v3356, %v3355
    %v3861 = vpack.c.b16 %v3358, %v3357
    %v3862 = vpack.c.b16 %v3360, %v3359
    %v3863 = vpack.c.b16 %v3362, %v3361
    %v3864 = vpack.c.b16 %v3364, %v3363
    %v3865 = vpack.c.b16 %v3366, %v3365
    %v3866 = vpack.c.b16 %v3368, %v3367
    %v3867 = vpack.c.b16 %v3370, %v3369
    %v3868 = vpack.c.b16 %v3372, %v3371
    %v3869 = vpack.c.b16 %v3374, %v3373
    %v3870 = vpack.c.b16 %v3376, %v3375
    %v3871 = vpack.c.b16 %v3378, %v3377
    %v3872 = vpack.c.b16 %v3380, %v3379
    %v3873 = vpack.c.b16 %v3382, %v3381
    %v3874 = vpack.c.b16 %v3384, %v3383
    %v3875 = vpack.c.b16 %v3386, %v3385
    %v3876 = vpack.c.b16 %v3388, %v3387
    %v3877 = vpack.c.b16 %v3390, %v3389
    %v3878 = vpack.c.b16 %v3392, %v3391
    %v3879 = vpack.c.b16 %v3394, %v3393
    %v3880 = vpack.c.b16 %v3396, %v3395
    %vm4365 = vcmask 523264
    %v4367 = vsel %vm4365, %v1391, 0
    %4369 = vmatprep.subr.bf16.mxu0 0
    %4370 = vmatpush1.bf16.msra.mxu0 %v3397
    %4371 = vmatprep.subr.bf16.mxu0 0
    %4372 = vmatpush1.bf16.msra.mxu0 %v3398
    %4373 = vmatprep.subr.bf16.mxu0 0
    %4374 = vmatpush1.bf16.msra.mxu0 %v3399
    %4375 = vmatprep.subr.bf16.mxu0 0
    %4376 = vmatpush1.bf16.msra.mxu0 %v3400
    %4377 = vmatprep.subr.bf16.mxu0 0
    %4378 = vmatpush1.bf16.msra.mxu0 %v3401
    %4379 = vmatprep.subr.bf16.mxu0 0
    %4380 = vmatpush1.bf16.msra.mxu0 %v3402
    %4381 = vmatprep.subr.bf16.mxu0 0
    %4382 = vmatpush1.bf16.msra.mxu0 %v3403
    %4383 = vmatprep.subr.bf16.mxu0 0
    %4384 = vmatpush1.bf16.msra.mxu0 %v3404
    %4385 = vmatprep.subr.bf16.mxu0 0
    %4386 = vmatpush1.bf16.msra.mxu0 %v3405
    %4387 = vmatprep.subr.bf16.mxu0 0
    %4388 = vmatpush1.bf16.msra.mxu0 %v3406
    %4389 = vmatprep.subr.bf16.mxu0 0
    %4390 = vmatpush1.bf16.msra.mxu0 %v3407
    %4391 = vmatprep.subr.bf16.mxu0 0
    %4392 = vmatpush1.bf16.msra.mxu0 %v3408
    %4393 = vmatprep.subr.bf16.mxu0 0
    %4394 = vmatpush1.bf16.msra.mxu0 %v3409
    %4395 = vmatprep.subr.bf16.mxu0 0
    %4396 = vmatpush1.bf16.msra.mxu0 %v3410
    %4397 = vmatprep.subr.bf16.mxu0 0
    %4398 = vmatpush1.bf16.msra.mxu0 %v3411
    %4399 = vmatprep.subr.bf16.mxu0 0
    %4400 = vmatpush1.bf16.msra.mxu0 %v3412
    %4401 = vmatprep.mubr.bf16.mxu0 %v1056
    %4402 = vmatmul.mubr.bf16.gmra.mrb[0].mxu0 %v1042
    %v4403 = vpop.f32.mrb[0].mxu0
    %v4404 = vadd.f32 %v1009, %v4403
    %v4405 = vpop.f32.mrb[0].mxu0
    %v4406 = vpop.f32.mrb[0].mxu0
    %v4407 = vpop.f32.mrb[0].mxu0
    %4408 = vdwg.mxu0
    %4409 = vmatprep.subr.bf16.mxu0 0
    %4410 = vmatpush1.bf16.msra.mxu0 %v3413
    %4411 = vmatprep.subr.bf16.mxu0 0
    %4412 = vmatpush1.bf16.msra.mxu0 %v3414
    %4413 = vmatprep.subr.bf16.mxu0 0
    %4414 = vmatpush1.bf16.msra.mxu0 %v3415
    %4415 = vmatprep.subr.bf16.mxu0 0
    %4416 = vmatpush1.bf16.msra.mxu0 %v3416
    %4417 = vmatprep.subr.bf16.mxu0 0
    %4418 = vmatpush1.bf16.msra.mxu0 %v3417
    %4419 = vmatprep.subr.bf16.mxu0 0
    %4420 = vmatpush1.bf16.msra.mxu0 %v3418
    %4421 = vmatprep.subr.bf16.mxu0 0
    %4422 = vmatpush1.bf16.msra.mxu0 %v3419
    %4423 = vmatprep.subr.bf16.mxu0 0
    %4424 = vmatpush1.bf16.msra.mxu0 %v3420
    %4425 = vmatprep.subr.bf16.mxu0 0
    %4426 = vmatpush1.bf16.msra.mxu0 %v3421
    %4427 = vmatprep.subr.bf16.mxu0 0
    %4428 = vmatpush1.bf16.msra.mxu0 %v3422
    %4429 = vmatprep.subr.bf16.mxu0 0
    %4430 = vmatpush1.bf16.msra.mxu0 %v3423
    %4431 = vmatprep.subr.bf16.mxu0 0
    %4432 = vmatpush1.bf16.msra.mxu0 %v3424
    %4433 = vmatprep.subr.bf16.mxu0 0
    %4434 = vmatpush1.bf16.msra.mxu0 %v3425
    %4435 = vmatprep.subr.bf16.mxu0 0
    %4436 = vmatpush1.bf16.msra.mxu0 %v3426
    %4437 = vmatprep.subr.bf16.mxu0 0
    %4438 = vmatpush1.bf16.msra.mxu0 %v3427
    %4439 = vmatprep.subr.bf16.mxu0 0
    %4440 = vmatpush1.bf16.msra.mxu0 %v3428
    %4441 = vmatprep.mubr.bf16.mxu0 %v1066
    %4442 = vmatmul.mubr.bf16.gmra.mrb[0].mxu0 %v1064
    %v4443 = vpop.f32.mrb[0].mxu0
    %v4444 = vadd.f32 %v4404, %v4443
    %v4445 = vpop.f32.mrb[0].mxu0
    %v4446 = vpop.f32.mrb[0].mxu0
    %v4447 = vpop.f32.mrb[0].mxu0
    %4448 = vdwg.mxu0
    %4449 = vmatprep.subr.bf16.mxu0 0
    %4450 = vmatpush1.bf16.msra.mxu0 %v3429
    %4451 = vmatprep.subr.bf16.mxu0 0
    %4452 = vmatpush1.bf16.msra.mxu0 %v3430
    %4453 = vmatprep.subr.bf16.mxu0 0
    %4454 = vmatpush1.bf16.msra.mxu0 %v3431
    %4455 = vmatprep.subr.bf16.mxu0 0
    %4456 = vmatpush1.bf16.msra.mxu0 %v3432
    %4457 = vmatprep.subr.bf16.mxu0 0
    %4458 = vmatpush1.bf16.msra.mxu0 %v3433
    %4459 = vmatprep.subr.bf16.mxu0 0
    %4460 = vmatpush1.bf16.msra.mxu0 %v3434
    %4461 = vmatprep.subr.bf16.mxu0 0
    %4462 = vmatpush1.bf16.msra.mxu0 %v3435
    %4463 = vmatprep.subr.bf16.mxu0 0
    %4464 = vmatpush1.bf16.msra.mxu0 %v3436
    %4465 = vmatprep.subr.bf16.mxu0 0
    %4466 = vmatpush1.bf16.msra.mxu0 %v3437
    %4467 = vmatprep.subr.bf16.mxu0 0
    %4468 = vmatpush1.bf16.msra.mxu0 %v3438
    %4469 = vmatprep.subr.bf16.mxu0 0
    %4470 = vmatpush1.bf16.msra.mxu0 %v3439
    %4471 = vmatprep.subr.bf16.mxu0 0
    %4472 = vmatpush1.bf16.msra.mxu0 %v3440
    %4473 = vmatprep.subr.bf16.mxu0 0
    %4474 = vmatpush1.bf16.msra.mxu0 %v3441
    %4475 = vmatprep.subr.bf16.mxu0 0
    %4476 = vmatpush1.bf16.msra.mxu0 %v3442
    %4477 = vmatprep.subr.bf16.mxu0 0
    %4478 = vmatpush1.bf16.msra.mxu0 %v3443
    %4479 = vmatprep.subr.bf16.mxu0 0
    %4480 = vmatpush1.bf16.msra.mxu0 %v3444
    %4481 = vmatprep.mubr.bf16.mxu0 %v1063
    %4482 = vmatmul.mubr.bf16.gmra.mrb[0].mxu0 %v1049
    %v4483 = vpop.f32.mrb[0].mxu0
    %v4484 = vadd.f32 %v4444, %v4483
    %v4485 = vpop.f32.mrb[0].mxu0
    %v4486 = vpop.f32.mrb[0].mxu0
    %v4487 = vpop.f32.mrb[0].mxu0
    %4488 = vdwg.mxu0
    %4489 = vmatprep.subr.bf16.mxu0 0
    %4490 = vmatpush1.bf16.msra.mxu0 %v3445
    %4491 = vmatprep.subr.bf16.mxu0 0
    %4492 = vmatpush1.bf16.msra.mxu0 %v3446
    %4493 = vmatprep.subr.bf16.mxu0 0
    %4494 = vmatpush1.bf16.msra.mxu0 %v3447
    %4495 = vmatprep.subr.bf16.mxu0 0
    %4496 = vmatpush1.bf16.msra.mxu0 %v3448
    %4497 = vmatprep.subr.bf16.mxu0 0
    %4498 = vmatpush1.bf16.msra.mxu0 %v3449
    %4499 = vmatprep.subr.bf16.mxu0 0
    %4500 = vmatpush1.bf16.msra.mxu0 %v3450
    %4501 = vmatprep.subr.bf16.mxu0 0
    %4502 = vmatpush1.bf16.msra.mxu0 %v3451
    %4503 = vmatprep.subr.bf16.mxu0 0
    %4504 = vmatpush1.bf16.msra.mxu0 %v3452
    %4505 = vmatprep.subr.bf16.mxu0 0
    %4506 = vmatpush1.bf16.msra.mxu0 %v3453
    %4507 = vmatprep.subr.bf16.mxu0 0
    %4508 = vmatpush1.bf16.msra.mxu0 %v3454
    %4509 = vmatprep.subr.bf16.mxu0 0
    %4510 = vmatpush1.bf16.msra.mxu0 %v3455
    %4511 = vmatprep.subr.bf16.mxu0 0
    %4512 = vmatpush1.bf16.msra.mxu0 %v3456
    %4513 = vmatprep.subr.bf16.mxu0 0
    %4514 = vmatpush1.bf16.msra.mxu0 %v3457
    %4515 = vmatprep.subr.bf16.mxu0 0
    %4516 = vmatpush1.bf16.msra.mxu0 %v3458
    %4517 = vmatprep.subr.bf16.mxu0 0
    %4518 = vmatpush1.bf16.msra.mxu0 %v3459
    %4519 = vmatprep.subr.bf16.mxu0 0
    %4520 = vmatpush1.bf16.msra.mxu0 %v3460
    %4521 = vmatprep.mubr.bf16.mxu0 %v1067
    %4522 = vmatmul.mubr.bf16.gmra.mrb[0].mxu0 %v1065
    %v4523 = vpop.f32.mrb[0].mxu0
    %v4524 = vadd.f32 %v4484, %v4523
    %v4525 = vpop.f32.mrb[0].mxu0
    %v4526 = vpop.f32.mrb[0].mxu0
    %v4527 = vpop.f32.mrb[0].mxu0
    %4528 = vdwg.mxu0
    %4529 = vmatprep.subr.bf16.mxu0 0
    %4530 = vmatpush1.bf16.msra.mxu0 %v3461
    %4531 = vmatprep.subr.bf16.mxu0 0
    %4532 = vmatpush1.bf16.msra.mxu0 %v3462
    %4533 = vmatprep.subr.bf16.mxu0 0
    %4534 = vmatpush1.bf16.msra.mxu0 %v3463
    %4535 = vmatprep.subr.bf16.mxu0 0
    %4536 = vmatpush1.bf16.msra.mxu0 %v3464
    %4537 = vmatprep.subr.bf16.mxu0 0
    %4538 = vmatpush1.bf16.msra.mxu0 %v3465
    %4539 = vmatprep.subr.bf16.mxu0 0
    %4540 = vmatpush1.bf16.msra.mxu0 %v3466
    %4541 = vmatprep.subr.bf16.mxu0 0
    %4542 = vmatpush1.bf16.msra.mxu0 %v3467
    %4543 = vmatprep.subr.bf16.mxu0 0
    %4544 = vmatpush1.bf16.msra.mxu0 %v3468
    %4545 = vmatprep.subr.bf16.mxu0 0
    %4546 = vmatpush1.bf16.msra.mxu0 %v3469
    %4547 = vmatprep.subr.bf16.mxu0 0
    %4548 = vmatpush1.bf16.msra.mxu0 %v3470
    %4549 = vmatprep.subr.bf16.mxu0 0
    %4550 = vmatpush1.bf16.msra.mxu0 %v3471
    %4551 = vmatprep.subr.bf16.mxu0 0
    %4552 = vmatpush1.bf16.msra.mxu0 %v3472
    %4553 = vmatprep.subr.bf16.mxu0 0
    %4554 = vmatpush1.bf16.msra.mxu0 %v3473
    %4555 = vmatprep.subr.bf16.mxu0 0
    %4556 = vmatpush1.bf16.msra.mxu0 %v3474
    %4557 = vmatprep.subr.bf16.mxu0 0
    %4558 = vmatpush1.bf16.msra.mxu0 %v3475
    %4559 = vmatprep.subr.bf16.mxu0 0
    %4560 = vmatpush1.bf16.msra.mxu0 %v3476
    %4561 = vmatprep.mubr.bf16.mxu0 %v1105
    %4562 = vmatmul.mubr.bf16.gmra.mrb[0].mxu0 %v1091
    %v4563 = vpop.f32.mrb[0].mxu0
    %v4564 = vadd.f32 %v4524, %v4563
    %v4565 = vpop.f32.mrb[0].mxu0
    %v4566 = vpop.f32.mrb[0].mxu0
    %v4567 = vpop.f32.mrb[0].mxu0
    %4568 = vdwg.mxu0
    %4569 = vmatprep.subr.bf16.mxu0 0
    %4570 = vmatpush1.bf16.msra.mxu0 %v3477
    %4571 = vmatprep.subr.bf16.mxu0 0
    %4572 = vmatpush1.bf16.msra.mxu0 %v3478
    %4573 = vmatprep.subr.bf16.mxu0 0
    %4574 = vmatpush1.bf16.msra.mxu0 %v3479
    %4575 = vmatprep.subr.bf16.mxu0 0
    %4576 = vmatpush1.bf16.msra.mxu0 %v3480
    %4577 = vmatprep.subr.bf16.mxu0 0
    %4578 = vmatpush1.bf16.msra.mxu0 %v3481
    %4579 = vmatprep.subr.bf16.mxu0 0
    %4580 = vmatpush1.bf16.msra.mxu0 %v3482
    %4581 = vmatprep.subr.bf16.mxu0 0
    %4582 = vmatpush1.bf16.msra.mxu0 %v3483
    %4583 = vmatprep.subr.bf16.mxu0 0
    %4584 = vmatpush1.bf16.msra.mxu0 %v3484
    %4585 = vmatprep.subr.bf16.mxu0 0
    %4586 = vmatpush1.bf16.msra.mxu0 %v3485
    %4587 = vmatprep.subr.bf16.mxu0 0
    %4588 = vmatpush1.bf16.msra.mxu0 %v3486
    %4589 = vmatprep.subr.bf16.mxu0 0
    %4590 = vmatpush1.bf16.msra.mxu0 %v3487
    %4591 = vmatprep.subr.bf16.mxu0 0
    %4592 = vmatpush1.bf16.msra.mxu0 %v3488
    %4593 = vmatprep.subr.bf16.mxu0 0
    %4594 = vmatpush1.bf16.msra.mxu0 %v3489
    %4595 = vmatprep.subr.bf16.mxu0 0
    %4596 = vmatpush1.bf16.msra.mxu0 %v3490
    %4597 = vmatprep.subr.bf16.mxu0 0
    %4598 = vmatpush1.bf16.msra.mxu0 %v3491
    %4599 = vmatprep.subr.bf16.mxu0 0
    %4600 = vmatpush1.bf16.msra.mxu0 %v3492
    %4601 = vmatprep.mubr.bf16.mxu0 %v1115
    %4602 = vmatmul.mubr.bf16.gmra.mrb[0].mxu0 %v1113
    %v4603 = vpop.f32.mrb[0].mxu0
    %v4604 = vadd.f32 %v4564, %v4603
    %v4605 = vpop.f32.mrb[0].mxu0
    %v4606 = vpop.f32.mrb[0].mxu0
    %v4607 = vpop.f32.mrb[0].mxu0
    %4608 = vdwg.mxu0
    %4609 = vmatprep.subr.bf16.mxu0 0
    %4610 = vmatpush1.bf16.msra.mxu0 %v3493
    %4611 = vmatprep.subr.bf16.mxu0 0
    %4612 = vmatpush1.bf16.msra.mxu0 %v3494
    %4613 = vmatprep.subr.bf16.mxu0 0
    %4614 = vmatpush1.bf16.msra.mxu0 %v3495
    %4615 = vmatprep.subr.bf16.mxu0 0
    %4616 = vmatpush1.bf16.msra.mxu0 %v3496
    %4617 = vmatprep.subr.bf16.mxu0 0
    %4618 = vmatpush1.bf16.msra.mxu0 %v3497
    %4619 = vmatprep.subr.bf16.mxu0 0
    %4620 = vmatpush1.bf16.msra.mxu0 %v3498
    %4621 = vmatprep.subr.bf16.mxu0 0
    %4622 = vmatpush1.bf16.msra.mxu0 %v3499
    %4623 = vmatprep.subr.bf16.mxu0 0
    %4624 = vmatpush1.bf16.msra.mxu0 %v3500
    %4625 = vmatprep.subr.bf16.mxu0 0
    %4626 = vmatpush1.bf16.msra.mxu0 %v3501
    %4627 = vmatprep.subr.bf16.mxu0 0
    %4628 = vmatpush1.bf16.msra.mxu0 %v3502
    %4629 = vmatprep.subr.bf16.mxu0 0
    %4630 = vmatpush1.bf16.msra.mxu0 %v3503
    %4631 = vmatprep.subr.bf16.mxu0 0
    %4632 = vmatpush1.bf16.msra.mxu0 %v3504
    %4633 = vmatprep.subr.bf16.mxu0 0
    %4634 = vmatpush1.bf16.msra.mxu0 %v3505
    %4635 = vmatprep.subr.bf16.mxu0 0
    %4636 = vmatpush1.bf16.msra.mxu0 %v3506
    %4637 = vmatprep.subr.bf16.mxu0 0
    %4638 = vmatpush1.bf16.msra.mxu0 %v3507
    %4639 = vmatprep.subr.bf16.mxu0 0
    %4640 = vmatpush1.bf16.msra.mxu0 %v3508
    %4641 = vmatprep.mubr.bf16.mxu0 %v1112
    %4642 = vmatmul.mubr.bf16.gmra.mrb[0].mxu0 %v1098
    %v4643 = vpop.f32.mrb[0].mxu0
    %v4644 = vadd.f32 %v4604, %v4643
    %v4645 = vpop.f32.mrb[0].mxu0
    %v4646 = vpop.f32.mrb[0].mxu0
    %v4647 = vpop.f32.mrb[0].mxu0
    %4648 = vdwg.mxu0
    %4649 = vmatprep.subr.bf16.mxu0 0
    %4650 = vmatpush1.bf16.msra.mxu0 %v3509
    %4651 = vmatprep.subr.bf16.mxu0 0
    %4652 = vmatpush1.bf16.msra.mxu0 %v3510
    %4653 = vmatprep.subr.bf16.mxu0 0
    %4654 = vmatpush1.bf16.msra.mxu0 %v3511
    %4655 = vmatprep.subr.bf16.mxu0 0
    %4656 = vmatpush1.bf16.msra.mxu0 %v3512
    %4657 = vmatprep.subr.bf16.mxu0 0
    %4658 = vmatpush1.bf16.msra.mxu0 %v3513
    %4659 = vmatprep.subr.bf16.mxu0 0
    %4660 = vmatpush1.bf16.msra.mxu0 %v3514
    %4661 = vmatprep.subr.bf16.mxu0 0
    %4662 = vmatpush1.bf16.msra.mxu0 %v3515
    %4663 = vmatprep.subr.bf16.mxu0 0
    %4664 = vmatpush1.bf16.msra.mxu0 %v3516
    %4665 = vmatprep.subr.bf16.mxu0 0
    %4666 = vmatpush1.bf16.msra.mxu0 %v3517
    %4667 = vmatprep.subr.bf16.mxu0 0
    %4668 = vmatpush1.bf16.msra.mxu0 %v3518
    %4669 = vmatprep.subr.bf16.mxu0 0
    %4670 = vmatpush1.bf16.msra.mxu0 %v3519
    %4671 = vmatprep.subr.bf16.mxu0 0
    %4672 = vmatpush1.bf16.msra.mxu0 %v3520
    %4673 = vmatprep.subr.bf16.mxu0 0
    %4674 = vmatpush1.bf16.msra.mxu0 %v3521
    %4675 = vmatprep.subr.bf16.mxu0 0
    %4676 = vmatpush1.bf16.msra.mxu0 %v3522
    %4677 = vmatprep.subr.bf16.mxu0 0
    %4678 = vmatpush1.bf16.msra.mxu0 %v3523
    %4679 = vmatprep.subr.bf16.mxu0 0
    %4680 = vmatpush1.bf16.msra.mxu0 %v3524
    %4681 = vmatprep.mubr.bf16.mxu0 %v1116
    %4682 = vmatmul.mubr.bf16.gmra.mrb[0].mxu0 %v1114
    %v4683 = vpop.f32.mrb[0].mxu0
    %v4684 = vadd.f32 %v4644, %v4683
    %v4685 = vpop.f32.mrb[0].mxu0
    %v4686 = vpop.f32.mrb[0].mxu0
    %v4687 = vpop.f32.mrb[0].mxu0
    %4688 = vdwg.mxu0
    %4689 = vmatprep.subr.bf16.mxu0 0
    %4690 = vmatpush1.bf16.msra.mxu0 %v3525
    %4691 = vmatprep.subr.bf16.mxu0 0
    %4692 = vmatpush1.bf16.msra.mxu0 %v3526
    %4693 = vmatprep.subr.bf16.mxu0 0
    %4694 = vmatpush1.bf16.msra.mxu0 %v3527
    %4695 = vmatprep.subr.bf16.mxu0 0
    %4696 = vmatpush1.bf16.msra.mxu0 %v3528
    %4697 = vmatprep.subr.bf16.mxu0 0
    %4698 = vmatpush1.bf16.msra.mxu0 %v3529
    %4699 = vmatprep.subr.bf16.mxu0 0
    %4700 = vmatpush1.bf16.msra.mxu0 %v3530
    %4701 = vmatprep.subr.bf16.mxu0 0
    %4702 = vmatpush1.bf16.msra.mxu0 %v3531
    %4703 = vmatprep.subr.bf16.mxu0 0
    %4704 = vmatpush1.bf16.msra.mxu0 %v3532
    %4705 = vmatprep.subr.bf16.mxu0 0
    %4706 = vmatpush1.bf16.msra.mxu0 %v3533
    %4707 = vmatprep.subr.bf16.mxu0 0
    %4708 = vmatpush1.bf16.msra.mxu0 %v3534
    %4709 = vmatprep.subr.bf16.mxu0 0
    %4710 = vmatpush1.bf16.msra.mxu0 %v3535
    %4711 = vmatprep.subr.bf16.mxu0 0
    %4712 = vmatpush1.bf16.msra.mxu0 %v3536
    %4713 = vmatprep.subr.bf16.mxu0 0
    %4714 = vmatpush1.bf16.msra.mxu0 %v3537
    %4715 = vmatprep.subr.bf16.mxu0 0
    %4716 = vmatpush1.bf16.msra.mxu0 %v3538
    %4717 = vmatprep.subr.bf16.mxu0 0
    %4718 = vmatpush1.bf16.msra.mxu0 %v3539
    %4719 = vmatprep.subr.bf16.mxu0 0
    %4720 = vmatpush1.bf16.msra.mxu0 %v3540
    %4721 = vmatprep.mubr.bf16.mxu0 %v1154
    %4722 = vmatmul.mubr.bf16.gmra.mrb[0].mxu0 %v1140
    %v4723 = vpop.f32.mrb[0].mxu0
    %v4724 = vadd.f32 %v4684, %v4723
    %v4725 = vpop.f32.mrb[0].mxu0
    %v4726 = vpop.f32.mrb[0].mxu0
    %v4727 = vpop.f32.mrb[0].mxu0
    %4728 = vdwg.mxu0
    %4729 = vmatprep.subr.bf16.mxu0 0
    %4730 = vmatpush1.bf16.msra.mxu0 %v3541
    %4731 = vmatprep.subr.bf16.mxu0 0
    %4732 = vmatpush1.bf16.msra.mxu0 %v3542
    %4733 = vmatprep.subr.bf16.mxu0 0
    %4734 = vmatpush1.bf16.msra.mxu0 %v3543
    %4735 = vmatprep.subr.bf16.mxu0 0
    %4736 = vmatpush1.bf16.msra.mxu0 %v3544
    %4737 = vmatprep.subr.bf16.mxu0 0
    %4738 = vmatpush1.bf16.msra.mxu0 %v3545
    %4739 = vmatprep.subr.bf16.mxu0 0
    %4740 = vmatpush1.bf16.msra.mxu0 %v3546
    %4741 = vmatprep.subr.bf16.mxu0 0
    %4742 = vmatpush1.bf16.msra.mxu0 %v3547
    %4743 = vmatprep.subr.bf16.mxu0 0
    %4744 = vmatpush1.bf16.msra.mxu0 %v3548
    %4745 = vmatprep.subr.bf16.mxu0 0
    %4746 = vmatpush1.bf16.msra.mxu0 %v3549
    %4747 = vmatprep.subr.bf16.mxu0 0
    %4748 = vmatpush1.bf16.msra.mxu0 %v3550
    %4749 = vmatprep.subr.bf16.mxu0 0
    %4750 = vmatpush1.bf16.msra.mxu0 %v3551
    %4751 = vmatprep.subr.bf16.mxu0 0
    %4752 = vmatpush1.bf16.msra.mxu0 %v3552
    %4753 = vmatprep.subr.bf16.mxu0 0
    %4754 = vmatpush1.bf16.msra.mxu0 %v3553
    %4755 = vmatprep.subr.bf16.mxu0 0
    %4756 = vmatpush1.bf16.msra.mxu0 %v3554
    %4757 = vmatprep.subr.bf16.mxu0 0
    %4758 = vmatpush1.bf16.msra.mxu0 %v3555
    %4759 = vmatprep.subr.bf16.mxu0 0
    %4760 = vmatpush1.bf16.msra.mxu0 %v3556
    %4761 = vmatprep.mubr.bf16.mxu0 %v1164
    %4762 = vmatmul.mubr.bf16.gmra.mrb[0].mxu0 %v1162
    %v4763 = vpop.f32.mrb[0].mxu0
    %v4764 = vadd.f32 %v4724, %v4763
    %v4765 = vpop.f32.mrb[0].mxu0
    %v4766 = vpop.f32.mrb[0].mxu0
    %v4767 = vpop.f32.mrb[0].mxu0
    %4768 = vdwg.mxu0
    %4769 = vmatprep.subr.bf16.mxu0 0
    %4770 = vmatpush1.bf16.msra.mxu0 %v3557
    %4771 = vmatprep.subr.bf16.mxu0 0
    %4772 = vmatpush1.bf16.msra.mxu0 %v3558
    %4773 = vmatprep.subr.bf16.mxu0 0
    %4774 = vmatpush1.bf16.msra.mxu0 %v3559
    %4775 = vmatprep.subr.bf16.mxu0 0
    %4776 = vmatpush1.bf16.msra.mxu0 %v3560
    %4777 = vmatprep.subr.bf16.mxu0 0
    %4778 = vmatpush1.bf16.msra.mxu0 %v3561
    %4779 = vmatprep.subr.bf16.mxu0 0
    %4780 = vmatpush1.bf16.msra.mxu0 %v3562
    %4781 = vmatprep.subr.bf16.mxu0 0
    %4782 = vmatpush1.bf16.msra.mxu0 %v3563
    %4783 = vmatprep.subr.bf16.mxu0 0
    %4784 = vmatpush1.bf16.msra.mxu0 %v3564
    %4785 = vmatprep.subr.bf16.mxu0 0
    %4786 = vmatpush1.bf16.msra.mxu0 %v3565
    %4787 = vmatprep.subr.bf16.mxu0 0
    %4788 = vmatpush1.bf16.msra.mxu0 %v3566
    %4789 = vmatprep.subr.bf16.mxu0 0
    %4790 = vmatpush1.bf16.msra.mxu0 %v3567
    %4791 = vmatprep.subr.bf16.mxu0 0
    %4792 = vmatpush1.bf16.msra.mxu0 %v3568
    %4793 = vmatprep.subr.bf16.mxu0 0
    %4794 = vmatpush1.bf16.msra.mxu0 %v3569
    %4795 = vmatprep.subr.bf16.mxu0 0
    %4796 = vmatpush1.bf16.msra.mxu0 %v3570
    %4797 = vmatprep.subr.bf16.mxu0 0
    %4798 = vmatpush1.bf16.msra.mxu0 %v3571
    %4799 = vmatprep.subr.bf16.mxu0 0
    %4800 = vmatpush1.bf16.msra.mxu0 %v3572
    %4801 = vmatprep.mubr.bf16.mxu0 %v1161
    %4802 = vmatmul.mubr.bf16.gmra.mrb[0].mxu0 %v1147
    %v4803 = vpop.f32.mrb[0].mxu0
    %v4804 = vadd.f32 %v4764, %v4803
    %v4805 = vpop.f32.mrb[0].mxu0
    %v4806 = vpop.f32.mrb[0].mxu0
    %v4807 = vpop.f32.mrb[0].mxu0
    %4808 = vdwg.mxu0
    %4809 = vmatprep.subr.bf16.mxu0 0
    %4810 = vmatpush1.bf16.msra.mxu0 %v3573
    %4811 = vmatprep.subr.bf16.mxu0 0
    %4812 = vmatpush1.bf16.msra.mxu0 %v3574
    %4813 = vmatprep.subr.bf16.mxu0 0
    %4814 = vmatpush1.bf16.msra.mxu0 %v3575
    %4815 = vmatprep.subr.bf16.mxu0 0
    %4816 = vmatpush1.bf16.msra.mxu0 %v3576
    %4817 = vmatprep.subr.bf16.mxu0 0
    %4818 = vmatpush1.bf16.msra.mxu0 %v3577
    %4819 = vmatprep.subr.bf16.mxu0 0
    %4820 = vmatpush1.bf16.msra.mxu0 %v3578
    %4821 = vmatprep.subr.bf16.mxu0 0
    %4822 = vmatpush1.bf16.msra.mxu0 %v3579
    %4823 = vmatprep.subr.bf16.mxu0 0
    %4824 = vmatpush1.bf16.msra.mxu0 %v3580
    %4825 = vmatprep.subr.bf16.mxu0 0
    %4826 = vmatpush1.bf16.msra.mxu0 %v3581
    %4827 = vmatprep.subr.bf16.mxu0 0
    %4828 = vmatpush1.bf16.msra.mxu0 %v3582
    %4829 = vmatprep.subr.bf16.mxu0 0
    %4830 = vmatpush1.bf16.msra.mxu0 %v3583
    %4831 = vmatprep.subr.bf16.mxu0 0
    %4832 = vmatpush1.bf16.msra.mxu0 %v3584
    %4833 = vmatprep.subr.bf16.mxu0 0
    %4834 = vmatpush1.bf16.msra.mxu0 %v3585
    %4835 = vmatprep.subr.bf16.mxu0 0
    %4836 = vmatpush1.bf16.msra.mxu0 %v3586
    %4837 = vmatprep.subr.bf16.mxu0 0
    %4838 = vmatpush1.bf16.msra.mxu0 %v3587
    %4839 = vmatprep.subr.bf16.mxu0 0
    %4840 = vmatpush1.bf16.msra.mxu0 %v3588
    %4841 = vmatprep.mubr.bf16.mxu0 %v1165
    %4842 = vmatmul.mubr.bf16.gmra.mrb[0].mxu0 %v1163
    %v4843 = vpop.f32.mrb[0].mxu0
    %v4844 = vadd.f32 %v4804, %v4843
    %v4845 = vpop.f32.mrb[0].mxu0
    %v4846 = vpop.f32.mrb[0].mxu0
    %v4847 = vpop.f32.mrb[0].mxu0
    %4848 = vdwg.mxu0
    %4849 = vmatprep.subr.bf16.mxu0 0
    %4850 = vmatpush1.bf16.msra.mxu0 %v3589
    %4851 = vmatprep.subr.bf16.mxu0 0
    %4852 = vmatpush1.bf16.msra.mxu0 %v3590
    %4853 = vmatprep.subr.bf16.mxu0 0
    %4854 = vmatpush1.bf16.msra.mxu0 %v3591
    %4855 = vmatprep.subr.bf16.mxu0 0
    %4856 = vmatpush1.bf16.msra.mxu0 %v3592
    %4857 = vmatprep.subr.bf16.mxu0 0
    %4858 = vmatpush1.bf16.msra.mxu0 %v3593
    %4859 = vmatprep.subr.bf16.mxu0 0
    %4860 = vmatpush1.bf16.msra.mxu0 %v3594
    %4861 = vmatprep.subr.bf16.mxu0 0
    %4862 = vmatpush1.bf16.msra.mxu0 %v3595
    %4863 = vmatprep.subr.bf16.mxu0 0
    %4864 = vmatpush1.bf16.msra.mxu0 %v3596
    %4865 = vmatprep.subr.bf16.mxu0 0
    %4866 = vmatpush1.bf16.msra.mxu0 %v3597
    %4867 = vmatprep.subr.bf16.mxu0 0
    %4868 = vmatpush1.bf16.msra.mxu0 %v3598
    %4869 = vmatprep.subr.bf16.mxu0 0
    %4870 = vmatpush1.bf16.msra.mxu0 %v3599
    %4871 = vmatprep.subr.bf16.mxu0 0
    %4872 = vmatpush1.bf16.msra.mxu0 %v3600
    %4873 = vmatprep.subr.bf16.mxu0 0
    %4874 = vmatpush1.bf16.msra.mxu0 %v3601
    %4875 = vmatprep.subr.bf16.mxu0 0
    %4876 = vmatpush1.bf16.msra.mxu0 %v3602
    %4877 = vmatprep.subr.bf16.mxu0 0
    %4878 = vmatpush1.bf16.msra.mxu0 %v3603
    %4879 = vmatprep.subr.bf16.mxu0 0
    %4880 = vmatpush1.bf16.msra.mxu0 %v3604
    %4881 = vmatprep.mubr.bf16.mxu0 %v1203
    %4882 = vmatmul.mubr.bf16.gmra.mrb[0].mxu0 %v1189
    %v4883 = vpop.f32.mrb[0].mxu0
    %v4884 = vadd.f32 %v4844, %v4883
    %v4885 = vpop.f32.mrb[0].mxu0
    %v4886 = vpop.f32.mrb[0].mxu0
    %v4887 = vpop.f32.mrb[0].mxu0
    %4888 = vdwg.mxu0
    %4889 = vmatprep.subr.bf16.mxu0 0
    %4890 = vmatpush1.bf16.msra.mxu0 %v3605
    %4891 = vmatprep.subr.bf16.mxu0 0
    %4892 = vmatpush1.bf16.msra.mxu0 %v3606
    %4893 = vmatprep.subr.bf16.mxu0 0
    %4894 = vmatpush1.bf16.msra.mxu0 %v3607
    %4895 = vmatprep.subr.bf16.mxu0 0
    %4896 = vmatpush1.bf16.msra.mxu0 %v3608
    %4897 = vmatprep.subr.bf16.mxu0 0
    %4898 = vmatpush1.bf16.msra.mxu0 %v3609
    %4899 = vmatprep.subr.bf16.mxu0 0
    %4900 = vmatpush1.bf16.msra.mxu0 %v3610
    %4901 = vmatprep.subr.bf16.mxu0 0
    %4902 = vmatpush1.bf16.msra.mxu0 %v3611
    %4903 = vmatprep.subr.bf16.mxu0 0
    %4904 = vmatpush1.bf16.msra.mxu0 %v3612
    %4905 = vmatprep.subr.bf16.mxu0 0
    %4906 = vmatpush1.bf16.msra.mxu0 %v3613
    %4907 = vmatprep.subr.bf16.mxu0 0
    %4908 = vmatpush1.bf16.msra.mxu0 %v3614
    %4909 = vmatprep.subr.bf16.mxu0 0
    %4910 = vmatpush1.bf16.msra.mxu0 %v3615
    %4911 = vmatprep.subr.bf16.mxu0 0
    %4912 = vmatpush1.bf16.msra.mxu0 %v3616
    %4913 = vmatprep.subr.bf16.mxu0 0
    %4914 = vmatpush1.bf16.msra.mxu0 %v3617
    %4915 = vmatprep.subr.bf16.mxu0 0
    %4916 = vmatpush1.bf16.msra.mxu0 %v3618
    %4917 = vmatprep.subr.bf16.mxu0 0
    %4918 = vmatpush1.bf16.msra.mxu0 %v3619
    %4919 = vmatprep.subr.bf16.mxu0 0
    %4920 = vmatpush1.bf16.msra.mxu0 %v3620
    %4921 = vmatprep.mubr.bf16.mxu0 %v1213
    %4922 = vmatmul.mubr.bf16.gmra.mrb[0].mxu0 %v1211
    %v4923 = vpop.f32.mrb[0].mxu0
    %v4924 = vadd.f32 %v4884, %v4923
    %v4925 = vpop.f32.mrb[0].mxu0
    %v4926 = vpop.f32.mrb[0].mxu0
    %v4927 = vpop.f32.mrb[0].mxu0
    %4928 = vdwg.mxu0
    %4929 = vmatprep.subr.bf16.mxu0 0
    %4930 = vmatpush1.bf16.msra.mxu0 %v3621
    %4931 = vmatprep.subr.bf16.mxu0 0
    %4932 = vmatpush1.bf16.msra.mxu0 %v3622
    %4933 = vmatprep.subr.bf16.mxu0 0
    %4934 = vmatpush1.bf16.msra.mxu0 %v3623
    %4935 = vmatprep.subr.bf16.mxu0 0
    %4936 = vmatpush1.bf16.msra.mxu0 %v3624
    %4937 = vmatprep.subr.bf16.mxu0 0
    %4938 = vmatpush1.bf16.msra.mxu0 %v3625
    %4939 = vmatprep.subr.bf16.mxu0 0
    %4940 = vmatpush1.bf16.msra.mxu0 %v3626
    %4941 = vmatprep.subr.bf16.mxu0 0
    %4942 = vmatpush1.bf16.msra.mxu0 %v3627
    %4943 = vmatprep.subr.bf16.mxu0 0
    %4944 = vmatpush1.bf16.msra.mxu0 %v3628
    %4945 = vmatprep.subr.bf16.mxu0 0
    %4946 = vmatpush1.bf16.msra.mxu0 %v3629
    %4947 = vmatprep.subr.bf16.mxu0 0
    %4948 = vmatpush1.bf16.msra.mxu0 %v3630
    %4949 = vmatprep.subr.bf16.mxu0 0
    %4950 = vmatpush1.bf16.msra.mxu0 %v3631
    %4951 = vmatprep.subr.bf16.mxu0 0
    %4952 = vmatpush1.bf16.msra.mxu0 %v3632
    %4953 = vmatprep.subr.bf16.mxu0 0
    %4954 = vmatpush1.bf16.msra.mxu0 %v3633
    %4955 = vmatprep.subr.bf16.mxu0 0
    %4956 = vmatpush1.bf16.msra.mxu0 %v3634
    %4957 = vmatprep.subr.bf16.mxu0 0
    %4958 = vmatpush1.bf16.msra.mxu0 %v3635
    %4959 = vmatprep.subr.bf16.mxu0 0
    %4960 = vmatpush1.bf16.msra.mxu0 %v3636
    %4961 = vmatprep.mubr.bf16.mxu0 %v1210
    %4962 = vmatmul.mubr.bf16.gmra.mrb[0].mxu0 %v1196
    %v4963 = vpop.f32.mrb[0].mxu0
    %v4964 = vadd.f32 %v4924, %v4963
    %v4965 = vpop.f32.mrb[0].mxu0
    %v4966 = vpop.f32.mrb[0].mxu0
    %v4967 = vpop.f32.mrb[0].mxu0
    %4968 = vdwg.mxu0
    %4969 = vmatprep.subr.bf16.mxu0 0
    %4970 = vmatpush1.bf16.msra.mxu0 %v3637
    %4971 = vmatprep.subr.bf16.mxu0 0
    %4972 = vmatpush1.bf16.msra.mxu0 %v3638
    %4973 = vmatprep.subr.bf16.mxu0 0
    %4974 = vmatpush1.bf16.msra.mxu0 %v3639
    %4975 = vmatprep.subr.bf16.mxu0 0
    %4976 = vmatpush1.bf16.msra.mxu0 %v3640
    %4977 = vmatprep.subr.bf16.mxu0 0
    %4978 = vmatpush1.bf16.msra.mxu0 %v3641
    %4979 = vmatprep.subr.bf16.mxu0 0
    %4980 = vmatpush1.bf16.msra.mxu0 %v3642
    %4981 = vmatprep.subr.bf16.mxu0 0
    %4982 = vmatpush1.bf16.msra.mxu0 %v3643
    %4983 = vmatprep.subr.bf16.mxu0 0
    %4984 = vmatpush1.bf16.msra.mxu0 %v3644
    %4985 = vmatprep.subr.bf16.mxu0 0
    %4986 = vmatpush1.bf16.msra.mxu0 %v3645
    %4987 = vmatprep.subr.bf16.mxu0 0
    %4988 = vmatpush1.bf16.msra.mxu0 %v3646
    %4989 = vmatprep.subr.bf16.mxu0 0
    %4990 = vmatpush1.bf16.msra.mxu0 %v3647
    %4991 = vmatprep.subr.bf16.mxu0 0
    %4992 = vmatpush1.bf16.msra.mxu0 %v3648
    %4993 = vmatprep.subr.bf16.mxu0 0
    %4994 = vmatpush1.bf16.msra.mxu0 %v3649
    %4995 = vmatprep.subr.bf16.mxu0 0
    %4996 = vmatpush1.bf16.msra.mxu0 %v3650
    %4997 = vmatprep.subr.bf16.mxu0 0
    %4998 = vmatpush1.bf16.msra.mxu0 %v3651
    %4999 = vmatprep.subr.bf16.mxu0 0
    %5000 = vmatpush1.bf16.msra.mxu0 %v3652
    %5001 = vmatprep.mubr.bf16.mxu0 %v1214
    %5002 = vmatmul.mubr.bf16.gmra.mrb[0].mxu0 %v1212
    %v5003 = vpop.f32.mrb[0].mxu0
    %v5004 = vadd.f32 %v4964, %v5003
    %v5005 = vpop.f32.mrb[0].mxu0
    %v5006 = vpop.f32.mrb[0].mxu0
    %v5007 = vpop.f32.mrb[0].mxu0
    %5008 = vdwg.mxu0
    %5009 = vmatprep.subr.bf16.mxu0 0
    %5010 = vmatpush1.bf16.msra.mxu0 %v3653
    %5011 = vmatprep.subr.bf16.mxu0 0
    %5012 = vmatpush1.bf16.msra.mxu0 %v3654
    %5013 = vmatprep.subr.bf16.mxu0 0
    %5014 = vmatpush1.bf16.msra.mxu0 %v3655
    %5015 = vmatprep.subr.bf16.mxu0 0
    %5016 = vmatpush1.bf16.msra.mxu0 %v3656
    %5017 = vmatprep.subr.bf16.mxu0 0
    %5018 = vmatpush1.bf16.msra.mxu0 %v3657
    %5019 = vmatprep.subr.bf16.mxu0 0
    %5020 = vmatpush1.bf16.msra.mxu0 %v3658
    %5021 = vmatprep.subr.bf16.mxu0 0
    %5022 = vmatpush1.bf16.msra.mxu0 %v3659
    %5023 = vmatprep.subr.bf16.mxu0 0
    %5024 = vmatpush1.bf16.msra.mxu0 %v3660
    %5025 = vmatprep.subr.bf16.mxu0 0
    %5026 = vmatpush1.bf16.msra.mxu0 %v3661
    %5027 = vmatprep.subr.bf16.mxu0 0
    %5028 = vmatpush1.bf16.msra.mxu0 %v3662
    %5029 = vmatprep.subr.bf16.mxu0 0
    %5030 = vmatpush1.bf16.msra.mxu0 %v3663
    %5031 = vmatprep.subr.bf16.mxu0 0
    %5032 = vmatpush1.bf16.msra.mxu0 %v3664
    %5033 = vmatprep.subr.bf16.mxu0 0
    %5034 = vmatpush1.bf16.msra.mxu0 %v3665
    %5035 = vmatprep.subr.bf16.mxu0 0
    %5036 = vmatpush1.bf16.msra.mxu0 %v3666
    %5037 = vmatprep.subr.bf16.mxu0 0
    %5038 = vmatpush1.bf16.msra.mxu0 %v3667
    %5039 = vmatprep.subr.bf16.mxu0 0
    %5040 = vmatpush1.bf16.msra.mxu0 %v3668
    %5041 = vmatprep.mubr.bf16.mxu0 %v1252
    %5042 = vmatmul.mubr.bf16.gmra.mrb[0].mxu0 %v1238
    %v5043 = vpop.f32.mrb[0].mxu0
    %v5044 = vadd.f32 %v5004, %v5043
    %v5045 = vpop.f32.mrb[0].mxu0
    %v5046 = vpop.f32.mrb[0].mxu0
    %v5047 = vpop.f32.mrb[0].mxu0
    %5048 = vdwg.mxu0
    %5049 = vmatprep.subr.bf16.mxu0 0
    %5050 = vmatpush1.bf16.msra.mxu0 %v3669
    %5051 = vmatprep.subr.bf16.mxu0 0
    %5052 = vmatpush1.bf16.msra.mxu0 %v3670
    %5053 = vmatprep.subr.bf16.mxu0 0
    %5054 = vmatpush1.bf16.msra.mxu0 %v3671
    %5055 = vmatprep.subr.bf16.mxu0 0
    %5056 = vmatpush1.bf16.msra.mxu0 %v3672
    %5057 = vmatprep.subr.bf16.mxu0 0
    %5058 = vmatpush1.bf16.msra.mxu0 %v3673
    %5059 = vmatprep.subr.bf16.mxu0 0
    %5060 = vmatpush1.bf16.msra.mxu0 %v3674
    %5061 = vmatprep.subr.bf16.mxu0 0
    %5062 = vmatpush1.bf16.msra.mxu0 %v3675
    %5063 = vmatprep.subr.bf16.mxu0 0
    %5064 = vmatpush1.bf16.msra.mxu0 %v3676
    %5065 = vmatprep.subr.bf16.mxu0 0
    %5066 = vmatpush1.bf16.msra.mxu0 %v3677
    %5067 = vmatprep.subr.bf16.mxu0 0
    %5068 = vmatpush1.bf16.msra.mxu0 %v3678
    %5069 = vmatprep.subr.bf16.mxu0 0
    %5070 = vmatpush1.bf16.msra.mxu0 %v3679
    %5071 = vmatprep.subr.bf16.mxu0 0
    %5072 = vmatpush1.bf16.msra.mxu0 %v3680
    %5073 = vmatprep.subr.bf16.mxu0 0
    %5074 = vmatpush1.bf16.msra.mxu0 %v3681
    %5075 = vmatprep.subr.bf16.mxu0 0
    %5076 = vmatpush1.bf16.msra.mxu0 %v3682
    %5077 = vmatprep.subr.bf16.mxu0 0
    %5078 = vmatpush1.bf16.msra.mxu0 %v3683
    %5079 = vmatprep.subr.bf16.mxu0 0
    %5080 = vmatpush1.bf16.msra.mxu0 %v3684
    %5081 = vmatprep.mubr.bf16.mxu0 %v1262
    %5082 = vmatmul.mubr.bf16.gmra.mrb[0].mxu0 %v1260
    %v5083 = vpop.f32.mrb[0].mxu0
    %v5084 = vadd.f32 %v5044, %v5083
    %v5085 = vpop.f32.mrb[0].mxu0
    %v5086 = vpop.f32.mrb[0].mxu0
    %v5087 = vpop.f32.mrb[0].mxu0
    %5088 = vdwg.mxu0
    %5089 = vmatprep.subr.bf16.mxu0 0
    %5090 = vmatpush1.bf16.msra.mxu0 %v3685
    %5091 = vmatprep.subr.bf16.mxu0 0
    %5092 = vmatpush1.bf16.msra.mxu0 %v3686
    %5093 = vmatprep.subr.bf16.mxu0 0
    %5094 = vmatpush1.bf16.msra.mxu0 %v3687
    %5095 = vmatprep.subr.bf16.mxu0 0
    %5096 = vmatpush1.bf16.msra.mxu0 %v3688
    %5097 = vmatprep.subr.bf16.mxu0 0
    %5098 = vmatpush1.bf16.msra.mxu0 %v3689
    %5099 = vmatprep.subr.bf16.mxu0 0
    %5100 = vmatpush1.bf16.msra.mxu0 %v3690
    %5101 = vmatprep.subr.bf16.mxu0 0
    %5102 = vmatpush1.bf16.msra.mxu0 %v3691
    %5103 = vmatprep.subr.bf16.mxu0 0
    %5104 = vmatpush1.bf16.msra.mxu0 %v3692
    %5105 = vmatprep.subr.bf16.mxu0 0
    %5106 = vmatpush1.bf16.msra.mxu0 %v3693
    %5107 = vmatprep.subr.bf16.mxu0 0
    %5108 = vmatpush1.bf16.msra.mxu0 %v3694
    %5109 = vmatprep.subr.bf16.mxu0 0
    %5110 = vmatpush1.bf16.msra.mxu0 %v3695
    %5111 = vmatprep.subr.bf16.mxu0 0
    %5112 = vmatpush1.bf16.msra.mxu0 %v3696
    %5113 = vmatprep.subr.bf16.mxu0 0
    %5114 = vmatpush1.bf16.msra.mxu0 %v3697
    %5115 = vmatprep.subr.bf16.mxu0 0
    %5116 = vmatpush1.bf16.msra.mxu0 %v3698
    %5117 = vmatprep.subr.bf16.mxu0 0
    %5118 = vmatpush1.bf16.msra.mxu0 %v3699
    %5119 = vmatprep.subr.bf16.mxu0 0
    %5120 = vmatpush1.bf16.msra.mxu0 %v3700
    %5121 = vmatprep.mubr.bf16.mxu0 %v1259
    %5122 = vmatmul.mubr.bf16.gmra.mrb[0].mxu0 %v1245
    %v5123 = vpop.f32.mrb[0].mxu0
    %v5124 = vadd.f32 %v5084, %v5123
    %v5125 = vpop.f32.mrb[0].mxu0
    %v5126 = vpop.f32.mrb[0].mxu0
    %v5127 = vpop.f32.mrb[0].mxu0
    %5128 = vdwg.mxu0
    %5129 = vmatprep.subr.bf16.mxu0 0
    %5130 = vmatpush1.bf16.msra.mxu0 %v3701
    %5131 = vmatprep.subr.bf16.mxu0 0
    %5132 = vmatpush1.bf16.msra.mxu0 %v3702
    %5133 = vmatprep.subr.bf16.mxu0 0
    %5134 = vmatpush1.bf16.msra.mxu0 %v3703
    %5135 = vmatprep.subr.bf16.mxu0 0
    %5136 = vmatpush1.bf16.msra.mxu0 %v3704
    %5137 = vmatprep.subr.bf16.mxu0 0
    %5138 = vmatpush1.bf16.msra.mxu0 %v3705
    %5139 = vmatprep.subr.bf16.mxu0 0
    %5140 = vmatpush1.bf16.msra.mxu0 %v3706
    %5141 = vmatprep.subr.bf16.mxu0 0
    %5142 = vmatpush1.bf16.msra.mxu0 %v3707
    %5143 = vmatprep.subr.bf16.mxu0 0
    %5144 = vmatpush1.bf16.msra.mxu0 %v3708
    %5145 = vmatprep.subr.bf16.mxu0 0
    %5146 = vmatpush1.bf16.msra.mxu0 %v3709
    %5147 = vmatprep.subr.bf16.mxu0 0
    %5148 = vmatpush1.bf16.msra.mxu0 %v3710
    %5149 = vmatprep.subr.bf16.mxu0 0
    %5150 = vmatpush1.bf16.msra.mxu0 %v3711
    %5151 = vmatprep.subr.bf16.mxu0 0
    %5152 = vmatpush1.bf16.msra.mxu0 %v3712
    %5153 = vmatprep.subr.bf16.mxu0 0
    %5154 = vmatpush1.bf16.msra.mxu0 %v3713
    %5155 = vmatprep.subr.bf16.mxu0 0
    %5156 = vmatpush1.bf16.msra.mxu0 %v3714
    %5157 = vmatprep.subr.bf16.mxu0 0
    %5158 = vmatpush1.bf16.msra.mxu0 %v3715
    %5159 = vmatprep.subr.bf16.mxu0 0
    %5160 = vmatpush1.bf16.msra.mxu0 %v3716
    %5161 = vmatprep.mubr.bf16.mxu0 %v1263
    %5162 = vmatmul.mubr.bf16.gmra.mrb[0].mxu0 %v1261
    %v5163 = vpop.f32.mrb[0].mxu0
    %v5164 = vadd.f32 %v5124, %v5163
    %v5165 = vpop.f32.mrb[0].mxu0
    %v5166 = vpop.f32.mrb[0].mxu0
    %v5167 = vpop.f32.mrb[0].mxu0
    %5168 = vdwg.mxu0
    %5169 = vmatprep.subr.bf16.mxu0 0
    %5170 = vmatpush1.bf16.msra.mxu0 %v3717
    %5171 = vmatprep.subr.bf16.mxu0 0
    %5172 = vmatpush1.bf16.msra.mxu0 %v3718
    %5173 = vmatprep.subr.bf16.mxu0 0
    %5174 = vmatpush1.bf16.msra.mxu0 %v3719
    %5175 = vmatprep.subr.bf16.mxu0 0
    %5176 = vmatpush1.bf16.msra.mxu0 %v3720
    %5177 = vmatprep.subr.bf16.mxu0 0
    %5178 = vmatpush1.bf16.msra.mxu0 %v3721
    %5179 = vmatprep.subr.bf16.mxu0 0
    %5180 = vmatpush1.bf16.msra.mxu0 %v3722
    %5181 = vmatprep.subr.bf16.mxu0 0
    %5182 = vmatpush1.bf16.msra.mxu0 %v3723
    %5183 = vmatprep.subr.bf16.mxu0 0
    %5184 = vmatpush1.bf16.msra.mxu0 %v3724
    %5185 = vmatprep.subr.bf16.mxu0 0
    %5186 = vmatpush1.bf16.msra.mxu0 %v3725
    %5187 = vmatprep.subr.bf16.mxu0 0
    %5188 = vmatpush1.bf16.msra.mxu0 %v3726
    %5189 = vmatprep.subr.bf16.mxu0 0
    %5190 = vmatpush1.bf16.msra.mxu0 %v3727
    %5191 = vmatprep.subr.bf16.mxu0 0
    %5192 = vmatpush1.bf16.msra.mxu0 %v3728
    %5193 = vmatprep.subr.bf16.mxu0 0
    %5194 = vmatpush1.bf16.msra.mxu0 %v3729
    %5195 = vmatprep.subr.bf16.mxu0 0
    %5196 = vmatpush1.bf16.msra.mxu0 %v3730
    %5197 = vmatprep.subr.bf16.mxu0 0
    %5198 = vmatpush1.bf16.msra.mxu0 %v3731
    %5199 = vmatprep.subr.bf16.mxu0 0
    %5200 = vmatpush1.bf16.msra.mxu0 %v3732
    %5201 = vmatprep.mubr.bf16.mxu0 %v1301
    %5202 = vmatmul.mubr.bf16.gmra.mrb[0].mxu0 %v1287
    %v5203 = vpop.f32.mrb[0].mxu0
    %v5204 = vadd.f32 %v5164, %v5203
    %v5205 = vpop.f32.mrb[0].mxu0
    %v5206 = vpop.f32.mrb[0].mxu0
    %v5207 = vpop.f32.mrb[0].mxu0
    %5208 = vdwg.mxu0
    %5209 = vmatprep.subr.bf16.mxu0 0
    %5210 = vmatpush1.bf16.msra.mxu0 %v3733
    %5211 = vmatprep.subr.bf16.mxu0 0
    %5212 = vmatpush1.bf16.msra.mxu0 %v3734
    %5213 = vmatprep.subr.bf16.mxu0 0
    %5214 = vmatpush1.bf16.msra.mxu0 %v3735
    %5215 = vmatprep.subr.bf16.mxu0 0
    %5216 = vmatpush1.bf16.msra.mxu0 %v3736
    %5217 = vmatprep.subr.bf16.mxu0 0
    %5218 = vmatpush1.bf16.msra.mxu0 %v3737
    %5219 = vmatprep.subr.bf16.mxu0 0
    %5220 = vmatpush1.bf16.msra.mxu0 %v3738
    %5221 = vmatprep.subr.bf16.mxu0 0
    %5222 = vmatpush1.bf16.msra.mxu0 %v3739
    %5223 = vmatprep.subr.bf16.mxu0 0
    %5224 = vmatpush1.bf16.msra.mxu0 %v3740
    %5225 = vmatprep.subr.bf16.mxu0 0
    %5226 = vmatpush1.bf16.msra.mxu0 %v3741
    %5227 = vmatprep.subr.bf16.mxu0 0
    %5228 = vmatpush1.bf16.msra.mxu0 %v3742
    %5229 = vmatprep.subr.bf16.mxu0 0
    %5230 = vmatpush1.bf16.msra.mxu0 %v3743
    %5231 = vmatprep.subr.bf16.mxu0 0
    %5232 = vmatpush1.bf16.msra.mxu0 %v3744
    %5233 = vmatprep.subr.bf16.mxu0 0
    %5234 = vmatpush1.bf16.msra.mxu0 %v3745
    %5235 = vmatprep.subr.bf16.mxu0 0
    %5236 = vmatpush1.bf16.msra.mxu0 %v3746
    %5237 = vmatprep.subr.bf16.mxu0 0
    %5238 = vmatpush1.bf16.msra.mxu0 %v3747
    %5239 = vmatprep.subr.bf16.mxu0 0
    %5240 = vmatpush1.bf16.msra.mxu0 %v3748
    %5241 = vmatprep.mubr.bf16.mxu0 %v1311
    %5242 = vmatmul.mubr.bf16.gmra.mrb[0].mxu0 %v1309
    %v5243 = vpop.f32.mrb[0].mxu0
    %v5244 = vadd.f32 %v5204, %v5243
    %v5245 = vpop.f32.mrb[0].mxu0
    %v5246 = vpop.f32.mrb[0].mxu0
    %v5247 = vpop.f32.mrb[0].mxu0
    %5248 = vdwg.mxu0
    %5249 = vmatprep.subr.bf16.mxu0 0
    %5250 = vmatpush1.bf16.msra.mxu0 %v3749
    %5251 = vmatprep.subr.bf16.mxu0 0
    %5252 = vmatpush1.bf16.msra.mxu0 %v3750
    %5253 = vmatprep.subr.bf16.mxu0 0
    %5254 = vmatpush1.bf16.msra.mxu0 %v3751
    %5255 = vmatprep.subr.bf16.mxu0 0
    %5256 = vmatpush1.bf16.msra.mxu0 %v3752
    %5257 = vmatprep.subr.bf16.mxu0 0
    %5258 = vmatpush1.bf16.msra.mxu0 %v3753
    %5259 = vmatprep.subr.bf16.mxu0 0
    %5260 = vmatpush1.bf16.msra.mxu0 %v3754
    %5261 = vmatprep.subr.bf16.mxu0 0
    %5262 = vmatpush1.bf16.msra.mxu0 %v3755
    %5263 = vmatprep.subr.bf16.mxu0 0
    %5264 = vmatpush1.bf16.msra.mxu0 %v3756
    %5265 = vmatprep.subr.bf16.mxu0 0
    %5266 = vmatpush1.bf16.msra.mxu0 %v3757
    %5267 = vmatprep.subr.bf16.mxu0 0
    %5268 = vmatpush1.bf16.msra.mxu0 %v3758
    %5269 = vmatprep.subr.bf16.mxu0 0
    %5270 = vmatpush1.bf16.msra.mxu0 %v3759
    %5271 = vmatprep.subr.bf16.mxu0 0
    %5272 = vmatpush1.bf16.msra.mxu0 %v3760
    %5273 = vmatprep.subr.bf16.mxu0 0
    %5274 = vmatpush1.bf16.msra.mxu0 %v3761
    %5275 = vmatprep.subr.bf16.mxu0 0
    %5276 = vmatpush1.bf16.msra.mxu0 %v3762
    %5277 = vmatprep.subr.bf16.mxu0 0
    %5278 = vmatpush1.bf16.msra.mxu0 %v3763
    %5279 = vmatprep.subr.bf16.mxu0 0
    %5280 = vmatpush1.bf16.msra.mxu0 %v3764
    %5281 = vmatprep.mubr.bf16.mxu0 %v1308
    %5282 = vmatmul.mubr.bf16.gmra.mrb[0].mxu0 %v1294
    %v5283 = vpop.f32.mrb[0].mxu0
    %v5284 = vadd.f32 %v5244, %v5283
    %v5285 = vpop.f32.mrb[0].mxu0
    %v5286 = vpop.f32.mrb[0].mxu0
    %v5287 = vpop.f32.mrb[0].mxu0
    %5288 = vdwg.mxu0
    %5289 = vmatprep.subr.bf16.mxu0 0
    %5290 = vmatpush1.bf16.msra.mxu0 %v3765
    %5291 = vmatprep.subr.bf16.mxu0 0
    %5292 = vmatpush1.bf16.msra.mxu0 %v3766
    %5293 = vmatprep.subr.bf16.mxu0 0
    %5294 = vmatpush1.bf16.msra.mxu0 %v3767
    %5295 = vmatprep.subr.bf16.mxu0 0
    %5296 = vmatpush1.bf16.msra.mxu0 %v3768
    %5297 = vmatprep.subr.bf16.mxu0 0
    %5298 = vmatpush1.bf16.msra.mxu0 %v3769
    %5299 = vmatprep.subr.bf16.mxu0 0
    %5300 = vmatpush1.bf16.msra.mxu0 %v3770
    %5301 = vmatprep.subr.bf16.mxu0 0
    %5302 = vmatpush1.bf16.msra.mxu0 %v3771
    %5303 = vmatprep.subr.bf16.mxu0 0
    %5304 = vmatpush1.bf16.msra.mxu0 %v3772
    %5305 = vmatprep.subr.bf16.mxu0 0
    %5306 = vmatpush1.bf16.msra.mxu0 %v3773
    %5307 = vmatprep.subr.bf16.mxu0 0
    %5308 = vmatpush1.bf16.msra.mxu0 %v3774
    %5309 = vmatprep.subr.bf16.mxu0 0
    %5310 = vmatpush1.bf16.msra.mxu0 %v3775
    %5311 = vmatprep.subr.bf16.mxu0 0
    %5312 = vmatpush1.bf16.msra.mxu0 %v3776
    %5313 = vmatprep.subr.bf16.mxu0 0
    %5314 = vmatpush1.bf16.msra.mxu0 %v3777
    %5315 = vmatprep.subr.bf16.mxu0 0
    %5316 = vmatpush1.bf16.msra.mxu0 %v3778
    %5317 = vmatprep.subr.bf16.mxu0 0
    %5318 = vmatpush1.bf16.msra.mxu0 %v3779
    %5319 = vmatprep.subr.bf16.mxu0 0
    %5320 = vmatpush1.bf16.msra.mxu0 %v3780
    %5321 = vmatprep.mubr.bf16.mxu0 %v1312
    %5322 = vmatmul.mubr.bf16.gmra.mrb[0].mxu0 %v1310
    %v5323 = vpop.f32.mrb[0].mxu0
    %v5324 = vadd.f32 %v5284, %v5323
    %v5325 = vpop.f32.mrb[0].mxu0
    %v5326 = vpop.f32.mrb[0].mxu0
    %v5327 = vpop.f32.mrb[0].mxu0
    %5328 = vdwg.mxu0
    %5329 = vmatprep.subr.bf16.mxu0 0
    %5330 = vmatpush1.bf16.msra.mxu0 %v3781
    %5331 = vmatprep.subr.bf16.mxu0 0
    %5332 = vmatpush1.bf16.msra.mxu0 %v3782
    %5333 = vmatprep.subr.bf16.mxu0 0
    %5334 = vmatpush1.bf16.msra.mxu0 %v3783
    %5335 = vmatprep.subr.bf16.mxu0 0
    %5336 = vmatpush1.bf16.msra.mxu0 %v3784
    %5337 = vmatprep.subr.bf16.mxu0 0
    %5338 = vmatpush1.bf16.msra.mxu0 %v3785
    %5339 = vmatprep.subr.bf16.mxu0 0
    %5340 = vmatpush1.bf16.msra.mxu0 %v3786
    %5341 = vmatprep.subr.bf16.mxu0 0
    %5342 = vmatpush1.bf16.msra.mxu0 %v3787
    %5343 = vmatprep.subr.bf16.mxu0 0
    %5344 = vmatpush1.bf16.msra.mxu0 %v3788
    %5345 = vmatprep.subr.bf16.mxu0 0
    %5346 = vmatpush1.bf16.msra.mxu0 %v3789
    %5347 = vmatprep.subr.bf16.mxu0 0
    %5348 = vmatpush1.bf16.msra.mxu0 %v3790
    %5349 = vmatprep.subr.bf16.mxu0 0
    %5350 = vmatpush1.bf16.msra.mxu0 %v3791
    %5351 = vmatprep.subr.bf16.mxu0 0
    %5352 = vmatpush1.bf16.msra.mxu0 %v3792
    %5353 = vmatprep.subr.bf16.mxu0 0
    %5354 = vmatpush1.bf16.msra.mxu0 %v3793
    %5355 = vmatprep.subr.bf16.mxu0 0
    %5356 = vmatpush1.bf16.msra.mxu0 %v3794
    %5357 = vmatprep.subr.bf16.mxu0 0
    %5358 = vmatpush1.bf16.msra.mxu0 %v3795
    %5359 = vmatprep.subr.bf16.mxu0 0
    %5360 = vmatpush1.bf16.msra.mxu0 %v3796
    %5361 = vmatprep.mubr.bf16.mxu0 %v1350
    %5362 = vmatmul.mubr.bf16.gmra.mrb[0].mxu0 %v1336
    %v5363 = vpop.f32.mrb[0].mxu0
    %v5364 = vadd.f32 %v5324, %v5363
    %v5365 = vpop.f32.mrb[0].mxu0
    %v5366 = vpop.f32.mrb[0].mxu0
    %v5367 = vpop.f32.mrb[0].mxu0
    %5368 = vdwg.mxu0
    %5369 = vmatprep.subr.bf16.mxu0 0
    %5370 = vmatpush1.bf16.msra.mxu0 %v3797
    %5371 = vmatprep.subr.bf16.mxu0 0
    %5372 = vmatpush1.bf16.msra.mxu0 %v3798
    %5373 = vmatprep.subr.bf16.mxu0 0
    %5374 = vmatpush1.bf16.msra.mxu0 %v3799
    %5375 = vmatprep.subr.bf16.mxu0 0
    %5376 = vmatpush1.bf16.msra.mxu0 %v3800
    %5377 = vmatprep.subr.bf16.mxu0 0
    %5378 = vmatpush1.bf16.msra.mxu0 %v3801
    %5379 = vmatprep.subr.bf16.mxu0 0
    %5380 = vmatpush1.bf16.msra.mxu0 %v3802
    %5381 = vmatprep.subr.bf16.mxu0 0
    %5382 = vmatpush1.bf16.msra.mxu0 %v3803
    %5383 = vmatprep.subr.bf16.mxu0 0
    %5384 = vmatpush1.bf16.msra.mxu0 %v3804
    %5385 = vmatprep.subr.bf16.mxu0 0
    %5386 = vmatpush1.bf16.msra.mxu0 %v3805
    %5387 = vmatprep.subr.bf16.mxu0 0
    %5388 = vmatpush1.bf16.msra.mxu0 %v3806
    %5389 = vmatprep.subr.bf16.mxu0 0
    %5390 = vmatpush1.bf16.msra.mxu0 %v3807
    %5391 = vmatprep.subr.bf16.mxu0 0
    %5392 = vmatpush1.bf16.msra.mxu0 %v3808
    %5393 = vmatprep.subr.bf16.mxu0 0
    %5394 = vmatpush1.bf16.msra.mxu0 %v3809
    %5395 = vmatprep.subr.bf16.mxu0 0
    %5396 = vmatpush1.bf16.msra.mxu0 %v3810
    %5397 = vmatprep.subr.bf16.mxu0 0
    %5398 = vmatpush1.bf16.msra.mxu0 %v3811
    %5399 = vmatprep.subr.bf16.mxu0 0
    %5400 = vmatpush1.bf16.msra.mxu0 %v3812
    %5401 = vmatprep.mubr.bf16.mxu0 %v1360
    %5402 = vmatmul.mubr.bf16.gmra.mrb[0].mxu0 %v1358
    %v5403 = vpop.f32.mrb[0].mxu0
    %v5404 = vadd.f32 %v5364, %v5403
    %v5405 = vpop.f32.mrb[0].mxu0
    %v5406 = vpop.f32.mrb[0].mxu0
    %v5407 = vpop.f32.mrb[0].mxu0
    %5408 = vdwg.mxu0
    %5409 = vmatprep.subr.bf16.mxu0 0
    %5410 = vmatpush1.bf16.msra.mxu0 %v3813
    %5411 = vmatprep.subr.bf16.mxu0 0
    %5412 = vmatpush1.bf16.msra.mxu0 %v3814
    %5413 = vmatprep.subr.bf16.mxu0 0
    %5414 = vmatpush1.bf16.msra.mxu0 %v3815
    %5415 = vmatprep.subr.bf16.mxu0 0
    %5416 = vmatpush1.bf16.msra.mxu0 %v3816
    %5417 = vmatprep.subr.bf16.mxu0 0
    %5418 = vmatpush1.bf16.msra.mxu0 %v3817
    %5419 = vmatprep.subr.bf16.mxu0 0
    %5420 = vmatpush1.bf16.msra.mxu0 %v3818
    %5421 = vmatprep.subr.bf16.mxu0 0
    %5422 = vmatpush1.bf16.msra.mxu0 %v3819
    %5423 = vmatprep.subr.bf16.mxu0 0
    %5424 = vmatpush1.bf16.msra.mxu0 %v3820
    %5425 = vmatprep.subr.bf16.mxu0 0
    %5426 = vmatpush1.bf16.msra.mxu0 %v3821
    %5427 = vmatprep.subr.bf16.mxu0 0
    %5428 = vmatpush1.bf16.msra.mxu0 %v3822
    %5429 = vmatprep.subr.bf16.mxu0 0
    %5430 = vmatpush1.bf16.msra.mxu0 %v3823
    %5431 = vmatprep.subr.bf16.mxu0 0
    %5432 = vmatpush1.bf16.msra.mxu0 %v3824
    %5433 = vmatprep.subr.bf16.mxu0 0
    %5434 = vmatpush1.bf16.msra.mxu0 %v3825
    %5435 = vmatprep.subr.bf16.mxu0 0
    %5436 = vmatpush1.bf16.msra.mxu0 %v3826
    %5437 = vmatprep.subr.bf16.mxu0 0
    %5438 = vmatpush1.bf16.msra.mxu0 %v3827
    %5439 = vmatprep.subr.bf16.mxu0 0
    %5440 = vmatpush1.bf16.msra.mxu0 %v3828
    %5441 = vmatprep.mubr.bf16.mxu0 %v1357
    %5442 = vmatmul.mubr.bf16.gmra.mrb[0].mxu0 %v1343
    %v5443 = vpop.f32.mrb[0].mxu0
    %v5444 = vadd.f32 %v5404, %v5443
    %v5445 = vpop.f32.mrb[0].mxu0
    %v5446 = vpop.f32.mrb[0].mxu0
    %v5447 = vpop.f32.mrb[0].mxu0
    %5448 = vdwg.mxu0
    %5449 = vmatprep.subr.bf16.mxu0 0
    %5450 = vmatpush1.bf16.msra.mxu0 %v3829
    %5451 = vmatprep.subr.bf16.mxu0 0
    %5452 = vmatpush1.bf16.msra.mxu0 %v3830
    %5453 = vmatprep.subr.bf16.mxu0 0
    %5454 = vmatpush1.bf16.msra.mxu0 %v3831
    %5455 = vmatprep.subr.bf16.mxu0 0
    %5456 = vmatpush1.bf16.msra.mxu0 %v3832
    %5457 = vmatprep.subr.bf16.mxu0 0
    %5458 = vmatpush1.bf16.msra.mxu0 %v3833
    %5459 = vmatprep.subr.bf16.mxu0 0
    %5460 = vmatpush1.bf16.msra.mxu0 %v3834
    %5461 = vmatprep.subr.bf16.mxu0 0
    %5462 = vmatpush1.bf16.msra.mxu0 %v3835
    %5463 = vmatprep.subr.bf16.mxu0 0
    %5464 = vmatpush1.bf16.msra.mxu0 %v3836
    %5465 = vmatprep.subr.bf16.mxu0 0
    %5466 = vmatpush1.bf16.msra.mxu0 %v3837
    %5467 = vmatprep.subr.bf16.mxu0 0
    %5468 = vmatpush1.bf16.msra.mxu0 %v3838
    %5469 = vmatprep.subr.bf16.mxu0 0
    %5470 = vmatpush1.bf16.msra.mxu0 %v3839
    %5471 = vmatprep.subr.bf16.mxu0 0
    %5472 = vmatpush1.bf16.msra.mxu0 %v3840
    %5473 = vmatprep.subr.bf16.mxu0 0
    %5474 = vmatpush1.bf16.msra.mxu0 %v3841
    %5475 = vmatprep.subr.bf16.mxu0 0
    %5476 = vmatpush1.bf16.msra.mxu0 %v3842
    %5477 = vmatprep.subr.bf16.mxu0 0
    %5478 = vmatpush1.bf16.msra.mxu0 %v3843
    %5479 = vmatprep.subr.bf16.mxu0 0
    %5480 = vmatpush1.bf16.msra.mxu0 %v3844
    %5481 = vmatprep.mubr.bf16.mxu0 %v1361
    %5482 = vmatmul.mubr.bf16.gmra.mrb[0].mxu0 %v1359
    %v5483 = vpop.f32.mrb[0].mxu0
    %v5484 = vadd.f32 %v5444, %v5483
    %v5485 = vpop.f32.mrb[0].mxu0
    %v5486 = vpop.f32.mrb[0].mxu0
    %v5487 = vpop.f32.mrb[0].mxu0
    %5488 = vdwg.mxu0
    %5489 = vmatprep.subr.bf16.mxu0 0
    %5490 = vmatpush1.bf16.msra.mxu0 %v3845
    %5491 = vmatprep.subr.bf16.mxu0 0
    %5492 = vmatpush1.bf16.msra.mxu0 %v3846
    %5493 = vmatprep.subr.bf16.mxu0 0
    %5494 = vmatpush1.bf16.msra.mxu0 %v3847
    %5495 = vmatprep.subr.bf16.mxu0 0
    %5496 = vmatpush1.bf16.msra.mxu0 %v3848
    %5497 = vmatprep.subr.bf16.mxu0 0
    %5498 = vmatpush1.bf16.msra.mxu0 %v3849
    %5499 = vmatprep.subr.bf16.mxu0 0
    %5500 = vmatpush1.bf16.msra.mxu0 %v3850
    %5501 = vmatprep.subr.bf16.mxu0 0
    %5502 = vmatpush1.bf16.msra.mxu0 %v3851
    %5503 = vmatprep.subr.bf16.mxu0 0
    %5504 = vmatpush1.bf16.msra.mxu0 %v3852
    %5505 = vmatprep.subr.bf16.mxu0 0
    %5506 = vmatpush1.bf16.msra.mxu0 %v3853
    %5507 = vmatprep.subr.bf16.mxu0 0
    %5508 = vmatpush1.bf16.msra.mxu0 %v3854
    %5509 = vmatprep.subr.bf16.mxu0 0
    %5510 = vmatpush1.bf16.msra.mxu0 %v3855
    %5511 = vmatprep.subr.bf16.mxu0 0
    %5512 = vmatpush1.bf16.msra.mxu0 %v3856
    %5513 = vmatprep.subr.bf16.mxu0 0
    %5514 = vmatpush1.bf16.msra.mxu0 %v3857
    %5515 = vmatprep.subr.bf16.mxu0 0
    %5516 = vmatpush1.bf16.msra.mxu0 %v3858
    %5517 = vmatprep.subr.bf16.mxu0 0
    %5518 = vmatpush1.bf16.msra.mxu0 %v3859
    %5519 = vmatprep.subr.bf16.mxu0 0
    %5520 = vmatpush1.bf16.msra.mxu0 %v3860
    %5521 = vmatprep.mubr.bf16.mxu0 %v1398
    %5522 = vmatmul.mubr.bf16.gmra.mrb[0].mxu0 %v1384
    %v5523 = vpop.f32.mrb[0].mxu0
    %v5524 = vadd.f32 %v5484, %v5523
    %v5525 = vpop.f32.mrb[0].mxu0
    %v5526 = vpop.f32.mrb[0].mxu0
    %v5527 = vpop.f32.mrb[0].mxu0
    %5528 = vdwg.mxu0
    %5529 = vmatprep.subr.bf16.mxu0 0
    %5530 = vmatpush1.bf16.msra.mxu0 %v3861
    %5531 = vmatprep.subr.bf16.mxu0 0
    %5532 = vmatpush1.bf16.msra.mxu0 %v3862
    %5533 = vmatprep.subr.bf16.mxu0 0
    %5534 = vmatpush1.bf16.msra.mxu0 %v3863
    %5535 = vmatprep.subr.bf16.mxu0 0
    %5536 = vmatpush1.bf16.msra.mxu0 %v3864
    %5537 = vmatprep.subr.bf16.mxu0 0
    %5538 = vmatpush1.bf16.msra.mxu0 %v3865
    %5539 = vmatprep.subr.bf16.mxu0 0
    %5540 = vmatpush1.bf16.msra.mxu0 %v3866
    %5541 = vmatprep.subr.bf16.mxu0 0
    %5542 = vmatpush1.bf16.msra.mxu0 %v3867
    %5543 = vmatprep.subr.bf16.mxu0 0
    %5544 = vmatpush1.bf16.msra.mxu0 %v3868
    %5545 = vmatprep.subr.bf16.mxu0 0
    %5546 = vmatpush1.bf16.msra.mxu0 %v3869
    %5547 = vmatprep.subr.bf16.mxu0 0
    %5548 = vmatpush1.bf16.msra.mxu0 %v3870
    %5549 = vmatprep.subr.bf16.mxu0 0
    %5550 = vmatpush1.bf16.msra.mxu0 %v3871
    %5551 = vmatprep.subr.bf16.mxu0 0
    %5552 = vmatpush1.bf16.msra.mxu0 %v3872
    %5553 = vmatprep.subr.bf16.mxu0 0
    %5554 = vmatpush1.bf16.msra.mxu0 %v3873
    %5555 = vmatprep.subr.bf16.mxu0 0
    %5556 = vmatpush1.bf16.msra.mxu0 %v3874
    %5557 = vmatprep.subr.bf16.mxu0 0
    %5558 = vmatpush1.bf16.msra.mxu0 %v3875
    %5559 = vmatprep.subr.bf16.mxu0 0
    %5560 = vmatpush1.bf16.msra.mxu0 %v3876
    %5561 = vmatprep.mubr.bf16.mxu0 %v1400
    %5562 = vmatmul.mubr.bf16.gmra.mrb[0].mxu0 %v1399
    %v5563 = vpop.f32.mrb[0].mxu0
    %v5564 = vadd.f32 %v5524, %v5563
    %v5565 = vpop.f32.mrb[0].mxu0
    %v5566 = vpop.f32.mrb[0].mxu0
    %v5567 = vpop.f32.mrb[0].mxu0
    %5568 = vdwg.mxu0
    %5569 = vmatprep.subr.bf16.mxu0 0
    %5570 = vmatpush1.bf16.msra.mxu0 %v3877
    %5571 = vmatprep.subr.bf16.mxu0 0
    %5572 = vmatpush1.bf16.msra.mxu0 %v3878
    %5573 = vmatprep.subr.bf16.mxu0 0
    %5574 = vmatpush1.bf16.msra.mxu0 %v3879
    %5575 = vmatprep.subr.bf16.mxu0 0
    %5576 = vmatpush1.bf16.msra.mxu0 %v3880
    %5577 = vmatprep.subr.bf16.mxu0 0
    %5578 = vmatpush1.bf16.msra.mxu0 0
    %5579 = vmatprep.subr.bf16.mxu0 0
    %5580 = vmatpush1.bf16.msra.mxu0 0
    %5581 = vmatprep.subr.bf16.mxu0 0
    %5582 = vmatpush1.bf16.msra.mxu0 0
    %5583 = vmatprep.subr.bf16.mxu0 0
    %5584 = vmatpush1.bf16.msra.mxu0 0
    %5585 = vmatprep.subr.bf16.mxu0 0
    %5586 = vmatpush1.bf16.msra.mxu0 0
    %5587 = vmatprep.subr.bf16.mxu0 0
    %5588 = vmatpush1.bf16.msra.mxu0 0
    %5589 = vmatprep.subr.bf16.mxu0 0
    %5590 = vmatpush1.bf16.msra.mxu0 0
    %5591 = vmatprep.subr.bf16.mxu0 0
    %5592 = vmatpush1.bf16.msra.mxu0 0
    %5593 = vmatprep.subr.bf16.mxu0 0
    %5594 = vmatpush1.bf16.msra.mxu0 0
    %5595 = vmatprep.subr.bf16.mxu0 0
    %5596 = vmatpush1.bf16.msra.mxu0 0
    %5597 = vmatprep.subr.bf16.mxu0 0
    %5598 = vmatpush1.bf16.msra.mxu0 0
    %5599 = vmatprep.subr.bf16.mxu0 0
    %5600 = vmatpush1.bf16.msra.mxu0 0
    %5601 = vmatprep.mubr.bf16.mxu0 0
    %5602 = vmatmul.mubr.bf16.gmra.mrb[0].mxu0 %v4367
    %v5603 = vpop.f32.mrb[0].mxu0
    %v5604 = vadd.f32 %v5564, %v5603
    %v5605 = vpop.f32.mrb[0].mxu0
    %v5606 = vpop.f32.mrb[0].mxu0
    %v5607 = vpop.f32.mrb[0].mxu0
    %5608 = vdwg.mxu0
    %v5609 = vmax.f32 %v5604, 0.0
    %v5610 = vpack.c.bf16 %v5609, %v5609
    %v5611 = vld [vmem:[%s3] sm:$0xf]
    %v5612 = vld [vmem:[%s3 + $0x4] sm:$0xf]
    %v5613 = vld [vmem:[%s3 + $0x8] sm:$0xf]
    %v5614 = vld [vmem:[%s3 + $0xc] sm:$0xf]
    %v5615 = vld [vmem:[%s3 + $0x10] sm:$0xf]
    %v5616 = vld [vmem:[%s3 + $0x14] sm:$0xf]
    %v5617 = vld [vmem:[%s3 + $0x18] sm:$0xf]
    %v5618 = vld [vmem:[%s3 + $0x1c] sm:$0xf]
    %v5619 = vld [vmem:[%s3 + $0x20] sm:$0xf]
    %v5620 = vld [vmem:[%s3 + $0x24] sm:$0xf]
    %v5621 = vld [vmem:[%s3 + $0x28] sm:$0xf]
    %v5622 = vld [vmem:[%s3 + $0x2c] sm:$0xf]
    %v5623 = vld [vmem:[%s3 + $0x30] sm:$0xf]
    %v5624 = vld [vmem:[%s3 + $0x34] sm:$0xf]
    %v5625 = vld [vmem:[%s3 + $0x38] sm:$0xf]
    %v5626 = vld [vmem:[%s4] sm:$0x1]
    %v5628 = vlaneseq
    %v5629 = vshrl.u32 %v5628, 7
    %v5630 = vsub.s32 0, %v5629
    %v5631 = vrot.slane %v5626, %v5630
    %v5648 = vunpack.c.l.b16 %v5611
    %v5649 = vunpack.c.l.b16 %v5612
    %v5650 = vunpack.c.l.b16 %v5613
    %v5651 = vunpack.c.l.b16 %v5614
    %v5652 = vunpack.c.l.b16 %v5615
    %v5653 = vunpack.c.l.b16 %v5616
    %v5654 = vunpack.c.l.b16 %v5617
    %v5655 = vunpack.c.l.b16 %v5618
    %v5656 = vunpack.c.l.b16 %v5619
    %v5657 = vunpack.c.l.b16 %v5620
    %v5658 = vunpack.c.l.b16 %v5621
    %v5659 = vunpack.c.l.b16 %v5622
    %v5660 = vunpack.c.l.b16 %v5623
    %v5661 = vunpack.c.l.b16 %v5624
    %v5662 = vunpack.c.l.b16 %v5625
    %v5663 = vpack.c.b16 %v5649, %v5648
    %v5664 = vpack.c.b16 %v5651, %v5650
    %v5665 = vpack.c.b16 %v5653, %v5652
    %v5666 = vpack.c.b16 %v5655, %v5654
    %v5667 = vpack.c.b16 %v5657, %v5656
    %v5668 = vpack.c.b16 %v5659, %v5658
    %v5669 = vpack.c.b16 %v5661, %v5660
    %v5670 = vpack.c.b16 %v5662, %v5662
    %vm5678 = vcmask 982016
    %v5680 = vsel %vm5678, %v5610, 0
    %vm5682 = vcmask 1043456
    %v5684 = vsel %vm5682, %v5670, 0
    %5686 = vmatprep.subr.bf16.mxu0 0
    %5687 = vmatpush1.bf16.msra.mxu0 %v5663
    %5688 = vmatprep.subr.bf16.mxu0 0
    %5689 = vmatpush1.bf16.msra.mxu0 %v5664
    %5690 = vmatprep.subr.bf16.mxu0 0
    %5691 = vmatpush1.bf16.msra.mxu0 %v5665
    %5692 = vmatprep.subr.bf16.mxu0 0
    %5693 = vmatpush1.bf16.msra.mxu0 %v5666
    %5694 = vmatprep.subr.bf16.mxu0 0
    %5695 = vmatpush1.bf16.msra.mxu0 %v5667
    %5696 = vmatprep.subr.bf16.mxu0 0
    %5697 = vmatpush1.bf16.msra.mxu0 %v5668
    %5698 = vmatprep.subr.bf16.mxu0 0
    %5699 = vmatpush1.bf16.msra.mxu0 %v5669
    %5700 = vmatprep.subr.bf16.mxu0 0
    %5701 = vmatpush1.bf16.msra.mxu0 %v5684
    %5702 = vmatprep.subr.bf16.mxu0 0
    %5703 = vmatpush1.bf16.msra.mxu0 0
    %5704 = vmatprep.subr.bf16.mxu0 0
    %5705 = vmatpush1.bf16.msra.mxu0 0
    %5706 = vmatprep.subr.bf16.mxu0 0
    %5707 = vmatpush1.bf16.msra.mxu0 0
    %5708 = vmatprep.subr.bf16.mxu0 0
    %5709 = vmatpush1.bf16.msra.mxu0 0
    %5710 = vmatprep.subr.bf16.mxu0 0
    %5711 = vmatpush1.bf16.msra.mxu0 0
    %5712 = vmatprep.subr.bf16.mxu0 0
    %5713 = vmatpush1.bf16.msra.mxu0 0
    %5714 = vmatprep.subr.bf16.mxu0 0
    %5715 = vmatpush1.bf16.msra.mxu0 0
    %5716 = vmatprep.subr.bf16.mxu0 0
    %5717 = vmatpush1.bf16.msra.mxu0 0
    %5718 = vmatprep.mubr.bf16.mxu0 0
    %5719 = vmatmul.mubr.bf16.gmra.mrb[0].mxu0 %v5680
    %v5720 = vpop.f32.mrb[0].mxu0
    %v5721 = vadd.f32 %v5631, %v5720
    %v5722 = vpop.f32.mrb[0].mxu0
    %v5723 = vpop.f32.mrb[0].mxu0
    %v5724 = vpop.f32.mrb[0].mxu0
    %5725 = vdwg.mxu0
    %v5726 = vmax.f32 %v5721, 0.0
    %v5727 = vpack.c.bf16 %v5726, %v5726
    %v5728 = vld [vmem:[%s5] sm:$0xf]
    %v5729 = vld [vmem:[%s5 + $0x4] sm:$0xf]
    %v5730 = vld [vmem:[%s5 + $0x8] sm:$0xf]
    %v5731 = vld [vmem:[%s5 + $0xc] sm:$0xf]
    %v5732 = vld [vmem:[%s5 + $0x10] sm:$0xf]
    %v5733 = vld [vmem:[%s5 + $0x14] sm:$0xf]
    %v5734 = vld [vmem:[%s5 + $0x18] sm:$0xf]
    %v5735 = vld [vmem:[%s5 + $0x1c] sm:$0xf]
    %v5736 = vld [vmem:[%s5 + $0x20] sm:$0xf]
    %v5737 = vld [vmem:[%s5 + $0x24] sm:$0xf]
    %v5738 = vld [vmem:[%s5 + $0x28] sm:$0x3]
    %v5739 = vld [vmem:[%s6] sm:$0x1]
    %v5741 = vlaneseq
    %v5742 = vshrl.u32 %v5741, 7
    %v5743 = vsub.s32 0, %v5742
    %v5744 = vrot.slane %v5739, %v5743
    %v5757 = vunpack.c.l.b16 %v5728
    %v5758 = vunpack.c.l.b16 %v5729
    %v5759 = vunpack.c.l.b16 %v5730
    %v5760 = vunpack.c.l.b16 %v5731
    %v5761 = vunpack.c.l.b16 %v5732
    %v5762 = vunpack.c.l.b16 %v5733
    %v5763 = vunpack.c.l.b16 %v5734
    %v5764 = vunpack.c.l.b16 %v5735
    %v5765 = vunpack.c.l.b16 %v5736
    %v5766 = vunpack.c.l.b16 %v5737
    %v5767 = vunpack.c.l.b16 %v5738
    %v5768 = vpack.c.b16 %v5758, %v5757
    %v5769 = vpack.c.b16 %v5760, %v5759
    %v5770 = vpack.c.b16 %v5762, %v5761
    %v5771 = vpack.c.b16 %v5764, %v5763
    %v5772 = vpack.c.b16 %v5766, %v5765
    %v5773 = vpack.c.b16 %v5767, %v5767
    %vm5779 = vcmask 687104
    %v5781 = vsel %vm5779, %v5727, 0
    %vm5783 = vcmask 1041408
    %v5785 = vsel %vm5783, %v5773, 0
    %5787 = vmatprep.subr.bf16.mxu0 0
    %5788 = vmatpush1.bf16.msra.mxu0 %v5768
    %5789 = vmatprep.subr.bf16.mxu0 0
    %5790 = vmatpush1.bf16.msra.mxu0 %v5769
    %5791 = vmatprep.subr.bf16.mxu0 0
    %5792 = vmatpush1.bf16.msra.mxu0 %v5770
    %5793 = vmatprep.subr.bf16.mxu0 0
    %5794 = vmatpush1.bf16.msra.mxu0 %v5771
    %5795 = vmatprep.subr.bf16.mxu0 0
    %5796 = vmatpush1.bf16.msra.mxu0 %v5772
    %5797 = vmatprep.subr.bf16.mxu0 0
    %5798 = vmatpush1.bf16.msra.mxu0 %v5785
    %5799 = vmatprep.subr.bf16.mxu0 0
    %5800 = vmatpush1.bf16.msra.mxu0 0
    %5801 = vmatprep.subr.bf16.mxu0 0
    %5802 = vmatpush1.bf16.msra.mxu0 0
    %5803 = vmatprep.subr.bf16.mxu0 0
    %5804 = vmatpush1.bf16.msra.mxu0 0
    %5805 = vmatprep.subr.bf16.mxu0 0
    %5806 = vmatpush1.bf16.msra.mxu0 0
    %5807 = vmatprep.subr.bf16.mxu0 0
    %5808 = vmatpush1.bf16.msra.mxu0 0
    %5809 = vmatprep.subr.bf16.mxu0 0
    %5810 = vmatpush1.bf16.msra.mxu0 0
    %5811 = vmatprep.subr.bf16.mxu0 0
    %5812 = vmatpush1.bf16.msra.mxu0 0
    %5813 = vmatprep.subr.bf16.mxu0 0
    %5814 = vmatpush1.bf16.msra.mxu0 0
    %5815 = vmatprep.subr.bf16.mxu0 0
    %5816 = vmatpush1.bf16.msra.mxu0 0
    %5817 = vmatprep.subr.bf16.mxu0 0
    %5818 = vmatpush1.bf16.msra.mxu0 0
    %5819 = vmatprep.mubr.bf16.mxu0 0
    %5820 = vmatmul.mubr.bf16.gmra.mrb[0].mxu0 %v5781
    %v5821 = vpop.f32.mrb[0].mxu0
    %v5822 = vadd.f32 %v5744, %v5821
    %v5823 = vpop.f32.mrb[0].mxu0
    %v5824 = vpop.f32.mrb[0].mxu0
    %v5825 = vpop.f32.mrb[0].mxu0
    %5826 = vdwg.mxu0
    %vm5827 = vcmask 74752
    %5828 = vst.msk [vmem:[#allocation2] sm:$0x3] %vm5827, %v5822
    // Predicated region
    $region30: #{net_forward.5} parent=1 // pred_check
      _
    $region31: #{net_forward.5} parent=1 // pred_check_branch
      %5830 = sbr.rel (0) target = $region33
    $region32: #{net_forward.5} parent=1 // pred_region
      %s5832 = ssub.s32 32, 32
      %5833 = vsyncadd [#allocation3], %s5832
      %s5835 = sshll.u32 [#allocation2], 4
      %s5836 = int_to_ptr.vmem [resolvable:$true] %s5835
      %5838 = dma.vmem_to_hbm [thread:$0]  %s5836, 32, %s7, [#allocation3]
    $region33: #{net_forward.5} parent=1 // pred_fallthru
      _
    // Predicated region
    $region34: #{net_forward.5} parent=1 // pred_check
      _
    $region35: #{net_forward.5} parent=1 // pred_check_branch
      %5840 = sbr.rel (0) target = $region37
    $region36: #{net_forward.5} parent=1 // pred_region
      %5841 = dma.done [#allocation3], 32
    $region37: #{net_forward.5} parent=1 // pred_fallthru
      _
    %5842 = vsyncpa [#allocation3], 1

</llo_original>
